<compile_context>
chip_gen: v7x
topology: tpu7x:2x2x1
jax: 0.10.0
libtpu: 0.0.40
codegen_flags: <defaults>
</compile_context>

<pallas_src>
import functools

import jax
import jax.numpy as jnp
from jax.experimental import pallas as pl
from jax.experimental.pallas import tpu as pltpu


# ----------------------------------------------------------------------------
# One encoder block in flat-spatial layout: Conv3x3(pad=1)+bias+ReLU+MaxPool2x2
# ----------------------------------------------------------------------------
def _conv_pool_block(pad_ref, conv_ref, w_ref, b_ref, Hb, Wb, emit_pooled):
    """pad_ref : ((Hb+4)*(Wb+2), Cin) zero-padded input; flat row = prow*(Wb+2)+col,
                 image row r lives at padded row r+2, columns 1..Wb
                 (one extra guard row top/bottom keeps the shifted slices in-bounds).
       conv_ref: (Hb*(Wb+2), Cout)    conv+ReLU band; output (r, c) at row r*(Wb+2)+c+1.
       emit_pooled(ip, pooled) is called per pooled row with pooled of shape (Wb//2, Cout).
    """
    Wp = Wb + 2
    L = Hb * Wp

    # 3x3 conv = 9 whole-plane matmuls on shifted flat slices (MXU).
    band = None
    for kh in range(3):
        for kw in range(3):
            seg = pad_ref[pl.ds((kh + 1) * Wp + kw - 1, L), :]          # (L, Cin)
            contrib = jnp.dot(seg, w_ref[kh * 3 + kw],
                              preferred_element_type=jnp.float32)       # (L, Cout)
            band = contrib if band is None else band + contrib
    conv_ref[...] = jnp.maximum(band + b_ref[...], 0.0)                 # bias + ReLU once

    # 2x2 max pool: 4 strided row reads per pooled row (valid columns only).
    Ho, Wo = Hb // 2, Wb // 2
    for ip in range(Ho):
        r0 = (2 * ip) * Wp
        r1 = (2 * ip + 1) * Wp
        if Wo > 1:
            a = conv_ref[pl.ds(r0 + 1, Wo, 2), :]
            b = conv_ref[pl.ds(r0 + 2, Wo, 2), :]
            c = conv_ref[pl.ds(r1 + 1, Wo, 2), :]
            d = conv_ref[pl.ds(r1 + 2, Wo, 2), :]
        else:
            a = conv_ref[pl.ds(r0 + 1, 1), :]
            b = conv_ref[pl.ds(r0 + 2, 1), :]
            c = conv_ref[pl.ds(r1 + 1, 1), :]
            d = conv_ref[pl.ds(r1 + 2, 1), :]
        pooled = jnp.maximum(jnp.maximum(a, b), jnp.maximum(c, d))      # (Wo, Cout)
        emit_pooled(ip, pooled)


# ----------------------------------------------------------------------------
# Fused forward kernel: 4 encoder blocks + activation map, one batch element.
# ----------------------------------------------------------------------------
def fused_kernel(x_ref, w1, b1, w2, b2, w3, b3, w4, b4,
                 feat_ref, am_ref,
                 padf1, convf1, padf2, convf2, padf3, convf3, padf4, convf4,
                 m1f, m2f, m3f, *, H, W):
    # Zero padded scratches (pad ring + guard rows must be 0; interiors get overwritten).
    for r in (padf1, padf2, padf3, padf4):
        r[...] = jnp.zeros_like(r)

    # Write the input image into block-1's padded scratch interior.
    Wp1 = W + 2
    for i in range(H):
        padf1[pl.ds((i + 2) * Wp1 + 1, W), :] = x_ref[0, pl.ds(i * W, W), :]

    # Sink for blocks 1-3: pooled row -> next block's padded interior + channel-mean map.
    def mid_sink(next_pad_ref, mean_ref, Wo):
        Wpn = Wo + 2
        def emit(ip, pooled):
            next_pad_ref[pl.ds((ip + 2) * Wpn + 1, Wo), :] = pooled
            mean_ref[pl.ds(ip * Wo, Wo), :] = jnp.mean(pooled, axis=-1, keepdims=True)
        return emit

    _conv_pool_block(padf1, convf1, w1, b1, H, W, mid_sink(padf2, m1f, W // 2))
    _conv_pool_block(padf2, convf2, w2, b2, H // 2, W // 2, mid_sink(padf3, m2f, W // 4))
    _conv_pool_block(padf3, convf3, w3, b3, H // 4, W // 4, mid_sink(padf4, m3f, W // 8))

    # Block 4: pooled output (1, C4) IS the feature vector; out4 mean is unused -> skipped.
    def feat_sink(ip, pooled):
        feat_ref[0] = pooled
    _conv_pool_block(padf4, convf4, w4, b4, H // 8, W // 8, feat_sink)

    # Activation map in flat (H*W, 1) form:
    #   am[p] = mean_c(x)[p] * m1[p>>1-grid] * m2[p>>2-grid] * m3[p>>3-grid]
    HW = H * W
    log_w = W.bit_length() - 1

    def upsample_flat(m_ref, Hs, Ws):
        S = Hs * Ws
        log_fh = (H // Hs).bit_length() - 1
        log_fw = (W // Ws).bit_length() - 1
        p = jax.lax.broadcasted_iota(jnp.int32, (HW, S), 0)
        q = jax.lax.broadcasted_iota(jnp.int32, (HW, S), 1)
        i_src = p >> (log_w + log_fh)                 # (p // W) // fh
        j_src = (p & (W - 1)) >> log_fw               # (p %  W) // fw
        sel = jnp.where(q == i_src * Ws + j_src, 1.0, 0.0).astype(jnp.float32)
        return jnp.dot(sel, m_ref[...], preferred_element_type=jnp.float32)   # (HW, 1)

    out0f = jnp.mean(x_ref[0], axis=-1, keepdims=True)                # (HW, 1)
    u1 = upsample_flat(m1f, H // 2, W // 2)
    u2 = upsample_flat(m2f, H // 4, W // 4)
    u3 = upsample_flat(m3f, H // 8, W // 8)
    am_ref[0] = out0f * u1 * u2 * u3


# ----------------------------------------------------------------------------
# Wrapper
# ----------------------------------------------------------------------------
def salient_raga_forward(x_nchw, params):
    """Returns (features (B, C4), activation_map (1, B, H, W))."""
    x = jnp.transpose(x_nchw, (0, 2, 3, 1)).astype(jnp.float32)       # NCHW -> NHWC
    B, H, W, Cin = x.shape
    assert H % 16 == 0 and W % 16 == 0
    assert (H & (H - 1)) == 0 and (W & (W - 1)) == 0                  # shift-based indexing

    xf = x.reshape(B, H * W, Cin)
    flat_params = []
    for (w, b) in params:
        flat_params += [w.reshape(9, w.shape[2], w.shape[3]), b.reshape(1, -1)]
    C1, C2, C3, C4 = [w.shape[3] for (w, _) in params]
    H2, W2, H3, W3, H4, W4 = H // 2, W // 2, H // 4, W // 4, H // 8, W // 8

    def pad_rows(h, w): return (h + 4) * (w + 2)
    def band_rows(h, w): return h * (w + 2)

    scratch = [
        pltpu.VMEM((pad_rows(H, W), Cin), jnp.float32),
        pltpu.VMEM((band_rows(H, W), C1), jnp.float32),
        pltpu.VMEM((pad_rows(H2, W2), C1), jnp.float32),
        pltpu.VMEM((band_rows(H2, W2), C2), jnp.float32),
        pltpu.VMEM((pad_rows(H3, W3), C2), jnp.float32),
        pltpu.VMEM((band_rows(H3, W3), C3), jnp.float32),
        pltpu.VMEM((pad_rows(H4, W4), C3), jnp.float32),
        pltpu.VMEM((band_rows(H4, W4), C4), jnp.float32),
        pltpu.VMEM((H2 * W2, 1), jnp.float32),   # channel mean after block 1 (out1)
        pltpu.VMEM((H3 * W3, 1), jnp.float32),   # out2
        pltpu.VMEM((H4 * W4, 1), jnp.float32),   # out3
    ]

    kernel = functools.partial(fused_kernel, H=H, W=W)
    feat3, amf = pl.pallas_call(
        kernel,
        out_shape=(
            jax.ShapeDtypeStruct((B, 1, C4), jnp.float32),
            jax.ShapeDtypeStruct((B, H * W, 1), jnp.float32),
        ),
        grid_spec=pltpu.PrefetchScalarGridSpec(
            num_scalar_prefetch=0,
            grid=(B,),
            in_specs=[
                pl.BlockSpec((1, H * W, Cin), lambda i: (i, 0, 0)),
                pl.BlockSpec((9, Cin, C1), lambda i: (0, 0, 0)),
                pl.BlockSpec((1, C1), lambda i: (0, 0)),
                pl.BlockSpec((9, C1, C2), lambda i: (0, 0, 0)),
                pl.BlockSpec((1, C2), lambda i: (0, 0)),
                pl.BlockSpec((9, C2, C3), lambda i: (0, 0, 0)),
                pl.BlockSpec((1, C3), lambda i: (0, 0)),
                pl.BlockSpec((9, C3, C4), lambda i: (0, 0, 0)),
                pl.BlockSpec((1, C4), lambda i: (0, 0)),
            ],
            out_specs=[
                pl.BlockSpec((1, 1, C4), lambda i: (i, 0, 0)),
                pl.BlockSpec((1, H * W, 1), lambda i: (i, 0, 0)),
            ],
            scratch_shapes=scratch,
        ),
        compiler_params=pltpu.CompilerParams(dimension_semantics=("parallel",)),
    )(xf, *flat_params)

    feat = feat3.reshape(B, C4)                 # == torch x.view(B, -1) (spatial is 1x1)
    am = amf[..., 0].reshape(B, H, W)[None]     # (1, B, H, W)
    return feat, am


# ----------------------------------------------------------------------------
# Deterministic parameter init + pure-JAX reference for verification
# ----------------------------------------------------------------------------
def init_params(key, cin, channels=(8, 16, 32, 64)):
    params = []
    c_prev = cin
    for c in channels:
        key, k1, k2 = jax.random.split(key, 3)
        w = jax.random.normal(k1, (3, 3, c_prev, c), dtype=jnp.float32)
        w = w / jnp.sqrt(9.0 * c_prev)
        b = 0.05 * jax.random.normal(k2, (c,), dtype=jnp.float32)
        params.append((w, b))
        c_prev = c
    return params


def reference_forward(x_nchw, params):
    x = x_nchw
    out0 = jnp.mean(x, axis=1)[None]
    cur = x
    means = []
    for (w, b) in params:
        cur = jax.lax.conv_general_dilated(
            cur, w, (1, 1), "SAME",
            dimension_numbers=("NCHW", "HWIO", "NCHW")) + b[None, :, None, None]
        cur = jnp.maximum(cur, 0.0)
        Bn, C, Hc, Wc = cur.shape
        cur = cur.reshape(Bn, C, Hc // 2, 2, Wc // 2, 2).max(axis=(3, 5))
        means.append(jnp.mean(cur, axis=1)[None])
    out1, out2, out3, _out4 = means
    feat = cur.reshape(cur.shape[0], -1)

    def up(a, f):
        return jnp.repeat(jnp.repeat(a, f, axis=-2), f, axis=-1)

    am = up(up(up(out3, 2) * out2, 2) * out1, 2) * out0
    return feat, am


if __name__ == "__main__":
    key = jax.random.PRNGKey(0)
    kx, kp = jax.random.split(key)
    B, Cin, H, W = 2, 4, 16, 16
    x = jax.random.normal(kx, (B, Cin, H, W), dtype=jnp.float32)   # NCHW input
    params = init_params(kp, Cin)

    feat, am = salient_raga_forward(x, params)
    jax.block_until_ready((feat, am))

    feat_ref, am_ref = reference_forward(x, params)
    assert feat.shape == feat_ref.shape, (feat.shape, feat_ref.shape)
    assert am.shape == am_ref.shape, (am.shape, am_ref.shape)
    assert jnp.allclose(feat, feat_ref, atol=1e-4, rtol=1e-4)
    assert jnp.allclose(am, am_ref, atol=1e-4, rtol=1e-4)
    print("KERNEL_OK")
</pallas_src>

<mosaic_0001>
module attributes {stable_mosaic.version = 11 : i64} {
  func.func @fused_kernel(%arg0: i32, %arg1: memref<1x256x4xf32, #tpu.memory_space<vmem>>, %arg2: memref<9x4x8xf32, #tpu.memory_space<vmem>>, %arg3: memref<1x8xf32, #tpu.memory_space<vmem>>, %arg4: memref<9x8x16xf32, #tpu.memory_space<vmem>>, %arg5: memref<1x16xf32, #tpu.memory_space<vmem>>, %arg6: memref<9x16x32xf32, #tpu.memory_space<vmem>>, %arg7: memref<1x32xf32, #tpu.memory_space<vmem>>, %arg8: memref<9x32x64xf32, #tpu.memory_space<vmem>>, %arg9: memref<1x64xf32, #tpu.memory_space<vmem>>, %arg10: memref<1x1x64xf32, #tpu.memory_space<vmem>>, %arg11: memref<1x256x1xf32, #tpu.memory_space<vmem>>, %arg12: memref<360x4xf32, #tpu.memory_space<vmem>>, %arg13: memref<288x8xf32, #tpu.memory_space<vmem>>, %arg14: memref<120x8xf32, #tpu.memory_space<vmem>>, %arg15: memref<80x16xf32, #tpu.memory_space<vmem>>, %arg16: memref<48x16xf32, #tpu.memory_space<vmem>>, %arg17: memref<24x32xf32, #tpu.memory_space<vmem>>, %arg18: memref<24x32xf32, #tpu.memory_space<vmem>>, %arg19: memref<8x64xf32, #tpu.memory_space<vmem>>, %arg20: memref<64x1xf32, #tpu.memory_space<vmem>>, %arg21: memref<16x1xf32, #tpu.memory_space<vmem>>, %arg22: memref<4x1xf32, #tpu.memory_space<vmem>>) attributes {dimension_semantics = [#tpu.dimension_semantics<parallel>], iteration_bounds = array<i64: 2>, scalar_prefetch = 0 : i64, scratch_operands = 11 : i64, tpu.core_type = #tpu.core_type<tc>, window_params = [{transform_indices = @transform_0, window_bounds = array<i64: 1, 256, 4>}, {pipeline_mode = #tpu.pipeline_mode<synchronous>, transform_indices = @transform_1, window_bounds = array<i64: 9, 4, 8>}, {pipeline_mode = #tpu.pipeline_mode<synchronous>, transform_indices = @transform_2, window_bounds = array<i64: 1, 8>}, {pipeline_mode = #tpu.pipeline_mode<synchronous>, transform_indices = @transform_3, window_bounds = array<i64: 9, 8, 16>}, {pipeline_mode = #tpu.pipeline_mode<synchronous>, transform_indices = @transform_4, window_bounds = array<i64: 1, 16>}, {pipeline_mode = #tpu.pipeline_mode<synchronous>, transform_indices = @transform_5, window_bounds = array<i64: 9, 16, 32>}, {pipeline_mode = #tpu.pipeline_mode<synchronous>, transform_indices = @transform_6, window_bounds = array<i64: 1, 32>}, {pipeline_mode = #tpu.pipeline_mode<synchronous>, transform_indices = @transform_7, window_bounds = array<i64: 9, 32, 64>}, {pipeline_mode = #tpu.pipeline_mode<synchronous>, transform_indices = @transform_8, window_bounds = array<i64: 1, 64>}, {transform_indices = @transform_9, window_bounds = array<i64: 1, 1, 64>}, {transform_indices = @transform_10, window_bounds = array<i64: 1, 256, 1>}]} {
    %cst = arith.constant 0.000000e+00 : f32
    %0 = vector.broadcast %cst : f32 to vector<360x4xf32>
    %c0 = arith.constant 0 : index
    %c0_0 = arith.constant 0 : index
    %1 = vector.load %arg12[%c0, %c0_0] : memref<360x4xf32, #tpu.memory_space<vmem>>, vector<360x4xf32>
    tpu.vector_store %arg12[%c0, %c0_0], %0 {strides = array<i32>} : memref<360x4xf32, #tpu.memory_space<vmem>>, vector<360x4xf32>,
    %cst_1 = arith.constant 0.000000e+00 : f32
    %2 = vector.broadcast %cst_1 : f32 to vector<120x8xf32>
    %c0_2 = arith.constant 0 : index
    %c0_3 = arith.constant 0 : index
    %3 = vector.load %arg14[%c0_2, %c0_3] : memref<120x8xf32, #tpu.memory_space<vmem>>, vector<120x8xf32>
    tpu.vector_store %arg14[%c0_2, %c0_3], %2 {strides = array<i32>} : memref<120x8xf32, #tpu.memory_space<vmem>>, vector<120x8xf32>,
    %cst_4 = arith.constant 0.000000e+00 : f32
    %4 = vector.broadcast %cst_4 : f32 to vector<48x16xf32>
    %c0_5 = arith.constant 0 : index
    %c0_6 = arith.constant 0 : index
    %5 = vector.load %arg16[%c0_5, %c0_6] : memref<48x16xf32, #tpu.memory_space<vmem>>, vector<48x16xf32>
    tpu.vector_store %arg16[%c0_5, %c0_6], %4 {strides = array<i32>} : memref<48x16xf32, #tpu.memory_space<vmem>>, vector<48x16xf32>,
    %cst_7 = arith.constant 0.000000e+00 : f32
    %6 = vector.broadcast %cst_7 : f32 to vector<24x32xf32>
    %c0_8 = arith.constant 0 : index
    %c0_9 = arith.constant 0 : index
    %7 = vector.load %arg18[%c0_8, %c0_9] : memref<24x32xf32, #tpu.memory_space<vmem>>, vector<24x32xf32>
    tpu.vector_store %arg18[%c0_8, %c0_9], %6 {strides = array<i32>} : memref<24x32xf32, #tpu.memory_space<vmem>>, vector<24x32xf32>,
    %c0_10 = arith.constant 0 : index
    %c0_11 = arith.constant 0 : index
    %c0_12 = arith.constant 0 : index
    %8 = vector.load %arg1[%c0_10, %c0_11, %c0_12] : memref<1x256x4xf32, #tpu.memory_space<vmem>>, vector<1x16x4xf32>
    %9 = vector.shape_cast %8 : vector<1x16x4xf32> to vector<16x4xf32>
    %c37 = arith.constant 37 : index
    %c0_13 = arith.constant 0 : index
    %10 = vector.load %arg12[%c37, %c0_13] : memref<360x4xf32, #tpu.memory_space<vmem>>, vector<16x4xf32>
    tpu.vector_store %arg12[%c37, %c0_13], %9 {strides = array<i32>} : memref<360x4xf32, #tpu.memory_space<vmem>>, vector<16x4xf32>,
    %c0_14 = arith.constant 0 : index
    %c16 = arith.constant 16 : index
    %c0_15 = arith.constant 0 : index
    %11 = vector.load %arg1[%c0_14, %c16, %c0_15] : memref<1x256x4xf32, #tpu.memory_space<vmem>>, vector<1x16x4xf32>
    %12 = vector.shape_cast %11 : vector<1x16x4xf32> to vector<16x4xf32>
    %c55 = arith.constant 55 : index
    %c0_16 = arith.constant 0 : index
    %13 = vector.load %arg12[%c55, %c0_16] : memref<360x4xf32, #tpu.memory_space<vmem>>, vector<16x4xf32>
    tpu.vector_store %arg12[%c55, %c0_16], %12 {strides = array<i32>} : memref<360x4xf32, #tpu.memory_space<vmem>>, vector<16x4xf32>,
    %c0_17 = arith.constant 0 : index
    %c32 = arith.constant 32 : index
    %c0_18 = arith.constant 0 : index
    %14 = vector.load %arg1[%c0_17, %c32, %c0_18] : memref<1x256x4xf32, #tpu.memory_space<vmem>>, vector<1x16x4xf32>
    %15 = vector.shape_cast %14 : vector<1x16x4xf32> to vector<16x4xf32>
    %c73 = arith.constant 73 : index
    %c0_19 = arith.constant 0 : index
    %16 = vector.load %arg12[%c73, %c0_19] : memref<360x4xf32, #tpu.memory_space<vmem>>, vector<16x4xf32>
    tpu.vector_store %arg12[%c73, %c0_19], %15 {strides = array<i32>} : memref<360x4xf32, #tpu.memory_space<vmem>>, vector<16x4xf32>,
    %c0_20 = arith.constant 0 : index
    %c48 = arith.constant 48 : index
    %c0_21 = arith.constant 0 : index
    %17 = vector.load %arg1[%c0_20, %c48, %c0_21] : memref<1x256x4xf32, #tpu.memory_space<vmem>>, vector<1x16x4xf32>
    %18 = vector.shape_cast %17 : vector<1x16x4xf32> to vector<16x4xf32>
    %c91 = arith.constant 91 : index
    %c0_22 = arith.constant 0 : index
    %19 = vector.load %arg12[%c91, %c0_22] : memref<360x4xf32, #tpu.memory_space<vmem>>, vector<16x4xf32>
    tpu.vector_store %arg12[%c91, %c0_22], %18 {strides = array<i32>} : memref<360x4xf32, #tpu.memory_space<vmem>>, vector<16x4xf32>,
    %c0_23 = arith.constant 0 : index
    %c64 = arith.constant 64 : index
    %c0_24 = arith.constant 0 : index
    %20 = vector.load %arg1[%c0_23, %c64, %c0_24] : memref<1x256x4xf32, #tpu.memory_space<vmem>>, vector<1x16x4xf32>
    %21 = vector.shape_cast %20 : vector<1x16x4xf32> to vector<16x4xf32>
    %c109 = arith.constant 109 : index
    %c0_25 = arith.constant 0 : index
    %22 = vector.load %arg12[%c109, %c0_25] : memref<360x4xf32, #tpu.memory_space<vmem>>, vector<16x4xf32>
    tpu.vector_store %arg12[%c109, %c0_25], %21 {strides = array<i32>} : memref<360x4xf32, #tpu.memory_space<vmem>>, vector<16x4xf32>,
    %c0_26 = arith.constant 0 : index
    %c80 = arith.constant 80 : index
    %c0_27 = arith.constant 0 : index
    %23 = vector.load %arg1[%c0_26, %c80, %c0_27] : memref<1x256x4xf32, #tpu.memory_space<vmem>>, vector<1x16x4xf32>
    %24 = vector.shape_cast %23 : vector<1x16x4xf32> to vector<16x4xf32>
    %c127 = arith.constant 127 : index
    %c0_28 = arith.constant 0 : index
    %25 = vector.load %arg12[%c127, %c0_28] : memref<360x4xf32, #tpu.memory_space<vmem>>, vector<16x4xf32>
    tpu.vector_store %arg12[%c127, %c0_28], %24 {strides = array<i32>} : memref<360x4xf32, #tpu.memory_space<vmem>>, vector<16x4xf32>,
    %c0_29 = arith.constant 0 : index
    %c96 = arith.constant 96 : index
    %c0_30 = arith.constant 0 : index
    %26 = vector.load %arg1[%c0_29, %c96, %c0_30] : memref<1x256x4xf32, #tpu.memory_space<vmem>>, vector<1x16x4xf32>
    %27 = vector.shape_cast %26 : vector<1x16x4xf32> to vector<16x4xf32>
    %c145 = arith.constant 145 : index
    %c0_31 = arith.constant 0 : index
    %28 = vector.load %arg12[%c145, %c0_31] : memref<360x4xf32, #tpu.memory_space<vmem>>, vector<16x4xf32>
    tpu.vector_store %arg12[%c145, %c0_31], %27 {strides = array<i32>} : memref<360x4xf32, #tpu.memory_space<vmem>>, vector<16x4xf32>,
    %c0_32 = arith.constant 0 : index
    %c112 = arith.constant 112 : index
    %c0_33 = arith.constant 0 : index
    %29 = vector.load %arg1[%c0_32, %c112, %c0_33] : memref<1x256x4xf32, #tpu.memory_space<vmem>>, vector<1x16x4xf32>
    %30 = vector.shape_cast %29 : vector<1x16x4xf32> to vector<16x4xf32>
    %c163 = arith.constant 163 : index
    %c0_34 = arith.constant 0 : index
    %31 = vector.load %arg12[%c163, %c0_34] : memref<360x4xf32, #tpu.memory_space<vmem>>, vector<16x4xf32>
    tpu.vector_store %arg12[%c163, %c0_34], %30 {strides = array<i32>} : memref<360x4xf32, #tpu.memory_space<vmem>>, vector<16x4xf32>,
    %c0_35 = arith.constant 0 : index
    %c128 = arith.constant 128 : index
    %c0_36 = arith.constant 0 : index
    %32 = vector.load %arg1[%c0_35, %c128, %c0_36] : memref<1x256x4xf32, #tpu.memory_space<vmem>>, vector<1x16x4xf32>
    %33 = vector.shape_cast %32 : vector<1x16x4xf32> to vector<16x4xf32>
    %c181 = arith.constant 181 : index
    %c0_37 = arith.constant 0 : index
    %34 = vector.load %arg12[%c181, %c0_37] : memref<360x4xf32, #tpu.memory_space<vmem>>, vector<16x4xf32>
    tpu.vector_store %arg12[%c181, %c0_37], %33 {strides = array<i32>} : memref<360x4xf32, #tpu.memory_space<vmem>>, vector<16x4xf32>,
    %c0_38 = arith.constant 0 : index
    %c144 = arith.constant 144 : index
    %c0_39 = arith.constant 0 : index
    %35 = vector.load %arg1[%c0_38, %c144, %c0_39] : memref<1x256x4xf32, #tpu.memory_space<vmem>>, vector<1x16x4xf32>
    %36 = vector.shape_cast %35 : vector<1x16x4xf32> to vector<16x4xf32>
    %c199 = arith.constant 199 : index
    %c0_40 = arith.constant 0 : index
    %37 = vector.load %arg12[%c199, %c0_40] : memref<360x4xf32, #tpu.memory_space<vmem>>, vector<16x4xf32>
    tpu.vector_store %arg12[%c199, %c0_40], %36 {strides = array<i32>} : memref<360x4xf32, #tpu.memory_space<vmem>>, vector<16x4xf32>,
    %c0_41 = arith.constant 0 : index
    %c160 = arith.constant 160 : index
    %c0_42 = arith.constant 0 : index
    %38 = vector.load %arg1[%c0_41, %c160, %c0_42] : memref<1x256x4xf32, #tpu.memory_space<vmem>>, vector<1x16x4xf32>
    %39 = vector.shape_cast %38 : vector<1x16x4xf32> to vector<16x4xf32>
    %c217 = arith.constant 217 : index
    %c0_43 = arith.constant 0 : index
    %40 = vector.load %arg12[%c217, %c0_43] : memref<360x4xf32, #tpu.memory_space<vmem>>, vector<16x4xf32>
    tpu.vector_store %arg12[%c217, %c0_43], %39 {strides = array<i32>} : memref<360x4xf32, #tpu.memory_space<vmem>>, vector<16x4xf32>,
    %c0_44 = arith.constant 0 : index
    %c176 = arith.constant 176 : index
    %c0_45 = arith.constant 0 : index
    %41 = vector.load %arg1[%c0_44, %c176, %c0_45] : memref<1x256x4xf32, #tpu.memory_space<vmem>>, vector<1x16x4xf32>
    %42 = vector.shape_cast %41 : vector<1x16x4xf32> to vector<16x4xf32>
    %c235 = arith.constant 235 : index
    %c0_46 = arith.constant 0 : index
    %43 = vector.load %arg12[%c235, %c0_46] : memref<360x4xf32, #tpu.memory_space<vmem>>, vector<16x4xf32>
    tpu.vector_store %arg12[%c235, %c0_46], %42 {strides = array<i32>} : memref<360x4xf32, #tpu.memory_space<vmem>>, vector<16x4xf32>,
    %c0_47 = arith.constant 0 : index
    %c192 = arith.constant 192 : index
    %c0_48 = arith.constant 0 : index
    %44 = vector.load %arg1[%c0_47, %c192, %c0_48] : memref<1x256x4xf32, #tpu.memory_space<vmem>>, vector<1x16x4xf32>
    %45 = vector.shape_cast %44 : vector<1x16x4xf32> to vector<16x4xf32>
    %c253 = arith.constant 253 : index
    %c0_49 = arith.constant 0 : index
    %46 = vector.load %arg12[%c253, %c0_49] : memref<360x4xf32, #tpu.memory_space<vmem>>, vector<16x4xf32>
    tpu.vector_store %arg12[%c253, %c0_49], %45 {strides = array<i32>} : memref<360x4xf32, #tpu.memory_space<vmem>>, vector<16x4xf32>,
    %c0_50 = arith.constant 0 : index
    %c208 = arith.constant 208 : index
    %c0_51 = arith.constant 0 : index
    %47 = vector.load %arg1[%c0_50, %c208, %c0_51] : memref<1x256x4xf32, #tpu.memory_space<vmem>>, vector<1x16x4xf32>
    %48 = vector.shape_cast %47 : vector<1x16x4xf32> to vector<16x4xf32>
    %c271 = arith.constant 271 : index
    %c0_52 = arith.constant 0 : index
    %49 = vector.load %arg12[%c271, %c0_52] : memref<360x4xf32, #tpu.memory_space<vmem>>, vector<16x4xf32>
    tpu.vector_store %arg12[%c271, %c0_52], %48 {strides = array<i32>} : memref<360x4xf32, #tpu.memory_space<vmem>>, vector<16x4xf32>,
    %c0_53 = arith.constant 0 : index
    %c224 = arith.constant 224 : index
    %c0_54 = arith.constant 0 : index
    %50 = vector.load %arg1[%c0_53, %c224, %c0_54] : memref<1x256x4xf32, #tpu.memory_space<vmem>>, vector<1x16x4xf32>
    %51 = vector.shape_cast %50 : vector<1x16x4xf32> to vector<16x4xf32>
    %c289 = arith.constant 289 : index
    %c0_55 = arith.constant 0 : index
    %52 = vector.load %arg12[%c289, %c0_55] : memref<360x4xf32, #tpu.memory_space<vmem>>, vector<16x4xf32>
    tpu.vector_store %arg12[%c289, %c0_55], %51 {strides = array<i32>} : memref<360x4xf32, #tpu.memory_space<vmem>>, vector<16x4xf32>,
    %c0_56 = arith.constant 0 : index
    %c240 = arith.constant 240 : index
    %c0_57 = arith.constant 0 : index
    %53 = vector.load %arg1[%c0_56, %c240, %c0_57] : memref<1x256x4xf32, #tpu.memory_space<vmem>>, vector<1x16x4xf32>
    %54 = vector.shape_cast %53 : vector<1x16x4xf32> to vector<16x4xf32>
    %c307 = arith.constant 307 : index
    %c0_58 = arith.constant 0 : index
    %55 = vector.load %arg12[%c307, %c0_58] : memref<360x4xf32, #tpu.memory_space<vmem>>, vector<16x4xf32>
    tpu.vector_store %arg12[%c307, %c0_58], %54 {strides = array<i32>} : memref<360x4xf32, #tpu.memory_space<vmem>>, vector<16x4xf32>,
    %c17 = arith.constant 17 : index
    %c0_59 = arith.constant 0 : index
    %56 = vector.load %arg12[%c17, %c0_59] : memref<360x4xf32, #tpu.memory_space<vmem>>, vector<288x4xf32>
    %c0_60 = arith.constant 0 : index
    %c0_61 = arith.constant 0 : index
    %c0_62 = arith.constant 0 : index
    %57 = vector.load %arg2[%c0_60, %c0_61, %c0_62] : memref<9x4x8xf32, #tpu.memory_space<vmem>>, vector<1x4x8xf32>
    %58 = vector.shape_cast %57 : vector<1x4x8xf32> to vector<4x8xf32>
    %cst_63 = arith.constant dense<0.000000e+00> : vector<288x8xf32>
    %59 = tpu.matmul %56, %58, %cst_63 {dimension_numbers = #tpu.dot_dimension_numbers<[1], [0], [0], [1], [0, 0, 1, 1], [], []>} : vector<288x4xf32>, vector<4x8xf32>, vector<288x8xf32> -> vector<288x8xf32>
    %c18 = arith.constant 18 : index
    %c0_64 = arith.constant 0 : index
    %60 = vector.load %arg12[%c18, %c0_64] : memref<360x4xf32, #tpu.memory_space<vmem>>, vector<288x4xf32>
    %c1 = arith.constant 1 : index
    %c0_65 = arith.constant 0 : index
    %c0_66 = arith.constant 0 : index
    %61 = vector.load %arg2[%c1, %c0_65, %c0_66] : memref<9x4x8xf32, #tpu.memory_space<vmem>>, vector<1x4x8xf32>
    %62 = vector.shape_cast %61 : vector<1x4x8xf32> to vector<4x8xf32>
    %cst_67 = arith.constant dense<0.000000e+00> : vector<288x8xf32>
    %63 = tpu.matmul %60, %62, %cst_67 {dimension_numbers = #tpu.dot_dimension_numbers<[1], [0], [0], [1], [0, 0, 1, 1], [], []>} : vector<288x4xf32>, vector<4x8xf32>, vector<288x8xf32> -> vector<288x8xf32>
    %64 = arith.addf %59, %63 : vector<288x8xf32>
    %c19 = arith.constant 19 : index
    %c0_68 = arith.constant 0 : index
    %65 = vector.load %arg12[%c19, %c0_68] : memref<360x4xf32, #tpu.memory_space<vmem>>, vector<288x4xf32>
    %c2 = arith.constant 2 : index
    %c0_69 = arith.constant 0 : index
    %c0_70 = arith.constant 0 : index
    %66 = vector.load %arg2[%c2, %c0_69, %c0_70] : memref<9x4x8xf32, #tpu.memory_space<vmem>>, vector<1x4x8xf32>
    %67 = vector.shape_cast %66 : vector<1x4x8xf32> to vector<4x8xf32>
    %cst_71 = arith.constant dense<0.000000e+00> : vector<288x8xf32>
    %68 = tpu.matmul %65, %67, %cst_71 {dimension_numbers = #tpu.dot_dimension_numbers<[1], [0], [0], [1], [0, 0, 1, 1], [], []>} : vector<288x4xf32>, vector<4x8xf32>, vector<288x8xf32> -> vector<288x8xf32>
    %69 = arith.addf %64, %68 : vector<288x8xf32>
    %c35 = arith.constant 35 : index
    %c0_72 = arith.constant 0 : index
    %70 = vector.load %arg12[%c35, %c0_72] : memref<360x4xf32, #tpu.memory_space<vmem>>, vector<288x4xf32>
    %c3 = arith.constant 3 : index
    %c0_73 = arith.constant 0 : index
    %c0_74 = arith.constant 0 : index
    %71 = vector.load %arg2[%c3, %c0_73, %c0_74] : memref<9x4x8xf32, #tpu.memory_space<vmem>>, vector<1x4x8xf32>
    %72 = vector.shape_cast %71 : vector<1x4x8xf32> to vector<4x8xf32>
    %cst_75 = arith.constant dense<0.000000e+00> : vector<288x8xf32>
    %73 = tpu.matmul %70, %72, %cst_75 {dimension_numbers = #tpu.dot_dimension_numbers<[1], [0], [0], [1], [0, 0, 1, 1], [], []>} : vector<288x4xf32>, vector<4x8xf32>, vector<288x8xf32> -> vector<288x8xf32>
    %74 = arith.addf %69, %73 : vector<288x8xf32>
    %c36 = arith.constant 36 : index
    %c0_76 = arith.constant 0 : index
    %75 = vector.load %arg12[%c36, %c0_76] : memref<360x4xf32, #tpu.memory_space<vmem>>, vector<288x4xf32>
    %c4 = arith.constant 4 : index
    %c0_77 = arith.constant 0 : index
    %c0_78 = arith.constant 0 : index
    %76 = vector.load %arg2[%c4, %c0_77, %c0_78] : memref<9x4x8xf32, #tpu.memory_space<vmem>>, vector<1x4x8xf32>
    %77 = vector.shape_cast %76 : vector<1x4x8xf32> to vector<4x8xf32>
    %cst_79 = arith.constant dense<0.000000e+00> : vector<288x8xf32>
    %78 = tpu.matmul %75, %77, %cst_79 {dimension_numbers = #tpu.dot_dimension_numbers<[1], [0], [0], [1], [0, 0, 1, 1], [], []>} : vector<288x4xf32>, vector<4x8xf32>, vector<288x8xf32> -> vector<288x8xf32>
    %79 = arith.addf %74, %78 : vector<288x8xf32>
    %c37_80 = arith.constant 37 : index
    %c0_81 = arith.constant 0 : index
    %80 = vector.load %arg12[%c37_80, %c0_81] : memref<360x4xf32, #tpu.memory_space<vmem>>, vector<288x4xf32>
    %c5 = arith.constant 5 : index
    %c0_82 = arith.constant 0 : index
    %c0_83 = arith.constant 0 : index
    %81 = vector.load %arg2[%c5, %c0_82, %c0_83] : memref<9x4x8xf32, #tpu.memory_space<vmem>>, vector<1x4x8xf32>
    %82 = vector.shape_cast %81 : vector<1x4x8xf32> to vector<4x8xf32>
    %cst_84 = arith.constant dense<0.000000e+00> : vector<288x8xf32>
    %83 = tpu.matmul %80, %82, %cst_84 {dimension_numbers = #tpu.dot_dimension_numbers<[1], [0], [0], [1], [0, 0, 1, 1], [], []>} : vector<288x4xf32>, vector<4x8xf32>, vector<288x8xf32> -> vector<288x8xf32>
    %84 = arith.addf %79, %83 : vector<288x8xf32>
    %c53 = arith.constant 53 : index
    %c0_85 = arith.constant 0 : index
    %85 = vector.load %arg12[%c53, %c0_85] : memref<360x4xf32, #tpu.memory_space<vmem>>, vector<288x4xf32>
    %c6 = arith.constant 6 : index
    %c0_86 = arith.constant 0 : index
    %c0_87 = arith.constant 0 : index
    %86 = vector.load %arg2[%c6, %c0_86, %c0_87] : memref<9x4x8xf32, #tpu.memory_space<vmem>>, vector<1x4x8xf32>
    %87 = vector.shape_cast %86 : vector<1x4x8xf32> to vector<4x8xf32>
    %cst_88 = arith.constant dense<0.000000e+00> : vector<288x8xf32>
    %88 = tpu.matmul %85, %87, %cst_88 {dimension_numbers = #tpu.dot_dimension_numbers<[1], [0], [0], [1], [0, 0, 1, 1], [], []>} : vector<288x4xf32>, vector<4x8xf32>, vector<288x8xf32> -> vector<288x8xf32>
    %89 = arith.addf %84, %88 : vector<288x8xf32>
    %c54 = arith.constant 54 : index
    %c0_89 = arith.constant 0 : index
    %90 = vector.load %arg12[%c54, %c0_89] : memref<360x4xf32, #tpu.memory_space<vmem>>, vector<288x4xf32>
    %c7 = arith.constant 7 : index
    %c0_90 = arith.constant 0 : index
    %c0_91 = arith.constant 0 : index
    %91 = vector.load %arg2[%c7, %c0_90, %c0_91] : memref<9x4x8xf32, #tpu.memory_space<vmem>>, vector<1x4x8xf32>
    %92 = vector.shape_cast %91 : vector<1x4x8xf32> to vector<4x8xf32>
    %cst_92 = arith.constant dense<0.000000e+00> : vector<288x8xf32>
    %93 = tpu.matmul %90, %92, %cst_92 {dimension_numbers = #tpu.dot_dimension_numbers<[1], [0], [0], [1], [0, 0, 1, 1], [], []>} : vector<288x4xf32>, vector<4x8xf32>, vector<288x8xf32> -> vector<288x8xf32>
    %94 = arith.addf %89, %93 : vector<288x8xf32>
    %c55_93 = arith.constant 55 : index
    %c0_94 = arith.constant 0 : index
    %95 = vector.load %arg12[%c55_93, %c0_94] : memref<360x4xf32, #tpu.memory_space<vmem>>, vector<288x4xf32>
    %c8 = arith.constant 8 : index
    %c0_95 = arith.constant 0 : index
    %c0_96 = arith.constant 0 : index
    %96 = vector.load %arg2[%c8, %c0_95, %c0_96] : memref<9x4x8xf32, #tpu.memory_space<vmem>>, vector<1x4x8xf32>
    %97 = vector.shape_cast %96 : vector<1x4x8xf32> to vector<4x8xf32>
    %cst_97 = arith.constant dense<0.000000e+00> : vector<288x8xf32>
    %98 = tpu.matmul %95, %97, %cst_97 {dimension_numbers = #tpu.dot_dimension_numbers<[1], [0], [0], [1], [0, 0, 1, 1], [], []>} : vector<288x4xf32>, vector<4x8xf32>, vector<288x8xf32> -> vector<288x8xf32>
    %99 = arith.addf %94, %98 : vector<288x8xf32>
    %c0_98 = arith.constant 0 : index
    %c0_99 = arith.constant 0 : index
    %100 = vector.load %arg3[%c0_98, %c0_99] : memref<1x8xf32, #tpu.memory_space<vmem>>, vector<1x8xf32>
    %101 = vector.broadcast %100 : vector<1x8xf32> to vector<288x8xf32>
    %102 = arith.addf %99, %101 : vector<288x8xf32>
    %cst_100 = arith.constant 0.000000e+00 : f32
    %103 = vector.broadcast %cst_100 : f32 to vector<288x8xf32>
    %104 = arith.maximumf %102, %103 : vector<288x8xf32>
    %c0_101 = arith.constant 0 : index
    %c0_102 = arith.constant 0 : index
    %105 = vector.load %arg13[%c0_101, %c0_102] : memref<288x8xf32, #tpu.memory_space<vmem>>, vector<288x8xf32>
    tpu.vector_store %arg13[%c0_101, %c0_102], %104 {strides = array<i32>} : memref<288x8xf32, #tpu.memory_space<vmem>>, vector<288x8xf32>,
    %c1_103 = arith.constant 1 : index
    %c0_104 = arith.constant 0 : index
    %106 = tpu.strided_load %arg13[%c1_103, %c0_104] {strides = array<i32: 2, 1>} : memref<288x8xf32, #tpu.memory_space<vmem>>, vector<8x8xf32>
    %c2_105 = arith.constant 2 : index
    %c0_106 = arith.constant 0 : index
    %107 = tpu.strided_load %arg13[%c2_105, %c0_106] {strides = array<i32: 2, 1>} : memref<288x8xf32, #tpu.memory_space<vmem>>, vector<8x8xf32>
    %c19_107 = arith.constant 19 : index
    %c0_108 = arith.constant 0 : index
    %108 = tpu.strided_load %arg13[%c19_107, %c0_108] {strides = array<i32: 2, 1>} : memref<288x8xf32, #tpu.memory_space<vmem>>, vector<8x8xf32>
    %c20 = arith.constant 20 : index
    %c0_109 = arith.constant 0 : index
    %109 = tpu.strided_load %arg13[%c20, %c0_109] {strides = array<i32: 2, 1>} : memref<288x8xf32, #tpu.memory_space<vmem>>, vector<8x8xf32>
    %110 = arith.maximumf %106, %107 : vector<8x8xf32>
    %111 = arith.maximumf %108, %109 : vector<8x8xf32>
    %112 = arith.maximumf %110, %111 : vector<8x8xf32>
    %c21 = arith.constant 21 : index
    %c0_110 = arith.constant 0 : index
    %113 = vector.load %arg14[%c21, %c0_110] : memref<120x8xf32, #tpu.memory_space<vmem>>, vector<8x8xf32>
    tpu.vector_store %arg14[%c21, %c0_110], %112 {strides = array<i32>} : memref<120x8xf32, #tpu.memory_space<vmem>>, vector<8x8xf32>,
    %cst_111 = arith.constant dense<0.000000e+00> : vector<8xf32>
    %114 = vector.multi_reduction <add>, %112, %cst_111 [1] : vector<8x8xf32> to vector<8xf32>
    %115 = vector.shape_cast %114 : vector<8xf32> to vector<8x1xf32>
    %cst_112 = arith.constant 8.000000e+00 : f32
    %116 = vector.broadcast %cst_112 : f32 to vector<8x1xf32>
    %117 = arith.divf %115, %116 : vector<8x1xf32>
    %c0_113 = arith.constant 0 : index
    %c0_114 = arith.constant 0 : index
    %118 = vector.load %arg20[%c0_113, %c0_114] : memref<64x1xf32, #tpu.memory_space<vmem>>, vector<8x1xf32>
    tpu.vector_store %arg20[%c0_113, %c0_114], %117 {strides = array<i32>} : memref<64x1xf32, #tpu.memory_space<vmem>>, vector<8x1xf32>,
    %c37_115 = arith.constant 37 : index
    %c0_116 = arith.constant 0 : index
    %119 = tpu.strided_load %arg13[%c37_115, %c0_116] {strides = array<i32: 2, 1>} : memref<288x8xf32, #tpu.memory_space<vmem>>, vector<8x8xf32>
    %c38 = arith.constant 38 : index
    %c0_117 = arith.constant 0 : index
    %120 = tpu.strided_load %arg13[%c38, %c0_117] {strides = array<i32: 2, 1>} : memref<288x8xf32, #tpu.memory_space<vmem>>, vector<8x8xf32>
    %c55_118 = arith.constant 55 : index
    %c0_119 = arith.constant 0 : index
    %121 = tpu.strided_load %arg13[%c55_118, %c0_119] {strides = array<i32: 2, 1>} : memref<288x8xf32, #tpu.memory_space<vmem>>, vector<8x8xf32>
    %c56 = arith.constant 56 : index
    %c0_120 = arith.constant 0 : index
    %122 = tpu.strided_load %arg13[%c56, %c0_120] {strides = array<i32: 2, 1>} : memref<288x8xf32, #tpu.memory_space<vmem>>, vector<8x8xf32>
    %123 = arith.maximumf %119, %120 : vector<8x8xf32>
    %124 = arith.maximumf %121, %122 : vector<8x8xf32>
    %125 = arith.maximumf %123, %124 : vector<8x8xf32>
    %c31 = arith.constant 31 : index
    %c0_121 = arith.constant 0 : index
    %126 = vector.load %arg14[%c31, %c0_121] : memref<120x8xf32, #tpu.memory_space<vmem>>, vector<8x8xf32>
    tpu.vector_store %arg14[%c31, %c0_121], %125 {strides = array<i32>} : memref<120x8xf32, #tpu.memory_space<vmem>>, vector<8x8xf32>,
    %cst_122 = arith.constant dense<0.000000e+00> : vector<8xf32>
    %127 = vector.multi_reduction <add>, %125, %cst_122 [1] : vector<8x8xf32> to vector<8xf32>
    %128 = vector.shape_cast %127 : vector<8xf32> to vector<8x1xf32>
    %cst_123 = arith.constant 8.000000e+00 : f32
    %129 = vector.broadcast %cst_123 : f32 to vector<8x1xf32>
    %130 = arith.divf %128, %129 : vector<8x1xf32>
    %c8_124 = arith.constant 8 : index
    %c0_125 = arith.constant 0 : index
    %131 = vector.load %arg20[%c8_124, %c0_125] : memref<64x1xf32, #tpu.memory_space<vmem>>, vector<8x1xf32>
    tpu.vector_store %arg20[%c8_124, %c0_125], %130 {strides = array<i32>} : memref<64x1xf32, #tpu.memory_space<vmem>>, vector<8x1xf32>,
    %c73_126 = arith.constant 73 : index
    %c0_127 = arith.constant 0 : index
    %132 = tpu.strided_load %arg13[%c73_126, %c0_127] {strides = array<i32: 2, 1>} : memref<288x8xf32, #tpu.memory_space<vmem>>, vector<8x8xf32>
    %c74 = arith.constant 74 : index
    %c0_128 = arith.constant 0 : index
    %133 = tpu.strided_load %arg13[%c74, %c0_128] {strides = array<i32: 2, 1>} : memref<288x8xf32, #tpu.memory_space<vmem>>, vector<8x8xf32>
    %c91_129 = arith.constant 91 : index
    %c0_130 = arith.constant 0 : index
    %134 = tpu.strided_load %arg13[%c91_129, %c0_130] {strides = array<i32: 2, 1>} : memref<288x8xf32, #tpu.memory_space<vmem>>, vector<8x8xf32>
    %c92 = arith.constant 92 : index
    %c0_131 = arith.constant 0 : index
    %135 = tpu.strided_load %arg13[%c92, %c0_131] {strides = array<i32: 2, 1>} : memref<288x8xf32, #tpu.memory_space<vmem>>, vector<8x8xf32>
    %136 = arith.maximumf %132, %133 : vector<8x8xf32>
    %137 = arith.maximumf %134, %135 : vector<8x8xf32>
    %138 = arith.maximumf %136, %137 : vector<8x8xf32>
    %c41 = arith.constant 41 : index
    %c0_132 = arith.constant 0 : index
    %139 = vector.load %arg14[%c41, %c0_132] : memref<120x8xf32, #tpu.memory_space<vmem>>, vector<8x8xf32>
    tpu.vector_store %arg14[%c41, %c0_132], %138 {strides = array<i32>} : memref<120x8xf32, #tpu.memory_space<vmem>>, vector<8x8xf32>,
    %cst_133 = arith.constant dense<0.000000e+00> : vector<8xf32>
    %140 = vector.multi_reduction <add>, %138, %cst_133 [1] : vector<8x8xf32> to vector<8xf32>
    %141 = vector.shape_cast %140 : vector<8xf32> to vector<8x1xf32>
    %cst_134 = arith.constant 8.000000e+00 : f32
    %142 = vector.broadcast %cst_134 : f32 to vector<8x1xf32>
    %143 = arith.divf %141, %142 : vector<8x1xf32>
    %c16_135 = arith.constant 16 : index
    %c0_136 = arith.constant 0 : index
    %144 = vector.load %arg20[%c16_135, %c0_136] : memref<64x1xf32, #tpu.memory_space<vmem>>, vector<8x1xf32>
    tpu.vector_store %arg20[%c16_135, %c0_136], %143 {strides = array<i32>} : memref<64x1xf32, #tpu.memory_space<vmem>>, vector<8x1xf32>,
    %c109_137 = arith.constant 109 : index
    %c0_138 = arith.constant 0 : index
    %145 = tpu.strided_load %arg13[%c109_137, %c0_138] {strides = array<i32: 2, 1>} : memref<288x8xf32, #tpu.memory_space<vmem>>, vector<8x8xf32>
    %c110 = arith.constant 110 : index
    %c0_139 = arith.constant 0 : index
    %146 = tpu.strided_load %arg13[%c110, %c0_139] {strides = array<i32: 2, 1>} : memref<288x8xf32, #tpu.memory_space<vmem>>, vector<8x8xf32>
    %c127_140 = arith.constant 127 : index
    %c0_141 = arith.constant 0 : index
    %147 = tpu.strided_load %arg13[%c127_140, %c0_141] {strides = array<i32: 2, 1>} : memref<288x8xf32, #tpu.memory_space<vmem>>, vector<8x8xf32>
    %c128_142 = arith.constant 128 : index
    %c0_143 = arith.constant 0 : index
    %148 = tpu.strided_load %arg13[%c128_142, %c0_143] {strides = array<i32: 2, 1>} : memref<288x8xf32, #tpu.memory_space<vmem>>, vector<8x8xf32>
    %149 = arith.maximumf %145, %146 : vector<8x8xf32>
    %150 = arith.maximumf %147, %148 : vector<8x8xf32>
    %151 = arith.maximumf %149, %150 : vector<8x8xf32>
    %c51 = arith.constant 51 : index
    %c0_144 = arith.constant 0 : index
    %152 = vector.load %arg14[%c51, %c0_144] : memref<120x8xf32, #tpu.memory_space<vmem>>, vector<8x8xf32>
    tpu.vector_store %arg14[%c51, %c0_144], %151 {strides = array<i32>} : memref<120x8xf32, #tpu.memory_space<vmem>>, vector<8x8xf32>,
    %cst_145 = arith.constant dense<0.000000e+00> : vector<8xf32>
    %153 = vector.multi_reduction <add>, %151, %cst_145 [1] : vector<8x8xf32> to vector<8xf32>
    %154 = vector.shape_cast %153 : vector<8xf32> to vector<8x1xf32>
    %cst_146 = arith.constant 8.000000e+00 : f32
    %155 = vector.broadcast %cst_146 : f32 to vector<8x1xf32>
    %156 = arith.divf %154, %155 : vector<8x1xf32>
    %c24 = arith.constant 24 : index
    %c0_147 = arith.constant 0 : index
    %157 = vector.load %arg20[%c24, %c0_147] : memref<64x1xf32, #tpu.memory_space<vmem>>, vector<8x1xf32>
    tpu.vector_store %arg20[%c24, %c0_147], %156 {strides = array<i32>} : memref<64x1xf32, #tpu.memory_space<vmem>>, vector<8x1xf32>,
    %c145_148 = arith.constant 145 : index
    %c0_149 = arith.constant 0 : index
    %158 = tpu.strided_load %arg13[%c145_148, %c0_149] {strides = array<i32: 2, 1>} : memref<288x8xf32, #tpu.memory_space<vmem>>, vector<8x8xf32>
    %c146 = arith.constant 146 : index
    %c0_150 = arith.constant 0 : index
    %159 = tpu.strided_load %arg13[%c146, %c0_150] {strides = array<i32: 2, 1>} : memref<288x8xf32, #tpu.memory_space<vmem>>, vector<8x8xf32>
    %c163_151 = arith.constant 163 : index
    %c0_152 = arith.constant 0 : index
    %160 = tpu.strided_load %arg13[%c163_151, %c0_152] {strides = array<i32: 2, 1>} : memref<288x8xf32, #tpu.memory_space<vmem>>, vector<8x8xf32>
    %c164 = arith.constant 164 : index
    %c0_153 = arith.constant 0 : index
    %161 = tpu.strided_load %arg13[%c164, %c0_153] {strides = array<i32: 2, 1>} : memref<288x8xf32, #tpu.memory_space<vmem>>, vector<8x8xf32>
    %162 = arith.maximumf %158, %159 : vector<8x8xf32>
    %163 = arith.maximumf %160, %161 : vector<8x8xf32>
    %164 = arith.maximumf %162, %163 : vector<8x8xf32>
    %c61 = arith.constant 61 : index
    %c0_154 = arith.constant 0 : index
    %165 = vector.load %arg14[%c61, %c0_154] : memref<120x8xf32, #tpu.memory_space<vmem>>, vector<8x8xf32>
    tpu.vector_store %arg14[%c61, %c0_154], %164 {strides = array<i32>} : memref<120x8xf32, #tpu.memory_space<vmem>>, vector<8x8xf32>,
    %cst_155 = arith.constant dense<0.000000e+00> : vector<8xf32>
    %166 = vector.multi_reduction <add>, %164, %cst_155 [1] : vector<8x8xf32> to vector<8xf32>
    %167 = vector.shape_cast %166 : vector<8xf32> to vector<8x1xf32>
    %cst_156 = arith.constant 8.000000e+00 : f32
    %168 = vector.broadcast %cst_156 : f32 to vector<8x1xf32>
    %169 = arith.divf %167, %168 : vector<8x1xf32>
    %c32_157 = arith.constant 32 : index
    %c0_158 = arith.constant 0 : index
    %170 = vector.load %arg20[%c32_157, %c0_158] : memref<64x1xf32, #tpu.memory_space<vmem>>, vector<8x1xf32>
    tpu.vector_store %arg20[%c32_157, %c0_158], %169 {strides = array<i32>} : memref<64x1xf32, #tpu.memory_space<vmem>>, vector<8x1xf32>,
    %c181_159 = arith.constant 181 : index
    %c0_160 = arith.constant 0 : index
    %171 = tpu.strided_load %arg13[%c181_159, %c0_160] {strides = array<i32: 2, 1>} : memref<288x8xf32, #tpu.memory_space<vmem>>, vector<8x8xf32>
    %c182 = arith.constant 182 : index
    %c0_161 = arith.constant 0 : index
    %172 = tpu.strided_load %arg13[%c182, %c0_161] {strides = array<i32: 2, 1>} : memref<288x8xf32, #tpu.memory_space<vmem>>, vector<8x8xf32>
    %c199_162 = arith.constant 199 : index
    %c0_163 = arith.constant 0 : index
    %173 = tpu.strided_load %arg13[%c199_162, %c0_163] {strides = array<i32: 2, 1>} : memref<288x8xf32, #tpu.memory_space<vmem>>, vector<8x8xf32>
    %c200 = arith.constant 200 : index
    %c0_164 = arith.constant 0 : index
    %174 = tpu.strided_load %arg13[%c200, %c0_164] {strides = array<i32: 2, 1>} : memref<288x8xf32, #tpu.memory_space<vmem>>, vector<8x8xf32>
    %175 = arith.maximumf %171, %172 : vector<8x8xf32>
    %176 = arith.maximumf %173, %174 : vector<8x8xf32>
    %177 = arith.maximumf %175, %176 : vector<8x8xf32>
    %c71 = arith.constant 71 : index
    %c0_165 = arith.constant 0 : index
    %178 = vector.load %arg14[%c71, %c0_165] : memref<120x8xf32, #tpu.memory_space<vmem>>, vector<8x8xf32>
    tpu.vector_store %arg14[%c71, %c0_165], %177 {strides = array<i32>} : memref<120x8xf32, #tpu.memory_space<vmem>>, vector<8x8xf32>,
    %cst_166 = arith.constant dense<0.000000e+00> : vector<8xf32>
    %179 = vector.multi_reduction <add>, %177, %cst_166 [1] : vector<8x8xf32> to vector<8xf32>
    %180 = vector.shape_cast %179 : vector<8xf32> to vector<8x1xf32>
    %cst_167 = arith.constant 8.000000e+00 : f32
    %181 = vector.broadcast %cst_167 : f32 to vector<8x1xf32>
    %182 = arith.divf %180, %181 : vector<8x1xf32>
    %c40 = arith.constant 40 : index
    %c0_168 = arith.constant 0 : index
    %183 = vector.load %arg20[%c40, %c0_168] : memref<64x1xf32, #tpu.memory_space<vmem>>, vector<8x1xf32>
    tpu.vector_store %arg20[%c40, %c0_168], %182 {strides = array<i32>} : memref<64x1xf32, #tpu.memory_space<vmem>>, vector<8x1xf32>,
    %c217_169 = arith.constant 217 : index
    %c0_170 = arith.constant 0 : index
    %184 = tpu.strided_load %arg13[%c217_169, %c0_170] {strides = array<i32: 2, 1>} : memref<288x8xf32, #tpu.memory_space<vmem>>, vector<8x8xf32>
    %c218 = arith.constant 218 : index
    %c0_171 = arith.constant 0 : index
    %185 = tpu.strided_load %arg13[%c218, %c0_171] {strides = array<i32: 2, 1>} : memref<288x8xf32, #tpu.memory_space<vmem>>, vector<8x8xf32>
    %c235_172 = arith.constant 235 : index
    %c0_173 = arith.constant 0 : index
    %186 = tpu.strided_load %arg13[%c235_172, %c0_173] {strides = array<i32: 2, 1>} : memref<288x8xf32, #tpu.memory_space<vmem>>, vector<8x8xf32>
    %c236 = arith.constant 236 : index
    %c0_174 = arith.constant 0 : index
    %187 = tpu.strided_load %arg13[%c236, %c0_174] {strides = array<i32: 2, 1>} : memref<288x8xf32, #tpu.memory_space<vmem>>, vector<8x8xf32>
    %188 = arith.maximumf %184, %185 : vector<8x8xf32>
    %189 = arith.maximumf %186, %187 : vector<8x8xf32>
    %190 = arith.maximumf %188, %189 : vector<8x8xf32>
    %c81 = arith.constant 81 : index
    %c0_175 = arith.constant 0 : index
    %191 = vector.load %arg14[%c81, %c0_175] : memref<120x8xf32, #tpu.memory_space<vmem>>, vector<8x8xf32>
    tpu.vector_store %arg14[%c81, %c0_175], %190 {strides = array<i32>} : memref<120x8xf32, #tpu.memory_space<vmem>>, vector<8x8xf32>,
    %cst_176 = arith.constant dense<0.000000e+00> : vector<8xf32>
    %192 = vector.multi_reduction <add>, %190, %cst_176 [1] : vector<8x8xf32> to vector<8xf32>
    %193 = vector.shape_cast %192 : vector<8xf32> to vector<8x1xf32>
    %cst_177 = arith.constant 8.000000e+00 : f32
    %194 = vector.broadcast %cst_177 : f32 to vector<8x1xf32>
    %195 = arith.divf %193, %194 : vector<8x1xf32>
    %c48_178 = arith.constant 48 : index
    %c0_179 = arith.constant 0 : index
    %196 = vector.load %arg20[%c48_178, %c0_179] : memref<64x1xf32, #tpu.memory_space<vmem>>, vector<8x1xf32>
    tpu.vector_store %arg20[%c48_178, %c0_179], %195 {strides = array<i32>} : memref<64x1xf32, #tpu.memory_space<vmem>>, vector<8x1xf32>,
    %c253_180 = arith.constant 253 : index
    %c0_181 = arith.constant 0 : index
    %197 = tpu.strided_load %arg13[%c253_180, %c0_181] {strides = array<i32: 2, 1>} : memref<288x8xf32, #tpu.memory_space<vmem>>, vector<8x8xf32>
    %c254 = arith.constant 254 : index
    %c0_182 = arith.constant 0 : index
    %198 = tpu.strided_load %arg13[%c254, %c0_182] {strides = array<i32: 2, 1>} : memref<288x8xf32, #tpu.memory_space<vmem>>, vector<8x8xf32>
    %c271_183 = arith.constant 271 : index
    %c0_184 = arith.constant 0 : index
    %199 = tpu.strided_load %arg13[%c271_183, %c0_184] {strides = array<i32: 2, 1>} : memref<288x8xf32, #tpu.memory_space<vmem>>, vector<8x8xf32>
    %c272 = arith.constant 272 : index
    %c0_185 = arith.constant 0 : index
    %200 = tpu.strided_load %arg13[%c272, %c0_185] {strides = array<i32: 2, 1>} : memref<288x8xf32, #tpu.memory_space<vmem>>, vector<8x8xf32>
    %201 = arith.maximumf %197, %198 : vector<8x8xf32>
    %202 = arith.maximumf %199, %200 : vector<8x8xf32>
    %203 = arith.maximumf %201, %202 : vector<8x8xf32>
    %c91_186 = arith.constant 91 : index
    %c0_187 = arith.constant 0 : index
    %204 = vector.load %arg14[%c91_186, %c0_187] : memref<120x8xf32, #tpu.memory_space<vmem>>, vector<8x8xf32>
    tpu.vector_store %arg14[%c91_186, %c0_187], %203 {strides = array<i32>} : memref<120x8xf32, #tpu.memory_space<vmem>>, vector<8x8xf32>,
    %cst_188 = arith.constant dense<0.000000e+00> : vector<8xf32>
    %205 = vector.multi_reduction <add>, %203, %cst_188 [1] : vector<8x8xf32> to vector<8xf32>
    %206 = vector.shape_cast %205 : vector<8xf32> to vector<8x1xf32>
    %cst_189 = arith.constant 8.000000e+00 : f32
    %207 = vector.broadcast %cst_189 : f32 to vector<8x1xf32>
    %208 = arith.divf %206, %207 : vector<8x1xf32>
    %c56_190 = arith.constant 56 : index
    %c0_191 = arith.constant 0 : index
    %209 = vector.load %arg20[%c56_190, %c0_191] : memref<64x1xf32, #tpu.memory_space<vmem>>, vector<8x1xf32>
    tpu.vector_store %arg20[%c56_190, %c0_191], %208 {strides = array<i32>} : memref<64x1xf32, #tpu.memory_space<vmem>>, vector<8x1xf32>,
    %c9 = arith.constant 9 : index
    %c0_192 = arith.constant 0 : index
    %210 = vector.load %arg14[%c9, %c0_192] : memref<120x8xf32, #tpu.memory_space<vmem>>, vector<80x8xf32>
    %c0_193 = arith.constant 0 : index
    %c0_194 = arith.constant 0 : index
    %c0_195 = arith.constant 0 : index
    %211 = vector.load %arg4[%c0_193, %c0_194, %c0_195] : memref<9x8x16xf32, #tpu.memory_space<vmem>>, vector<1x8x16xf32>
    %212 = vector.shape_cast %211 : vector<1x8x16xf32> to vector<8x16xf32>
    %cst_196 = arith.constant dense<0.000000e+00> : vector<80x16xf32>
    %213 = tpu.matmul %210, %212, %cst_196 {dimension_numbers = #tpu.dot_dimension_numbers<[1], [0], [0], [1], [0, 0, 1, 1], [], []>} : vector<80x8xf32>, vector<8x16xf32>, vector<80x16xf32> -> vector<80x16xf32>
    %c10 = arith.constant 10 : index
    %c0_197 = arith.constant 0 : index
    %214 = vector.load %arg14[%c10, %c0_197] : memref<120x8xf32, #tpu.memory_space<vmem>>, vector<80x8xf32>
    %c1_198 = arith.constant 1 : index
    %c0_199 = arith.constant 0 : index
    %c0_200 = arith.constant 0 : index
    %215 = vector.load %arg4[%c1_198, %c0_199, %c0_200] : memref<9x8x16xf32, #tpu.memory_space<vmem>>, vector<1x8x16xf32>
    %216 = vector.shape_cast %215 : vector<1x8x16xf32> to vector<8x16xf32>
    %cst_201 = arith.constant dense<0.000000e+00> : vector<80x16xf32>
    %217 = tpu.matmul %214, %216, %cst_201 {dimension_numbers = #tpu.dot_dimension_numbers<[1], [0], [0], [1], [0, 0, 1, 1], [], []>} : vector<80x8xf32>, vector<8x16xf32>, vector<80x16xf32> -> vector<80x16xf32>
    %218 = arith.addf %213, %217 : vector<80x16xf32>
    %c11 = arith.constant 11 : index
    %c0_202 = arith.constant 0 : index
    %219 = vector.load %arg14[%c11, %c0_202] : memref<120x8xf32, #tpu.memory_space<vmem>>, vector<80x8xf32>
    %c2_203 = arith.constant 2 : index
    %c0_204 = arith.constant 0 : index
    %c0_205 = arith.constant 0 : index
    %220 = vector.load %arg4[%c2_203, %c0_204, %c0_205] : memref<9x8x16xf32, #tpu.memory_space<vmem>>, vector<1x8x16xf32>
    %221 = vector.shape_cast %220 : vector<1x8x16xf32> to vector<8x16xf32>
    %cst_206 = arith.constant dense<0.000000e+00> : vector<80x16xf32>
    %222 = tpu.matmul %219, %221, %cst_206 {dimension_numbers = #tpu.dot_dimension_numbers<[1], [0], [0], [1], [0, 0, 1, 1], [], []>} : vector<80x8xf32>, vector<8x16xf32>, vector<80x16xf32> -> vector<80x16xf32>
    %223 = arith.addf %218, %222 : vector<80x16xf32>
    %c19_207 = arith.constant 19 : index
    %c0_208 = arith.constant 0 : index
    %224 = vector.load %arg14[%c19_207, %c0_208] : memref<120x8xf32, #tpu.memory_space<vmem>>, vector<80x8xf32>
    %c3_209 = arith.constant 3 : index
    %c0_210 = arith.constant 0 : index
    %c0_211 = arith.constant 0 : index
    %225 = vector.load %arg4[%c3_209, %c0_210, %c0_211] : memref<9x8x16xf32, #tpu.memory_space<vmem>>, vector<1x8x16xf32>
    %226 = vector.shape_cast %225 : vector<1x8x16xf32> to vector<8x16xf32>
    %cst_212 = arith.constant dense<0.000000e+00> : vector<80x16xf32>
    %227 = tpu.matmul %224, %226, %cst_212 {dimension_numbers = #tpu.dot_dimension_numbers<[1], [0], [0], [1], [0, 0, 1, 1], [], []>} : vector<80x8xf32>, vector<8x16xf32>, vector<80x16xf32> -> vector<80x16xf32>
    %228 = arith.addf %223, %227 : vector<80x16xf32>
    %c20_213 = arith.constant 20 : index
    %c0_214 = arith.constant 0 : index
    %229 = vector.load %arg14[%c20_213, %c0_214] : memref<120x8xf32, #tpu.memory_space<vmem>>, vector<80x8xf32>
    %c4_215 = arith.constant 4 : index
    %c0_216 = arith.constant 0 : index
    %c0_217 = arith.constant 0 : index
    %230 = vector.load %arg4[%c4_215, %c0_216, %c0_217] : memref<9x8x16xf32, #tpu.memory_space<vmem>>, vector<1x8x16xf32>
    %231 = vector.shape_cast %230 : vector<1x8x16xf32> to vector<8x16xf32>
    %cst_218 = arith.constant dense<0.000000e+00> : vector<80x16xf32>
    %232 = tpu.matmul %229, %231, %cst_218 {dimension_numbers = #tpu.dot_dimension_numbers<[1], [0], [0], [1], [0, 0, 1, 1], [], []>} : vector<80x8xf32>, vector<8x16xf32>, vector<80x16xf32> -> vector<80x16xf32>
    %233 = arith.addf %228, %232 : vector<80x16xf32>
    %c21_219 = arith.constant 21 : index
    %c0_220 = arith.constant 0 : index
    %234 = vector.load %arg14[%c21_219, %c0_220] : memref<120x8xf32, #tpu.memory_space<vmem>>, vector<80x8xf32>
    %c5_221 = arith.constant 5 : index
    %c0_222 = arith.constant 0 : index
    %c0_223 = arith.constant 0 : index
    %235 = vector.load %arg4[%c5_221, %c0_222, %c0_223] : memref<9x8x16xf32, #tpu.memory_space<vmem>>, vector<1x8x16xf32>
    %236 = vector.shape_cast %235 : vector<1x8x16xf32> to vector<8x16xf32>
    %cst_224 = arith.constant dense<0.000000e+00> : vector<80x16xf32>
    %237 = tpu.matmul %234, %236, %cst_224 {dimension_numbers = #tpu.dot_dimension_numbers<[1], [0], [0], [1], [0, 0, 1, 1], [], []>} : vector<80x8xf32>, vector<8x16xf32>, vector<80x16xf32> -> vector<80x16xf32>
    %238 = arith.addf %233, %237 : vector<80x16xf32>
    %c29 = arith.constant 29 : index
    %c0_225 = arith.constant 0 : index
    %239 = vector.load %arg14[%c29, %c0_225] : memref<120x8xf32, #tpu.memory_space<vmem>>, vector<80x8xf32>
    %c6_226 = arith.constant 6 : index
    %c0_227 = arith.constant 0 : index
    %c0_228 = arith.constant 0 : index
    %240 = vector.load %arg4[%c6_226, %c0_227, %c0_228] : memref<9x8x16xf32, #tpu.memory_space<vmem>>, vector<1x8x16xf32>
    %241 = vector.shape_cast %240 : vector<1x8x16xf32> to vector<8x16xf32>
    %cst_229 = arith.constant dense<0.000000e+00> : vector<80x16xf32>
    %242 = tpu.matmul %239, %241, %cst_229 {dimension_numbers = #tpu.dot_dimension_numbers<[1], [0], [0], [1], [0, 0, 1, 1], [], []>} : vector<80x8xf32>, vector<8x16xf32>, vector<80x16xf32> -> vector<80x16xf32>
    %243 = arith.addf %238, %242 : vector<80x16xf32>
    %c30 = arith.constant 30 : index
    %c0_230 = arith.constant 0 : index
    %244 = vector.load %arg14[%c30, %c0_230] : memref<120x8xf32, #tpu.memory_space<vmem>>, vector<80x8xf32>
    %c7_231 = arith.constant 7 : index
    %c0_232 = arith.constant 0 : index
    %c0_233 = arith.constant 0 : index
    %245 = vector.load %arg4[%c7_231, %c0_232, %c0_233] : memref<9x8x16xf32, #tpu.memory_space<vmem>>, vector<1x8x16xf32>
    %246 = vector.shape_cast %245 : vector<1x8x16xf32> to vector<8x16xf32>
    %cst_234 = arith.constant dense<0.000000e+00> : vector<80x16xf32>
    %247 = tpu.matmul %244, %246, %cst_234 {dimension_numbers = #tpu.dot_dimension_numbers<[1], [0], [0], [1], [0, 0, 1, 1], [], []>} : vector<80x8xf32>, vector<8x16xf32>, vector<80x16xf32> -> vector<80x16xf32>
    %248 = arith.addf %243, %247 : vector<80x16xf32>
    %c31_235 = arith.constant 31 : index
    %c0_236 = arith.constant 0 : index
    %249 = vector.load %arg14[%c31_235, %c0_236] : memref<120x8xf32, #tpu.memory_space<vmem>>, vector<80x8xf32>
    %c8_237 = arith.constant 8 : index
    %c0_238 = arith.constant 0 : index
    %c0_239 = arith.constant 0 : index
    %250 = vector.load %arg4[%c8_237, %c0_238, %c0_239] : memref<9x8x16xf32, #tpu.memory_space<vmem>>, vector<1x8x16xf32>
    %251 = vector.shape_cast %250 : vector<1x8x16xf32> to vector<8x16xf32>
    %cst_240 = arith.constant dense<0.000000e+00> : vector<80x16xf32>
    %252 = tpu.matmul %249, %251, %cst_240 {dimension_numbers = #tpu.dot_dimension_numbers<[1], [0], [0], [1], [0, 0, 1, 1], [], []>} : vector<80x8xf32>, vector<8x16xf32>, vector<80x16xf32> -> vector<80x16xf32>
    %253 = arith.addf %248, %252 : vector<80x16xf32>
    %c0_241 = arith.constant 0 : index
    %c0_242 = arith.constant 0 : index
    %254 = vector.load %arg5[%c0_241, %c0_242] : memref<1x16xf32, #tpu.memory_space<vmem>>, vector<1x16xf32>
    %255 = vector.broadcast %254 : vector<1x16xf32> to vector<80x16xf32>
    %256 = arith.addf %253, %255 : vector<80x16xf32>
    %cst_243 = arith.constant 0.000000e+00 : f32
    %257 = vector.broadcast %cst_243 : f32 to vector<80x16xf32>
    %258 = arith.maximumf %256, %257 : vector<80x16xf32>
    %c0_244 = arith.constant 0 : index
    %c0_245 = arith.constant 0 : index
    %259 = vector.load %arg15[%c0_244, %c0_245] : memref<80x16xf32, #tpu.memory_space<vmem>>, vector<80x16xf32>
    tpu.vector_store %arg15[%c0_244, %c0_245], %258 {strides = array<i32>} : memref<80x16xf32, #tpu.memory_space<vmem>>, vector<80x16xf32>,
    %c1_246 = arith.constant 1 : index
    %c0_247 = arith.constant 0 : index
    %260 = tpu.strided_load %arg15[%c1_246, %c0_247] {strides = array<i32: 2, 1>} : memref<80x16xf32, #tpu.memory_space<vmem>>, vector<4x16xf32>
    %c2_248 = arith.constant 2 : index
    %c0_249 = arith.constant 0 : index
    %261 = tpu.strided_load %arg15[%c2_248, %c0_249] {strides = array<i32: 2, 1>} : memref<80x16xf32, #tpu.memory_space<vmem>>, vector<4x16xf32>
    %c11_250 = arith.constant 11 : index
    %c0_251 = arith.constant 0 : index
    %262 = tpu.strided_load %arg15[%c11_250, %c0_251] {strides = array<i32: 2, 1>} : memref<80x16xf32, #tpu.memory_space<vmem>>, vector<4x16xf32>
    %c12 = arith.constant 12 : index
    %c0_252 = arith.constant 0 : index
    %263 = tpu.strided_load %arg15[%c12, %c0_252] {strides = array<i32: 2, 1>} : memref<80x16xf32, #tpu.memory_space<vmem>>, vector<4x16xf32>
    %264 = arith.maximumf %260, %261 : vector<4x16xf32>
    %265 = arith.maximumf %262, %263 : vector<4x16xf32>
    %266 = arith.maximumf %264, %265 : vector<4x16xf32>
    %c13 = arith.constant 13 : index
    %c0_253 = arith.constant 0 : index
    %267 = vector.load %arg16[%c13, %c0_253] : memref<48x16xf32, #tpu.memory_space<vmem>>, vector<4x16xf32>
    tpu.vector_store %arg16[%c13, %c0_253], %266 {strides = array<i32>} : memref<48x16xf32, #tpu.memory_space<vmem>>, vector<4x16xf32>,
    %cst_254 = arith.constant dense<0.000000e+00> : vector<4xf32>
    %268 = vector.multi_reduction <add>, %266, %cst_254 [1] : vector<4x16xf32> to vector<4xf32>
    %269 = vector.shape_cast %268 : vector<4xf32> to vector<4x1xf32>
    %cst_255 = arith.constant 1.600000e+01 : f32
    %270 = vector.broadcast %cst_255 : f32 to vector<4x1xf32>
    %271 = arith.divf %269, %270 : vector<4x1xf32>
    %c0_256 = arith.constant 0 : index
    %c0_257 = arith.constant 0 : index
    %272 = vector.load %arg21[%c0_256, %c0_257] : memref<16x1xf32, #tpu.memory_space<vmem>>, vector<4x1xf32>
    tpu.vector_store %arg21[%c0_256, %c0_257], %271 {strides = array<i32>} : memref<16x1xf32, #tpu.memory_space<vmem>>, vector<4x1xf32>,
    %c21_258 = arith.constant 21 : index
    %c0_259 = arith.constant 0 : index
    %273 = tpu.strided_load %arg15[%c21_258, %c0_259] {strides = array<i32: 2, 1>} : memref<80x16xf32, #tpu.memory_space<vmem>>, vector<4x16xf32>
    %c22 = arith.constant 22 : index
    %c0_260 = arith.constant 0 : index
    %274 = tpu.strided_load %arg15[%c22, %c0_260] {strides = array<i32: 2, 1>} : memref<80x16xf32, #tpu.memory_space<vmem>>, vector<4x16xf32>
    %c31_261 = arith.constant 31 : index
    %c0_262 = arith.constant 0 : index
    %275 = tpu.strided_load %arg15[%c31_261, %c0_262] {strides = array<i32: 2, 1>} : memref<80x16xf32, #tpu.memory_space<vmem>>, vector<4x16xf32>
    %c32_263 = arith.constant 32 : index
    %c0_264 = arith.constant 0 : index
    %276 = tpu.strided_load %arg15[%c32_263, %c0_264] {strides = array<i32: 2, 1>} : memref<80x16xf32, #tpu.memory_space<vmem>>, vector<4x16xf32>
    %277 = arith.maximumf %273, %274 : vector<4x16xf32>
    %278 = arith.maximumf %275, %276 : vector<4x16xf32>
    %279 = arith.maximumf %277, %278 : vector<4x16xf32>
    %c19_265 = arith.constant 19 : index
    %c0_266 = arith.constant 0 : index
    %280 = vector.load %arg16[%c19_265, %c0_266] : memref<48x16xf32, #tpu.memory_space<vmem>>, vector<4x16xf32>
    tpu.vector_store %arg16[%c19_265, %c0_266], %279 {strides = array<i32>} : memref<48x16xf32, #tpu.memory_space<vmem>>, vector<4x16xf32>,
    %cst_267 = arith.constant dense<0.000000e+00> : vector<4xf32>
    %281 = vector.multi_reduction <add>, %279, %cst_267 [1] : vector<4x16xf32> to vector<4xf32>
    %282 = vector.shape_cast %281 : vector<4xf32> to vector<4x1xf32>
    %cst_268 = arith.constant 1.600000e+01 : f32
    %283 = vector.broadcast %cst_268 : f32 to vector<4x1xf32>
    %284 = arith.divf %282, %283 : vector<4x1xf32>
    %c4_269 = arith.constant 4 : index
    %c0_270 = arith.constant 0 : index
    %285 = vector.load %arg21[%c4_269, %c0_270] : memref<16x1xf32, #tpu.memory_space<vmem>>, vector<4x1xf32>
    tpu.vector_store %arg21[%c4_269, %c0_270], %284 {strides = array<i32>} : memref<16x1xf32, #tpu.memory_space<vmem>>, vector<4x1xf32>,
    %c41_271 = arith.constant 41 : index
    %c0_272 = arith.constant 0 : index
    %286 = tpu.strided_load %arg15[%c41_271, %c0_272] {strides = array<i32: 2, 1>} : memref<80x16xf32, #tpu.memory_space<vmem>>, vector<4x16xf32>
    %c42 = arith.constant 42 : index
    %c0_273 = arith.constant 0 : index
    %287 = tpu.strided_load %arg15[%c42, %c0_273] {strides = array<i32: 2, 1>} : memref<80x16xf32, #tpu.memory_space<vmem>>, vector<4x16xf32>
    %c51_274 = arith.constant 51 : index
    %c0_275 = arith.constant 0 : index
    %288 = tpu.strided_load %arg15[%c51_274, %c0_275] {strides = array<i32: 2, 1>} : memref<80x16xf32, #tpu.memory_space<vmem>>, vector<4x16xf32>
    %c52 = arith.constant 52 : index
    %c0_276 = arith.constant 0 : index
    %289 = tpu.strided_load %arg15[%c52, %c0_276] {strides = array<i32: 2, 1>} : memref<80x16xf32, #tpu.memory_space<vmem>>, vector<4x16xf32>
    %290 = arith.maximumf %286, %287 : vector<4x16xf32>
    %291 = arith.maximumf %288, %289 : vector<4x16xf32>
    %292 = arith.maximumf %290, %291 : vector<4x16xf32>
    %c25 = arith.constant 25 : index
    %c0_277 = arith.constant 0 : index
    %293 = vector.load %arg16[%c25, %c0_277] : memref<48x16xf32, #tpu.memory_space<vmem>>, vector<4x16xf32>
    tpu.vector_store %arg16[%c25, %c0_277], %292 {strides = array<i32>} : memref<48x16xf32, #tpu.memory_space<vmem>>, vector<4x16xf32>,
    %cst_278 = arith.constant dense<0.000000e+00> : vector<4xf32>
    %294 = vector.multi_reduction <add>, %292, %cst_278 [1] : vector<4x16xf32> to vector<4xf32>
    %295 = vector.shape_cast %294 : vector<4xf32> to vector<4x1xf32>
    %cst_279 = arith.constant 1.600000e+01 : f32
    %296 = vector.broadcast %cst_279 : f32 to vector<4x1xf32>
    %297 = arith.divf %295, %296 : vector<4x1xf32>
    %c8_280 = arith.constant 8 : index
    %c0_281 = arith.constant 0 : index
    %298 = vector.load %arg21[%c8_280, %c0_281] : memref<16x1xf32, #tpu.memory_space<vmem>>, vector<4x1xf32>
    tpu.vector_store %arg21[%c8_280, %c0_281], %297 {strides = array<i32>} : memref<16x1xf32, #tpu.memory_space<vmem>>, vector<4x1xf32>,
    %c61_282 = arith.constant 61 : index
    %c0_283 = arith.constant 0 : index
    %299 = tpu.strided_load %arg15[%c61_282, %c0_283] {strides = array<i32: 2, 1>} : memref<80x16xf32, #tpu.memory_space<vmem>>, vector<4x16xf32>
    %c62 = arith.constant 62 : index
    %c0_284 = arith.constant 0 : index
    %300 = tpu.strided_load %arg15[%c62, %c0_284] {strides = array<i32: 2, 1>} : memref<80x16xf32, #tpu.memory_space<vmem>>, vector<4x16xf32>
    %c71_285 = arith.constant 71 : index
    %c0_286 = arith.constant 0 : index
    %301 = tpu.strided_load %arg15[%c71_285, %c0_286] {strides = array<i32: 2, 1>} : memref<80x16xf32, #tpu.memory_space<vmem>>, vector<4x16xf32>
    %c72 = arith.constant 72 : index
    %c0_287 = arith.constant 0 : index
    %302 = tpu.strided_load %arg15[%c72, %c0_287] {strides = array<i32: 2, 1>} : memref<80x16xf32, #tpu.memory_space<vmem>>, vector<4x16xf32>
    %303 = arith.maximumf %299, %300 : vector<4x16xf32>
    %304 = arith.maximumf %301, %302 : vector<4x16xf32>
    %305 = arith.maximumf %303, %304 : vector<4x16xf32>
    %c31_288 = arith.constant 31 : index
    %c0_289 = arith.constant 0 : index
    %306 = vector.load %arg16[%c31_288, %c0_289] : memref<48x16xf32, #tpu.memory_space<vmem>>, vector<4x16xf32>
    tpu.vector_store %arg16[%c31_288, %c0_289], %305 {strides = array<i32>} : memref<48x16xf32, #tpu.memory_space<vmem>>, vector<4x16xf32>,
    %cst_290 = arith.constant dense<0.000000e+00> : vector<4xf32>
    %307 = vector.multi_reduction <add>, %305, %cst_290 [1] : vector<4x16xf32> to vector<4xf32>
    %308 = vector.shape_cast %307 : vector<4xf32> to vector<4x1xf32>
    %cst_291 = arith.constant 1.600000e+01 : f32
    %309 = vector.broadcast %cst_291 : f32 to vector<4x1xf32>
    %310 = arith.divf %308, %309 : vector<4x1xf32>
    %c12_292 = arith.constant 12 : index
    %c0_293 = arith.constant 0 : index
    %311 = vector.load %arg21[%c12_292, %c0_293] : memref<16x1xf32, #tpu.memory_space<vmem>>, vector<4x1xf32>
    tpu.vector_store %arg21[%c12_292, %c0_293], %310 {strides = array<i32>} : memref<16x1xf32, #tpu.memory_space<vmem>>, vector<4x1xf32>,
    %c5_294 = arith.constant 5 : index
    %c0_295 = arith.constant 0 : index
    %312 = vector.load %arg16[%c5_294, %c0_295] : memref<48x16xf32, #tpu.memory_space<vmem>>, vector<24x16xf32>
    %c0_296 = arith.constant 0 : index
    %c0_297 = arith.constant 0 : index
    %c0_298 = arith.constant 0 : index
    %313 = vector.load %arg6[%c0_296, %c0_297, %c0_298] : memref<9x16x32xf32, #tpu.memory_space<vmem>>, vector<1x16x32xf32>
    %314 = vector.shape_cast %313 : vector<1x16x32xf32> to vector<16x32xf32>
    %cst_299 = arith.constant dense<0.000000e+00> : vector<24x32xf32>
    %315 = tpu.matmul %312, %314, %cst_299 {dimension_numbers = #tpu.dot_dimension_numbers<[1], [0], [0], [1], [0, 0, 1, 1], [], []>} : vector<24x16xf32>, vector<16x32xf32>, vector<24x32xf32> -> vector<24x32xf32>
    %c6_300 = arith.constant 6 : index
    %c0_301 = arith.constant 0 : index
    %316 = vector.load %arg16[%c6_300, %c0_301] : memref<48x16xf32, #tpu.memory_space<vmem>>, vector<24x16xf32>
    %c1_302 = arith.constant 1 : index
    %c0_303 = arith.constant 0 : index
    %c0_304 = arith.constant 0 : index
    %317 = vector.load %arg6[%c1_302, %c0_303, %c0_304] : memref<9x16x32xf32, #tpu.memory_space<vmem>>, vector<1x16x32xf32>
    %318 = vector.shape_cast %317 : vector<1x16x32xf32> to vector<16x32xf32>
    %cst_305 = arith.constant dense<0.000000e+00> : vector<24x32xf32>
    %319 = tpu.matmul %316, %318, %cst_305 {dimension_numbers = #tpu.dot_dimension_numbers<[1], [0], [0], [1], [0, 0, 1, 1], [], []>} : vector<24x16xf32>, vector<16x32xf32>, vector<24x32xf32> -> vector<24x32xf32>
    %320 = arith.addf %315, %319 : vector<24x32xf32>
    %c7_306 = arith.constant 7 : index
    %c0_307 = arith.constant 0 : index
    %321 = vector.load %arg16[%c7_306, %c0_307] : memref<48x16xf32, #tpu.memory_space<vmem>>, vector<24x16xf32>
    %c2_308 = arith.constant 2 : index
    %c0_309 = arith.constant 0 : index
    %c0_310 = arith.constant 0 : index
    %322 = vector.load %arg6[%c2_308, %c0_309, %c0_310] : memref<9x16x32xf32, #tpu.memory_space<vmem>>, vector<1x16x32xf32>
    %323 = vector.shape_cast %322 : vector<1x16x32xf32> to vector<16x32xf32>
    %cst_311 = arith.constant dense<0.000000e+00> : vector<24x32xf32>
    %324 = tpu.matmul %321, %323, %cst_311 {dimension_numbers = #tpu.dot_dimension_numbers<[1], [0], [0], [1], [0, 0, 1, 1], [], []>} : vector<24x16xf32>, vector<16x32xf32>, vector<24x32xf32> -> vector<24x32xf32>
    %325 = arith.addf %320, %324 : vector<24x32xf32>
    %c11_312 = arith.constant 11 : index
    %c0_313 = arith.constant 0 : index
    %326 = vector.load %arg16[%c11_312, %c0_313] : memref<48x16xf32, #tpu.memory_space<vmem>>, vector<24x16xf32>
    %c3_314 = arith.constant 3 : index
    %c0_315 = arith.constant 0 : index
    %c0_316 = arith.constant 0 : index
    %327 = vector.load %arg6[%c3_314, %c0_315, %c0_316] : memref<9x16x32xf32, #tpu.memory_space<vmem>>, vector<1x16x32xf32>
    %328 = vector.shape_cast %327 : vector<1x16x32xf32> to vector<16x32xf32>
    %cst_317 = arith.constant dense<0.000000e+00> : vector<24x32xf32>
    %329 = tpu.matmul %326, %328, %cst_317 {dimension_numbers = #tpu.dot_dimension_numbers<[1], [0], [0], [1], [0, 0, 1, 1], [], []>} : vector<24x16xf32>, vector<16x32xf32>, vector<24x32xf32> -> vector<24x32xf32>
    %330 = arith.addf %325, %329 : vector<24x32xf32>
    %c12_318 = arith.constant 12 : index
    %c0_319 = arith.constant 0 : index
    %331 = vector.load %arg16[%c12_318, %c0_319] : memref<48x16xf32, #tpu.memory_space<vmem>>, vector<24x16xf32>
    %c4_320 = arith.constant 4 : index
    %c0_321 = arith.constant 0 : index
    %c0_322 = arith.constant 0 : index
    %332 = vector.load %arg6[%c4_320, %c0_321, %c0_322] : memref<9x16x32xf32, #tpu.memory_space<vmem>>, vector<1x16x32xf32>
    %333 = vector.shape_cast %332 : vector<1x16x32xf32> to vector<16x32xf32>
    %cst_323 = arith.constant dense<0.000000e+00> : vector<24x32xf32>
    %334 = tpu.matmul %331, %333, %cst_323 {dimension_numbers = #tpu.dot_dimension_numbers<[1], [0], [0], [1], [0, 0, 1, 1], [], []>} : vector<24x16xf32>, vector<16x32xf32>, vector<24x32xf32> -> vector<24x32xf32>
    %335 = arith.addf %330, %334 : vector<24x32xf32>
    %c13_324 = arith.constant 13 : index
    %c0_325 = arith.constant 0 : index
    %336 = vector.load %arg16[%c13_324, %c0_325] : memref<48x16xf32, #tpu.memory_space<vmem>>, vector<24x16xf32>
    %c5_326 = arith.constant 5 : index
    %c0_327 = arith.constant 0 : index
    %c0_328 = arith.constant 0 : index
    %337 = vector.load %arg6[%c5_326, %c0_327, %c0_328] : memref<9x16x32xf32, #tpu.memory_space<vmem>>, vector<1x16x32xf32>
    %338 = vector.shape_cast %337 : vector<1x16x32xf32> to vector<16x32xf32>
    %cst_329 = arith.constant dense<0.000000e+00> : vector<24x32xf32>
    %339 = tpu.matmul %336, %338, %cst_329 {dimension_numbers = #tpu.dot_dimension_numbers<[1], [0], [0], [1], [0, 0, 1, 1], [], []>} : vector<24x16xf32>, vector<16x32xf32>, vector<24x32xf32> -> vector<24x32xf32>
    %340 = arith.addf %335, %339 : vector<24x32xf32>
    %c17_330 = arith.constant 17 : index
    %c0_331 = arith.constant 0 : index
    %341 = vector.load %arg16[%c17_330, %c0_331] : memref<48x16xf32, #tpu.memory_space<vmem>>, vector<24x16xf32>
    %c6_332 = arith.constant 6 : index
    %c0_333 = arith.constant 0 : index
    %c0_334 = arith.constant 0 : index
    %342 = vector.load %arg6[%c6_332, %c0_333, %c0_334] : memref<9x16x32xf32, #tpu.memory_space<vmem>>, vector<1x16x32xf32>
    %343 = vector.shape_cast %342 : vector<1x16x32xf32> to vector<16x32xf32>
    %cst_335 = arith.constant dense<0.000000e+00> : vector<24x32xf32>
    %344 = tpu.matmul %341, %343, %cst_335 {dimension_numbers = #tpu.dot_dimension_numbers<[1], [0], [0], [1], [0, 0, 1, 1], [], []>} : vector<24x16xf32>, vector<16x32xf32>, vector<24x32xf32> -> vector<24x32xf32>
    %345 = arith.addf %340, %344 : vector<24x32xf32>
    %c18_336 = arith.constant 18 : index
    %c0_337 = arith.constant 0 : index
    %346 = vector.load %arg16[%c18_336, %c0_337] : memref<48x16xf32, #tpu.memory_space<vmem>>, vector<24x16xf32>
    %c7_338 = arith.constant 7 : index
    %c0_339 = arith.constant 0 : index
    %c0_340 = arith.constant 0 : index
    %347 = vector.load %arg6[%c7_338, %c0_339, %c0_340] : memref<9x16x32xf32, #tpu.memory_space<vmem>>, vector<1x16x32xf32>
    %348 = vector.shape_cast %347 : vector<1x16x32xf32> to vector<16x32xf32>
    %cst_341 = arith.constant dense<0.000000e+00> : vector<24x32xf32>
    %349 = tpu.matmul %346, %348, %cst_341 {dimension_numbers = #tpu.dot_dimension_numbers<[1], [0], [0], [1], [0, 0, 1, 1], [], []>} : vector<24x16xf32>, vector<16x32xf32>, vector<24x32xf32> -> vector<24x32xf32>
    %350 = arith.addf %345, %349 : vector<24x32xf32>
    %c19_342 = arith.constant 19 : index
    %c0_343 = arith.constant 0 : index
    %351 = vector.load %arg16[%c19_342, %c0_343] : memref<48x16xf32, #tpu.memory_space<vmem>>, vector<24x16xf32>
    %c8_344 = arith.constant 8 : index
    %c0_345 = arith.constant 0 : index
    %c0_346 = arith.constant 0 : index
    %352 = vector.load %arg6[%c8_344, %c0_345, %c0_346] : memref<9x16x32xf32, #tpu.memory_space<vmem>>, vector<1x16x32xf32>
    %353 = vector.shape_cast %352 : vector<1x16x32xf32> to vector<16x32xf32>
    %cst_347 = arith.constant dense<0.000000e+00> : vector<24x32xf32>
    %354 = tpu.matmul %351, %353, %cst_347 {dimension_numbers = #tpu.dot_dimension_numbers<[1], [0], [0], [1], [0, 0, 1, 1], [], []>} : vector<24x16xf32>, vector<16x32xf32>, vector<24x32xf32> -> vector<24x32xf32>
    %355 = arith.addf %350, %354 : vector<24x32xf32>
    %c0_348 = arith.constant 0 : index
    %c0_349 = arith.constant 0 : index
    %356 = vector.load %arg7[%c0_348, %c0_349] : memref<1x32xf32, #tpu.memory_space<vmem>>, vector<1x32xf32>
    %357 = vector.broadcast %356 : vector<1x32xf32> to vector<24x32xf32>
    %358 = arith.addf %355, %357 : vector<24x32xf32>
    %cst_350 = arith.constant 0.000000e+00 : f32
    %359 = vector.broadcast %cst_350 : f32 to vector<24x32xf32>
    %360 = arith.maximumf %358, %359 : vector<24x32xf32>
    %c0_351 = arith.constant 0 : index
    %c0_352 = arith.constant 0 : index
    %361 = vector.load %arg17[%c0_351, %c0_352] : memref<24x32xf32, #tpu.memory_space<vmem>>, vector<24x32xf32>
    tpu.vector_store %arg17[%c0_351, %c0_352], %360 {strides = array<i32>} : memref<24x32xf32, #tpu.memory_space<vmem>>, vector<24x32xf32>,
    %c1_353 = arith.constant 1 : index
    %c0_354 = arith.constant 0 : index
    %362 = tpu.strided_load %arg17[%c1_353, %c0_354] {strides = array<i32: 2, 1>} : memref<24x32xf32, #tpu.memory_space<vmem>>, vector<2x32xf32>
    %c2_355 = arith.constant 2 : index
    %c0_356 = arith.constant 0 : index
    %363 = tpu.strided_load %arg17[%c2_355, %c0_356] {strides = array<i32: 2, 1>} : memref<24x32xf32, #tpu.memory_space<vmem>>, vector<2x32xf32>
    %c7_357 = arith.constant 7 : index
    %c0_358 = arith.constant 0 : index
    %364 = tpu.strided_load %arg17[%c7_357, %c0_358] {strides = array<i32: 2, 1>} : memref<24x32xf32, #tpu.memory_space<vmem>>, vector<2x32xf32>
    %c8_359 = arith.constant 8 : index
    %c0_360 = arith.constant 0 : index
    %365 = tpu.strided_load %arg17[%c8_359, %c0_360] {strides = array<i32: 2, 1>} : memref<24x32xf32, #tpu.memory_space<vmem>>, vector<2x32xf32>
    %366 = arith.maximumf %362, %363 : vector<2x32xf32>
    %367 = arith.maximumf %364, %365 : vector<2x32xf32>
    %368 = arith.maximumf %366, %367 : vector<2x32xf32>
    %c9_361 = arith.constant 9 : index
    %c0_362 = arith.constant 0 : index
    %369 = vector.load %arg18[%c9_361, %c0_362] : memref<24x32xf32, #tpu.memory_space<vmem>>, vector<2x32xf32>
    tpu.vector_store %arg18[%c9_361, %c0_362], %368 {strides = array<i32>} : memref<24x32xf32, #tpu.memory_space<vmem>>, vector<2x32xf32>,
    %cst_363 = arith.constant dense<0.000000e+00> : vector<2xf32>
    %370 = vector.multi_reduction <add>, %368, %cst_363 [1] : vector<2x32xf32> to vector<2xf32>
    %371 = vector.shape_cast %370 : vector<2xf32> to vector<2x1xf32>
    %cst_364 = arith.constant 3.200000e+01 : f32
    %372 = vector.broadcast %cst_364 : f32 to vector<2x1xf32>
    %373 = arith.divf %371, %372 : vector<2x1xf32>
    %c0_365 = arith.constant 0 : index
    %c0_366 = arith.constant 0 : index
    %374 = vector.load %arg22[%c0_365, %c0_366] : memref<4x1xf32, #tpu.memory_space<vmem>>, vector<2x1xf32>
    tpu.vector_store %arg22[%c0_365, %c0_366], %373 {strides = array<i32>} : memref<4x1xf32, #tpu.memory_space<vmem>>, vector<2x1xf32>,
    %c13_367 = arith.constant 13 : index
    %c0_368 = arith.constant 0 : index
    %375 = tpu.strided_load %arg17[%c13_367, %c0_368] {strides = array<i32: 2, 1>} : memref<24x32xf32, #tpu.memory_space<vmem>>, vector<2x32xf32>
    %c14 = arith.constant 14 : index
    %c0_369 = arith.constant 0 : index
    %376 = tpu.strided_load %arg17[%c14, %c0_369] {strides = array<i32: 2, 1>} : memref<24x32xf32, #tpu.memory_space<vmem>>, vector<2x32xf32>
    %c19_370 = arith.constant 19 : index
    %c0_371 = arith.constant 0 : index
    %377 = tpu.strided_load %arg17[%c19_370, %c0_371] {strides = array<i32: 2, 1>} : memref<24x32xf32, #tpu.memory_space<vmem>>, vector<2x32xf32>
    %c20_372 = arith.constant 20 : index
    %c0_373 = arith.constant 0 : index
    %378 = tpu.strided_load %arg17[%c20_372, %c0_373] {strides = array<i32: 2, 1>} : memref<24x32xf32, #tpu.memory_space<vmem>>, vector<2x32xf32>
    %379 = arith.maximumf %375, %376 : vector<2x32xf32>
    %380 = arith.maximumf %377, %378 : vector<2x32xf32>
    %381 = arith.maximumf %379, %380 : vector<2x32xf32>
    %c13_374 = arith.constant 13 : index
    %c0_375 = arith.constant 0 : index
    %382 = vector.load %arg18[%c13_374, %c0_375] : memref<24x32xf32, #tpu.memory_space<vmem>>, vector<2x32xf32>
    tpu.vector_store %arg18[%c13_374, %c0_375], %381 {strides = array<i32>} : memref<24x32xf32, #tpu.memory_space<vmem>>, vector<2x32xf32>,
    %cst_376 = arith.constant dense<0.000000e+00> : vector<2xf32>
    %383 = vector.multi_reduction <add>, %381, %cst_376 [1] : vector<2x32xf32> to vector<2xf32>
    %384 = vector.shape_cast %383 : vector<2xf32> to vector<2x1xf32>
    %cst_377 = arith.constant 3.200000e+01 : f32
    %385 = vector.broadcast %cst_377 : f32 to vector<2x1xf32>
    %386 = arith.divf %384, %385 : vector<2x1xf32>
    %c2_378 = arith.constant 2 : index
    %c0_379 = arith.constant 0 : index
    %387 = vector.load %arg22[%c2_378, %c0_379] : memref<4x1xf32, #tpu.memory_space<vmem>>, vector<2x1xf32>
    tpu.vector_store %arg22[%c2_378, %c0_379], %386 {strides = array<i32>} : memref<4x1xf32, #tpu.memory_space<vmem>>, vector<2x1xf32>,
    %c3_380 = arith.constant 3 : index
    %c0_381 = arith.constant 0 : index
    %388 = vector.load %arg18[%c3_380, %c0_381] : memref<24x32xf32, #tpu.memory_space<vmem>>, vector<8x32xf32>
    %c0_382 = arith.constant 0 : index
    %c0_383 = arith.constant 0 : index
    %c0_384 = arith.constant 0 : index
    %389 = vector.load %arg8[%c0_382, %c0_383, %c0_384] : memref<9x32x64xf32, #tpu.memory_space<vmem>>, vector<1x32x64xf32>
    %390 = vector.shape_cast %389 : vector<1x32x64xf32> to vector<32x64xf32>
    %cst_385 = arith.constant dense<0.000000e+00> : vector<8x64xf32>
    %391 = tpu.matmul %388, %390, %cst_385 {dimension_numbers = #tpu.dot_dimension_numbers<[1], [0], [0], [1], [0, 0, 1, 1], [], []>} : vector<8x32xf32>, vector<32x64xf32>, vector<8x64xf32> -> vector<8x64xf32>
    %c4_386 = arith.constant 4 : index
    %c0_387 = arith.constant 0 : index
    %392 = vector.load %arg18[%c4_386, %c0_387] : memref<24x32xf32, #tpu.memory_space<vmem>>, vector<8x32xf32>
    %c1_388 = arith.constant 1 : index
    %c0_389 = arith.constant 0 : index
    %c0_390 = arith.constant 0 : index
    %393 = vector.load %arg8[%c1_388, %c0_389, %c0_390] : memref<9x32x64xf32, #tpu.memory_space<vmem>>, vector<1x32x64xf32>
    %394 = vector.shape_cast %393 : vector<1x32x64xf32> to vector<32x64xf32>
    %cst_391 = arith.constant dense<0.000000e+00> : vector<8x64xf32>
    %395 = tpu.matmul %392, %394, %cst_391 {dimension_numbers = #tpu.dot_dimension_numbers<[1], [0], [0], [1], [0, 0, 1, 1], [], []>} : vector<8x32xf32>, vector<32x64xf32>, vector<8x64xf32> -> vector<8x64xf32>
    %396 = arith.addf %391, %395 : vector<8x64xf32>
    %c5_392 = arith.constant 5 : index
    %c0_393 = arith.constant 0 : index
    %397 = vector.load %arg18[%c5_392, %c0_393] : memref<24x32xf32, #tpu.memory_space<vmem>>, vector<8x32xf32>
    %c2_394 = arith.constant 2 : index
    %c0_395 = arith.constant 0 : index
    %c0_396 = arith.constant 0 : index
    %398 = vector.load %arg8[%c2_394, %c0_395, %c0_396] : memref<9x32x64xf32, #tpu.memory_space<vmem>>, vector<1x32x64xf32>
    %399 = vector.shape_cast %398 : vector<1x32x64xf32> to vector<32x64xf32>
    %cst_397 = arith.constant dense<0.000000e+00> : vector<8x64xf32>
    %400 = tpu.matmul %397, %399, %cst_397 {dimension_numbers = #tpu.dot_dimension_numbers<[1], [0], [0], [1], [0, 0, 1, 1], [], []>} : vector<8x32xf32>, vector<32x64xf32>, vector<8x64xf32> -> vector<8x64xf32>
    %401 = arith.addf %396, %400 : vector<8x64xf32>
    %c7_398 = arith.constant 7 : index
    %c0_399 = arith.constant 0 : index
    %402 = vector.load %arg18[%c7_398, %c0_399] : memref<24x32xf32, #tpu.memory_space<vmem>>, vector<8x32xf32>
    %c3_400 = arith.constant 3 : index
    %c0_401 = arith.constant 0 : index
    %c0_402 = arith.constant 0 : index
    %403 = vector.load %arg8[%c3_400, %c0_401, %c0_402] : memref<9x32x64xf32, #tpu.memory_space<vmem>>, vector<1x32x64xf32>
    %404 = vector.shape_cast %403 : vector<1x32x64xf32> to vector<32x64xf32>
    %cst_403 = arith.constant dense<0.000000e+00> : vector<8x64xf32>
    %405 = tpu.matmul %402, %404, %cst_403 {dimension_numbers = #tpu.dot_dimension_numbers<[1], [0], [0], [1], [0, 0, 1, 1], [], []>} : vector<8x32xf32>, vector<32x64xf32>, vector<8x64xf32> -> vector<8x64xf32>
    %406 = arith.addf %401, %405 : vector<8x64xf32>
    %c8_404 = arith.constant 8 : index
    %c0_405 = arith.constant 0 : index
    %407 = vector.load %arg18[%c8_404, %c0_405] : memref<24x32xf32, #tpu.memory_space<vmem>>, vector<8x32xf32>
    %c4_406 = arith.constant 4 : index
    %c0_407 = arith.constant 0 : index
    %c0_408 = arith.constant 0 : index
    %408 = vector.load %arg8[%c4_406, %c0_407, %c0_408] : memref<9x32x64xf32, #tpu.memory_space<vmem>>, vector<1x32x64xf32>
    %409 = vector.shape_cast %408 : vector<1x32x64xf32> to vector<32x64xf32>
    %cst_409 = arith.constant dense<0.000000e+00> : vector<8x64xf32>
    %410 = tpu.matmul %407, %409, %cst_409 {dimension_numbers = #tpu.dot_dimension_numbers<[1], [0], [0], [1], [0, 0, 1, 1], [], []>} : vector<8x32xf32>, vector<32x64xf32>, vector<8x64xf32> -> vector<8x64xf32>
    %411 = arith.addf %406, %410 : vector<8x64xf32>
    %c9_410 = arith.constant 9 : index
    %c0_411 = arith.constant 0 : index
    %412 = vector.load %arg18[%c9_410, %c0_411] : memref<24x32xf32, #tpu.memory_space<vmem>>, vector<8x32xf32>
    %c5_412 = arith.constant 5 : index
    %c0_413 = arith.constant 0 : index
    %c0_414 = arith.constant 0 : index
    %413 = vector.load %arg8[%c5_412, %c0_413, %c0_414] : memref<9x32x64xf32, #tpu.memory_space<vmem>>, vector<1x32x64xf32>
    %414 = vector.shape_cast %413 : vector<1x32x64xf32> to vector<32x64xf32>
    %cst_415 = arith.constant dense<0.000000e+00> : vector<8x64xf32>
    %415 = tpu.matmul %412, %414, %cst_415 {dimension_numbers = #tpu.dot_dimension_numbers<[1], [0], [0], [1], [0, 0, 1, 1], [], []>} : vector<8x32xf32>, vector<32x64xf32>, vector<8x64xf32> -> vector<8x64xf32>
    %416 = arith.addf %411, %415 : vector<8x64xf32>
    %c11_416 = arith.constant 11 : index
    %c0_417 = arith.constant 0 : index
    %417 = vector.load %arg18[%c11_416, %c0_417] : memref<24x32xf32, #tpu.memory_space<vmem>>, vector<8x32xf32>
    %c6_418 = arith.constant 6 : index
    %c0_419 = arith.constant 0 : index
    %c0_420 = arith.constant 0 : index
    %418 = vector.load %arg8[%c6_418, %c0_419, %c0_420] : memref<9x32x64xf32, #tpu.memory_space<vmem>>, vector<1x32x64xf32>
    %419 = vector.shape_cast %418 : vector<1x32x64xf32> to vector<32x64xf32>
    %cst_421 = arith.constant dense<0.000000e+00> : vector<8x64xf32>
    %420 = tpu.matmul %417, %419, %cst_421 {dimension_numbers = #tpu.dot_dimension_numbers<[1], [0], [0], [1], [0, 0, 1, 1], [], []>} : vector<8x32xf32>, vector<32x64xf32>, vector<8x64xf32> -> vector<8x64xf32>
    %421 = arith.addf %416, %420 : vector<8x64xf32>
    %c12_422 = arith.constant 12 : index
    %c0_423 = arith.constant 0 : index
    %422 = vector.load %arg18[%c12_422, %c0_423] : memref<24x32xf32, #tpu.memory_space<vmem>>, vector<8x32xf32>
    %c7_424 = arith.constant 7 : index
    %c0_425 = arith.constant 0 : index
    %c0_426 = arith.constant 0 : index
    %423 = vector.load %arg8[%c7_424, %c0_425, %c0_426] : memref<9x32x64xf32, #tpu.memory_space<vmem>>, vector<1x32x64xf32>
    %424 = vector.shape_cast %423 : vector<1x32x64xf32> to vector<32x64xf32>
    %cst_427 = arith.constant dense<0.000000e+00> : vector<8x64xf32>
    %425 = tpu.matmul %422, %424, %cst_427 {dimension_numbers = #tpu.dot_dimension_numbers<[1], [0], [0], [1], [0, 0, 1, 1], [], []>} : vector<8x32xf32>, vector<32x64xf32>, vector<8x64xf32> -> vector<8x64xf32>
    %426 = arith.addf %421, %425 : vector<8x64xf32>
    %c13_428 = arith.constant 13 : index
    %c0_429 = arith.constant 0 : index
    %427 = vector.load %arg18[%c13_428, %c0_429] : memref<24x32xf32, #tpu.memory_space<vmem>>, vector<8x32xf32>
    %c8_430 = arith.constant 8 : index
    %c0_431 = arith.constant 0 : index
    %c0_432 = arith.constant 0 : index
    %428 = vector.load %arg8[%c8_430, %c0_431, %c0_432] : memref<9x32x64xf32, #tpu.memory_space<vmem>>, vector<1x32x64xf32>
    %429 = vector.shape_cast %428 : vector<1x32x64xf32> to vector<32x64xf32>
    %cst_433 = arith.constant dense<0.000000e+00> : vector<8x64xf32>
    %430 = tpu.matmul %427, %429, %cst_433 {dimension_numbers = #tpu.dot_dimension_numbers<[1], [0], [0], [1], [0, 0, 1, 1], [], []>} : vector<8x32xf32>, vector<32x64xf32>, vector<8x64xf32> -> vector<8x64xf32>
    %431 = arith.addf %426, %430 : vector<8x64xf32>
    %c0_434 = arith.constant 0 : index
    %c0_435 = arith.constant 0 : index
    %432 = vector.load %arg9[%c0_434, %c0_435] : memref<1x64xf32, #tpu.memory_space<vmem>>, vector<1x64xf32>
    %433 = vector.broadcast %432 : vector<1x64xf32> to vector<8x64xf32>
    %434 = arith.addf %431, %433 : vector<8x64xf32>
    %cst_436 = arith.constant 0.000000e+00 : f32
    %435 = vector.broadcast %cst_436 : f32 to vector<8x64xf32>
    %436 = arith.maximumf %434, %435 : vector<8x64xf32>
    %c0_437 = arith.constant 0 : index
    %c0_438 = arith.constant 0 : index
    %437 = vector.load %arg19[%c0_437, %c0_438] : memref<8x64xf32, #tpu.memory_space<vmem>>, vector<8x64xf32>
    tpu.vector_store %arg19[%c0_437, %c0_438], %436 {strides = array<i32>} : memref<8x64xf32, #tpu.memory_space<vmem>>, vector<8x64xf32>,
    %c1_439 = arith.constant 1 : index
    %c0_440 = arith.constant 0 : index
    %438 = vector.load %arg19[%c1_439, %c0_440] : memref<8x64xf32, #tpu.memory_space<vmem>>, vector<1x64xf32>
    %c2_441 = arith.constant 2 : index
    %c0_442 = arith.constant 0 : index
    %439 = vector.load %arg19[%c2_441, %c0_442] : memref<8x64xf32, #tpu.memory_space<vmem>>, vector<1x64xf32>
    %c5_443 = arith.constant 5 : index
    %c0_444 = arith.constant 0 : index
    %440 = vector.load %arg19[%c5_443, %c0_444] : memref<8x64xf32, #tpu.memory_space<vmem>>, vector<1x64xf32>
    %c6_445 = arith.constant 6 : index
    %c0_446 = arith.constant 0 : index
    %441 = vector.load %arg19[%c6_445, %c0_446] : memref<8x64xf32, #tpu.memory_space<vmem>>, vector<1x64xf32>
    %442 = arith.maximumf %438, %439 : vector<1x64xf32>
    %443 = arith.maximumf %440, %441 : vector<1x64xf32>
    %444 = arith.maximumf %442, %443 : vector<1x64xf32>
    %c0_447 = arith.constant 0 : index
    %c0_448 = arith.constant 0 : index
    %c0_449 = arith.constant 0 : index
    %445 = vector.load %arg10[%c0_447, %c0_448, %c0_449] : memref<1x1x64xf32, #tpu.memory_space<vmem>>, vector<1x1x64xf32>
    %446 = vector.shape_cast %445 : vector<1x1x64xf32> to vector<1x64xf32>
    %447 = vector.shape_cast %444 : vector<1x64xf32> to vector<1x1x64xf32>
    tpu.vector_store %arg10[%c0_447, %c0_448, %c0_449], %447 {strides = array<i32>} : memref<1x1x64xf32, #tpu.memory_space<vmem>>, vector<1x1x64xf32>,
    %c0_450 = arith.constant 0 : index
    %c0_451 = arith.constant 0 : index
    %c0_452 = arith.constant 0 : index
    %448 = vector.load %arg1[%c0_450, %c0_451, %c0_452] : memref<1x256x4xf32, #tpu.memory_space<vmem>>, vector<1x256x4xf32>
    %449 = vector.shape_cast %448 : vector<1x256x4xf32> to vector<256x4xf32>
    %cst_453 = arith.constant dense<0.000000e+00> : vector<256xf32>
    %450 = vector.multi_reduction <add>, %449, %cst_453 [1] : vector<256x4xf32> to vector<256xf32>
    %451 = vector.shape_cast %450 : vector<256xf32> to vector<256x1xf32>
    %cst_454 = arith.constant 4.000000e+00 : f32
    %452 = vector.broadcast %cst_454 : f32 to vector<256x1xf32>
    %453 = arith.divf %451, %452 : vector<256x1xf32>
    %454 = tpu.iota {dimensions = array<i32: 0>} : vector<256x64xi32>
    %455 = tpu.iota {dimensions = array<i32: 1>} : vector<256x64xi32>
    %c5_i32 = arith.constant 5 : i32
    %456 = vector.broadcast %c5_i32 : i32 to vector<256x64xi32>
    %457 = arith.shrsi %454, %456 : vector<256x64xi32>
    %c15_i32 = arith.constant 15 : i32
    %458 = vector.broadcast %c15_i32 : i32 to vector<256x64xi32>
    %459 = arith.andi %454, %458 : vector<256x64xi32>
    %c1_i32 = arith.constant 1 : i32
    %460 = vector.broadcast %c1_i32 : i32 to vector<256x64xi32>
    %461 = arith.shrsi %459, %460 : vector<256x64xi32>
    %c8_i32 = arith.constant 8 : i32
    %462 = vector.broadcast %c8_i32 : i32 to vector<256x64xi32>
    %463 = arith.muli %457, %462 : vector<256x64xi32>
    %464 = arith.addi %463, %461 : vector<256x64xi32>
    %465 = arith.cmpi eq, %455, %464 : vector<256x64xi32>
    %cst_455 = arith.constant 1.000000e+00 : f32
    %cst_456 = arith.constant 0.000000e+00 : f32
    %466 = vector.broadcast %cst_455 : f32 to vector<256x64xf32>
    %467 = vector.broadcast %cst_456 : f32 to vector<256x64xf32>
    %468 = arith.select %465, %466, %467 : vector<256x64xi1>, vector<256x64xf32>
    %c0_457 = arith.constant 0 : index
    %c0_458 = arith.constant 0 : index
    %469 = vector.load %arg20[%c0_457, %c0_458] : memref<64x1xf32, #tpu.memory_space<vmem>>, vector<64x1xf32>
    %cst_459 = arith.constant dense<0.000000e+00> : vector<256x1xf32>
    %470 = tpu.matmul %468, %469, %cst_459 {dimension_numbers = #tpu.dot_dimension_numbers<[1], [0], [0], [1], [0, 0, 1, 1], [], []>} : vector<256x64xf32>, vector<64x1xf32>, vector<256x1xf32> -> vector<256x1xf32>
    %471 = tpu.iota {dimensions = array<i32: 0>} : vector<256x16xi32>
    %472 = tpu.iota {dimensions = array<i32: 1>} : vector<256x16xi32>
    %c6_i32 = arith.constant 6 : i32
    %473 = vector.broadcast %c6_i32 : i32 to vector<256x16xi32>
    %474 = arith.shrsi %471, %473 : vector<256x16xi32>
    %c15_i32_460 = arith.constant 15 : i32
    %475 = vector.broadcast %c15_i32_460 : i32 to vector<256x16xi32>
    %476 = arith.andi %471, %475 : vector<256x16xi32>
    %c2_i32 = arith.constant 2 : i32
    %477 = vector.broadcast %c2_i32 : i32 to vector<256x16xi32>
    %478 = arith.shrsi %476, %477 : vector<256x16xi32>
    %c4_i32 = arith.constant 4 : i32
    %479 = vector.broadcast %c4_i32 : i32 to vector<256x16xi32>
    %480 = arith.muli %474, %479 : vector<256x16xi32>
    %481 = arith.addi %480, %478 : vector<256x16xi32>
    %482 = arith.cmpi eq, %472, %481 : vector<256x16xi32>
    %cst_461 = arith.constant 1.000000e+00 : f32
    %cst_462 = arith.constant 0.000000e+00 : f32
    %483 = vector.broadcast %cst_461 : f32 to vector<256x16xf32>
    %484 = vector.broadcast %cst_462 : f32 to vector<256x16xf32>
    %485 = arith.select %482, %483, %484 : vector<256x16xi1>, vector<256x16xf32>
    %c0_463 = arith.constant 0 : index
    %c0_464 = arith.constant 0 : index
    %486 = vector.load %arg21[%c0_463, %c0_464] : memref<16x1xf32, #tpu.memory_space<vmem>>, vector<16x1xf32>
    %cst_465 = arith.constant dense<0.000000e+00> : vector<256x1xf32>
    %487 = tpu.matmul %485, %486, %cst_465 {dimension_numbers = #tpu.dot_dimension_numbers<[1], [0], [0], [1], [0, 0, 1, 1], [], []>} : vector<256x16xf32>, vector<16x1xf32>, vector<256x1xf32> -> vector<256x1xf32>
    %488 = tpu.iota {dimensions = array<i32: 0>} : vector<256x4xi32>
    %489 = tpu.iota {dimensions = array<i32: 1>} : vector<256x4xi32>
    %c7_i32 = arith.constant 7 : i32
    %490 = vector.broadcast %c7_i32 : i32 to vector<256x4xi32>
    %491 = arith.shrsi %488, %490 : vector<256x4xi32>
    %c15_i32_466 = arith.constant 15 : i32
    %492 = vector.broadcast %c15_i32_466 : i32 to vector<256x4xi32>
    %493 = arith.andi %488, %492 : vector<256x4xi32>
    %c3_i32 = arith.constant 3 : i32
    %494 = vector.broadcast %c3_i32 : i32 to vector<256x4xi32>
    %495 = arith.shrsi %493, %494 : vector<256x4xi32>
    %c2_i32_467 = arith.constant 2 : i32
    %496 = vector.broadcast %c2_i32_467 : i32 to vector<256x4xi32>
    %497 = arith.muli %491, %496 : vector<256x4xi32>
    %498 = arith.addi %497, %495 : vector<256x4xi32>
    %499 = arith.cmpi eq, %489, %498 : vector<256x4xi32>
    %cst_468 = arith.constant 1.000000e+00 : f32
    %cst_469 = arith.constant 0.000000e+00 : f32
    %500 = vector.broadcast %cst_468 : f32 to vector<256x4xf32>
    %501 = vector.broadcast %cst_469 : f32 to vector<256x4xf32>
    %502 = arith.select %499, %500, %501 : vector<256x4xi1>, vector<256x4xf32>
    %c0_470 = arith.constant 0 : index
    %c0_471 = arith.constant 0 : index
    %503 = vector.load %arg22[%c0_470, %c0_471] : memref<4x1xf32, #tpu.memory_space<vmem>>, vector<4x1xf32>
    %cst_472 = arith.constant dense<0.000000e+00> : vector<256x1xf32>
    %504 = tpu.matmul %502, %503, %cst_472 {dimension_numbers = #tpu.dot_dimension_numbers<[1], [0], [0], [1], [0, 0, 1, 1], [], []>} : vector<256x4xf32>, vector<4x1xf32>, vector<256x1xf32> -> vector<256x1xf32>
    %505 = arith.mulf %453, %470 : vector<256x1xf32>
    %506 = arith.mulf %505, %487 : vector<256x1xf32>
    %507 = arith.mulf %506, %504 : vector<256x1xf32>
    %c0_473 = arith.constant 0 : index
    %c0_474 = arith.constant 0 : index
    %c0_475 = arith.constant 0 : index
    %508 = vector.load %arg11[%c0_473, %c0_474, %c0_475] : memref<1x256x1xf32, #tpu.memory_space<vmem>>, vector<1x256x1xf32>
    %509 = vector.shape_cast %508 : vector<1x256x1xf32> to vector<256x1xf32>
    %510 = vector.shape_cast %507 : vector<256x1xf32> to vector<1x256x1xf32>
    tpu.vector_store %arg11[%c0_473, %c0_474, %c0_475], %510 {strides = array<i32>} : memref<1x256x1xf32, #tpu.memory_space<vmem>>, vector<1x256x1xf32>,
    return
  }
  func.func @transform_0(%arg0: i32) -> (i32, i32, i32) {
    %c0_i32 = arith.constant 0 : i32
    %c0_i32_0 = arith.constant 0 : i32
    %c0_i32_1 = arith.constant 0 : i32
    return %arg0, %c0_i32, %c0_i32_0 : i32, i32, i32
  }
  func.func @transform_1(%arg0: i32) -> (i32, i32, i32) {
    %c0_i32 = arith.constant 0 : i32
    %c0_i32_0 = arith.constant 0 : i32
    %c0_i32_1 = arith.constant 0 : i32
    %c0_i32_2 = arith.constant 0 : i32
    return %c0_i32, %c0_i32_0, %c0_i32_1 : i32, i32, i32
  }
  func.func @transform_2(%arg0: i32) -> (i32, i32) {
    %c0_i32 = arith.constant 0 : i32
    %c0_i32_0 = arith.constant 0 : i32
    %c0_i32_1 = arith.constant 0 : i32
    return %c0_i32, %c0_i32_0 : i32, i32
  }
  func.func @transform_3(%arg0: i32) -> (i32, i32, i32) {
    %c0_i32 = arith.constant 0 : i32
    %c0_i32_0 = arith.constant 0 : i32
    %c0_i32_1 = arith.constant 0 : i32
    %c0_i32_2 = arith.constant 0 : i32
    return %c0_i32, %c0_i32_0, %c0_i32_1 : i32, i32, i32
  }
  func.func @transform_4(%arg0: i32) -> (i32, i32) {
    %c0_i32 = arith.constant 0 : i32
    %c0_i32_0 = arith.constant 0 : i32
    %c0_i32_1 = arith.constant 0 : i32
    return %c0_i32, %c0_i32_0 : i32, i32
  }
  func.func @transform_5(%arg0: i32) -> (i32, i32, i32) {
    %c0_i32 = arith.constant 0 : i32
    %c0_i32_0 = arith.constant 0 : i32
    %c0_i32_1 = arith.constant 0 : i32
    %c0_i32_2 = arith.constant 0 : i32
    return %c0_i32, %c0_i32_0, %c0_i32_1 : i32, i32, i32
  }
  func.func @transform_6(%arg0: i32) -> (i32, i32) {
    %c0_i32 = arith.constant 0 : i32
    %c0_i32_0 = arith.constant 0 : i32
    %c0_i32_1 = arith.constant 0 : i32
    return %c0_i32, %c0_i32_0 : i32, i32
  }
  func.func @transform_7(%arg0: i32) -> (i32, i32, i32) {
    %c0_i32 = arith.constant 0 : i32
    %c0_i32_0 = arith.constant 0 : i32
    %c0_i32_1 = arith.constant 0 : i32
    %c0_i32_2 = arith.constant 0 : i32
    return %c0_i32, %c0_i32_0, %c0_i32_1 : i32, i32, i32
  }
  func.func @transform_8(%arg0: i32) -> (i32, i32) {
    %c0_i32 = arith.constant 0 : i32
    %c0_i32_0 = arith.constant 0 : i32
    %c0_i32_1 = arith.constant 0 : i32
    return %c0_i32, %c0_i32_0 : i32, i32
  }
  func.func @transform_9(%arg0: i32) -> (i32, i32, i32) {
    %c0_i32 = arith.constant 0 : i32
    %c0_i32_0 = arith.constant 0 : i32
    %c0_i32_1 = arith.constant 0 : i32
    return %arg0, %c0_i32, %c0_i32_0 : i32, i32, i32
  }
  func.func @transform_10(%arg0: i32) -> (i32, i32, i32) {
    %c0_i32 = arith.constant 0 : i32
    %c0_i32_0 = arith.constant 0 : i32
    %c0_i32_1 = arith.constant 0 : i32
    return %arg0, %c0_i32, %c0_i32_0 : i32, i32, i32
  }
}

</mosaic_0001>

<llo_original>
// kernel: tpu_custom_call.1
$region0: #{tpu_custom_call.1}
  #allocation0 [shape = 'u32[]', space=smem, size = 0x4, offset = 0x4, fixed_abs, tag = 'smem constant byte address 0x4 - core index']
  #allocation1 [shape = 'u32[144,128]{1,0:T(1,128)}', space=vmem, size = 0x12000, scoped, tag = 'internal scratch']
  #allocation2 [shape = 'f32[360,4]{1,0:T(8,128)}', space=vmem, size = 0x2d000, scoped, tag = 'scratch operand']
  #allocation3 [shape = 'f32[288,8]{1,0:T(8,128)}', space=vmem, size = 0x24000, scoped, tag = 'scratch operand']
  #allocation4 [shape = 'f32[120,8]{1,0:T(8,128)}', space=vmem, size = 0xf000, scoped, tag = 'scratch operand']
  #allocation5 [shape = 'f32[80,16]{1,0:T(8,128)}', space=vmem, size = 0xa000, scoped, tag = 'scratch operand']
  #allocation6 [shape = 'f32[48,16]{1,0:T(8,128)}', space=vmem, size = 0x6000, scoped, tag = 'scratch operand']
  #allocation7 [shape = 'f32[24,32]{1,0:T(8,128)}', space=vmem, size = 0x3000, scoped, tag = 'scratch operand']
  #allocation8 [shape = 'f32[24,32]{1,0:T(8,128)}', space=vmem, size = 0x3000, scoped, tag = 'scratch operand']
  #allocation9 [shape = 'f32[8,64]{1,0:T(8,128)}', space=vmem, size = 0x1000, scoped, tag = 'scratch operand']
  #allocation10 [shape = 'f32[64,1]{1,0:T(8,128)}', space=vmem, size = 0x8000, scoped, tag = 'scratch operand']
  #allocation11 [shape = 'f32[16,1]{1,0:T(8,128)}', space=vmem, size = 0x2000, scoped, tag = 'scratch operand']
  #allocation12 [shape = 'f32[4,1]{1,0:T(4,128)}', space=vmem, size = 0x800, scoped, tag = 'scratch operand']
  %s0 = inlined_call_operand.vmem [shape: f32[2,256,4], index: 0, kind: input, shape index: {}]
  %s1 = inlined_call_operand.vmem [shape: f32[9,4,8], index: 1, kind: input, shape index: {}]
  %s2 = inlined_call_operand.vmem [shape: f32[1,8], index: 2, kind: input, shape index: {}]
  %s3 = inlined_call_operand.vmem [shape: f32[9,8,16], index: 3, kind: input, shape index: {}]
  %s4 = inlined_call_operand.vmem [shape: f32[1,16], index: 4, kind: input, shape index: {}]
  %s5 = inlined_call_operand.vmem [shape: f32[9,16,32], index: 5, kind: input, shape index: {}]
  %s6 = inlined_call_operand.vmem [shape: f32[1,32], index: 6, kind: input, shape index: {}]
  %s7 = inlined_call_operand.vmem [shape: f32[9,32,64], index: 7, kind: input, shape index: {}]
  %s8 = inlined_call_operand.vmem [shape: f32[1,64], index: 8, kind: input, shape index: {}]
  %s9 = inlined_call_operand.hbm [shape: f32[2,1,64], index: 9, kind: output, shape index: {0}]
  %s10 = inlined_call_operand.vmem [shape: f32[2,256,1], index: 10, kind: output, shape index: {1}]
  %11 = xla_tuple %s9, %s10
  %s12 = sld [smem:[#allocation0]]
  $region77: #{tpu_custom_call.1} parent=0
    _
  %s14 = ssub.s32 1, %s12
  %s15 = scalar_select 0, %s14, %s12
  $region1: #{tpu_custom_call.1} parent=0
    #allocation13 [shape = 'u8[1024]{0}', space=vmem, size = 0x400, scoped, tag = 'output window, operand 0']
    #allocation14 [shape = 's32[2]{0}', space=sflag, size = 0x8, scoped, tag = 'scoped memory for tpu_custom_call.1']
    %16 = vsyncpa [#allocation14], 0
    %s17 = scalar_lea.sflag [#allocation14], 1
    %18 = vsyncpa %s17, 0
    loop: start=0, step=1, limit=4
    $region2: #{tpu_custom_call.1} parent=1 // loop_pre_header
      _
    $region3: #{tpu_custom_call.1} parent=1 // loop_header
      %s20 = sphi 0, %s24
      %p21 = scmp.ge.s32.totalorder %s20, 4
      %s30 = sphi 0, %s32
      %s33 = sphi 0, %s30
      %s34 = sphi 0, %s33
      %s50 = sphi 0, %s34
      %s54 = sphi 0, %s54
      %s56 = sphi 0, %s54
      %s57 = sphi 0, %s56
      %s71 = sphi 0, %s57
      %s75 = sphi 0, %s75
      %s77 = sphi 0, %s75
      %s78 = sphi 0, %s77
      %s92 = sphi 0, %s78
      %s96 = sphi 0, %s96
      %s98 = sphi 0, %s96
      %s99 = sphi 0, %s98
      %s113 = sphi 0, %s99
      %s117 = sphi 0, %s117
      %s119 = sphi 0, %s117
      %s120 = sphi 0, %s119
      %s134 = sphi 0, %s120
      %s138 = sphi 0, %s138
      %s140 = sphi 0, %s138
      %s141 = sphi 0, %s140
      %s155 = sphi 0, %s141
      %s159 = sphi 0, %s159
      %s161 = sphi 0, %s159
      %s162 = sphi 0, %s161
      %s176 = sphi 0, %s162
      %s180 = sphi 0, %s180
      %s182 = sphi 0, %s180
      %s183 = sphi 0, %s182
      %s197 = sphi 0, %s183
      %s201 = sphi 0, %s201
      %s203 = sphi 0, %s201
      %s204 = sphi 0, %s203
      %s218 = sphi 0, %s204
      %s224 = sphi 0, %s226
      %s227 = sphi 0, %s224
      %s228 = sphi 0, %s227
      %s244 = sphi 0, %s228
      %s250 = sphi 0, %s252
      %s253 = sphi 0, %s250
      %s254 = sphi 0, %s253
      %s270 = sphi 0, %s254
    $region4: #{tpu_custom_call.1} parent=1 // loop_header_branch
      %23 = sbr.rel (%p21) target = $region8
    $region5: #{tpu_custom_call.1} parent=1 // loop_body
      %s25 = ssub.s32 %s20, 1
      %s26 = ssub.s32 %s20, 2
      %s27 = sadd.s32 %s20, 1
      %s28 = ssub.s32 %s20, %s27
      %p29 = scmp.eq.s32.totalorder %s28, 0
      %s31 = sadd.s32 %s30, 1
      %s32 = scalar_select %p29, %s30, %s31
      %p35 = pneg %p29
      %p36 = scmp.eq.s32.totalorder %s20, 1
      %p37 = por %p35, %p36
      %p38 = scmp.ne.s32.totalorder %s30, %s33
      %p39 = scmp.eq.s32.totalorder %s20, 0
      %p40 = por %p38, %p39
      %p41 = scmp.ne.s32.totalorder %s30, %s33
      %p42 = scmp.eq.s32.totalorder %s25, 1
      %p43 = por %p41, %p42
      %p44 = scmp.ne.s32.totalorder %s33, %s34
      %p45 = scmp.eq.s32.totalorder %s25, 0
      %p46 = por %p44, %p45
      %p47 = scmp.ne.s32.totalorder %s33, %s34
      %p48 = scmp.eq.s32.totalorder %s26, 1
      %p49 = por %p47, %p48
      %p51 = scmp.ne.s32.totalorder %s34, %s50
      %p52 = scmp.eq.s32.totalorder %s26, 0
      %p53 = por %p51, %p52
      %s55 = sadd.s32 %s54, 1
      %p58 = scmp.eq.s32.totalorder %s20, 1
      %p59 = scmp.ne.s32.totalorder %s54, %s56
      %p60 = scmp.eq.s32.totalorder %s20, 0
      %p61 = por %p59, %p60
      %p62 = scmp.ne.s32.totalorder %s54, %s56
      %p63 = scmp.eq.s32.totalorder %s25, 1
      %p64 = por %p62, %p63
      %p65 = scmp.ne.s32.totalorder %s56, %s57
      %p66 = scmp.eq.s32.totalorder %s25, 0
      %p67 = por %p65, %p66
      %p68 = scmp.ne.s32.totalorder %s56, %s57
      %p69 = scmp.eq.s32.totalorder %s26, 1
      %p70 = por %p68, %p69
      %p72 = scmp.ne.s32.totalorder %s57, %s71
      %p73 = scmp.eq.s32.totalorder %s26, 0
      %p74 = por %p72, %p73
      %s76 = sadd.s32 %s75, 1
      %p79 = scmp.eq.s32.totalorder %s20, 1
      %p80 = scmp.ne.s32.totalorder %s75, %s77
      %p81 = scmp.eq.s32.totalorder %s20, 0
      %p82 = por %p80, %p81
      %p83 = scmp.ne.s32.totalorder %s75, %s77
      %p84 = scmp.eq.s32.totalorder %s25, 1
      %p85 = por %p83, %p84
      %p86 = scmp.ne.s32.totalorder %s77, %s78
      %p87 = scmp.eq.s32.totalorder %s25, 0
      %p88 = por %p86, %p87
      %p89 = scmp.ne.s32.totalorder %s77, %s78
      %p90 = scmp.eq.s32.totalorder %s26, 1
      %p91 = por %p89, %p90
      %p93 = scmp.ne.s32.totalorder %s78, %s92
      %p94 = scmp.eq.s32.totalorder %s26, 0
      %p95 = por %p93, %p94
      %s97 = sadd.s32 %s96, 1
      %p100 = scmp.eq.s32.totalorder %s20, 1
      %p101 = scmp.ne.s32.totalorder %s96, %s98
      %p102 = scmp.eq.s32.totalorder %s20, 0
      %p103 = por %p101, %p102
      %p104 = scmp.ne.s32.totalorder %s96, %s98
      %p105 = scmp.eq.s32.totalorder %s25, 1
      %p106 = por %p104, %p105
      %p107 = scmp.ne.s32.totalorder %s98, %s99
      %p108 = scmp.eq.s32.totalorder %s25, 0
      %p109 = por %p107, %p108
      %p110 = scmp.ne.s32.totalorder %s98, %s99
      %p111 = scmp.eq.s32.totalorder %s26, 1
      %p112 = por %p110, %p111
      %p114 = scmp.ne.s32.totalorder %s99, %s113
      %p115 = scmp.eq.s32.totalorder %s26, 0
      %p116 = por %p114, %p115
      %s118 = sadd.s32 %s117, 1
      %p121 = scmp.eq.s32.totalorder %s20, 1
      %p122 = scmp.ne.s32.totalorder %s117, %s119
      %p123 = scmp.eq.s32.totalorder %s20, 0
      %p124 = por %p122, %p123
      %p125 = scmp.ne.s32.totalorder %s117, %s119
      %p126 = scmp.eq.s32.totalorder %s25, 1
      %p127 = por %p125, %p126
      %p128 = scmp.ne.s32.totalorder %s119, %s120
      %p129 = scmp.eq.s32.totalorder %s25, 0
      %p130 = por %p128, %p129
      %p131 = scmp.ne.s32.totalorder %s119, %s120
      %p132 = scmp.eq.s32.totalorder %s26, 1
      %p133 = por %p131, %p132
      %p135 = scmp.ne.s32.totalorder %s120, %s134
      %p136 = scmp.eq.s32.totalorder %s26, 0
      %p137 = por %p135, %p136
      %s139 = sadd.s32 %s138, 1
      %p142 = scmp.eq.s32.totalorder %s20, 1
      %p143 = scmp.ne.s32.totalorder %s138, %s140
      %p144 = scmp.eq.s32.totalorder %s20, 0
      %p145 = por %p143, %p144
      %p146 = scmp.ne.s32.totalorder %s138, %s140
      %p147 = scmp.eq.s32.totalorder %s25, 1
      %p148 = por %p146, %p147
      %p149 = scmp.ne.s32.totalorder %s140, %s141
      %p150 = scmp.eq.s32.totalorder %s25, 0
      %p151 = por %p149, %p150
      %p152 = scmp.ne.s32.totalorder %s140, %s141
      %p153 = scmp.eq.s32.totalorder %s26, 1
      %p154 = por %p152, %p153
      %p156 = scmp.ne.s32.totalorder %s141, %s155
      %p157 = scmp.eq.s32.totalorder %s26, 0
      %p158 = por %p156, %p157
      %s160 = sadd.s32 %s159, 1
      %p163 = scmp.eq.s32.totalorder %s20, 1
      %p164 = scmp.ne.s32.totalorder %s159, %s161
      %p165 = scmp.eq.s32.totalorder %s20, 0
      %p166 = por %p164, %p165
      %p167 = scmp.ne.s32.totalorder %s159, %s161
      %p168 = scmp.eq.s32.totalorder %s25, 1
      %p169 = por %p167, %p168
      %p170 = scmp.ne.s32.totalorder %s161, %s162
      %p171 = scmp.eq.s32.totalorder %s25, 0
      %p172 = por %p170, %p171
      %p173 = scmp.ne.s32.totalorder %s161, %s162
      %p174 = scmp.eq.s32.totalorder %s26, 1
      %p175 = por %p173, %p174
      %p177 = scmp.ne.s32.totalorder %s162, %s176
      %p178 = scmp.eq.s32.totalorder %s26, 0
      %p179 = por %p177, %p178
      %s181 = sadd.s32 %s180, 1
      %p184 = scmp.eq.s32.totalorder %s20, 1
      %p185 = scmp.ne.s32.totalorder %s180, %s182
      %p186 = scmp.eq.s32.totalorder %s20, 0
      %p187 = por %p185, %p186
      %p188 = scmp.ne.s32.totalorder %s180, %s182
      %p189 = scmp.eq.s32.totalorder %s25, 1
      %p190 = por %p188, %p189
      %p191 = scmp.ne.s32.totalorder %s182, %s183
      %p192 = scmp.eq.s32.totalorder %s25, 0
      %p193 = por %p191, %p192
      %p194 = scmp.ne.s32.totalorder %s182, %s183
      %p195 = scmp.eq.s32.totalorder %s26, 1
      %p196 = por %p194, %p195
      %p198 = scmp.ne.s32.totalorder %s183, %s197
      %p199 = scmp.eq.s32.totalorder %s26, 0
      %p200 = por %p198, %p199
      %s202 = sadd.s32 %s201, 1
      %p205 = scmp.eq.s32.totalorder %s20, 1
      %p206 = scmp.ne.s32.totalorder %s201, %s203
      %p207 = scmp.eq.s32.totalorder %s20, 0
      %p208 = por %p206, %p207
      %p209 = scmp.ne.s32.totalorder %s201, %s203
      %p210 = scmp.eq.s32.totalorder %s25, 1
      %p211 = por %p209, %p210
      %p212 = scmp.ne.s32.totalorder %s203, %s204
      %p213 = scmp.eq.s32.totalorder %s25, 0
      %p214 = por %p212, %p213
      %p215 = scmp.ne.s32.totalorder %s203, %s204
      %p216 = scmp.eq.s32.totalorder %s26, 1
      %p217 = por %p215, %p216
      %p219 = scmp.ne.s32.totalorder %s204, %s218
      %p220 = scmp.eq.s32.totalorder %s26, 0
      %p221 = por %p219, %p220
      %s222 = ssub.s32 %s20, %s27
      %p223 = scmp.eq.s32.totalorder %s222, 0
      %s225 = sadd.s32 %s224, 1
      %s226 = scalar_select %p223, %s224, %s225
      %p229 = pneg %p223
      %p230 = scmp.eq.s32.totalorder %s20, 1
      %p231 = por %p229, %p230
      %p232 = scmp.ne.s32.totalorder %s224, %s227
      %p233 = scmp.eq.s32.totalorder %s20, 0
      %p234 = por %p232, %p233
      %p235 = scmp.ne.s32.totalorder %s224, %s227
      %p236 = scmp.eq.s32.totalorder %s25, 1
      %p237 = por %p235, %p236
      %p238 = scmp.ne.s32.totalorder %s227, %s228
      %p239 = scmp.eq.s32.totalorder %s25, 0
      %p240 = por %p238, %p239
      %p241 = scmp.ne.s32.totalorder %s227, %s228
      %p242 = scmp.eq.s32.totalorder %s26, 1
      %p243 = por %p241, %p242
      %p245 = scmp.ne.s32.totalorder %s228, %s244
      %p246 = scmp.eq.s32.totalorder %s26, 0
      %p247 = por %p245, %p246
      %s248 = ssub.s32 %s20, %s27
      %p249 = scmp.eq.s32.totalorder %s248, 0
      %s251 = sadd.s32 %s250, 1
      %s252 = scalar_select %p249, %s250, %s251
      %p255 = pneg %p249
      %p256 = scmp.eq.s32.totalorder %s20, 1
      %p257 = por %p255, %p256
      %p258 = scmp.ne.s32.totalorder %s250, %s253
      %p259 = scmp.eq.s32.totalorder %s20, 0
      %p260 = por %p258, %p259
      %p261 = scmp.ne.s32.totalorder %s250, %s253
      %p262 = scmp.eq.s32.totalorder %s25, 1
      %p263 = por %p261, %p262
      %p264 = scmp.ne.s32.totalorder %s253, %s254
      %p265 = scmp.eq.s32.totalorder %s25, 0
      %p266 = por %p264, %p265
      %p267 = scmp.ne.s32.totalorder %s253, %s254
      %p268 = scmp.eq.s32.totalorder %s26, 1
      %p269 = por %p267, %p268
      %p271 = scmp.ne.s32.totalorder %s254, %s270
      %p272 = scmp.eq.s32.totalorder %s26, 0
      %p273 = por %p271, %p272
      %p274 = scmp.le.s32.totalorder 1, %s20
      %p275 = scmp.lt.s32.totalorder %s20, 3
      %p276 = pnand %p274, %p275
      %p277 = pneg %p276
      // Predicated region
      $region9: #{tpu_custom_call.1} parent=5 // pred_check
        _
      $region10: #{tpu_custom_call.1} parent=5 // pred_check_branch
        %279 = sbr.rel (%p276) target = $region12
      $region11: #{tpu_custom_call.1} parent=5 // pred_region
        %s280 = ssub.s32 %s20, 1
        // Predicated region
        $region13: #{tpu_custom_call.1} parent=11 // pred_check
          %p281 = pneg %p67
        $region14: #{tpu_custom_call.1} parent=11 // pred_check_branch
          %283 = sbr.rel (%p281) target = $region16
        $region15: #{tpu_custom_call.1} parent=11 // pred_region
          _
        $region16: #{tpu_custom_call.1} parent=11 // pred_fallthru
          _
        // Predicated region
        $region17: #{tpu_custom_call.1} parent=11 // pred_check
          %p284 = pneg %p88
        $region18: #{tpu_custom_call.1} parent=11 // pred_check_branch
          %286 = sbr.rel (%p284) target = $region20
        $region19: #{tpu_custom_call.1} parent=11 // pred_region
          _
        $region20: #{tpu_custom_call.1} parent=11 // pred_fallthru
          _
        // Predicated region
        $region21: #{tpu_custom_call.1} parent=11 // pred_check
          %p287 = pneg %p109
        $region22: #{tpu_custom_call.1} parent=11 // pred_check_branch
          %289 = sbr.rel (%p287) target = $region24
        $region23: #{tpu_custom_call.1} parent=11 // pred_region
          _
        $region24: #{tpu_custom_call.1} parent=11 // pred_fallthru
          _
        // Predicated region
        $region25: #{tpu_custom_call.1} parent=11 // pred_check
          %p290 = pneg %p130
        $region26: #{tpu_custom_call.1} parent=11 // pred_check_branch
          %292 = sbr.rel (%p290) target = $region28
        $region27: #{tpu_custom_call.1} parent=11 // pred_region
          _
        $region28: #{tpu_custom_call.1} parent=11 // pred_fallthru
          _
        // Predicated region
        $region29: #{tpu_custom_call.1} parent=11 // pred_check
          %p293 = pneg %p151
        $region30: #{tpu_custom_call.1} parent=11 // pred_check_branch
          %295 = sbr.rel (%p293) target = $region32
        $region31: #{tpu_custom_call.1} parent=11 // pred_region
          _
        $region32: #{tpu_custom_call.1} parent=11 // pred_fallthru
          _
        // Predicated region
        $region33: #{tpu_custom_call.1} parent=11 // pred_check
          %p296 = pneg %p172
        $region34: #{tpu_custom_call.1} parent=11 // pred_check_branch
          %298 = sbr.rel (%p296) target = $region36
        $region35: #{tpu_custom_call.1} parent=11 // pred_region
          _
        $region36: #{tpu_custom_call.1} parent=11 // pred_fallthru
          _
        // Predicated region
        $region37: #{tpu_custom_call.1} parent=11 // pred_check
          %p299 = pneg %p193
        $region38: #{tpu_custom_call.1} parent=11 // pred_check_branch
          %301 = sbr.rel (%p299) target = $region40
        $region39: #{tpu_custom_call.1} parent=11 // pred_region
          _
        $region40: #{tpu_custom_call.1} parent=11 // pred_fallthru
          _
        // Predicated region
        $region41: #{tpu_custom_call.1} parent=11 // pred_check
          %p302 = pneg %p214
        $region42: #{tpu_custom_call.1} parent=11 // pred_check_branch
          %304 = sbr.rel (%p302) target = $region44
        $region43: #{tpu_custom_call.1} parent=11 // pred_region
          _
        $region44: #{tpu_custom_call.1} parent=11 // pred_fallthru
          _
      $region12: #{tpu_custom_call.1} parent=5 // pred_fallthru
        _
      %p305 = scmp.lt.s32.totalorder %s20, 2
      // Predicated region
      $region45: #{tpu_custom_call.1} parent=5 // pred_check
        %p306 = pneg %p305
      $region46: #{tpu_custom_call.1} parent=5 // pred_check_branch
        %308 = sbr.rel (%p306) target = $region48
      $region47: #{tpu_custom_call.1} parent=5 // pred_region
        // Predicated region
        $region49: #{tpu_custom_call.1} parent=47 // pred_check
          %p309 = pneg %p40
        $region50: #{tpu_custom_call.1} parent=47 // pred_check_branch
          %311 = sbr.rel (%p309) target = $region52
        $region51: #{tpu_custom_call.1} parent=47 // pred_region
          %p312 = scmp.lt.s32.totalorder %s20, 1
          %s313 = scalar_select %p312, %s20, 1
          %s314 = smul.addr %s313, 32
          %s315 = smul.addr %s314, 8
          %s316 = scalar_lea.vmem %s0, %s315
        $region52: #{tpu_custom_call.1} parent=47 // pred_fallthru
          _
      $region48: #{tpu_custom_call.1} parent=5 // pred_fallthru
        _
      %p317 = scmp.le.s32.totalorder 1, %s20
      %p318 = scmp.lt.s32.totalorder %s20, 3
      %p319 = pnand %p317, %p318
      %p320 = pneg %p319
      // Predicated region
      $region53: #{tpu_custom_call.1} parent=5 // pred_check
        _
      $region54: #{tpu_custom_call.1} parent=5 // pred_check_branch
        %322 = sbr.rel (%p319) target = $region56
      $region55: #{tpu_custom_call.1} parent=5 // pred_region
        %s323 = ssub.s32 %s20, 1
        %p324 = scmp.lt.s32.totalorder %s25, 1
        %s325 = scalar_select %p324, %s25, 1
        %s326 = smul.addr %s325, 32
        %s327 = smul.addr %s326, 8
        %s328 = scalar_lea.vmem %s0, %s327
        %p329 = pneg %p46
        %p330 = pneg %p43
        %p331 = pneg %p67
        %p332 = pneg %p64
        %p333 = pneg %p88
        %p334 = pneg %p85
        %p335 = pneg %p109
        %p336 = pneg %p106
        %p337 = pneg %p130
        %p338 = pneg %p127
        %p339 = pneg %p151
        %p340 = pneg %p148
        %p341 = pneg %p172
        %p342 = pneg %p169
        %p343 = pneg %p193
        %p344 = pneg %p190
        %p345 = pneg %p214
        %p346 = pneg %p211
        %p347 = pneg %p240
        %p348 = pneg %p237
        %s349 = sand.u32 %s227, 1
        %s350 = scalar_lea.sflag [#allocation14], %s349
        %s351 = sand.u32 %s227, 1
        %s352 = scalar_lea.vmem [#allocation13], %s351
        %p353 = pneg %p266
        %p354 = pneg %p263
        %p355 = scmp.lt.s32.totalorder %s25, 1
        %s356 = scalar_select %p355, %s25, 1
        %s357 = smul.addr %s356, 32
        %s358 = smul.addr %s357, 8
        %s359 = scalar_lea.vmem %s10, %s358
        %p360 = scmp.lt.s32.totalorder %s25, 1
        %s361 = scalar_select %p360, %s25, 1
        %s362 = smul.addr %s361, 32
        %s363 = smul.addr %s362, 8
        %s364 = scalar_lea.vmem %s0, %s363
        %p365 = scmp.lt.s32.totalorder %s25, 1
        %s366 = scalar_select %p365, %s25, 1
        %s367 = smul.addr %s366, 32
        %s368 = smul.addr %s367, 8
        %s369 = scalar_lea.vmem %s10, %s368
        %vm370 = vcmask 31744
        %371 = vst.msk [vmem:[#allocation2] sm:$0xff] %vm370, 0.0
        %372 = vst.msk [vmem:[#allocation2 + $0x8] sm:$0xff] %vm370, 0.0
        %373 = vst.msk [vmem:[#allocation2 + $0x10] sm:$0xff] %vm370, 0.0
        %374 = vst.msk [vmem:[#allocation2 + $0x18] sm:$0xff] %vm370, 0.0
        %375 = vst.msk [vmem:[#allocation2 + $0x20] sm:$0xff] %vm370, 0.0
        %376 = vst.msk [vmem:[#allocation2 + $0x28] sm:$0xff] %vm370, 0.0
        %377 = vst.msk [vmem:[#allocation2 + $0x30] sm:$0xff] %vm370, 0.0
        %378 = vst.msk [vmem:[#allocation2 + $0x38] sm:$0xff] %vm370, 0.0
        %379 = vst.msk [vmem:[#allocation2 + $0x40] sm:$0xff] %vm370, 0.0
        %380 = vst.msk [vmem:[#allocation2 + $0x48] sm:$0xff] %vm370, 0.0
        %381 = vst.msk [vmem:[#allocation2 + $0x50] sm:$0xff] %vm370, 0.0
        %382 = vst.msk [vmem:[#allocation2 + $0x58] sm:$0xff] %vm370, 0.0
        %383 = vst.msk [vmem:[#allocation2 + $0x60] sm:$0xff] %vm370, 0.0
        %384 = vst.msk [vmem:[#allocation2 + $0x68] sm:$0xff] %vm370, 0.0
        %385 = vst.msk [vmem:[#allocation2 + $0x70] sm:$0xff] %vm370, 0.0
        %386 = vst.msk [vmem:[#allocation2 + $0x78] sm:$0xff] %vm370, 0.0
        %387 = vst.msk [vmem:[#allocation2 + $0x80] sm:$0xff] %vm370, 0.0
        %388 = vst.msk [vmem:[#allocation2 + $0x88] sm:$0xff] %vm370, 0.0
        %389 = vst.msk [vmem:[#allocation2 + $0x90] sm:$0xff] %vm370, 0.0
        %390 = vst.msk [vmem:[#allocation2 + $0x98] sm:$0xff] %vm370, 0.0
        %391 = vst.msk [vmem:[#allocation2 + $0xa0] sm:$0xff] %vm370, 0.0
        %392 = vst.msk [vmem:[#allocation2 + $0xa8] sm:$0xff] %vm370, 0.0
        %393 = vst.msk [vmem:[#allocation2 + $0xb0] sm:$0xff] %vm370, 0.0
        %394 = vst.msk [vmem:[#allocation2 + $0xb8] sm:$0xff] %vm370, 0.0
        %395 = vst.msk [vmem:[#allocation2 + $0xc0] sm:$0xff] %vm370, 0.0
        %396 = vst.msk [vmem:[#allocation2 + $0xc8] sm:$0xff] %vm370, 0.0
        %397 = vst.msk [vmem:[#allocation2 + $0xd0] sm:$0xff] %vm370, 0.0
        %398 = vst.msk [vmem:[#allocation2 + $0xd8] sm:$0xff] %vm370, 0.0
        %399 = vst.msk [vmem:[#allocation2 + $0xe0] sm:$0xff] %vm370, 0.0
        %400 = vst.msk [vmem:[#allocation2 + $0xe8] sm:$0xff] %vm370, 0.0
        %401 = vst.msk [vmem:[#allocation2 + $0xf0] sm:$0xff] %vm370, 0.0
        %402 = vst.msk [vmem:[#allocation2 + $0xf8] sm:$0xff] %vm370, 0.0
        %403 = vst.msk [vmem:[#allocation2 + $0x100] sm:$0xff] %vm370, 0.0
        %404 = vst.msk [vmem:[#allocation2 + $0x108] sm:$0xff] %vm370, 0.0
        %405 = vst.msk [vmem:[#allocation2 + $0x110] sm:$0xff] %vm370, 0.0
        %406 = vst.msk [vmem:[#allocation2 + $0x118] sm:$0xff] %vm370, 0.0
        %407 = vst.msk [vmem:[#allocation2 + $0x120] sm:$0xff] %vm370, 0.0
        %408 = vst.msk [vmem:[#allocation2 + $0x128] sm:$0xff] %vm370, 0.0
        %409 = vst.msk [vmem:[#allocation2 + $0x130] sm:$0xff] %vm370, 0.0
        %410 = vst.msk [vmem:[#allocation2 + $0x138] sm:$0xff] %vm370, 0.0
        %411 = vst.msk [vmem:[#allocation2 + $0x140] sm:$0xff] %vm370, 0.0
        %412 = vst.msk [vmem:[#allocation2 + $0x148] sm:$0xff] %vm370, 0.0
        %413 = vst.msk [vmem:[#allocation2 + $0x150] sm:$0xff] %vm370, 0.0
        %414 = vst.msk [vmem:[#allocation2 + $0x158] sm:$0xff] %vm370, 0.0
        %415 = vst.msk [vmem:[#allocation2 + $0x160] sm:$0xff] %vm370, 0.0
        %vm416 = vcmask 64512
        %417 = vst.msk [vmem:[#allocation4] sm:$0xff] %vm416, 0.0
        %418 = vst.msk [vmem:[#allocation4 + $0x8] sm:$0xff] %vm416, 0.0
        %419 = vst.msk [vmem:[#allocation4 + $0x10] sm:$0xff] %vm416, 0.0
        %420 = vst.msk [vmem:[#allocation4 + $0x18] sm:$0xff] %vm416, 0.0
        %421 = vst.msk [vmem:[#allocation4 + $0x20] sm:$0xff] %vm416, 0.0
        %422 = vst.msk [vmem:[#allocation4 + $0x28] sm:$0xff] %vm416, 0.0
        %423 = vst.msk [vmem:[#allocation4 + $0x30] sm:$0xff] %vm416, 0.0
        %424 = vst.msk [vmem:[#allocation4 + $0x38] sm:$0xff] %vm416, 0.0
        %425 = vst.msk [vmem:[#allocation4 + $0x40] sm:$0xff] %vm416, 0.0
        %426 = vst.msk [vmem:[#allocation4 + $0x48] sm:$0xff] %vm416, 0.0
        %427 = vst.msk [vmem:[#allocation4 + $0x50] sm:$0xff] %vm416, 0.0
        %428 = vst.msk [vmem:[#allocation4 + $0x58] sm:$0xff] %vm416, 0.0
        %429 = vst.msk [vmem:[#allocation4 + $0x60] sm:$0xff] %vm416, 0.0
        %430 = vst.msk [vmem:[#allocation4 + $0x68] sm:$0xff] %vm416, 0.0
        %431 = vst.msk [vmem:[#allocation4 + $0x70] sm:$0xff] %vm416, 0.0
        %vm432 = vcmask 130048
        %433 = vst.msk [vmem:[#allocation6] sm:$0xff] %vm432, 0.0
        %434 = vst.msk [vmem:[#allocation6 + $0x8] sm:$0xff] %vm432, 0.0
        %435 = vst.msk [vmem:[#allocation6 + $0x10] sm:$0xff] %vm432, 0.0
        %436 = vst.msk [vmem:[#allocation6 + $0x18] sm:$0xff] %vm432, 0.0
        %437 = vst.msk [vmem:[#allocation6 + $0x20] sm:$0xff] %vm432, 0.0
        %438 = vst.msk [vmem:[#allocation6 + $0x28] sm:$0xff] %vm432, 0.0
        %vm439 = vcmask 261120
        %440 = vst.msk [vmem:[#allocation8] sm:$0xff] %vm439, 0.0
        %441 = vst.msk [vmem:[#allocation8 + $0x8] sm:$0xff] %vm439, 0.0
        %442 = vst.msk [vmem:[#allocation8 + $0x10] sm:$0xff] %vm439, 0.0
        %v443 = vld [vmem:[%s364] sm:$0xff]
        %v444 = vld [vmem:[%s364 + $0x8] sm:$0xff]
        %445 = vst.msk [vmem:[#allocation2 + $0x25] sm:$0xff] %vm370, %v443
        %446 = vst.msk [vmem:[#allocation2 + $0x2d] sm:$0xff] %vm370, %v444
        %v447 = vld [vmem:[%s364 + $0x10] sm:$0xff]
        %v448 = vld [vmem:[%s364 + $0x18] sm:$0xff]
        %449 = vst.msk [vmem:[#allocation2 + $0x37] sm:$0xff] %vm370, %v447
        %450 = vst.msk [vmem:[#allocation2 + $0x3f] sm:$0xff] %vm370, %v448
        %v451 = vld [vmem:[%s364 + $0x20] sm:$0xff]
        %v452 = vld [vmem:[%s364 + $0x28] sm:$0xff]
        %453 = vst.msk [vmem:[#allocation2 + $0x49] sm:$0xff] %vm370, %v451
        %454 = vst.msk [vmem:[#allocation2 + $0x51] sm:$0xff] %vm370, %v452
        %v455 = vld [vmem:[%s364 + $0x30] sm:$0xff]
        %v456 = vld [vmem:[%s364 + $0x38] sm:$0xff]
        %457 = vst.msk [vmem:[#allocation2 + $0x5b] sm:$0xff] %vm370, %v455
        %458 = vst.msk [vmem:[#allocation2 + $0x63] sm:$0xff] %vm370, %v456
        %v459 = vld [vmem:[%s364 + $0x40] sm:$0xff]
        %v460 = vld [vmem:[%s364 + $0x48] sm:$0xff]
        %461 = vst.msk [vmem:[#allocation2 + $0x6d] sm:$0xff] %vm370, %v459
        %462 = vst.msk [vmem:[#allocation2 + $0x75] sm:$0xff] %vm370, %v460
        %v463 = vld [vmem:[%s364 + $0x50] sm:$0xff]
        %v464 = vld [vmem:[%s364 + $0x58] sm:$0xff]
        %465 = vst.msk [vmem:[#allocation2 + $0x7f] sm:$0xff] %vm370, %v463
        %466 = vst.msk [vmem:[#allocation2 + $0x87] sm:$0xff] %vm370, %v464
        %v467 = vld [vmem:[%s364 + $0x60] sm:$0xff]
        %v468 = vld [vmem:[%s364 + $0x68] sm:$0xff]
        %469 = vst.msk [vmem:[#allocation2 + $0x91] sm:$0xff] %vm370, %v467
        %470 = vst.msk [vmem:[#allocation2 + $0x99] sm:$0xff] %vm370, %v468
        %v471 = vld [vmem:[%s364 + $0x70] sm:$0xff]
        %v472 = vld [vmem:[%s364 + $0x78] sm:$0xff]
        %473 = vst.msk [vmem:[#allocation2 + $0xa3] sm:$0xff] %vm370, %v471
        %474 = vst.msk [vmem:[#allocation2 + $0xab] sm:$0xff] %vm370, %v472
        %v475 = vld [vmem:[%s364 + $0x80] sm:$0xff]
        %v476 = vld [vmem:[%s364 + $0x88] sm:$0xff]
        %477 = vst.msk [vmem:[#allocation2 + $0xb5] sm:$0xff] %vm370, %v475
        %478 = vst.msk [vmem:[#allocation2 + $0xbd] sm:$0xff] %vm370, %v476
        %v479 = vld [vmem:[%s364 + $0x90] sm:$0xff]
        %v480 = vld [vmem:[%s364 + $0x98] sm:$0xff]
        %481 = vst.msk [vmem:[#allocation2 + $0xc7] sm:$0xff] %vm370, %v479
        %482 = vst.msk [vmem:[#allocation2 + $0xcf] sm:$0xff] %vm370, %v480
        %v483 = vld [vmem:[%s364 + $0xa0] sm:$0xff]
        %v484 = vld [vmem:[%s364 + $0xa8] sm:$0xff]
        %485 = vst.msk [vmem:[#allocation2 + $0xd9] sm:$0xff] %vm370, %v483
        %486 = vst.msk [vmem:[#allocation2 + $0xe1] sm:$0xff] %vm370, %v484
        %v487 = vld [vmem:[%s364 + $0xb0] sm:$0xff]
        %v488 = vld [vmem:[%s364 + $0xb8] sm:$0xff]
        %489 = vst.msk [vmem:[#allocation2 + $0xeb] sm:$0xff] %vm370, %v487
        %490 = vst.msk [vmem:[#allocation2 + $0xf3] sm:$0xff] %vm370, %v488
        %v491 = vld [vmem:[%s364 + $0xc0] sm:$0xff]
        %v492 = vld [vmem:[%s364 + $0xc8] sm:$0xff]
        %493 = vst.msk [vmem:[#allocation2 + $0xfd] sm:$0xff] %vm370, %v491
        %494 = vst.msk [vmem:[#allocation2 + $0x105] sm:$0xff] %vm370, %v492
        %v495 = vld [vmem:[%s364 + $0xd0] sm:$0xff]
        %v496 = vld [vmem:[%s364 + $0xd8] sm:$0xff]
        %497 = vst.msk [vmem:[#allocation2 + $0x10f] sm:$0xff] %vm370, %v495
        %498 = vst.msk [vmem:[#allocation2 + $0x117] sm:$0xff] %vm370, %v496
        %v499 = vld [vmem:[%s364 + $0xe0] sm:$0xff]
        %v500 = vld [vmem:[%s364 + $0xe8] sm:$0xff]
        %501 = vst.msk [vmem:[#allocation2 + $0x121] sm:$0xff] %vm370, %v499
        %502 = vst.msk [vmem:[#allocation2 + $0x129] sm:$0xff] %vm370, %v500
        %v503 = vld [vmem:[%s364 + $0xf0] sm:$0xff]
        %v504 = vld [vmem:[%s364 + $0xf8] sm:$0xff]
        %505 = vst.msk [vmem:[#allocation2 + $0x133] sm:$0xff] %vm370, %v503
        %506 = vst.msk [vmem:[#allocation2 + $0x13b] sm:$0xff] %vm370, %v504
        %v507 = vld [vmem:[#allocation2 + $0x11] sm:$0xff]
        %v508 = vld [vmem:[#allocation2 + $0x19] sm:$0xff]
        %v509 = vld [vmem:[#allocation2 + $0x21] sm:$0xff]
        %v510 = vld [vmem:[#allocation2 + $0x29] sm:$0xff]
        %v511 = vld [vmem:[#allocation2 + $0x31] sm:$0xff]
        %v512 = vld [vmem:[#allocation2 + $0x39] sm:$0xff]
        %v513 = vld [vmem:[#allocation2 + $0x41] sm:$0xff]
        %v514 = vld [vmem:[#allocation2 + $0x49] sm:$0xff]
        %v515 = vld [vmem:[#allocation2 + $0x51] sm:$0xff]
        %v516 = vld [vmem:[#allocation2 + $0x59] sm:$0xff]
        %v517 = vld [vmem:[#allocation2 + $0x61] sm:$0xff]
        %v518 = vld [vmem:[#allocation2 + $0x69] sm:$0xff]
        %v519 = vld [vmem:[#allocation2 + $0x71] sm:$0xff]
        %v520 = vld [vmem:[#allocation2 + $0x79] sm:$0xff]
        %v521 = vld [vmem:[#allocation2 + $0x81] sm:$0xff]
        %v522 = vld [vmem:[#allocation2 + $0x89] sm:$0xff]
        %v523 = vld [vmem:[#allocation2 + $0x91] sm:$0xff]
        %v524 = vld [vmem:[#allocation2 + $0x99] sm:$0xff]
        %v525 = vld [vmem:[#allocation2 + $0xa1] sm:$0xff]
        %v526 = vld [vmem:[#allocation2 + $0xa9] sm:$0xff]
        %v527 = vld [vmem:[#allocation2 + $0xb1] sm:$0xff]
        %v528 = vld [vmem:[#allocation2 + $0xb9] sm:$0xff]
        %v529 = vld [vmem:[#allocation2 + $0xc1] sm:$0xff]
        %v530 = vld [vmem:[#allocation2 + $0xc9] sm:$0xff]
        %v531 = vld [vmem:[#allocation2 + $0xd1] sm:$0xff]
        %v532 = vld [vmem:[#allocation2 + $0xd9] sm:$0xff]
        %v533 = vld [vmem:[#allocation2 + $0xe1] sm:$0xff]
        %v534 = vld [vmem:[#allocation2 + $0xe9] sm:$0xff]
        %v535 = vld [vmem:[#allocation2 + $0xf1] sm:$0xff]
        %v536 = vld [vmem:[#allocation2 + $0xf9] sm:$0xff]
        %v537 = vld [vmem:[#allocation2 + $0x101] sm:$0xff]
        %v538 = vld [vmem:[#allocation2 + $0x109] sm:$0xff]
        %v539 = vld [vmem:[#allocation2 + $0x111] sm:$0xff]
        %v540 = vld [vmem:[#allocation2 + $0x119] sm:$0xff]
        %v541 = vld [vmem:[#allocation2 + $0x121] sm:$0xff]
        %v542 = vld [vmem:[#allocation2 + $0x129] sm:$0xff]
        %v543 = vld [vmem:[%s1] sm:$0xf]
        %v544 = vld [vmem:[#allocation2 + $0x12] sm:$0xff]
        %v545 = vld [vmem:[#allocation2 + $0x1a] sm:$0xff]
        %v546 = vld [vmem:[#allocation2 + $0x22] sm:$0xff]
        %v547 = vld [vmem:[#allocation2 + $0x2a] sm:$0xff]
        %v548 = vld [vmem:[#allocation2 + $0x32] sm:$0xff]
        %v549 = vld [vmem:[#allocation2 + $0x3a] sm:$0xff]
        %v550 = vld [vmem:[#allocation2 + $0x42] sm:$0xff]
        %v551 = vld [vmem:[#allocation2 + $0x4a] sm:$0xff]
        %v552 = vld [vmem:[#allocation2 + $0x52] sm:$0xff]
        %v553 = vld [vmem:[#allocation2 + $0x5a] sm:$0xff]
        %v554 = vld [vmem:[#allocation2 + $0x62] sm:$0xff]
        %v555 = vld [vmem:[#allocation2 + $0x6a] sm:$0xff]
        %v556 = vld [vmem:[#allocation2 + $0x72] sm:$0xff]
        %v557 = vld [vmem:[#allocation2 + $0x7a] sm:$0xff]
        %v558 = vld [vmem:[#allocation2 + $0x82] sm:$0xff]
        %v559 = vld [vmem:[#allocation2 + $0x8a] sm:$0xff]
        %v560 = vld [vmem:[#allocation2 + $0x92] sm:$0xff]
        %v561 = vld [vmem:[#allocation2 + $0x9a] sm:$0xff]
        %v562 = vld [vmem:[#allocation2 + $0xa2] sm:$0xff]
        %v563 = vld [vmem:[#allocation2 + $0xaa] sm:$0xff]
        %v564 = vld [vmem:[#allocation2 + $0xb2] sm:$0xff]
        %v565 = vld [vmem:[#allocation2 + $0xba] sm:$0xff]
        %v566 = vld [vmem:[#allocation2 + $0xc2] sm:$0xff]
        %v567 = vld [vmem:[#allocation2 + $0xca] sm:$0xff]
        %v568 = vld [vmem:[#allocation2 + $0xd2] sm:$0xff]
        %v569 = vld [vmem:[#allocation2 + $0xda] sm:$0xff]
        %v570 = vld [vmem:[#allocation2 + $0xe2] sm:$0xff]
        %v571 = vld [vmem:[#allocation2 + $0xea] sm:$0xff]
        %v572 = vld [vmem:[#allocation2 + $0xf2] sm:$0xff]
        %v573 = vld [vmem:[#allocation2 + $0xfa] sm:$0xff]
        %v574 = vld [vmem:[#allocation2 + $0x102] sm:$0xff]
        %v575 = vld [vmem:[#allocation2 + $0x10a] sm:$0xff]
        %v576 = vld [vmem:[#allocation2 + $0x112] sm:$0xff]
        %v577 = vld [vmem:[#allocation2 + $0x11a] sm:$0xff]
        %v578 = vld [vmem:[#allocation2 + $0x122] sm:$0xff]
        %v579 = vld [vmem:[#allocation2 + $0x12a] sm:$0xff]
        %s580 = scalar_lea.vmem %s1, 4
        %v581 = vld [vmem:[%s580] sm:$0xf]
        %v583 = vsel %vm370, %v544, 0
        %v586 = vsel %vm370, %v545, 0
        %v589 = vsel %vm370, %v546, 0
        %v592 = vsel %vm370, %v547, 0
        %v595 = vsel %vm370, %v548, 0
        %v598 = vsel %vm370, %v549, 0
        %v601 = vsel %vm370, %v550, 0
        %v604 = vsel %vm370, %v551, 0
        %v607 = vsel %vm370, %v552, 0
        %v610 = vsel %vm370, %v553, 0
        %v613 = vsel %vm370, %v554, 0
        %v616 = vsel %vm370, %v555, 0
        %v619 = vsel %vm370, %v556, 0
        %v622 = vsel %vm370, %v557, 0
        %v625 = vsel %vm370, %v558, 0
        %v628 = vsel %vm370, %v559, 0
        %v631 = vsel %vm370, %v560, 0
        %v634 = vsel %vm370, %v561, 0
        %v637 = vsel %vm370, %v562, 0
        %v640 = vsel %vm370, %v563, 0
        %v643 = vsel %vm370, %v564, 0
        %v646 = vsel %vm370, %v565, 0
        %v649 = vsel %vm370, %v566, 0
        %v652 = vsel %vm370, %v567, 0
        %v655 = vsel %vm370, %v568, 0
        %v658 = vsel %vm370, %v569, 0
        %v661 = vsel %vm370, %v570, 0
        %v664 = vsel %vm370, %v571, 0
        %v667 = vsel %vm370, %v572, 0
        %v670 = vsel %vm370, %v573, 0
        %v673 = vsel %vm370, %v574, 0
        %v676 = vsel %vm370, %v575, 0
        %v679 = vsel %vm370, %v576, 0
        %v682 = vsel %vm370, %v577, 0
        %v685 = vsel %vm370, %v578, 0
        %v688 = vsel %vm370, %v579, 0
        %vm690 = vcmask 1043456
        %v692 = vsel %vm690, %v581, 0
        %694 = vmatprep.subr.mxu0 0.0
        %695 = vmatpush1.msra.mxu0 %v692
        %696 = vmatprep.subr.mxu0 0.0
        %697 = vmatpush1.msra.mxu0 0.0
        %698 = vmatprep.subr.mxu0 0.0
        %699 = vmatpush1.msra.mxu0 0.0
        %700 = vmatprep.subr.mxu0 0.0
        %701 = vmatpush1.msra.mxu0 0.0
        %702 = vmatprep.subr.mxu0 0.0
        %703 = vmatpush1.msra.mxu0 0.0
        %704 = vmatprep.subr.mxu0 0.0
        %705 = vmatpush1.msra.mxu0 0.0
        %706 = vmatprep.subr.mxu0 0.0
        %707 = vmatpush1.msra.mxu0 0.0
        %708 = vmatprep.subr.mxu0 0.0
        %709 = vmatpush1.msra.mxu0 0.0
        %710 = vmatprep.subr.mxu0 0.0
        %711 = vmatpush1.msra.mxu0 0.0
        %712 = vmatprep.subr.mxu0 0.0
        %713 = vmatpush1.msra.mxu0 0.0
        %714 = vmatprep.subr.mxu0 0.0
        %715 = vmatpush1.msra.mxu0 0.0
        %716 = vmatprep.subr.mxu0 0.0
        %717 = vmatpush1.msra.mxu0 0.0
        %718 = vmatprep.subr.mxu0 0.0
        %719 = vmatpush1.msra.mxu0 0.0
        %720 = vmatprep.subr.mxu0 0.0
        %721 = vmatpush1.msra.mxu0 0.0
        %722 = vmatprep.subr.mxu0 0.0
        %723 = vmatpush1.msra.mxu0 0.0
        %724 = vmatprep.subr.mxu0 0.0
        %725 = vmatpush1.msra.mxu0 0.0
        %726 = vmatprep.subr.mxu0 0.0
        %727 = vmatpush1.msra.mxu0 0.0
        %728 = vmatprep.subr.mxu0 0.0
        %729 = vmatpush1.msra.mxu0 0.0
        %730 = vmatprep.subr.mxu0 0.0
        %731 = vmatpush1.msra.mxu0 0.0
        %732 = vmatprep.subr.mxu0 0.0
        %733 = vmatpush1.msra.mxu0 0.0
        %734 = vmatprep.subr.mxu0 0.0
        %735 = vmatpush1.msra.mxu0 0.0
        %736 = vmatprep.subr.mxu0 0.0
        %737 = vmatpush1.msra.mxu0 0.0
        %738 = vmatprep.subr.mxu0 0.0
        %739 = vmatpush1.msra.mxu0 0.0
        %740 = vmatprep.subr.mxu0 0.0
        %741 = vmatpush1.msra.mxu0 0.0
        %742 = vmatprep.subr.mxu0 0.0
        %743 = vmatpush1.msra.mxu0 0.0
        %744 = vmatprep.subr.mxu0 0.0
        %745 = vmatpush1.msra.mxu0 0.0
        %746 = vmatprep.subr.mxu0 0.0
        %747 = vmatpush1.msra.mxu0 0.0
        %748 = vmatprep.subr.mxu0 0.0
        %749 = vmatpush1.msra.mxu0 0.0
        %750 = vmatprep.subr.mxu0 0.0
        %751 = vmatpush1.msra.mxu0 0.0
        %752 = vmatprep.subr.mxu0 0.0
        %753 = vmatpush1.msra.mxu0 0.0
        %754 = vmatprep.subr.mxu0 0.0
        %755 = vmatpush1.msra.mxu0 0.0
        %756 = vmatprep.subr.mxu0 0.0
        %757 = vmatpush1.msra.mxu0 0.0
        %758 = vmatprep.mubr.f32.mxu0 0.0
        %759 = vmatmul.mubr.f32.gmra.mrb[0].mxu0 %v583
        %v760 = vpop.f32.mrb[0].mxu0
        %v761 = vadd.f32 0.0, %v760
        %v762 = vpop.f32.mrb[0].mxu0
        %763 = vmatprep.mubr.f32.mxu0 0.0
        %764 = vmatmul.mubr.f32.gmra.mrb[0].mxu0 %v586
        %v765 = vpop.f32.mrb[0].mxu0
        %v766 = vadd.f32 0.0, %v765
        %v767 = vpop.f32.mrb[0].mxu0
        %768 = vmatprep.mubr.f32.mxu0 0.0
        %769 = vmatmul.mubr.f32.gmra.mrb[0].mxu0 %v589
        %v770 = vpop.f32.mrb[0].mxu0
        %v771 = vadd.f32 0.0, %v770
        %v772 = vpop.f32.mrb[0].mxu0
        %773 = vmatprep.mubr.f32.mxu0 0.0
        %774 = vmatmul.mubr.f32.gmra.mrb[0].mxu0 %v592
        %v775 = vpop.f32.mrb[0].mxu0
        %v776 = vadd.f32 0.0, %v775
        %v777 = vpop.f32.mrb[0].mxu0
        %778 = vmatprep.mubr.f32.mxu0 0.0
        %779 = vmatmul.mubr.f32.gmra.mrb[0].mxu0 %v595
        %v780 = vpop.f32.mrb[0].mxu0
        %v781 = vadd.f32 0.0, %v780
        %v782 = vpop.f32.mrb[0].mxu0
        %783 = vmatprep.mubr.f32.mxu0 0.0
        %784 = vmatmul.mubr.f32.gmra.mrb[0].mxu0 %v598
        %v785 = vpop.f32.mrb[0].mxu0
        %v786 = vadd.f32 0.0, %v785
        %v787 = vpop.f32.mrb[0].mxu0
        %788 = vmatprep.mubr.f32.mxu0 0.0
        %789 = vmatmul.mubr.f32.gmra.mrb[0].mxu0 %v601
        %v790 = vpop.f32.mrb[0].mxu0
        %v791 = vadd.f32 0.0, %v790
        %v792 = vpop.f32.mrb[0].mxu0
        %793 = vmatprep.mubr.f32.mxu0 0.0
        %794 = vmatmul.mubr.f32.gmra.mrb[0].mxu0 %v604
        %v795 = vpop.f32.mrb[0].mxu0
        %v796 = vadd.f32 0.0, %v795
        %v797 = vpop.f32.mrb[0].mxu0
        %798 = vmatprep.mubr.f32.mxu0 0.0
        %799 = vmatmul.mubr.f32.gmra.mrb[0].mxu0 %v607
        %v800 = vpop.f32.mrb[0].mxu0
        %v801 = vadd.f32 0.0, %v800
        %v802 = vpop.f32.mrb[0].mxu0
        %803 = vmatprep.mubr.f32.mxu0 0.0
        %804 = vmatmul.mubr.f32.gmra.mrb[0].mxu0 %v610
        %v805 = vpop.f32.mrb[0].mxu0
        %v806 = vadd.f32 0.0, %v805
        %v807 = vpop.f32.mrb[0].mxu0
        %808 = vmatprep.mubr.f32.mxu0 0.0
        %809 = vmatmul.mubr.f32.gmra.mrb[0].mxu0 %v613
        %v810 = vpop.f32.mrb[0].mxu0
        %v811 = vadd.f32 0.0, %v810
        %v812 = vpop.f32.mrb[0].mxu0
        %813 = vmatprep.mubr.f32.mxu0 0.0
        %814 = vmatmul.mubr.f32.gmra.mrb[0].mxu0 %v616
        %v815 = vpop.f32.mrb[0].mxu0
        %v816 = vadd.f32 0.0, %v815
        %v817 = vpop.f32.mrb[0].mxu0
        %818 = vmatprep.mubr.f32.mxu0 0.0
        %819 = vmatmul.mubr.f32.gmra.mrb[0].mxu0 %v619
        %v820 = vpop.f32.mrb[0].mxu0
        %v821 = vadd.f32 0.0, %v820
        %v822 = vpop.f32.mrb[0].mxu0
        %823 = vmatprep.mubr.f32.mxu0 0.0
        %824 = vmatmul.mubr.f32.gmra.mrb[0].mxu0 %v622
        %v825 = vpop.f32.mrb[0].mxu0
        %v826 = vadd.f32 0.0, %v825
        %v827 = vpop.f32.mrb[0].mxu0
        %828 = vmatprep.mubr.f32.mxu0 0.0
        %829 = vmatmul.mubr.f32.gmra.mrb[0].mxu0 %v625
        %v830 = vpop.f32.mrb[0].mxu0
        %v831 = vadd.f32 0.0, %v830
        %v832 = vpop.f32.mrb[0].mxu0
        %833 = vmatprep.mubr.f32.mxu0 0.0
        %834 = vmatmul.mubr.f32.gmra.mrb[0].mxu0 %v628
        %v835 = vpop.f32.mrb[0].mxu0
        %v836 = vadd.f32 0.0, %v835
        %v837 = vpop.f32.mrb[0].mxu0
        %838 = vmatprep.mubr.f32.mxu0 0.0
        %839 = vmatmul.mubr.f32.gmra.mrb[0].mxu0 %v631
        %v840 = vpop.f32.mrb[0].mxu0
        %v841 = vadd.f32 0.0, %v840
        %v842 = vpop.f32.mrb[0].mxu0
        %843 = vmatprep.mubr.f32.mxu0 0.0
        %844 = vmatmul.mubr.f32.gmra.mrb[0].mxu0 %v634
        %v845 = vpop.f32.mrb[0].mxu0
        %v846 = vadd.f32 0.0, %v845
        %v847 = vpop.f32.mrb[0].mxu0
        %848 = vmatprep.mubr.f32.mxu0 0.0
        %849 = vmatmul.mubr.f32.gmra.mrb[0].mxu0 %v637
        %v850 = vpop.f32.mrb[0].mxu0
        %v851 = vadd.f32 0.0, %v850
        %v852 = vpop.f32.mrb[0].mxu0
        %853 = vmatprep.mubr.f32.mxu0 0.0
        %854 = vmatmul.mubr.f32.gmra.mrb[0].mxu0 %v640
        %v855 = vpop.f32.mrb[0].mxu0
        %v856 = vadd.f32 0.0, %v855
        %v857 = vpop.f32.mrb[0].mxu0
        %858 = vmatprep.mubr.f32.mxu0 0.0
        %859 = vmatmul.mubr.f32.gmra.mrb[0].mxu0 %v643
        %v860 = vpop.f32.mrb[0].mxu0
        %v861 = vadd.f32 0.0, %v860
        %v862 = vpop.f32.mrb[0].mxu0
        %863 = vmatprep.mubr.f32.mxu0 0.0
        %864 = vmatmul.mubr.f32.gmra.mrb[0].mxu0 %v646
        %v865 = vpop.f32.mrb[0].mxu0
        %v866 = vadd.f32 0.0, %v865
        %v867 = vpop.f32.mrb[0].mxu0
        %868 = vmatprep.mubr.f32.mxu0 0.0
        %869 = vmatmul.mubr.f32.gmra.mrb[0].mxu0 %v649
        %v870 = vpop.f32.mrb[0].mxu0
        %v871 = vadd.f32 0.0, %v870
        %v872 = vpop.f32.mrb[0].mxu0
        %873 = vmatprep.mubr.f32.mxu0 0.0
        %874 = vmatmul.mubr.f32.gmra.mrb[0].mxu0 %v652
        %v875 = vpop.f32.mrb[0].mxu0
        %v876 = vadd.f32 0.0, %v875
        %v877 = vpop.f32.mrb[0].mxu0
        %878 = vmatprep.mubr.f32.mxu0 0.0
        %879 = vmatmul.mubr.f32.gmra.mrb[0].mxu0 %v655
        %v880 = vpop.f32.mrb[0].mxu0
        %v881 = vadd.f32 0.0, %v880
        %v882 = vpop.f32.mrb[0].mxu0
        %883 = vmatprep.mubr.f32.mxu0 0.0
        %884 = vmatmul.mubr.f32.gmra.mrb[0].mxu0 %v658
        %v885 = vpop.f32.mrb[0].mxu0
        %v886 = vadd.f32 0.0, %v885
        %v887 = vpop.f32.mrb[0].mxu0
        %888 = vmatprep.mubr.f32.mxu0 0.0
        %889 = vmatmul.mubr.f32.gmra.mrb[0].mxu0 %v661
        %v890 = vpop.f32.mrb[0].mxu0
        %v891 = vadd.f32 0.0, %v890
        %v892 = vpop.f32.mrb[0].mxu0
        %893 = vmatprep.mubr.f32.mxu0 0.0
        %894 = vmatmul.mubr.f32.gmra.mrb[0].mxu0 %v664
        %v895 = vpop.f32.mrb[0].mxu0
        %v896 = vadd.f32 0.0, %v895
        %v897 = vpop.f32.mrb[0].mxu0
        %898 = vmatprep.mubr.f32.mxu0 0.0
        %899 = vmatmul.mubr.f32.gmra.mrb[0].mxu0 %v667
        %v900 = vpop.f32.mrb[0].mxu0
        %v901 = vadd.f32 0.0, %v900
        %v902 = vpop.f32.mrb[0].mxu0
        %903 = vmatprep.mubr.f32.mxu0 0.0
        %904 = vmatmul.mubr.f32.gmra.mrb[0].mxu0 %v670
        %v905 = vpop.f32.mrb[0].mxu0
        %v906 = vadd.f32 0.0, %v905
        %v907 = vpop.f32.mrb[0].mxu0
        %908 = vmatprep.mubr.f32.mxu0 0.0
        %909 = vmatmul.mubr.f32.gmra.mrb[0].mxu0 %v673
        %v910 = vpop.f32.mrb[0].mxu0
        %v911 = vadd.f32 0.0, %v910
        %v912 = vpop.f32.mrb[0].mxu0
        %913 = vmatprep.mubr.f32.mxu0 0.0
        %914 = vmatmul.mubr.f32.gmra.mrb[0].mxu0 %v676
        %v915 = vpop.f32.mrb[0].mxu0
        %v916 = vadd.f32 0.0, %v915
        %v917 = vpop.f32.mrb[0].mxu0
        %918 = vmatprep.mubr.f32.mxu0 0.0
        %919 = vmatmul.mubr.f32.gmra.mrb[0].mxu0 %v679
        %v920 = vpop.f32.mrb[0].mxu0
        %v921 = vadd.f32 0.0, %v920
        %v922 = vpop.f32.mrb[0].mxu0
        %923 = vmatprep.mubr.f32.mxu0 0.0
        %924 = vmatmul.mubr.f32.gmra.mrb[0].mxu0 %v682
        %v925 = vpop.f32.mrb[0].mxu0
        %v926 = vadd.f32 0.0, %v925
        %v927 = vpop.f32.mrb[0].mxu0
        %928 = vmatprep.mubr.f32.mxu0 0.0
        %929 = vmatmul.mubr.f32.gmra.mrb[0].mxu0 %v685
        %v930 = vpop.f32.mrb[0].mxu0
        %v931 = vadd.f32 0.0, %v930
        %v932 = vpop.f32.mrb[0].mxu0
        %933 = vmatprep.mubr.f32.mxu0 0.0
        %934 = vmatmul.mubr.f32.gmra.mrb[0].mxu0 %v688
        %v935 = vpop.f32.mrb[0].mxu0
        %v936 = vadd.f32 0.0, %v935
        %v937 = vpop.f32.mrb[0].mxu0
        %938 = vdwg.mxu0
        %v940 = vsel %vm370, %v507, 0
        %v943 = vsel %vm370, %v508, 0
        %v946 = vsel %vm370, %v509, 0
        %v949 = vsel %vm370, %v510, 0
        %v952 = vsel %vm370, %v511, 0
        %v955 = vsel %vm370, %v512, 0
        %v958 = vsel %vm370, %v513, 0
        %v961 = vsel %vm370, %v514, 0
        %v964 = vsel %vm370, %v515, 0
        %v967 = vsel %vm370, %v516, 0
        %v970 = vsel %vm370, %v517, 0
        %v973 = vsel %vm370, %v518, 0
        %v976 = vsel %vm370, %v519, 0
        %v979 = vsel %vm370, %v520, 0
        %v982 = vsel %vm370, %v521, 0
        %v985 = vsel %vm370, %v522, 0
        %v988 = vsel %vm370, %v523, 0
        %v991 = vsel %vm370, %v524, 0
        %v994 = vsel %vm370, %v525, 0
        %v997 = vsel %vm370, %v526, 0
        %v1000 = vsel %vm370, %v527, 0
        %v1003 = vsel %vm370, %v528, 0
        %v1006 = vsel %vm370, %v529, 0
        %v1009 = vsel %vm370, %v530, 0
        %v1012 = vsel %vm370, %v531, 0
        %v1015 = vsel %vm370, %v532, 0
        %v1018 = vsel %vm370, %v533, 0
        %v1021 = vsel %vm370, %v534, 0
        %v1024 = vsel %vm370, %v535, 0
        %v1027 = vsel %vm370, %v536, 0
        %v1030 = vsel %vm370, %v537, 0
        %v1033 = vsel %vm370, %v538, 0
        %v1036 = vsel %vm370, %v539, 0
        %v1039 = vsel %vm370, %v540, 0
        %v1042 = vsel %vm370, %v541, 0
        %v1045 = vsel %vm370, %v542, 0
        %v1048 = vsel %vm690, %v543, 0
        %1050 = vmatprep.subr.mxu0 0.0
        %1051 = vmatpush1.msra.mxu0 %v1048
        %1052 = vmatprep.subr.mxu0 0.0
        %1053 = vmatpush1.msra.mxu0 0.0
        %1054 = vmatprep.subr.mxu0 0.0
        %1055 = vmatpush1.msra.mxu0 0.0
        %1056 = vmatprep.subr.mxu0 0.0
        %1057 = vmatpush1.msra.mxu0 0.0
        %1058 = vmatprep.subr.mxu0 0.0
        %1059 = vmatpush1.msra.mxu0 0.0
        %1060 = vmatprep.subr.mxu0 0.0
        %1061 = vmatpush1.msra.mxu0 0.0
        %1062 = vmatprep.subr.mxu0 0.0
        %1063 = vmatpush1.msra.mxu0 0.0
        %1064 = vmatprep.subr.mxu0 0.0
        %1065 = vmatpush1.msra.mxu0 0.0
        %1066 = vmatprep.subr.mxu0 0.0
        %1067 = vmatpush1.msra.mxu0 0.0
        %1068 = vmatprep.subr.mxu0 0.0
        %1069 = vmatpush1.msra.mxu0 0.0
        %1070 = vmatprep.subr.mxu0 0.0
        %1071 = vmatpush1.msra.mxu0 0.0
        %1072 = vmatprep.subr.mxu0 0.0
        %1073 = vmatpush1.msra.mxu0 0.0
        %1074 = vmatprep.subr.mxu0 0.0
        %1075 = vmatpush1.msra.mxu0 0.0
        %1076 = vmatprep.subr.mxu0 0.0
        %1077 = vmatpush1.msra.mxu0 0.0
        %1078 = vmatprep.subr.mxu0 0.0
        %1079 = vmatpush1.msra.mxu0 0.0
        %1080 = vmatprep.subr.mxu0 0.0
        %1081 = vmatpush1.msra.mxu0 0.0
        %1082 = vmatprep.subr.mxu0 0.0
        %1083 = vmatpush1.msra.mxu0 0.0
        %1084 = vmatprep.subr.mxu0 0.0
        %1085 = vmatpush1.msra.mxu0 0.0
        %1086 = vmatprep.subr.mxu0 0.0
        %1087 = vmatpush1.msra.mxu0 0.0
        %1088 = vmatprep.subr.mxu0 0.0
        %1089 = vmatpush1.msra.mxu0 0.0
        %1090 = vmatprep.subr.mxu0 0.0
        %1091 = vmatpush1.msra.mxu0 0.0
        %1092 = vmatprep.subr.mxu0 0.0
        %1093 = vmatpush1.msra.mxu0 0.0
        %1094 = vmatprep.subr.mxu0 0.0
        %1095 = vmatpush1.msra.mxu0 0.0
        %1096 = vmatprep.subr.mxu0 0.0
        %1097 = vmatpush1.msra.mxu0 0.0
        %1098 = vmatprep.subr.mxu0 0.0
        %1099 = vmatpush1.msra.mxu0 0.0
        %1100 = vmatprep.subr.mxu0 0.0
        %1101 = vmatpush1.msra.mxu0 0.0
        %1102 = vmatprep.subr.mxu0 0.0
        %1103 = vmatpush1.msra.mxu0 0.0
        %1104 = vmatprep.subr.mxu0 0.0
        %1105 = vmatpush1.msra.mxu0 0.0
        %1106 = vmatprep.subr.mxu0 0.0
        %1107 = vmatpush1.msra.mxu0 0.0
        %1108 = vmatprep.subr.mxu0 0.0
        %1109 = vmatpush1.msra.mxu0 0.0
        %1110 = vmatprep.subr.mxu0 0.0
        %1111 = vmatpush1.msra.mxu0 0.0
        %1112 = vmatprep.subr.mxu0 0.0
        %1113 = vmatpush1.msra.mxu0 0.0
        %1114 = vmatprep.mubr.f32.mxu0 0.0
        %1115 = vmatmul.mubr.f32.gmra.mrb[0].mxu0 %v940
        %v1116 = vpop.f32.mrb[0].mxu0
        %v1117 = vadd.f32 %v761, %v1116
        %v1118 = vpop.f32.mrb[0].mxu0
        %1119 = vmatprep.mubr.f32.mxu0 0.0
        %1120 = vmatmul.mubr.f32.gmra.mrb[0].mxu0 %v943
        %v1121 = vpop.f32.mrb[0].mxu0
        %v1122 = vadd.f32 %v766, %v1121
        %v1123 = vpop.f32.mrb[0].mxu0
        %1124 = vmatprep.mubr.f32.mxu0 0.0
        %1125 = vmatmul.mubr.f32.gmra.mrb[0].mxu0 %v946
        %v1126 = vpop.f32.mrb[0].mxu0
        %v1127 = vadd.f32 %v771, %v1126
        %v1128 = vpop.f32.mrb[0].mxu0
        %1129 = vmatprep.mubr.f32.mxu0 0.0
        %1130 = vmatmul.mubr.f32.gmra.mrb[0].mxu0 %v949
        %v1131 = vpop.f32.mrb[0].mxu0
        %v1132 = vadd.f32 %v776, %v1131
        %v1133 = vpop.f32.mrb[0].mxu0
        %1134 = vmatprep.mubr.f32.mxu0 0.0
        %1135 = vmatmul.mubr.f32.gmra.mrb[0].mxu0 %v952
        %v1136 = vpop.f32.mrb[0].mxu0
        %v1137 = vadd.f32 %v781, %v1136
        %v1138 = vpop.f32.mrb[0].mxu0
        %1139 = vmatprep.mubr.f32.mxu0 0.0
        %1140 = vmatmul.mubr.f32.gmra.mrb[0].mxu0 %v955
        %v1141 = vpop.f32.mrb[0].mxu0
        %v1142 = vadd.f32 %v786, %v1141
        %v1143 = vpop.f32.mrb[0].mxu0
        %1144 = vmatprep.mubr.f32.mxu0 0.0
        %1145 = vmatmul.mubr.f32.gmra.mrb[0].mxu0 %v958
        %v1146 = vpop.f32.mrb[0].mxu0
        %v1147 = vadd.f32 %v791, %v1146
        %v1148 = vpop.f32.mrb[0].mxu0
        %1149 = vmatprep.mubr.f32.mxu0 0.0
        %1150 = vmatmul.mubr.f32.gmra.mrb[0].mxu0 %v961
        %v1151 = vpop.f32.mrb[0].mxu0
        %v1152 = vadd.f32 %v796, %v1151
        %v1153 = vpop.f32.mrb[0].mxu0
        %1154 = vmatprep.mubr.f32.mxu0 0.0
        %1155 = vmatmul.mubr.f32.gmra.mrb[0].mxu0 %v964
        %v1156 = vpop.f32.mrb[0].mxu0
        %v1157 = vadd.f32 %v801, %v1156
        %v1158 = vpop.f32.mrb[0].mxu0
        %1159 = vmatprep.mubr.f32.mxu0 0.0
        %1160 = vmatmul.mubr.f32.gmra.mrb[0].mxu0 %v967
        %v1161 = vpop.f32.mrb[0].mxu0
        %v1162 = vadd.f32 %v806, %v1161
        %v1163 = vpop.f32.mrb[0].mxu0
        %1164 = vmatprep.mubr.f32.mxu0 0.0
        %1165 = vmatmul.mubr.f32.gmra.mrb[0].mxu0 %v970
        %v1166 = vpop.f32.mrb[0].mxu0
        %v1167 = vadd.f32 %v811, %v1166
        %v1168 = vpop.f32.mrb[0].mxu0
        %1169 = vmatprep.mubr.f32.mxu0 0.0
        %1170 = vmatmul.mubr.f32.gmra.mrb[0].mxu0 %v973
        %v1171 = vpop.f32.mrb[0].mxu0
        %v1172 = vadd.f32 %v816, %v1171
        %v1173 = vpop.f32.mrb[0].mxu0
        %1174 = vmatprep.mubr.f32.mxu0 0.0
        %1175 = vmatmul.mubr.f32.gmra.mrb[0].mxu0 %v976
        %v1176 = vpop.f32.mrb[0].mxu0
        %v1177 = vadd.f32 %v821, %v1176
        %v1178 = vpop.f32.mrb[0].mxu0
        %1179 = vmatprep.mubr.f32.mxu0 0.0
        %1180 = vmatmul.mubr.f32.gmra.mrb[0].mxu0 %v979
        %v1181 = vpop.f32.mrb[0].mxu0
        %v1182 = vadd.f32 %v826, %v1181
        %v1183 = vpop.f32.mrb[0].mxu0
        %1184 = vmatprep.mubr.f32.mxu0 0.0
        %1185 = vmatmul.mubr.f32.gmra.mrb[0].mxu0 %v982
        %v1186 = vpop.f32.mrb[0].mxu0
        %v1187 = vadd.f32 %v831, %v1186
        %v1188 = vpop.f32.mrb[0].mxu0
        %1189 = vmatprep.mubr.f32.mxu0 0.0
        %1190 = vmatmul.mubr.f32.gmra.mrb[0].mxu0 %v985
        %v1191 = vpop.f32.mrb[0].mxu0
        %v1192 = vadd.f32 %v836, %v1191
        %v1193 = vpop.f32.mrb[0].mxu0
        %1194 = vmatprep.mubr.f32.mxu0 0.0
        %1195 = vmatmul.mubr.f32.gmra.mrb[0].mxu0 %v988
        %v1196 = vpop.f32.mrb[0].mxu0
        %v1197 = vadd.f32 %v841, %v1196
        %v1198 = vpop.f32.mrb[0].mxu0
        %1199 = vmatprep.mubr.f32.mxu0 0.0
        %1200 = vmatmul.mubr.f32.gmra.mrb[0].mxu0 %v991
        %v1201 = vpop.f32.mrb[0].mxu0
        %v1202 = vadd.f32 %v846, %v1201
        %v1203 = vpop.f32.mrb[0].mxu0
        %1204 = vmatprep.mubr.f32.mxu0 0.0
        %1205 = vmatmul.mubr.f32.gmra.mrb[0].mxu0 %v994
        %v1206 = vpop.f32.mrb[0].mxu0
        %v1207 = vadd.f32 %v851, %v1206
        %v1208 = vpop.f32.mrb[0].mxu0
        %1209 = vmatprep.mubr.f32.mxu0 0.0
        %1210 = vmatmul.mubr.f32.gmra.mrb[0].mxu0 %v997
        %v1211 = vpop.f32.mrb[0].mxu0
        %v1212 = vadd.f32 %v856, %v1211
        %v1213 = vpop.f32.mrb[0].mxu0
        %1214 = vmatprep.mubr.f32.mxu0 0.0
        %1215 = vmatmul.mubr.f32.gmra.mrb[0].mxu0 %v1000
        %v1216 = vpop.f32.mrb[0].mxu0
        %v1217 = vadd.f32 %v861, %v1216
        %v1218 = vpop.f32.mrb[0].mxu0
        %1219 = vmatprep.mubr.f32.mxu0 0.0
        %1220 = vmatmul.mubr.f32.gmra.mrb[0].mxu0 %v1003
        %v1221 = vpop.f32.mrb[0].mxu0
        %v1222 = vadd.f32 %v866, %v1221
        %v1223 = vpop.f32.mrb[0].mxu0
        %1224 = vmatprep.mubr.f32.mxu0 0.0
        %1225 = vmatmul.mubr.f32.gmra.mrb[0].mxu0 %v1006
        %v1226 = vpop.f32.mrb[0].mxu0
        %v1227 = vadd.f32 %v871, %v1226
        %v1228 = vpop.f32.mrb[0].mxu0
        %1229 = vmatprep.mubr.f32.mxu0 0.0
        %1230 = vmatmul.mubr.f32.gmra.mrb[0].mxu0 %v1009
        %v1231 = vpop.f32.mrb[0].mxu0
        %v1232 = vadd.f32 %v876, %v1231
        %v1233 = vpop.f32.mrb[0].mxu0
        %1234 = vmatprep.mubr.f32.mxu0 0.0
        %1235 = vmatmul.mubr.f32.gmra.mrb[0].mxu0 %v1012
        %v1236 = vpop.f32.mrb[0].mxu0
        %v1237 = vadd.f32 %v881, %v1236
        %v1238 = vpop.f32.mrb[0].mxu0
        %1239 = vmatprep.mubr.f32.mxu0 0.0
        %1240 = vmatmul.mubr.f32.gmra.mrb[0].mxu0 %v1015
        %v1241 = vpop.f32.mrb[0].mxu0
        %v1242 = vadd.f32 %v886, %v1241
        %v1243 = vpop.f32.mrb[0].mxu0
        %1244 = vmatprep.mubr.f32.mxu0 0.0
        %1245 = vmatmul.mubr.f32.gmra.mrb[0].mxu0 %v1018
        %v1246 = vpop.f32.mrb[0].mxu0
        %v1247 = vadd.f32 %v891, %v1246
        %v1248 = vpop.f32.mrb[0].mxu0
        %1249 = vmatprep.mubr.f32.mxu0 0.0
        %1250 = vmatmul.mubr.f32.gmra.mrb[0].mxu0 %v1021
        %v1251 = vpop.f32.mrb[0].mxu0
        %v1252 = vadd.f32 %v896, %v1251
        %v1253 = vpop.f32.mrb[0].mxu0
        %1254 = vmatprep.mubr.f32.mxu0 0.0
        %1255 = vmatmul.mubr.f32.gmra.mrb[0].mxu0 %v1024
        %v1256 = vpop.f32.mrb[0].mxu0
        %v1257 = vadd.f32 %v901, %v1256
        %v1258 = vpop.f32.mrb[0].mxu0
        %1259 = vmatprep.mubr.f32.mxu0 0.0
        %1260 = vmatmul.mubr.f32.gmra.mrb[0].mxu0 %v1027
        %v1261 = vpop.f32.mrb[0].mxu0
        %v1262 = vadd.f32 %v906, %v1261
        %v1263 = vpop.f32.mrb[0].mxu0
        %1264 = vmatprep.mubr.f32.mxu0 0.0
        %1265 = vmatmul.mubr.f32.gmra.mrb[0].mxu0 %v1030
        %v1266 = vpop.f32.mrb[0].mxu0
        %v1267 = vadd.f32 %v911, %v1266
        %v1268 = vpop.f32.mrb[0].mxu0
        %1269 = vmatprep.mubr.f32.mxu0 0.0
        %1270 = vmatmul.mubr.f32.gmra.mrb[0].mxu0 %v1033
        %v1271 = vpop.f32.mrb[0].mxu0
        %v1272 = vadd.f32 %v916, %v1271
        %v1273 = vpop.f32.mrb[0].mxu0
        %1274 = vmatprep.mubr.f32.mxu0 0.0
        %1275 = vmatmul.mubr.f32.gmra.mrb[0].mxu0 %v1036
        %v1276 = vpop.f32.mrb[0].mxu0
        %v1277 = vadd.f32 %v921, %v1276
        %v1278 = vpop.f32.mrb[0].mxu0
        %1279 = vmatprep.mubr.f32.mxu0 0.0
        %1280 = vmatmul.mubr.f32.gmra.mrb[0].mxu0 %v1039
        %v1281 = vpop.f32.mrb[0].mxu0
        %v1282 = vadd.f32 %v926, %v1281
        %v1283 = vpop.f32.mrb[0].mxu0
        %1284 = vmatprep.mubr.f32.mxu0 0.0
        %1285 = vmatmul.mubr.f32.gmra.mrb[0].mxu0 %v1042
        %v1286 = vpop.f32.mrb[0].mxu0
        %v1287 = vadd.f32 %v931, %v1286
        %v1288 = vpop.f32.mrb[0].mxu0
        %1289 = vmatprep.mubr.f32.mxu0 0.0
        %1290 = vmatmul.mubr.f32.gmra.mrb[0].mxu0 %v1045
        %v1291 = vpop.f32.mrb[0].mxu0
        %v1292 = vadd.f32 %v936, %v1291
        %v1293 = vpop.f32.mrb[0].mxu0
        %1294 = vdwg.mxu0
        %v1295 = vld [vmem:[#allocation2 + $0x13] sm:$0xff]
        %v1296 = vld [vmem:[#allocation2 + $0x1b] sm:$0xff]
        %v1297 = vld [vmem:[#allocation2 + $0x23] sm:$0xff]
        %v1298 = vld [vmem:[#allocation2 + $0x2b] sm:$0xff]
        %v1299 = vld [vmem:[#allocation2 + $0x33] sm:$0xff]
        %v1300 = vld [vmem:[#allocation2 + $0x3b] sm:$0xff]
        %v1301 = vld [vmem:[#allocation2 + $0x43] sm:$0xff]
        %v1302 = vld [vmem:[#allocation2 + $0x4b] sm:$0xff]
        %v1303 = vld [vmem:[#allocation2 + $0x53] sm:$0xff]
        %v1304 = vld [vmem:[#allocation2 + $0x5b] sm:$0xff]
        %v1305 = vld [vmem:[#allocation2 + $0x63] sm:$0xff]
        %v1306 = vld [vmem:[#allocation2 + $0x6b] sm:$0xff]
        %v1307 = vld [vmem:[#allocation2 + $0x73] sm:$0xff]
        %v1308 = vld [vmem:[#allocation2 + $0x7b] sm:$0xff]
        %v1309 = vld [vmem:[#allocation2 + $0x83] sm:$0xff]
        %v1310 = vld [vmem:[#allocation2 + $0x8b] sm:$0xff]
        %v1311 = vld [vmem:[#allocation2 + $0x93] sm:$0xff]
        %v1312 = vld [vmem:[#allocation2 + $0x9b] sm:$0xff]
        %v1313 = vld [vmem:[#allocation2 + $0xa3] sm:$0xff]
        %v1314 = vld [vmem:[#allocation2 + $0xab] sm:$0xff]
        %v1315 = vld [vmem:[#allocation2 + $0xb3] sm:$0xff]
        %v1316 = vld [vmem:[#allocation2 + $0xbb] sm:$0xff]
        %v1317 = vld [vmem:[#allocation2 + $0xc3] sm:$0xff]
        %v1318 = vld [vmem:[#allocation2 + $0xcb] sm:$0xff]
        %v1319 = vld [vmem:[#allocation2 + $0xd3] sm:$0xff]
        %v1320 = vld [vmem:[#allocation2 + $0xdb] sm:$0xff]
        %v1321 = vld [vmem:[#allocation2 + $0xe3] sm:$0xff]
        %v1322 = vld [vmem:[#allocation2 + $0xeb] sm:$0xff]
        %v1323 = vld [vmem:[#allocation2 + $0xf3] sm:$0xff]
        %v1324 = vld [vmem:[#allocation2 + $0xfb] sm:$0xff]
        %v1325 = vld [vmem:[#allocation2 + $0x103] sm:$0xff]
        %v1326 = vld [vmem:[#allocation2 + $0x10b] sm:$0xff]
        %v1327 = vld [vmem:[#allocation2 + $0x113] sm:$0xff]
        %v1328 = vld [vmem:[#allocation2 + $0x11b] sm:$0xff]
        %v1329 = vld [vmem:[#allocation2 + $0x123] sm:$0xff]
        %v1330 = vld [vmem:[#allocation2 + $0x12b] sm:$0xff]
        %s1331 = scalar_lea.vmem %s1, 8
        %v1332 = vld [vmem:[%s1331] sm:$0xf]
        %v1334 = vsel %vm370, %v1295, 0
        %v1337 = vsel %vm370, %v1296, 0
        %v1340 = vsel %vm370, %v1297, 0
        %v1343 = vsel %vm370, %v1298, 0
        %v1346 = vsel %vm370, %v1299, 0
        %v1349 = vsel %vm370, %v1300, 0
        %v1352 = vsel %vm370, %v1301, 0
        %v1355 = vsel %vm370, %v1302, 0
        %v1358 = vsel %vm370, %v1303, 0
        %v1361 = vsel %vm370, %v1304, 0
        %v1364 = vsel %vm370, %v1305, 0
        %v1367 = vsel %vm370, %v1306, 0
        %v1370 = vsel %vm370, %v1307, 0
        %v1373 = vsel %vm370, %v1308, 0
        %v1376 = vsel %vm370, %v1309, 0
        %v1379 = vsel %vm370, %v1310, 0
        %v1382 = vsel %vm370, %v1311, 0
        %v1385 = vsel %vm370, %v1312, 0
        %v1388 = vsel %vm370, %v1313, 0
        %v1391 = vsel %vm370, %v1314, 0
        %v1394 = vsel %vm370, %v1315, 0
        %v1397 = vsel %vm370, %v1316, 0
        %v1400 = vsel %vm370, %v1317, 0
        %v1403 = vsel %vm370, %v1318, 0
        %v1406 = vsel %vm370, %v1319, 0
        %v1409 = vsel %vm370, %v1320, 0
        %v1412 = vsel %vm370, %v1321, 0
        %v1415 = vsel %vm370, %v1322, 0
        %v1418 = vsel %vm370, %v1323, 0
        %v1421 = vsel %vm370, %v1324, 0
        %v1424 = vsel %vm370, %v1325, 0
        %v1427 = vsel %vm370, %v1326, 0
        %v1430 = vsel %vm370, %v1327, 0
        %v1433 = vsel %vm370, %v1328, 0
        %v1436 = vsel %vm370, %v1329, 0
        %v1439 = vsel %vm370, %v1330, 0
        %v1442 = vsel %vm690, %v1332, 0
        %1444 = vmatprep.subr.mxu0 0.0
        %1445 = vmatpush1.msra.mxu0 %v1442
        %1446 = vmatprep.subr.mxu0 0.0
        %1447 = vmatpush1.msra.mxu0 0.0
        %1448 = vmatprep.subr.mxu0 0.0
        %1449 = vmatpush1.msra.mxu0 0.0
        %1450 = vmatprep.subr.mxu0 0.0
        %1451 = vmatpush1.msra.mxu0 0.0
        %1452 = vmatprep.subr.mxu0 0.0
        %1453 = vmatpush1.msra.mxu0 0.0
        %1454 = vmatprep.subr.mxu0 0.0
        %1455 = vmatpush1.msra.mxu0 0.0
        %1456 = vmatprep.subr.mxu0 0.0
        %1457 = vmatpush1.msra.mxu0 0.0
        %1458 = vmatprep.subr.mxu0 0.0
        %1459 = vmatpush1.msra.mxu0 0.0
        %1460 = vmatprep.subr.mxu0 0.0
        %1461 = vmatpush1.msra.mxu0 0.0
        %1462 = vmatprep.subr.mxu0 0.0
        %1463 = vmatpush1.msra.mxu0 0.0
        %1464 = vmatprep.subr.mxu0 0.0
        %1465 = vmatpush1.msra.mxu0 0.0
        %1466 = vmatprep.subr.mxu0 0.0
        %1467 = vmatpush1.msra.mxu0 0.0
        %1468 = vmatprep.subr.mxu0 0.0
        %1469 = vmatpush1.msra.mxu0 0.0
        %1470 = vmatprep.subr.mxu0 0.0
        %1471 = vmatpush1.msra.mxu0 0.0
        %1472 = vmatprep.subr.mxu0 0.0
        %1473 = vmatpush1.msra.mxu0 0.0
        %1474 = vmatprep.subr.mxu0 0.0
        %1475 = vmatpush1.msra.mxu0 0.0
        %1476 = vmatprep.subr.mxu0 0.0
        %1477 = vmatpush1.msra.mxu0 0.0
        %1478 = vmatprep.subr.mxu0 0.0
        %1479 = vmatpush1.msra.mxu0 0.0
        %1480 = vmatprep.subr.mxu0 0.0
        %1481 = vmatpush1.msra.mxu0 0.0
        %1482 = vmatprep.subr.mxu0 0.0
        %1483 = vmatpush1.msra.mxu0 0.0
        %1484 = vmatprep.subr.mxu0 0.0
        %1485 = vmatpush1.msra.mxu0 0.0
        %1486 = vmatprep.subr.mxu0 0.0
        %1487 = vmatpush1.msra.mxu0 0.0
        %1488 = vmatprep.subr.mxu0 0.0
        %1489 = vmatpush1.msra.mxu0 0.0
        %1490 = vmatprep.subr.mxu0 0.0
        %1491 = vmatpush1.msra.mxu0 0.0
        %1492 = vmatprep.subr.mxu0 0.0
        %1493 = vmatpush1.msra.mxu0 0.0
        %1494 = vmatprep.subr.mxu0 0.0
        %1495 = vmatpush1.msra.mxu0 0.0
        %1496 = vmatprep.subr.mxu0 0.0
        %1497 = vmatpush1.msra.mxu0 0.0
        %1498 = vmatprep.subr.mxu0 0.0
        %1499 = vmatpush1.msra.mxu0 0.0
        %1500 = vmatprep.subr.mxu0 0.0
        %1501 = vmatpush1.msra.mxu0 0.0
        %1502 = vmatprep.subr.mxu0 0.0
        %1503 = vmatpush1.msra.mxu0 0.0
        %1504 = vmatprep.subr.mxu0 0.0
        %1505 = vmatpush1.msra.mxu0 0.0
        %1506 = vmatprep.subr.mxu0 0.0
        %1507 = vmatpush1.msra.mxu0 0.0
        %1508 = vmatprep.mubr.f32.mxu0 0.0
        %1509 = vmatmul.mubr.f32.gmra.mrb[0].mxu0 %v1334
        %v1510 = vpop.f32.mrb[0].mxu0
        %v1511 = vadd.f32 0.0, %v1510
        %v1512 = vpop.f32.mrb[0].mxu0
        %1513 = vmatprep.mubr.f32.mxu0 0.0
        %1514 = vmatmul.mubr.f32.gmra.mrb[0].mxu0 %v1337
        %v1515 = vpop.f32.mrb[0].mxu0
        %v1516 = vadd.f32 0.0, %v1515
        %v1517 = vpop.f32.mrb[0].mxu0
        %1518 = vmatprep.mubr.f32.mxu0 0.0
        %1519 = vmatmul.mubr.f32.gmra.mrb[0].mxu0 %v1340
        %v1520 = vpop.f32.mrb[0].mxu0
        %v1521 = vadd.f32 0.0, %v1520
        %v1522 = vpop.f32.mrb[0].mxu0
        %1523 = vmatprep.mubr.f32.mxu0 0.0
        %1524 = vmatmul.mubr.f32.gmra.mrb[0].mxu0 %v1343
        %v1525 = vpop.f32.mrb[0].mxu0
        %v1526 = vadd.f32 0.0, %v1525
        %v1527 = vpop.f32.mrb[0].mxu0
        %1528 = vmatprep.mubr.f32.mxu0 0.0
        %1529 = vmatmul.mubr.f32.gmra.mrb[0].mxu0 %v1346
        %v1530 = vpop.f32.mrb[0].mxu0
        %v1531 = vadd.f32 0.0, %v1530
        %v1532 = vpop.f32.mrb[0].mxu0
        %1533 = vmatprep.mubr.f32.mxu0 0.0
        %1534 = vmatmul.mubr.f32.gmra.mrb[0].mxu0 %v1349
        %v1535 = vpop.f32.mrb[0].mxu0
        %v1536 = vadd.f32 0.0, %v1535
        %v1537 = vpop.f32.mrb[0].mxu0
        %1538 = vmatprep.mubr.f32.mxu0 0.0
        %1539 = vmatmul.mubr.f32.gmra.mrb[0].mxu0 %v1352
        %v1540 = vpop.f32.mrb[0].mxu0
        %v1541 = vadd.f32 0.0, %v1540
        %v1542 = vpop.f32.mrb[0].mxu0
        %1543 = vmatprep.mubr.f32.mxu0 0.0
        %1544 = vmatmul.mubr.f32.gmra.mrb[0].mxu0 %v1355
        %v1545 = vpop.f32.mrb[0].mxu0
        %v1546 = vadd.f32 0.0, %v1545
        %v1547 = vpop.f32.mrb[0].mxu0
        %1548 = vmatprep.mubr.f32.mxu0 0.0
        %1549 = vmatmul.mubr.f32.gmra.mrb[0].mxu0 %v1358
        %v1550 = vpop.f32.mrb[0].mxu0
        %v1551 = vadd.f32 0.0, %v1550
        %v1552 = vpop.f32.mrb[0].mxu0
        %1553 = vmatprep.mubr.f32.mxu0 0.0
        %1554 = vmatmul.mubr.f32.gmra.mrb[0].mxu0 %v1361
        %v1555 = vpop.f32.mrb[0].mxu0
        %v1556 = vadd.f32 0.0, %v1555
        %v1557 = vpop.f32.mrb[0].mxu0
        %1558 = vmatprep.mubr.f32.mxu0 0.0
        %1559 = vmatmul.mubr.f32.gmra.mrb[0].mxu0 %v1364
        %v1560 = vpop.f32.mrb[0].mxu0
        %v1561 = vadd.f32 0.0, %v1560
        %v1562 = vpop.f32.mrb[0].mxu0
        %1563 = vmatprep.mubr.f32.mxu0 0.0
        %1564 = vmatmul.mubr.f32.gmra.mrb[0].mxu0 %v1367
        %v1565 = vpop.f32.mrb[0].mxu0
        %v1566 = vadd.f32 0.0, %v1565
        %v1567 = vpop.f32.mrb[0].mxu0
        %1568 = vmatprep.mubr.f32.mxu0 0.0
        %1569 = vmatmul.mubr.f32.gmra.mrb[0].mxu0 %v1370
        %v1570 = vpop.f32.mrb[0].mxu0
        %v1571 = vadd.f32 0.0, %v1570
        %v1572 = vpop.f32.mrb[0].mxu0
        %1573 = vmatprep.mubr.f32.mxu0 0.0
        %1574 = vmatmul.mubr.f32.gmra.mrb[0].mxu0 %v1373
        %v1575 = vpop.f32.mrb[0].mxu0
        %v1576 = vadd.f32 0.0, %v1575
        %v1577 = vpop.f32.mrb[0].mxu0
        %1578 = vmatprep.mubr.f32.mxu0 0.0
        %1579 = vmatmul.mubr.f32.gmra.mrb[0].mxu0 %v1376
        %v1580 = vpop.f32.mrb[0].mxu0
        %v1581 = vadd.f32 0.0, %v1580
        %v1582 = vpop.f32.mrb[0].mxu0
        %1583 = vmatprep.mubr.f32.mxu0 0.0
        %1584 = vmatmul.mubr.f32.gmra.mrb[0].mxu0 %v1379
        %v1585 = vpop.f32.mrb[0].mxu0
        %v1586 = vadd.f32 0.0, %v1585
        %v1587 = vpop.f32.mrb[0].mxu0
        %1588 = vmatprep.mubr.f32.mxu0 0.0
        %1589 = vmatmul.mubr.f32.gmra.mrb[0].mxu0 %v1382
        %v1590 = vpop.f32.mrb[0].mxu0
        %v1591 = vadd.f32 0.0, %v1590
        %v1592 = vpop.f32.mrb[0].mxu0
        %1593 = vmatprep.mubr.f32.mxu0 0.0
        %1594 = vmatmul.mubr.f32.gmra.mrb[0].mxu0 %v1385
        %v1595 = vpop.f32.mrb[0].mxu0
        %v1596 = vadd.f32 0.0, %v1595
        %v1597 = vpop.f32.mrb[0].mxu0
        %1598 = vmatprep.mubr.f32.mxu0 0.0
        %1599 = vmatmul.mubr.f32.gmra.mrb[0].mxu0 %v1388
        %v1600 = vpop.f32.mrb[0].mxu0
        %v1601 = vadd.f32 0.0, %v1600
        %v1602 = vpop.f32.mrb[0].mxu0
        %1603 = vmatprep.mubr.f32.mxu0 0.0
        %1604 = vmatmul.mubr.f32.gmra.mrb[0].mxu0 %v1391
        %v1605 = vpop.f32.mrb[0].mxu0
        %v1606 = vadd.f32 0.0, %v1605
        %v1607 = vpop.f32.mrb[0].mxu0
        %1608 = vmatprep.mubr.f32.mxu0 0.0
        %1609 = vmatmul.mubr.f32.gmra.mrb[0].mxu0 %v1394
        %v1610 = vpop.f32.mrb[0].mxu0
        %v1611 = vadd.f32 0.0, %v1610
        %v1612 = vpop.f32.mrb[0].mxu0
        %1613 = vmatprep.mubr.f32.mxu0 0.0
        %1614 = vmatmul.mubr.f32.gmra.mrb[0].mxu0 %v1397
        %v1615 = vpop.f32.mrb[0].mxu0
        %v1616 = vadd.f32 0.0, %v1615
        %v1617 = vpop.f32.mrb[0].mxu0
        %1618 = vmatprep.mubr.f32.mxu0 0.0
        %1619 = vmatmul.mubr.f32.gmra.mrb[0].mxu0 %v1400
        %v1620 = vpop.f32.mrb[0].mxu0
        %v1621 = vadd.f32 0.0, %v1620
        %v1622 = vpop.f32.mrb[0].mxu0
        %1623 = vmatprep.mubr.f32.mxu0 0.0
        %1624 = vmatmul.mubr.f32.gmra.mrb[0].mxu0 %v1403
        %v1625 = vpop.f32.mrb[0].mxu0
        %v1626 = vadd.f32 0.0, %v1625
        %v1627 = vpop.f32.mrb[0].mxu0
        %1628 = vmatprep.mubr.f32.mxu0 0.0
        %1629 = vmatmul.mubr.f32.gmra.mrb[0].mxu0 %v1406
        %v1630 = vpop.f32.mrb[0].mxu0
        %v1631 = vadd.f32 0.0, %v1630
        %v1632 = vpop.f32.mrb[0].mxu0
        %1633 = vmatprep.mubr.f32.mxu0 0.0
        %1634 = vmatmul.mubr.f32.gmra.mrb[0].mxu0 %v1409
        %v1635 = vpop.f32.mrb[0].mxu0
        %v1636 = vadd.f32 0.0, %v1635
        %v1637 = vpop.f32.mrb[0].mxu0
        %1638 = vmatprep.mubr.f32.mxu0 0.0
        %1639 = vmatmul.mubr.f32.gmra.mrb[0].mxu0 %v1412
        %v1640 = vpop.f32.mrb[0].mxu0
        %v1641 = vadd.f32 0.0, %v1640
        %v1642 = vpop.f32.mrb[0].mxu0
        %1643 = vmatprep.mubr.f32.mxu0 0.0
        %1644 = vmatmul.mubr.f32.gmra.mrb[0].mxu0 %v1415
        %v1645 = vpop.f32.mrb[0].mxu0
        %v1646 = vadd.f32 0.0, %v1645
        %v1647 = vpop.f32.mrb[0].mxu0
        %1648 = vmatprep.mubr.f32.mxu0 0.0
        %1649 = vmatmul.mubr.f32.gmra.mrb[0].mxu0 %v1418
        %v1650 = vpop.f32.mrb[0].mxu0
        %v1651 = vadd.f32 0.0, %v1650
        %v1652 = vpop.f32.mrb[0].mxu0
        %1653 = vmatprep.mubr.f32.mxu0 0.0
        %1654 = vmatmul.mubr.f32.gmra.mrb[0].mxu0 %v1421
        %v1655 = vpop.f32.mrb[0].mxu0
        %v1656 = vadd.f32 0.0, %v1655
        %v1657 = vpop.f32.mrb[0].mxu0
        %1658 = vmatprep.mubr.f32.mxu0 0.0
        %1659 = vmatmul.mubr.f32.gmra.mrb[0].mxu0 %v1424
        %v1660 = vpop.f32.mrb[0].mxu0
        %v1661 = vadd.f32 0.0, %v1660
        %v1662 = vpop.f32.mrb[0].mxu0
        %1663 = vmatprep.mubr.f32.mxu0 0.0
        %1664 = vmatmul.mubr.f32.gmra.mrb[0].mxu0 %v1427
        %v1665 = vpop.f32.mrb[0].mxu0
        %v1666 = vadd.f32 0.0, %v1665
        %v1667 = vpop.f32.mrb[0].mxu0
        %1668 = vmatprep.mubr.f32.mxu0 0.0
        %1669 = vmatmul.mubr.f32.gmra.mrb[0].mxu0 %v1430
        %v1670 = vpop.f32.mrb[0].mxu0
        %v1671 = vadd.f32 0.0, %v1670
        %v1672 = vpop.f32.mrb[0].mxu0
        %1673 = vmatprep.mubr.f32.mxu0 0.0
        %1674 = vmatmul.mubr.f32.gmra.mrb[0].mxu0 %v1433
        %v1675 = vpop.f32.mrb[0].mxu0
        %v1676 = vadd.f32 0.0, %v1675
        %v1677 = vpop.f32.mrb[0].mxu0
        %1678 = vmatprep.mubr.f32.mxu0 0.0
        %1679 = vmatmul.mubr.f32.gmra.mrb[0].mxu0 %v1436
        %v1680 = vpop.f32.mrb[0].mxu0
        %v1681 = vadd.f32 0.0, %v1680
        %v1682 = vpop.f32.mrb[0].mxu0
        %1683 = vmatprep.mubr.f32.mxu0 0.0
        %1684 = vmatmul.mubr.f32.gmra.mrb[0].mxu0 %v1439
        %v1685 = vpop.f32.mrb[0].mxu0
        %v1686 = vadd.f32 0.0, %v1685
        %v1687 = vpop.f32.mrb[0].mxu0
        %1688 = vdwg.mxu0
        %v1689 = vadd.f32 %v1117, %v1511
        %v1690 = vadd.f32 %v1122, %v1516
        %v1691 = vadd.f32 %v1127, %v1521
        %v1692 = vadd.f32 %v1132, %v1526
        %v1693 = vadd.f32 %v1137, %v1531
        %v1694 = vadd.f32 %v1142, %v1536
        %v1695 = vadd.f32 %v1147, %v1541
        %v1696 = vadd.f32 %v1152, %v1546
        %v1697 = vadd.f32 %v1157, %v1551
        %v1698 = vadd.f32 %v1162, %v1556
        %v1699 = vadd.f32 %v1167, %v1561
        %v1700 = vadd.f32 %v1172, %v1566
        %v1701 = vadd.f32 %v1177, %v1571
        %v1702 = vadd.f32 %v1182, %v1576
        %v1703 = vadd.f32 %v1187, %v1581
        %v1704 = vadd.f32 %v1192, %v1586
        %v1705 = vadd.f32 %v1197, %v1591
        %v1706 = vadd.f32 %v1202, %v1596
        %v1707 = vadd.f32 %v1207, %v1601
        %v1708 = vadd.f32 %v1212, %v1606
        %v1709 = vadd.f32 %v1217, %v1611
        %v1710 = vadd.f32 %v1222, %v1616
        %v1711 = vadd.f32 %v1227, %v1621
        %v1712 = vadd.f32 %v1232, %v1626
        %v1713 = vadd.f32 %v1237, %v1631
        %v1714 = vadd.f32 %v1242, %v1636
        %v1715 = vadd.f32 %v1247, %v1641
        %v1716 = vadd.f32 %v1252, %v1646
        %v1717 = vadd.f32 %v1257, %v1651
        %v1718 = vadd.f32 %v1262, %v1656
        %v1719 = vadd.f32 %v1267, %v1661
        %v1720 = vadd.f32 %v1272, %v1666
        %v1721 = vadd.f32 %v1277, %v1671
        %v1722 = vadd.f32 %v1282, %v1676
        %v1723 = vadd.f32 %v1287, %v1681
        %v1724 = vadd.f32 %v1292, %v1686
        %v1725 = vld [vmem:[#allocation2 + $0x23] sm:$0xff]
        %v1726 = vld [vmem:[#allocation2 + $0x2b] sm:$0xff]
        %v1727 = vld [vmem:[#allocation2 + $0x33] sm:$0xff]
        %v1728 = vld [vmem:[#allocation2 + $0x3b] sm:$0xff]
        %v1729 = vld [vmem:[#allocation2 + $0x43] sm:$0xff]
        %v1730 = vld [vmem:[#allocation2 + $0x4b] sm:$0xff]
        %v1731 = vld [vmem:[#allocation2 + $0x53] sm:$0xff]
        %v1732 = vld [vmem:[#allocation2 + $0x5b] sm:$0xff]
        %v1733 = vld [vmem:[#allocation2 + $0x63] sm:$0xff]
        %v1734 = vld [vmem:[#allocation2 + $0x6b] sm:$0xff]
        %v1735 = vld [vmem:[#allocation2 + $0x73] sm:$0xff]
        %v1736 = vld [vmem:[#allocation2 + $0x7b] sm:$0xff]
        %v1737 = vld [vmem:[#allocation2 + $0x83] sm:$0xff]
        %v1738 = vld [vmem:[#allocation2 + $0x8b] sm:$0xff]
        %v1739 = vld [vmem:[#allocation2 + $0x93] sm:$0xff]
        %v1740 = vld [vmem:[#allocation2 + $0x9b] sm:$0xff]
        %v1741 = vld [vmem:[#allocation2 + $0xa3] sm:$0xff]
        %v1742 = vld [vmem:[#allocation2 + $0xab] sm:$0xff]
        %v1743 = vld [vmem:[#allocation2 + $0xb3] sm:$0xff]
        %v1744 = vld [vmem:[#allocation2 + $0xbb] sm:$0xff]
        %v1745 = vld [vmem:[#allocation2 + $0xc3] sm:$0xff]
        %v1746 = vld [vmem:[#allocation2 + $0xcb] sm:$0xff]
        %v1747 = vld [vmem:[#allocation2 + $0xd3] sm:$0xff]
        %v1748 = vld [vmem:[#allocation2 + $0xdb] sm:$0xff]
        %v1749 = vld [vmem:[#allocation2 + $0xe3] sm:$0xff]
        %v1750 = vld [vmem:[#allocation2 + $0xeb] sm:$0xff]
        %v1751 = vld [vmem:[#allocation2 + $0xf3] sm:$0xff]
        %v1752 = vld [vmem:[#allocation2 + $0xfb] sm:$0xff]
        %v1753 = vld [vmem:[#allocation2 + $0x103] sm:$0xff]
        %v1754 = vld [vmem:[#allocation2 + $0x10b] sm:$0xff]
        %v1755 = vld [vmem:[#allocation2 + $0x113] sm:$0xff]
        %v1756 = vld [vmem:[#allocation2 + $0x11b] sm:$0xff]
        %v1757 = vld [vmem:[#allocation2 + $0x123] sm:$0xff]
        %v1758 = vld [vmem:[#allocation2 + $0x12b] sm:$0xff]
        %v1759 = vld [vmem:[#allocation2 + $0x133] sm:$0xff]
        %v1760 = vld [vmem:[#allocation2 + $0x13b] sm:$0xff]
        %s1761 = scalar_lea.vmem %s1, 12
        %v1762 = vld [vmem:[%s1761] sm:$0xf]
        %v1764 = vsel %vm370, %v1725, 0
        %v1767 = vsel %vm370, %v1726, 0
        %v1770 = vsel %vm370, %v1727, 0
        %v1773 = vsel %vm370, %v1728, 0
        %v1776 = vsel %vm370, %v1729, 0
        %v1779 = vsel %vm370, %v1730, 0
        %v1782 = vsel %vm370, %v1731, 0
        %v1785 = vsel %vm370, %v1732, 0
        %v1788 = vsel %vm370, %v1733, 0
        %v1791 = vsel %vm370, %v1734, 0
        %v1794 = vsel %vm370, %v1735, 0
        %v1797 = vsel %vm370, %v1736, 0
        %v1800 = vsel %vm370, %v1737, 0
        %v1803 = vsel %vm370, %v1738, 0
        %v1806 = vsel %vm370, %v1739, 0
        %v1809 = vsel %vm370, %v1740, 0
        %v1812 = vsel %vm370, %v1741, 0
        %v1815 = vsel %vm370, %v1742, 0
        %v1818 = vsel %vm370, %v1743, 0
        %v1821 = vsel %vm370, %v1744, 0
        %v1824 = vsel %vm370, %v1745, 0
        %v1827 = vsel %vm370, %v1746, 0
        %v1830 = vsel %vm370, %v1747, 0
        %v1833 = vsel %vm370, %v1748, 0
        %v1836 = vsel %vm370, %v1749, 0
        %v1839 = vsel %vm370, %v1750, 0
        %v1842 = vsel %vm370, %v1751, 0
        %v1845 = vsel %vm370, %v1752, 0
        %v1848 = vsel %vm370, %v1753, 0
        %v1851 = vsel %vm370, %v1754, 0
        %v1854 = vsel %vm370, %v1755, 0
        %v1857 = vsel %vm370, %v1756, 0
        %v1860 = vsel %vm370, %v1757, 0
        %v1863 = vsel %vm370, %v1758, 0
        %v1866 = vsel %vm370, %v1759, 0
        %v1869 = vsel %vm370, %v1760, 0
        %v1872 = vsel %vm690, %v1762, 0
        %1874 = vmatprep.subr.mxu0 0.0
        %1875 = vmatpush1.msra.mxu0 %v1872
        %1876 = vmatprep.subr.mxu0 0.0
        %1877 = vmatpush1.msra.mxu0 0.0
        %1878 = vmatprep.subr.mxu0 0.0
        %1879 = vmatpush1.msra.mxu0 0.0
        %1880 = vmatprep.subr.mxu0 0.0
        %1881 = vmatpush1.msra.mxu0 0.0
        %1882 = vmatprep.subr.mxu0 0.0
        %1883 = vmatpush1.msra.mxu0 0.0
        %1884 = vmatprep.subr.mxu0 0.0
        %1885 = vmatpush1.msra.mxu0 0.0
        %1886 = vmatprep.subr.mxu0 0.0
        %1887 = vmatpush1.msra.mxu0 0.0
        %1888 = vmatprep.subr.mxu0 0.0
        %1889 = vmatpush1.msra.mxu0 0.0
        %1890 = vmatprep.subr.mxu0 0.0
        %1891 = vmatpush1.msra.mxu0 0.0
        %1892 = vmatprep.subr.mxu0 0.0
        %1893 = vmatpush1.msra.mxu0 0.0
        %1894 = vmatprep.subr.mxu0 0.0
        %1895 = vmatpush1.msra.mxu0 0.0
        %1896 = vmatprep.subr.mxu0 0.0
        %1897 = vmatpush1.msra.mxu0 0.0
        %1898 = vmatprep.subr.mxu0 0.0
        %1899 = vmatpush1.msra.mxu0 0.0
        %1900 = vmatprep.subr.mxu0 0.0
        %1901 = vmatpush1.msra.mxu0 0.0
        %1902 = vmatprep.subr.mxu0 0.0
        %1903 = vmatpush1.msra.mxu0 0.0
        %1904 = vmatprep.subr.mxu0 0.0
        %1905 = vmatpush1.msra.mxu0 0.0
        %1906 = vmatprep.subr.mxu0 0.0
        %1907 = vmatpush1.msra.mxu0 0.0
        %1908 = vmatprep.subr.mxu0 0.0
        %1909 = vmatpush1.msra.mxu0 0.0
        %1910 = vmatprep.subr.mxu0 0.0
        %1911 = vmatpush1.msra.mxu0 0.0
        %1912 = vmatprep.subr.mxu0 0.0
        %1913 = vmatpush1.msra.mxu0 0.0
        %1914 = vmatprep.subr.mxu0 0.0
        %1915 = vmatpush1.msra.mxu0 0.0
        %1916 = vmatprep.subr.mxu0 0.0
        %1917 = vmatpush1.msra.mxu0 0.0
        %1918 = vmatprep.subr.mxu0 0.0
        %1919 = vmatpush1.msra.mxu0 0.0
        %1920 = vmatprep.subr.mxu0 0.0
        %1921 = vmatpush1.msra.mxu0 0.0
        %1922 = vmatprep.subr.mxu0 0.0
        %1923 = vmatpush1.msra.mxu0 0.0
        %1924 = vmatprep.subr.mxu0 0.0
        %1925 = vmatpush1.msra.mxu0 0.0
        %1926 = vmatprep.subr.mxu0 0.0
        %1927 = vmatpush1.msra.mxu0 0.0
        %1928 = vmatprep.subr.mxu0 0.0
        %1929 = vmatpush1.msra.mxu0 0.0
        %1930 = vmatprep.subr.mxu0 0.0
        %1931 = vmatpush1.msra.mxu0 0.0
        %1932 = vmatprep.subr.mxu0 0.0
        %1933 = vmatpush1.msra.mxu0 0.0
        %1934 = vmatprep.subr.mxu0 0.0
        %1935 = vmatpush1.msra.mxu0 0.0
        %1936 = vmatprep.subr.mxu0 0.0
        %1937 = vmatpush1.msra.mxu0 0.0
        %1938 = vmatprep.mubr.f32.mxu0 0.0
        %1939 = vmatmul.mubr.f32.gmra.mrb[0].mxu0 %v1764
        %v1940 = vpop.f32.mrb[0].mxu0
        %v1941 = vadd.f32 0.0, %v1940
        %v1942 = vpop.f32.mrb[0].mxu0
        %1943 = vmatprep.mubr.f32.mxu0 0.0
        %1944 = vmatmul.mubr.f32.gmra.mrb[0].mxu0 %v1767
        %v1945 = vpop.f32.mrb[0].mxu0
        %v1946 = vadd.f32 0.0, %v1945
        %v1947 = vpop.f32.mrb[0].mxu0
        %1948 = vmatprep.mubr.f32.mxu0 0.0
        %1949 = vmatmul.mubr.f32.gmra.mrb[0].mxu0 %v1770
        %v1950 = vpop.f32.mrb[0].mxu0
        %v1951 = vadd.f32 0.0, %v1950
        %v1952 = vpop.f32.mrb[0].mxu0
        %1953 = vmatprep.mubr.f32.mxu0 0.0
        %1954 = vmatmul.mubr.f32.gmra.mrb[0].mxu0 %v1773
        %v1955 = vpop.f32.mrb[0].mxu0
        %v1956 = vadd.f32 0.0, %v1955
        %v1957 = vpop.f32.mrb[0].mxu0
        %1958 = vmatprep.mubr.f32.mxu0 0.0
        %1959 = vmatmul.mubr.f32.gmra.mrb[0].mxu0 %v1776
        %v1960 = vpop.f32.mrb[0].mxu0
        %v1961 = vadd.f32 0.0, %v1960
        %v1962 = vpop.f32.mrb[0].mxu0
        %1963 = vmatprep.mubr.f32.mxu0 0.0
        %1964 = vmatmul.mubr.f32.gmra.mrb[0].mxu0 %v1779
        %v1965 = vpop.f32.mrb[0].mxu0
        %v1966 = vadd.f32 0.0, %v1965
        %v1967 = vpop.f32.mrb[0].mxu0
        %1968 = vmatprep.mubr.f32.mxu0 0.0
        %1969 = vmatmul.mubr.f32.gmra.mrb[0].mxu0 %v1782
        %v1970 = vpop.f32.mrb[0].mxu0
        %v1971 = vadd.f32 0.0, %v1970
        %v1972 = vpop.f32.mrb[0].mxu0
        %1973 = vmatprep.mubr.f32.mxu0 0.0
        %1974 = vmatmul.mubr.f32.gmra.mrb[0].mxu0 %v1785
        %v1975 = vpop.f32.mrb[0].mxu0
        %v1976 = vadd.f32 0.0, %v1975
        %v1977 = vpop.f32.mrb[0].mxu0
        %1978 = vmatprep.mubr.f32.mxu0 0.0
        %1979 = vmatmul.mubr.f32.gmra.mrb[0].mxu0 %v1788
        %v1980 = vpop.f32.mrb[0].mxu0
        %v1981 = vadd.f32 0.0, %v1980
        %v1982 = vpop.f32.mrb[0].mxu0
        %1983 = vmatprep.mubr.f32.mxu0 0.0
        %1984 = vmatmul.mubr.f32.gmra.mrb[0].mxu0 %v1791
        %v1985 = vpop.f32.mrb[0].mxu0
        %v1986 = vadd.f32 0.0, %v1985
        %v1987 = vpop.f32.mrb[0].mxu0
        %1988 = vmatprep.mubr.f32.mxu0 0.0
        %1989 = vmatmul.mubr.f32.gmra.mrb[0].mxu0 %v1794
        %v1990 = vpop.f32.mrb[0].mxu0
        %v1991 = vadd.f32 0.0, %v1990
        %v1992 = vpop.f32.mrb[0].mxu0
        %1993 = vmatprep.mubr.f32.mxu0 0.0
        %1994 = vmatmul.mubr.f32.gmra.mrb[0].mxu0 %v1797
        %v1995 = vpop.f32.mrb[0].mxu0
        %v1996 = vadd.f32 0.0, %v1995
        %v1997 = vpop.f32.mrb[0].mxu0
        %1998 = vmatprep.mubr.f32.mxu0 0.0
        %1999 = vmatmul.mubr.f32.gmra.mrb[0].mxu0 %v1800
        %v2000 = vpop.f32.mrb[0].mxu0
        %v2001 = vadd.f32 0.0, %v2000
        %v2002 = vpop.f32.mrb[0].mxu0
        %2003 = vmatprep.mubr.f32.mxu0 0.0
        %2004 = vmatmul.mubr.f32.gmra.mrb[0].mxu0 %v1803
        %v2005 = vpop.f32.mrb[0].mxu0
        %v2006 = vadd.f32 0.0, %v2005
        %v2007 = vpop.f32.mrb[0].mxu0
        %2008 = vmatprep.mubr.f32.mxu0 0.0
        %2009 = vmatmul.mubr.f32.gmra.mrb[0].mxu0 %v1806
        %v2010 = vpop.f32.mrb[0].mxu0
        %v2011 = vadd.f32 0.0, %v2010
        %v2012 = vpop.f32.mrb[0].mxu0
        %2013 = vmatprep.mubr.f32.mxu0 0.0
        %2014 = vmatmul.mubr.f32.gmra.mrb[0].mxu0 %v1809
        %v2015 = vpop.f32.mrb[0].mxu0
        %v2016 = vadd.f32 0.0, %v2015
        %v2017 = vpop.f32.mrb[0].mxu0
        %2018 = vmatprep.mubr.f32.mxu0 0.0
        %2019 = vmatmul.mubr.f32.gmra.mrb[0].mxu0 %v1812
        %v2020 = vpop.f32.mrb[0].mxu0
        %v2021 = vadd.f32 0.0, %v2020
        %v2022 = vpop.f32.mrb[0].mxu0
        %2023 = vmatprep.mubr.f32.mxu0 0.0
        %2024 = vmatmul.mubr.f32.gmra.mrb[0].mxu0 %v1815
        %v2025 = vpop.f32.mrb[0].mxu0
        %v2026 = vadd.f32 0.0, %v2025
        %v2027 = vpop.f32.mrb[0].mxu0
        %2028 = vmatprep.mubr.f32.mxu0 0.0
        %2029 = vmatmul.mubr.f32.gmra.mrb[0].mxu0 %v1818
        %v2030 = vpop.f32.mrb[0].mxu0
        %v2031 = vadd.f32 0.0, %v2030
        %v2032 = vpop.f32.mrb[0].mxu0
        %2033 = vmatprep.mubr.f32.mxu0 0.0
        %2034 = vmatmul.mubr.f32.gmra.mrb[0].mxu0 %v1821
        %v2035 = vpop.f32.mrb[0].mxu0
        %v2036 = vadd.f32 0.0, %v2035
        %v2037 = vpop.f32.mrb[0].mxu0
        %2038 = vmatprep.mubr.f32.mxu0 0.0
        %2039 = vmatmul.mubr.f32.gmra.mrb[0].mxu0 %v1824
        %v2040 = vpop.f32.mrb[0].mxu0
        %v2041 = vadd.f32 0.0, %v2040
        %v2042 = vpop.f32.mrb[0].mxu0
        %2043 = vmatprep.mubr.f32.mxu0 0.0
        %2044 = vmatmul.mubr.f32.gmra.mrb[0].mxu0 %v1827
        %v2045 = vpop.f32.mrb[0].mxu0
        %v2046 = vadd.f32 0.0, %v2045
        %v2047 = vpop.f32.mrb[0].mxu0
        %2048 = vmatprep.mubr.f32.mxu0 0.0
        %2049 = vmatmul.mubr.f32.gmra.mrb[0].mxu0 %v1830
        %v2050 = vpop.f32.mrb[0].mxu0
        %v2051 = vadd.f32 0.0, %v2050
        %v2052 = vpop.f32.mrb[0].mxu0
        %2053 = vmatprep.mubr.f32.mxu0 0.0
        %2054 = vmatmul.mubr.f32.gmra.mrb[0].mxu0 %v1833
        %v2055 = vpop.f32.mrb[0].mxu0
        %v2056 = vadd.f32 0.0, %v2055
        %v2057 = vpop.f32.mrb[0].mxu0
        %2058 = vmatprep.mubr.f32.mxu0 0.0
        %2059 = vmatmul.mubr.f32.gmra.mrb[0].mxu0 %v1836
        %v2060 = vpop.f32.mrb[0].mxu0
        %v2061 = vadd.f32 0.0, %v2060
        %v2062 = vpop.f32.mrb[0].mxu0
        %2063 = vmatprep.mubr.f32.mxu0 0.0
        %2064 = vmatmul.mubr.f32.gmra.mrb[0].mxu0 %v1839
        %v2065 = vpop.f32.mrb[0].mxu0
        %v2066 = vadd.f32 0.0, %v2065
        %v2067 = vpop.f32.mrb[0].mxu0
        %2068 = vmatprep.mubr.f32.mxu0 0.0
        %2069 = vmatmul.mubr.f32.gmra.mrb[0].mxu0 %v1842
        %v2070 = vpop.f32.mrb[0].mxu0
        %v2071 = vadd.f32 0.0, %v2070
        %v2072 = vpop.f32.mrb[0].mxu0
        %2073 = vmatprep.mubr.f32.mxu0 0.0
        %2074 = vmatmul.mubr.f32.gmra.mrb[0].mxu0 %v1845
        %v2075 = vpop.f32.mrb[0].mxu0
        %v2076 = vadd.f32 0.0, %v2075
        %v2077 = vpop.f32.mrb[0].mxu0
        %2078 = vmatprep.mubr.f32.mxu0 0.0
        %2079 = vmatmul.mubr.f32.gmra.mrb[0].mxu0 %v1848
        %v2080 = vpop.f32.mrb[0].mxu0
        %v2081 = vadd.f32 0.0, %v2080
        %v2082 = vpop.f32.mrb[0].mxu0
        %2083 = vmatprep.mubr.f32.mxu0 0.0
        %2084 = vmatmul.mubr.f32.gmra.mrb[0].mxu0 %v1851
        %v2085 = vpop.f32.mrb[0].mxu0
        %v2086 = vadd.f32 0.0, %v2085
        %v2087 = vpop.f32.mrb[0].mxu0
        %2088 = vmatprep.mubr.f32.mxu0 0.0
        %2089 = vmatmul.mubr.f32.gmra.mrb[0].mxu0 %v1854
        %v2090 = vpop.f32.mrb[0].mxu0
        %v2091 = vadd.f32 0.0, %v2090
        %v2092 = vpop.f32.mrb[0].mxu0
        %2093 = vmatprep.mubr.f32.mxu0 0.0
        %2094 = vmatmul.mubr.f32.gmra.mrb[0].mxu0 %v1857
        %v2095 = vpop.f32.mrb[0].mxu0
        %v2096 = vadd.f32 0.0, %v2095
        %v2097 = vpop.f32.mrb[0].mxu0
        %2098 = vmatprep.mubr.f32.mxu0 0.0
        %2099 = vmatmul.mubr.f32.gmra.mrb[0].mxu0 %v1860
        %v2100 = vpop.f32.mrb[0].mxu0
        %v2101 = vadd.f32 0.0, %v2100
        %v2102 = vpop.f32.mrb[0].mxu0
        %2103 = vmatprep.mubr.f32.mxu0 0.0
        %2104 = vmatmul.mubr.f32.gmra.mrb[0].mxu0 %v1863
        %v2105 = vpop.f32.mrb[0].mxu0
        %v2106 = vadd.f32 0.0, %v2105
        %v2107 = vpop.f32.mrb[0].mxu0
        %2108 = vmatprep.mubr.f32.mxu0 0.0
        %2109 = vmatmul.mubr.f32.gmra.mrb[0].mxu0 %v1866
        %v2110 = vpop.f32.mrb[0].mxu0
        %v2111 = vadd.f32 0.0, %v2110
        %v2112 = vpop.f32.mrb[0].mxu0
        %2113 = vmatprep.mubr.f32.mxu0 0.0
        %2114 = vmatmul.mubr.f32.gmra.mrb[0].mxu0 %v1869
        %v2115 = vpop.f32.mrb[0].mxu0
        %v2116 = vadd.f32 0.0, %v2115
        %v2117 = vpop.f32.mrb[0].mxu0
        %2118 = vdwg.mxu0
        %v2119 = vadd.f32 %v1689, %v1941
        %v2120 = vadd.f32 %v1690, %v1946
        %v2121 = vadd.f32 %v1691, %v1951
        %v2122 = vadd.f32 %v1692, %v1956
        %v2123 = vadd.f32 %v1693, %v1961
        %v2124 = vadd.f32 %v1694, %v1966
        %v2125 = vadd.f32 %v1695, %v1971
        %v2126 = vadd.f32 %v1696, %v1976
        %v2127 = vadd.f32 %v1697, %v1981
        %v2128 = vadd.f32 %v1698, %v1986
        %v2129 = vadd.f32 %v1699, %v1991
        %v2130 = vadd.f32 %v1700, %v1996
        %v2131 = vadd.f32 %v1701, %v2001
        %v2132 = vadd.f32 %v1702, %v2006
        %v2133 = vadd.f32 %v1703, %v2011
        %v2134 = vadd.f32 %v1704, %v2016
        %v2135 = vadd.f32 %v1705, %v2021
        %v2136 = vadd.f32 %v1706, %v2026
        %v2137 = vadd.f32 %v1707, %v2031
        %v2138 = vadd.f32 %v1708, %v2036
        %v2139 = vadd.f32 %v1709, %v2041
        %v2140 = vadd.f32 %v1710, %v2046
        %v2141 = vadd.f32 %v1711, %v2051
        %v2142 = vadd.f32 %v1712, %v2056
        %v2143 = vadd.f32 %v1713, %v2061
        %v2144 = vadd.f32 %v1714, %v2066
        %v2145 = vadd.f32 %v1715, %v2071
        %v2146 = vadd.f32 %v1716, %v2076
        %v2147 = vadd.f32 %v1717, %v2081
        %v2148 = vadd.f32 %v1718, %v2086
        %v2149 = vadd.f32 %v1719, %v2091
        %v2150 = vadd.f32 %v1720, %v2096
        %v2151 = vadd.f32 %v1721, %v2101
        %v2152 = vadd.f32 %v1722, %v2106
        %v2153 = vadd.f32 %v1723, %v2111
        %v2154 = vadd.f32 %v1724, %v2116
        %v2155 = vld [vmem:[#allocation2 + $0x24] sm:$0xff]
        %v2156 = vld [vmem:[#allocation2 + $0x2c] sm:$0xff]
        %v2157 = vld [vmem:[#allocation2 + $0x34] sm:$0xff]
        %v2158 = vld [vmem:[#allocation2 + $0x3c] sm:$0xff]
        %v2159 = vld [vmem:[#allocation2 + $0x44] sm:$0xff]
        %v2160 = vld [vmem:[#allocation2 + $0x4c] sm:$0xff]
        %v2161 = vld [vmem:[#allocation2 + $0x54] sm:$0xff]
        %v2162 = vld [vmem:[#allocation2 + $0x5c] sm:$0xff]
        %v2163 = vld [vmem:[#allocation2 + $0x64] sm:$0xff]
        %v2164 = vld [vmem:[#allocation2 + $0x6c] sm:$0xff]
        %v2165 = vld [vmem:[#allocation2 + $0x74] sm:$0xff]
        %v2166 = vld [vmem:[#allocation2 + $0x7c] sm:$0xff]
        %v2167 = vld [vmem:[#allocation2 + $0x84] sm:$0xff]
        %v2168 = vld [vmem:[#allocation2 + $0x8c] sm:$0xff]
        %v2169 = vld [vmem:[#allocation2 + $0x94] sm:$0xff]
        %v2170 = vld [vmem:[#allocation2 + $0x9c] sm:$0xff]
        %v2171 = vld [vmem:[#allocation2 + $0xa4] sm:$0xff]
        %v2172 = vld [vmem:[#allocation2 + $0xac] sm:$0xff]
        %v2173 = vld [vmem:[#allocation2 + $0xb4] sm:$0xff]
        %v2174 = vld [vmem:[#allocation2 + $0xbc] sm:$0xff]
        %v2175 = vld [vmem:[#allocation2 + $0xc4] sm:$0xff]
        %v2176 = vld [vmem:[#allocation2 + $0xcc] sm:$0xff]
        %v2177 = vld [vmem:[#allocation2 + $0xd4] sm:$0xff]
        %v2178 = vld [vmem:[#allocation2 + $0xdc] sm:$0xff]
        %v2179 = vld [vmem:[#allocation2 + $0xe4] sm:$0xff]
        %v2180 = vld [vmem:[#allocation2 + $0xec] sm:$0xff]
        %v2181 = vld [vmem:[#allocation2 + $0xf4] sm:$0xff]
        %v2182 = vld [vmem:[#allocation2 + $0xfc] sm:$0xff]
        %v2183 = vld [vmem:[#allocation2 + $0x104] sm:$0xff]
        %v2184 = vld [vmem:[#allocation2 + $0x10c] sm:$0xff]
        %v2185 = vld [vmem:[#allocation2 + $0x114] sm:$0xff]
        %v2186 = vld [vmem:[#allocation2 + $0x11c] sm:$0xff]
        %v2187 = vld [vmem:[#allocation2 + $0x124] sm:$0xff]
        %v2188 = vld [vmem:[#allocation2 + $0x12c] sm:$0xff]
        %v2189 = vld [vmem:[#allocation2 + $0x134] sm:$0xff]
        %v2190 = vld [vmem:[#allocation2 + $0x13c] sm:$0xff]
        %s2191 = scalar_lea.vmem %s1, 16
        %v2192 = vld [vmem:[%s2191] sm:$0xf]
        %v2194 = vsel %vm370, %v2155, 0
        %v2197 = vsel %vm370, %v2156, 0
        %v2200 = vsel %vm370, %v2157, 0
        %v2203 = vsel %vm370, %v2158, 0
        %v2206 = vsel %vm370, %v2159, 0
        %v2209 = vsel %vm370, %v2160, 0
        %v2212 = vsel %vm370, %v2161, 0
        %v2215 = vsel %vm370, %v2162, 0
        %v2218 = vsel %vm370, %v2163, 0
        %v2221 = vsel %vm370, %v2164, 0
        %v2224 = vsel %vm370, %v2165, 0
        %v2227 = vsel %vm370, %v2166, 0
        %v2230 = vsel %vm370, %v2167, 0
        %v2233 = vsel %vm370, %v2168, 0
        %v2236 = vsel %vm370, %v2169, 0
        %v2239 = vsel %vm370, %v2170, 0
        %v2242 = vsel %vm370, %v2171, 0
        %v2245 = vsel %vm370, %v2172, 0
        %v2248 = vsel %vm370, %v2173, 0
        %v2251 = vsel %vm370, %v2174, 0
        %v2254 = vsel %vm370, %v2175, 0
        %v2257 = vsel %vm370, %v2176, 0
        %v2260 = vsel %vm370, %v2177, 0
        %v2263 = vsel %vm370, %v2178, 0
        %v2266 = vsel %vm370, %v2179, 0
        %v2269 = vsel %vm370, %v2180, 0
        %v2272 = vsel %vm370, %v2181, 0
        %v2275 = vsel %vm370, %v2182, 0
        %v2278 = vsel %vm370, %v2183, 0
        %v2281 = vsel %vm370, %v2184, 0
        %v2284 = vsel %vm370, %v2185, 0
        %v2287 = vsel %vm370, %v2186, 0
        %v2290 = vsel %vm370, %v2187, 0
        %v2293 = vsel %vm370, %v2188, 0
        %v2296 = vsel %vm370, %v2189, 0
        %v2299 = vsel %vm370, %v2190, 0
        %v2302 = vsel %vm690, %v2192, 0
        %2304 = vmatprep.subr.mxu0 0.0
        %2305 = vmatpush1.msra.mxu0 %v2302
        %2306 = vmatprep.subr.mxu0 0.0
        %2307 = vmatpush1.msra.mxu0 0.0
        %2308 = vmatprep.subr.mxu0 0.0
        %2309 = vmatpush1.msra.mxu0 0.0
        %2310 = vmatprep.subr.mxu0 0.0
        %2311 = vmatpush1.msra.mxu0 0.0
        %2312 = vmatprep.subr.mxu0 0.0
        %2313 = vmatpush1.msra.mxu0 0.0
        %2314 = vmatprep.subr.mxu0 0.0
        %2315 = vmatpush1.msra.mxu0 0.0
        %2316 = vmatprep.subr.mxu0 0.0
        %2317 = vmatpush1.msra.mxu0 0.0
        %2318 = vmatprep.subr.mxu0 0.0
        %2319 = vmatpush1.msra.mxu0 0.0
        %2320 = vmatprep.subr.mxu0 0.0
        %2321 = vmatpush1.msra.mxu0 0.0
        %2322 = vmatprep.subr.mxu0 0.0
        %2323 = vmatpush1.msra.mxu0 0.0
        %2324 = vmatprep.subr.mxu0 0.0
        %2325 = vmatpush1.msra.mxu0 0.0
        %2326 = vmatprep.subr.mxu0 0.0
        %2327 = vmatpush1.msra.mxu0 0.0
        %2328 = vmatprep.subr.mxu0 0.0
        %2329 = vmatpush1.msra.mxu0 0.0
        %2330 = vmatprep.subr.mxu0 0.0
        %2331 = vmatpush1.msra.mxu0 0.0
        %2332 = vmatprep.subr.mxu0 0.0
        %2333 = vmatpush1.msra.mxu0 0.0
        %2334 = vmatprep.subr.mxu0 0.0
        %2335 = vmatpush1.msra.mxu0 0.0
        %2336 = vmatprep.subr.mxu0 0.0
        %2337 = vmatpush1.msra.mxu0 0.0
        %2338 = vmatprep.subr.mxu0 0.0
        %2339 = vmatpush1.msra.mxu0 0.0
        %2340 = vmatprep.subr.mxu0 0.0
        %2341 = vmatpush1.msra.mxu0 0.0
        %2342 = vmatprep.subr.mxu0 0.0
        %2343 = vmatpush1.msra.mxu0 0.0
        %2344 = vmatprep.subr.mxu0 0.0
        %2345 = vmatpush1.msra.mxu0 0.0
        %2346 = vmatprep.subr.mxu0 0.0
        %2347 = vmatpush1.msra.mxu0 0.0
        %2348 = vmatprep.subr.mxu0 0.0
        %2349 = vmatpush1.msra.mxu0 0.0
        %2350 = vmatprep.subr.mxu0 0.0
        %2351 = vmatpush1.msra.mxu0 0.0
        %2352 = vmatprep.subr.mxu0 0.0
        %2353 = vmatpush1.msra.mxu0 0.0
        %2354 = vmatprep.subr.mxu0 0.0
        %2355 = vmatpush1.msra.mxu0 0.0
        %2356 = vmatprep.subr.mxu0 0.0
        %2357 = vmatpush1.msra.mxu0 0.0
        %2358 = vmatprep.subr.mxu0 0.0
        %2359 = vmatpush1.msra.mxu0 0.0
        %2360 = vmatprep.subr.mxu0 0.0
        %2361 = vmatpush1.msra.mxu0 0.0
        %2362 = vmatprep.subr.mxu0 0.0
        %2363 = vmatpush1.msra.mxu0 0.0
        %2364 = vmatprep.subr.mxu0 0.0
        %2365 = vmatpush1.msra.mxu0 0.0
        %2366 = vmatprep.subr.mxu0 0.0
        %2367 = vmatpush1.msra.mxu0 0.0
        %2368 = vmatprep.mubr.f32.mxu0 0.0
        %2369 = vmatmul.mubr.f32.gmra.mrb[0].mxu0 %v2194
        %v2370 = vpop.f32.mrb[0].mxu0
        %v2371 = vadd.f32 0.0, %v2370
        %v2372 = vpop.f32.mrb[0].mxu0
        %2373 = vmatprep.mubr.f32.mxu0 0.0
        %2374 = vmatmul.mubr.f32.gmra.mrb[0].mxu0 %v2197
        %v2375 = vpop.f32.mrb[0].mxu0
        %v2376 = vadd.f32 0.0, %v2375
        %v2377 = vpop.f32.mrb[0].mxu0
        %2378 = vmatprep.mubr.f32.mxu0 0.0
        %2379 = vmatmul.mubr.f32.gmra.mrb[0].mxu0 %v2200
        %v2380 = vpop.f32.mrb[0].mxu0
        %v2381 = vadd.f32 0.0, %v2380
        %v2382 = vpop.f32.mrb[0].mxu0
        %2383 = vmatprep.mubr.f32.mxu0 0.0
        %2384 = vmatmul.mubr.f32.gmra.mrb[0].mxu0 %v2203
        %v2385 = vpop.f32.mrb[0].mxu0
        %v2386 = vadd.f32 0.0, %v2385
        %v2387 = vpop.f32.mrb[0].mxu0
        %2388 = vmatprep.mubr.f32.mxu0 0.0
        %2389 = vmatmul.mubr.f32.gmra.mrb[0].mxu0 %v2206
        %v2390 = vpop.f32.mrb[0].mxu0
        %v2391 = vadd.f32 0.0, %v2390
        %v2392 = vpop.f32.mrb[0].mxu0
        %2393 = vmatprep.mubr.f32.mxu0 0.0
        %2394 = vmatmul.mubr.f32.gmra.mrb[0].mxu0 %v2209
        %v2395 = vpop.f32.mrb[0].mxu0
        %v2396 = vadd.f32 0.0, %v2395
        %v2397 = vpop.f32.mrb[0].mxu0
        %2398 = vmatprep.mubr.f32.mxu0 0.0
        %2399 = vmatmul.mubr.f32.gmra.mrb[0].mxu0 %v2212
        %v2400 = vpop.f32.mrb[0].mxu0
        %v2401 = vadd.f32 0.0, %v2400
        %v2402 = vpop.f32.mrb[0].mxu0
        %2403 = vmatprep.mubr.f32.mxu0 0.0
        %2404 = vmatmul.mubr.f32.gmra.mrb[0].mxu0 %v2215
        %v2405 = vpop.f32.mrb[0].mxu0
        %v2406 = vadd.f32 0.0, %v2405
        %v2407 = vpop.f32.mrb[0].mxu0
        %2408 = vmatprep.mubr.f32.mxu0 0.0
        %2409 = vmatmul.mubr.f32.gmra.mrb[0].mxu0 %v2218
        %v2410 = vpop.f32.mrb[0].mxu0
        %v2411 = vadd.f32 0.0, %v2410
        %v2412 = vpop.f32.mrb[0].mxu0
        %2413 = vmatprep.mubr.f32.mxu0 0.0
        %2414 = vmatmul.mubr.f32.gmra.mrb[0].mxu0 %v2221
        %v2415 = vpop.f32.mrb[0].mxu0
        %v2416 = vadd.f32 0.0, %v2415
        %v2417 = vpop.f32.mrb[0].mxu0
        %2418 = vmatprep.mubr.f32.mxu0 0.0
        %2419 = vmatmul.mubr.f32.gmra.mrb[0].mxu0 %v2224
        %v2420 = vpop.f32.mrb[0].mxu0
        %v2421 = vadd.f32 0.0, %v2420
        %v2422 = vpop.f32.mrb[0].mxu0
        %2423 = vmatprep.mubr.f32.mxu0 0.0
        %2424 = vmatmul.mubr.f32.gmra.mrb[0].mxu0 %v2227
        %v2425 = vpop.f32.mrb[0].mxu0
        %v2426 = vadd.f32 0.0, %v2425
        %v2427 = vpop.f32.mrb[0].mxu0
        %2428 = vmatprep.mubr.f32.mxu0 0.0
        %2429 = vmatmul.mubr.f32.gmra.mrb[0].mxu0 %v2230
        %v2430 = vpop.f32.mrb[0].mxu0
        %v2431 = vadd.f32 0.0, %v2430
        %v2432 = vpop.f32.mrb[0].mxu0
        %2433 = vmatprep.mubr.f32.mxu0 0.0
        %2434 = vmatmul.mubr.f32.gmra.mrb[0].mxu0 %v2233
        %v2435 = vpop.f32.mrb[0].mxu0
        %v2436 = vadd.f32 0.0, %v2435
        %v2437 = vpop.f32.mrb[0].mxu0
        %2438 = vmatprep.mubr.f32.mxu0 0.0
        %2439 = vmatmul.mubr.f32.gmra.mrb[0].mxu0 %v2236
        %v2440 = vpop.f32.mrb[0].mxu0
        %v2441 = vadd.f32 0.0, %v2440
        %v2442 = vpop.f32.mrb[0].mxu0
        %2443 = vmatprep.mubr.f32.mxu0 0.0
        %2444 = vmatmul.mubr.f32.gmra.mrb[0].mxu0 %v2239
        %v2445 = vpop.f32.mrb[0].mxu0
        %v2446 = vadd.f32 0.0, %v2445
        %v2447 = vpop.f32.mrb[0].mxu0
        %2448 = vmatprep.mubr.f32.mxu0 0.0
        %2449 = vmatmul.mubr.f32.gmra.mrb[0].mxu0 %v2242
        %v2450 = vpop.f32.mrb[0].mxu0
        %v2451 = vadd.f32 0.0, %v2450
        %v2452 = vpop.f32.mrb[0].mxu0
        %2453 = vmatprep.mubr.f32.mxu0 0.0
        %2454 = vmatmul.mubr.f32.gmra.mrb[0].mxu0 %v2245
        %v2455 = vpop.f32.mrb[0].mxu0
        %v2456 = vadd.f32 0.0, %v2455
        %v2457 = vpop.f32.mrb[0].mxu0
        %2458 = vmatprep.mubr.f32.mxu0 0.0
        %2459 = vmatmul.mubr.f32.gmra.mrb[0].mxu0 %v2248
        %v2460 = vpop.f32.mrb[0].mxu0
        %v2461 = vadd.f32 0.0, %v2460
        %v2462 = vpop.f32.mrb[0].mxu0
        %2463 = vmatprep.mubr.f32.mxu0 0.0
        %2464 = vmatmul.mubr.f32.gmra.mrb[0].mxu0 %v2251
        %v2465 = vpop.f32.mrb[0].mxu0
        %v2466 = vadd.f32 0.0, %v2465
        %v2467 = vpop.f32.mrb[0].mxu0
        %2468 = vmatprep.mubr.f32.mxu0 0.0
        %2469 = vmatmul.mubr.f32.gmra.mrb[0].mxu0 %v2254
        %v2470 = vpop.f32.mrb[0].mxu0
        %v2471 = vadd.f32 0.0, %v2470
        %v2472 = vpop.f32.mrb[0].mxu0
        %2473 = vmatprep.mubr.f32.mxu0 0.0
        %2474 = vmatmul.mubr.f32.gmra.mrb[0].mxu0 %v2257
        %v2475 = vpop.f32.mrb[0].mxu0
        %v2476 = vadd.f32 0.0, %v2475
        %v2477 = vpop.f32.mrb[0].mxu0
        %2478 = vmatprep.mubr.f32.mxu0 0.0
        %2479 = vmatmul.mubr.f32.gmra.mrb[0].mxu0 %v2260
        %v2480 = vpop.f32.mrb[0].mxu0
        %v2481 = vadd.f32 0.0, %v2480
        %v2482 = vpop.f32.mrb[0].mxu0
        %2483 = vmatprep.mubr.f32.mxu0 0.0
        %2484 = vmatmul.mubr.f32.gmra.mrb[0].mxu0 %v2263
        %v2485 = vpop.f32.mrb[0].mxu0
        %v2486 = vadd.f32 0.0, %v2485
        %v2487 = vpop.f32.mrb[0].mxu0
        %2488 = vmatprep.mubr.f32.mxu0 0.0
        %2489 = vmatmul.mubr.f32.gmra.mrb[0].mxu0 %v2266
        %v2490 = vpop.f32.mrb[0].mxu0
        %v2491 = vadd.f32 0.0, %v2490
        %v2492 = vpop.f32.mrb[0].mxu0
        %2493 = vmatprep.mubr.f32.mxu0 0.0
        %2494 = vmatmul.mubr.f32.gmra.mrb[0].mxu0 %v2269
        %v2495 = vpop.f32.mrb[0].mxu0
        %v2496 = vadd.f32 0.0, %v2495
        %v2497 = vpop.f32.mrb[0].mxu0
        %2498 = vmatprep.mubr.f32.mxu0 0.0
        %2499 = vmatmul.mubr.f32.gmra.mrb[0].mxu0 %v2272
        %v2500 = vpop.f32.mrb[0].mxu0
        %v2501 = vadd.f32 0.0, %v2500
        %v2502 = vpop.f32.mrb[0].mxu0
        %2503 = vmatprep.mubr.f32.mxu0 0.0
        %2504 = vmatmul.mubr.f32.gmra.mrb[0].mxu0 %v2275
        %v2505 = vpop.f32.mrb[0].mxu0
        %v2506 = vadd.f32 0.0, %v2505
        %v2507 = vpop.f32.mrb[0].mxu0
        %2508 = vmatprep.mubr.f32.mxu0 0.0
        %2509 = vmatmul.mubr.f32.gmra.mrb[0].mxu0 %v2278
        %v2510 = vpop.f32.mrb[0].mxu0
        %v2511 = vadd.f32 0.0, %v2510
        %v2512 = vpop.f32.mrb[0].mxu0
        %2513 = vmatprep.mubr.f32.mxu0 0.0
        %2514 = vmatmul.mubr.f32.gmra.mrb[0].mxu0 %v2281
        %v2515 = vpop.f32.mrb[0].mxu0
        %v2516 = vadd.f32 0.0, %v2515
        %v2517 = vpop.f32.mrb[0].mxu0
        %2518 = vmatprep.mubr.f32.mxu0 0.0
        %2519 = vmatmul.mubr.f32.gmra.mrb[0].mxu0 %v2284
        %v2520 = vpop.f32.mrb[0].mxu0
        %v2521 = vadd.f32 0.0, %v2520
        %v2522 = vpop.f32.mrb[0].mxu0
        %2523 = vmatprep.mubr.f32.mxu0 0.0
        %2524 = vmatmul.mubr.f32.gmra.mrb[0].mxu0 %v2287
        %v2525 = vpop.f32.mrb[0].mxu0
        %v2526 = vadd.f32 0.0, %v2525
        %v2527 = vpop.f32.mrb[0].mxu0
        %2528 = vmatprep.mubr.f32.mxu0 0.0
        %2529 = vmatmul.mubr.f32.gmra.mrb[0].mxu0 %v2290
        %v2530 = vpop.f32.mrb[0].mxu0
        %v2531 = vadd.f32 0.0, %v2530
        %v2532 = vpop.f32.mrb[0].mxu0
        %2533 = vmatprep.mubr.f32.mxu0 0.0
        %2534 = vmatmul.mubr.f32.gmra.mrb[0].mxu0 %v2293
        %v2535 = vpop.f32.mrb[0].mxu0
        %v2536 = vadd.f32 0.0, %v2535
        %v2537 = vpop.f32.mrb[0].mxu0
        %2538 = vmatprep.mubr.f32.mxu0 0.0
        %2539 = vmatmul.mubr.f32.gmra.mrb[0].mxu0 %v2296
        %v2540 = vpop.f32.mrb[0].mxu0
        %v2541 = vadd.f32 0.0, %v2540
        %v2542 = vpop.f32.mrb[0].mxu0
        %2543 = vmatprep.mubr.f32.mxu0 0.0
        %2544 = vmatmul.mubr.f32.gmra.mrb[0].mxu0 %v2299
        %v2545 = vpop.f32.mrb[0].mxu0
        %v2546 = vadd.f32 0.0, %v2545
        %v2547 = vpop.f32.mrb[0].mxu0
        %2548 = vdwg.mxu0
        %v2549 = vadd.f32 %v2119, %v2371
        %v2550 = vadd.f32 %v2120, %v2376
        %v2551 = vadd.f32 %v2121, %v2381
        %v2552 = vadd.f32 %v2122, %v2386
        %v2553 = vadd.f32 %v2123, %v2391
        %v2554 = vadd.f32 %v2124, %v2396
        %v2555 = vadd.f32 %v2125, %v2401
        %v2556 = vadd.f32 %v2126, %v2406
        %v2557 = vadd.f32 %v2127, %v2411
        %v2558 = vadd.f32 %v2128, %v2416
        %v2559 = vadd.f32 %v2129, %v2421
        %v2560 = vadd.f32 %v2130, %v2426
        %v2561 = vadd.f32 %v2131, %v2431
        %v2562 = vadd.f32 %v2132, %v2436
        %v2563 = vadd.f32 %v2133, %v2441
        %v2564 = vadd.f32 %v2134, %v2446
        %v2565 = vadd.f32 %v2135, %v2451
        %v2566 = vadd.f32 %v2136, %v2456
        %v2567 = vadd.f32 %v2137, %v2461
        %v2568 = vadd.f32 %v2138, %v2466
        %v2569 = vadd.f32 %v2139, %v2471
        %v2570 = vadd.f32 %v2140, %v2476
        %v2571 = vadd.f32 %v2141, %v2481
        %v2572 = vadd.f32 %v2142, %v2486
        %v2573 = vadd.f32 %v2143, %v2491
        %v2574 = vadd.f32 %v2144, %v2496
        %v2575 = vadd.f32 %v2145, %v2501
        %v2576 = vadd.f32 %v2146, %v2506
        %v2577 = vadd.f32 %v2147, %v2511
        %v2578 = vadd.f32 %v2148, %v2516
        %v2579 = vadd.f32 %v2149, %v2521
        %v2580 = vadd.f32 %v2150, %v2526
        %v2581 = vadd.f32 %v2151, %v2531
        %v2582 = vadd.f32 %v2152, %v2536
        %v2583 = vadd.f32 %v2153, %v2541
        %v2584 = vadd.f32 %v2154, %v2546
        %v2585 = vld [vmem:[#allocation2 + $0x25] sm:$0xff]
        %v2586 = vld [vmem:[#allocation2 + $0x2d] sm:$0xff]
        %v2587 = vld [vmem:[#allocation2 + $0x35] sm:$0xff]
        %v2588 = vld [vmem:[#allocation2 + $0x3d] sm:$0xff]
        %v2589 = vld [vmem:[#allocation2 + $0x45] sm:$0xff]
        %v2590 = vld [vmem:[#allocation2 + $0x4d] sm:$0xff]
        %v2591 = vld [vmem:[#allocation2 + $0x55] sm:$0xff]
        %v2592 = vld [vmem:[#allocation2 + $0x5d] sm:$0xff]
        %v2593 = vld [vmem:[#allocation2 + $0x65] sm:$0xff]
        %v2594 = vld [vmem:[#allocation2 + $0x6d] sm:$0xff]
        %v2595 = vld [vmem:[#allocation2 + $0x75] sm:$0xff]
        %v2596 = vld [vmem:[#allocation2 + $0x7d] sm:$0xff]
        %v2597 = vld [vmem:[#allocation2 + $0x85] sm:$0xff]
        %v2598 = vld [vmem:[#allocation2 + $0x8d] sm:$0xff]
        %v2599 = vld [vmem:[#allocation2 + $0x95] sm:$0xff]
        %v2600 = vld [vmem:[#allocation2 + $0x9d] sm:$0xff]
        %v2601 = vld [vmem:[#allocation2 + $0xa5] sm:$0xff]
        %v2602 = vld [vmem:[#allocation2 + $0xad] sm:$0xff]
        %v2603 = vld [vmem:[#allocation2 + $0xb5] sm:$0xff]
        %v2604 = vld [vmem:[#allocation2 + $0xbd] sm:$0xff]
        %v2605 = vld [vmem:[#allocation2 + $0xc5] sm:$0xff]
        %v2606 = vld [vmem:[#allocation2 + $0xcd] sm:$0xff]
        %v2607 = vld [vmem:[#allocation2 + $0xd5] sm:$0xff]
        %v2608 = vld [vmem:[#allocation2 + $0xdd] sm:$0xff]
        %v2609 = vld [vmem:[#allocation2 + $0xe5] sm:$0xff]
        %v2610 = vld [vmem:[#allocation2 + $0xed] sm:$0xff]
        %v2611 = vld [vmem:[#allocation2 + $0xf5] sm:$0xff]
        %v2612 = vld [vmem:[#allocation2 + $0xfd] sm:$0xff]
        %v2613 = vld [vmem:[#allocation2 + $0x105] sm:$0xff]
        %v2614 = vld [vmem:[#allocation2 + $0x10d] sm:$0xff]
        %v2615 = vld [vmem:[#allocation2 + $0x115] sm:$0xff]
        %v2616 = vld [vmem:[#allocation2 + $0x11d] sm:$0xff]
        %v2617 = vld [vmem:[#allocation2 + $0x125] sm:$0xff]
        %v2618 = vld [vmem:[#allocation2 + $0x12d] sm:$0xff]
        %v2619 = vld [vmem:[#allocation2 + $0x135] sm:$0xff]
        %v2620 = vld [vmem:[#allocation2 + $0x13d] sm:$0xff]
        %s2621 = scalar_lea.vmem %s1, 20
        %v2622 = vld [vmem:[%s2621] sm:$0xf]
        %v2624 = vsel %vm370, %v2585, 0
        %v2627 = vsel %vm370, %v2586, 0
        %v2630 = vsel %vm370, %v2587, 0
        %v2633 = vsel %vm370, %v2588, 0
        %v2636 = vsel %vm370, %v2589, 0
        %v2639 = vsel %vm370, %v2590, 0
        %v2642 = vsel %vm370, %v2591, 0
        %v2645 = vsel %vm370, %v2592, 0
        %v2648 = vsel %vm370, %v2593, 0
        %v2651 = vsel %vm370, %v2594, 0
        %v2654 = vsel %vm370, %v2595, 0
        %v2657 = vsel %vm370, %v2596, 0
        %v2660 = vsel %vm370, %v2597, 0
        %v2663 = vsel %vm370, %v2598, 0
        %v2666 = vsel %vm370, %v2599, 0
        %v2669 = vsel %vm370, %v2600, 0
        %v2672 = vsel %vm370, %v2601, 0
        %v2675 = vsel %vm370, %v2602, 0
        %v2678 = vsel %vm370, %v2603, 0
        %v2681 = vsel %vm370, %v2604, 0
        %v2684 = vsel %vm370, %v2605, 0
        %v2687 = vsel %vm370, %v2606, 0
        %v2690 = vsel %vm370, %v2607, 0
        %v2693 = vsel %vm370, %v2608, 0
        %v2696 = vsel %vm370, %v2609, 0
        %v2699 = vsel %vm370, %v2610, 0
        %v2702 = vsel %vm370, %v2611, 0
        %v2705 = vsel %vm370, %v2612, 0
        %v2708 = vsel %vm370, %v2613, 0
        %v2711 = vsel %vm370, %v2614, 0
        %v2714 = vsel %vm370, %v2615, 0
        %v2717 = vsel %vm370, %v2616, 0
        %v2720 = vsel %vm370, %v2617, 0
        %v2723 = vsel %vm370, %v2618, 0
        %v2726 = vsel %vm370, %v2619, 0
        %v2729 = vsel %vm370, %v2620, 0
        %v2732 = vsel %vm690, %v2622, 0
        %2734 = vmatprep.subr.mxu0 0.0
        %2735 = vmatpush1.msra.mxu0 %v2732
        %2736 = vmatprep.subr.mxu0 0.0
        %2737 = vmatpush1.msra.mxu0 0.0
        %2738 = vmatprep.subr.mxu0 0.0
        %2739 = vmatpush1.msra.mxu0 0.0
        %2740 = vmatprep.subr.mxu0 0.0
        %2741 = vmatpush1.msra.mxu0 0.0
        %2742 = vmatprep.subr.mxu0 0.0
        %2743 = vmatpush1.msra.mxu0 0.0
        %2744 = vmatprep.subr.mxu0 0.0
        %2745 = vmatpush1.msra.mxu0 0.0
        %2746 = vmatprep.subr.mxu0 0.0
        %2747 = vmatpush1.msra.mxu0 0.0
        %2748 = vmatprep.subr.mxu0 0.0
        %2749 = vmatpush1.msra.mxu0 0.0
        %2750 = vmatprep.subr.mxu0 0.0
        %2751 = vmatpush1.msra.mxu0 0.0
        %2752 = vmatprep.subr.mxu0 0.0
        %2753 = vmatpush1.msra.mxu0 0.0
        %2754 = vmatprep.subr.mxu0 0.0
        %2755 = vmatpush1.msra.mxu0 0.0
        %2756 = vmatprep.subr.mxu0 0.0
        %2757 = vmatpush1.msra.mxu0 0.0
        %2758 = vmatprep.subr.mxu0 0.0
        %2759 = vmatpush1.msra.mxu0 0.0
        %2760 = vmatprep.subr.mxu0 0.0
        %2761 = vmatpush1.msra.mxu0 0.0
        %2762 = vmatprep.subr.mxu0 0.0
        %2763 = vmatpush1.msra.mxu0 0.0
        %2764 = vmatprep.subr.mxu0 0.0
        %2765 = vmatpush1.msra.mxu0 0.0
        %2766 = vmatprep.subr.mxu0 0.0
        %2767 = vmatpush1.msra.mxu0 0.0
        %2768 = vmatprep.subr.mxu0 0.0
        %2769 = vmatpush1.msra.mxu0 0.0
        %2770 = vmatprep.subr.mxu0 0.0
        %2771 = vmatpush1.msra.mxu0 0.0
        %2772 = vmatprep.subr.mxu0 0.0
        %2773 = vmatpush1.msra.mxu0 0.0
        %2774 = vmatprep.subr.mxu0 0.0
        %2775 = vmatpush1.msra.mxu0 0.0
        %2776 = vmatprep.subr.mxu0 0.0
        %2777 = vmatpush1.msra.mxu0 0.0
        %2778 = vmatprep.subr.mxu0 0.0
        %2779 = vmatpush1.msra.mxu0 0.0
        %2780 = vmatprep.subr.mxu0 0.0
        %2781 = vmatpush1.msra.mxu0 0.0
        %2782 = vmatprep.subr.mxu0 0.0
        %2783 = vmatpush1.msra.mxu0 0.0
        %2784 = vmatprep.subr.mxu0 0.0
        %2785 = vmatpush1.msra.mxu0 0.0
        %2786 = vmatprep.subr.mxu0 0.0
        %2787 = vmatpush1.msra.mxu0 0.0
        %2788 = vmatprep.subr.mxu0 0.0
        %2789 = vmatpush1.msra.mxu0 0.0
        %2790 = vmatprep.subr.mxu0 0.0
        %2791 = vmatpush1.msra.mxu0 0.0
        %2792 = vmatprep.subr.mxu0 0.0
        %2793 = vmatpush1.msra.mxu0 0.0
        %2794 = vmatprep.subr.mxu0 0.0
        %2795 = vmatpush1.msra.mxu0 0.0
        %2796 = vmatprep.subr.mxu0 0.0
        %2797 = vmatpush1.msra.mxu0 0.0
        %2798 = vmatprep.mubr.f32.mxu0 0.0
        %2799 = vmatmul.mubr.f32.gmra.mrb[0].mxu0 %v2624
        %v2800 = vpop.f32.mrb[0].mxu0
        %v2801 = vadd.f32 0.0, %v2800
        %v2802 = vpop.f32.mrb[0].mxu0
        %2803 = vmatprep.mubr.f32.mxu0 0.0
        %2804 = vmatmul.mubr.f32.gmra.mrb[0].mxu0 %v2627
        %v2805 = vpop.f32.mrb[0].mxu0
        %v2806 = vadd.f32 0.0, %v2805
        %v2807 = vpop.f32.mrb[0].mxu0
        %2808 = vmatprep.mubr.f32.mxu0 0.0
        %2809 = vmatmul.mubr.f32.gmra.mrb[0].mxu0 %v2630
        %v2810 = vpop.f32.mrb[0].mxu0
        %v2811 = vadd.f32 0.0, %v2810
        %v2812 = vpop.f32.mrb[0].mxu0
        %2813 = vmatprep.mubr.f32.mxu0 0.0
        %2814 = vmatmul.mubr.f32.gmra.mrb[0].mxu0 %v2633
        %v2815 = vpop.f32.mrb[0].mxu0
        %v2816 = vadd.f32 0.0, %v2815
        %v2817 = vpop.f32.mrb[0].mxu0
        %2818 = vmatprep.mubr.f32.mxu0 0.0
        %2819 = vmatmul.mubr.f32.gmra.mrb[0].mxu0 %v2636
        %v2820 = vpop.f32.mrb[0].mxu0
        %v2821 = vadd.f32 0.0, %v2820
        %v2822 = vpop.f32.mrb[0].mxu0
        %2823 = vmatprep.mubr.f32.mxu0 0.0
        %2824 = vmatmul.mubr.f32.gmra.mrb[0].mxu0 %v2639
        %v2825 = vpop.f32.mrb[0].mxu0
        %v2826 = vadd.f32 0.0, %v2825
        %v2827 = vpop.f32.mrb[0].mxu0
        %2828 = vmatprep.mubr.f32.mxu0 0.0
        %2829 = vmatmul.mubr.f32.gmra.mrb[0].mxu0 %v2642
        %v2830 = vpop.f32.mrb[0].mxu0
        %v2831 = vadd.f32 0.0, %v2830
        %v2832 = vpop.f32.mrb[0].mxu0
        %2833 = vmatprep.mubr.f32.mxu0 0.0
        %2834 = vmatmul.mubr.f32.gmra.mrb[0].mxu0 %v2645
        %v2835 = vpop.f32.mrb[0].mxu0
        %v2836 = vadd.f32 0.0, %v2835
        %v2837 = vpop.f32.mrb[0].mxu0
        %2838 = vmatprep.mubr.f32.mxu0 0.0
        %2839 = vmatmul.mubr.f32.gmra.mrb[0].mxu0 %v2648
        %v2840 = vpop.f32.mrb[0].mxu0
        %v2841 = vadd.f32 0.0, %v2840
        %v2842 = vpop.f32.mrb[0].mxu0
        %2843 = vmatprep.mubr.f32.mxu0 0.0
        %2844 = vmatmul.mubr.f32.gmra.mrb[0].mxu0 %v2651
        %v2845 = vpop.f32.mrb[0].mxu0
        %v2846 = vadd.f32 0.0, %v2845
        %v2847 = vpop.f32.mrb[0].mxu0
        %2848 = vmatprep.mubr.f32.mxu0 0.0
        %2849 = vmatmul.mubr.f32.gmra.mrb[0].mxu0 %v2654
        %v2850 = vpop.f32.mrb[0].mxu0
        %v2851 = vadd.f32 0.0, %v2850
        %v2852 = vpop.f32.mrb[0].mxu0
        %2853 = vmatprep.mubr.f32.mxu0 0.0
        %2854 = vmatmul.mubr.f32.gmra.mrb[0].mxu0 %v2657
        %v2855 = vpop.f32.mrb[0].mxu0
        %v2856 = vadd.f32 0.0, %v2855
        %v2857 = vpop.f32.mrb[0].mxu0
        %2858 = vmatprep.mubr.f32.mxu0 0.0
        %2859 = vmatmul.mubr.f32.gmra.mrb[0].mxu0 %v2660
        %v2860 = vpop.f32.mrb[0].mxu0
        %v2861 = vadd.f32 0.0, %v2860
        %v2862 = vpop.f32.mrb[0].mxu0
        %2863 = vmatprep.mubr.f32.mxu0 0.0
        %2864 = vmatmul.mubr.f32.gmra.mrb[0].mxu0 %v2663
        %v2865 = vpop.f32.mrb[0].mxu0
        %v2866 = vadd.f32 0.0, %v2865
        %v2867 = vpop.f32.mrb[0].mxu0
        %2868 = vmatprep.mubr.f32.mxu0 0.0
        %2869 = vmatmul.mubr.f32.gmra.mrb[0].mxu0 %v2666
        %v2870 = vpop.f32.mrb[0].mxu0
        %v2871 = vadd.f32 0.0, %v2870
        %v2872 = vpop.f32.mrb[0].mxu0
        %2873 = vmatprep.mubr.f32.mxu0 0.0
        %2874 = vmatmul.mubr.f32.gmra.mrb[0].mxu0 %v2669
        %v2875 = vpop.f32.mrb[0].mxu0
        %v2876 = vadd.f32 0.0, %v2875
        %v2877 = vpop.f32.mrb[0].mxu0
        %2878 = vmatprep.mubr.f32.mxu0 0.0
        %2879 = vmatmul.mubr.f32.gmra.mrb[0].mxu0 %v2672
        %v2880 = vpop.f32.mrb[0].mxu0
        %v2881 = vadd.f32 0.0, %v2880
        %v2882 = vpop.f32.mrb[0].mxu0
        %2883 = vmatprep.mubr.f32.mxu0 0.0
        %2884 = vmatmul.mubr.f32.gmra.mrb[0].mxu0 %v2675
        %v2885 = vpop.f32.mrb[0].mxu0
        %v2886 = vadd.f32 0.0, %v2885
        %v2887 = vpop.f32.mrb[0].mxu0
        %2888 = vmatprep.mubr.f32.mxu0 0.0
        %2889 = vmatmul.mubr.f32.gmra.mrb[0].mxu0 %v2678
        %v2890 = vpop.f32.mrb[0].mxu0
        %v2891 = vadd.f32 0.0, %v2890
        %v2892 = vpop.f32.mrb[0].mxu0
        %2893 = vmatprep.mubr.f32.mxu0 0.0
        %2894 = vmatmul.mubr.f32.gmra.mrb[0].mxu0 %v2681
        %v2895 = vpop.f32.mrb[0].mxu0
        %v2896 = vadd.f32 0.0, %v2895
        %v2897 = vpop.f32.mrb[0].mxu0
        %2898 = vmatprep.mubr.f32.mxu0 0.0
        %2899 = vmatmul.mubr.f32.gmra.mrb[0].mxu0 %v2684
        %v2900 = vpop.f32.mrb[0].mxu0
        %v2901 = vadd.f32 0.0, %v2900
        %v2902 = vpop.f32.mrb[0].mxu0
        %2903 = vmatprep.mubr.f32.mxu0 0.0
        %2904 = vmatmul.mubr.f32.gmra.mrb[0].mxu0 %v2687
        %v2905 = vpop.f32.mrb[0].mxu0
        %v2906 = vadd.f32 0.0, %v2905
        %v2907 = vpop.f32.mrb[0].mxu0
        %2908 = vmatprep.mubr.f32.mxu0 0.0
        %2909 = vmatmul.mubr.f32.gmra.mrb[0].mxu0 %v2690
        %v2910 = vpop.f32.mrb[0].mxu0
        %v2911 = vadd.f32 0.0, %v2910
        %v2912 = vpop.f32.mrb[0].mxu0
        %2913 = vmatprep.mubr.f32.mxu0 0.0
        %2914 = vmatmul.mubr.f32.gmra.mrb[0].mxu0 %v2693
        %v2915 = vpop.f32.mrb[0].mxu0
        %v2916 = vadd.f32 0.0, %v2915
        %v2917 = vpop.f32.mrb[0].mxu0
        %2918 = vmatprep.mubr.f32.mxu0 0.0
        %2919 = vmatmul.mubr.f32.gmra.mrb[0].mxu0 %v2696
        %v2920 = vpop.f32.mrb[0].mxu0
        %v2921 = vadd.f32 0.0, %v2920
        %v2922 = vpop.f32.mrb[0].mxu0
        %2923 = vmatprep.mubr.f32.mxu0 0.0
        %2924 = vmatmul.mubr.f32.gmra.mrb[0].mxu0 %v2699
        %v2925 = vpop.f32.mrb[0].mxu0
        %v2926 = vadd.f32 0.0, %v2925
        %v2927 = vpop.f32.mrb[0].mxu0
        %2928 = vmatprep.mubr.f32.mxu0 0.0
        %2929 = vmatmul.mubr.f32.gmra.mrb[0].mxu0 %v2702
        %v2930 = vpop.f32.mrb[0].mxu0
        %v2931 = vadd.f32 0.0, %v2930
        %v2932 = vpop.f32.mrb[0].mxu0
        %2933 = vmatprep.mubr.f32.mxu0 0.0
        %2934 = vmatmul.mubr.f32.gmra.mrb[0].mxu0 %v2705
        %v2935 = vpop.f32.mrb[0].mxu0
        %v2936 = vadd.f32 0.0, %v2935
        %v2937 = vpop.f32.mrb[0].mxu0
        %2938 = vmatprep.mubr.f32.mxu0 0.0
        %2939 = vmatmul.mubr.f32.gmra.mrb[0].mxu0 %v2708
        %v2940 = vpop.f32.mrb[0].mxu0
        %v2941 = vadd.f32 0.0, %v2940
        %v2942 = vpop.f32.mrb[0].mxu0
        %2943 = vmatprep.mubr.f32.mxu0 0.0
        %2944 = vmatmul.mubr.f32.gmra.mrb[0].mxu0 %v2711
        %v2945 = vpop.f32.mrb[0].mxu0
        %v2946 = vadd.f32 0.0, %v2945
        %v2947 = vpop.f32.mrb[0].mxu0
        %2948 = vmatprep.mubr.f32.mxu0 0.0
        %2949 = vmatmul.mubr.f32.gmra.mrb[0].mxu0 %v2714
        %v2950 = vpop.f32.mrb[0].mxu0
        %v2951 = vadd.f32 0.0, %v2950
        %v2952 = vpop.f32.mrb[0].mxu0
        %2953 = vmatprep.mubr.f32.mxu0 0.0
        %2954 = vmatmul.mubr.f32.gmra.mrb[0].mxu0 %v2717
        %v2955 = vpop.f32.mrb[0].mxu0
        %v2956 = vadd.f32 0.0, %v2955
        %v2957 = vpop.f32.mrb[0].mxu0
        %2958 = vmatprep.mubr.f32.mxu0 0.0
        %2959 = vmatmul.mubr.f32.gmra.mrb[0].mxu0 %v2720
        %v2960 = vpop.f32.mrb[0].mxu0
        %v2961 = vadd.f32 0.0, %v2960
        %v2962 = vpop.f32.mrb[0].mxu0
        %2963 = vmatprep.mubr.f32.mxu0 0.0
        %2964 = vmatmul.mubr.f32.gmra.mrb[0].mxu0 %v2723
        %v2965 = vpop.f32.mrb[0].mxu0
        %v2966 = vadd.f32 0.0, %v2965
        %v2967 = vpop.f32.mrb[0].mxu0
        %2968 = vmatprep.mubr.f32.mxu0 0.0
        %2969 = vmatmul.mubr.f32.gmra.mrb[0].mxu0 %v2726
        %v2970 = vpop.f32.mrb[0].mxu0
        %v2971 = vadd.f32 0.0, %v2970
        %v2972 = vpop.f32.mrb[0].mxu0
        %2973 = vmatprep.mubr.f32.mxu0 0.0
        %2974 = vmatmul.mubr.f32.gmra.mrb[0].mxu0 %v2729
        %v2975 = vpop.f32.mrb[0].mxu0
        %v2976 = vadd.f32 0.0, %v2975
        %v2977 = vpop.f32.mrb[0].mxu0
        %2978 = vdwg.mxu0
        %v2979 = vadd.f32 %v2549, %v2801
        %v2980 = vadd.f32 %v2550, %v2806
        %v2981 = vadd.f32 %v2551, %v2811
        %v2982 = vadd.f32 %v2552, %v2816
        %v2983 = vadd.f32 %v2553, %v2821
        %v2984 = vadd.f32 %v2554, %v2826
        %v2985 = vadd.f32 %v2555, %v2831
        %v2986 = vadd.f32 %v2556, %v2836
        %v2987 = vadd.f32 %v2557, %v2841
        %v2988 = vadd.f32 %v2558, %v2846
        %v2989 = vadd.f32 %v2559, %v2851
        %v2990 = vadd.f32 %v2560, %v2856
        %v2991 = vadd.f32 %v2561, %v2861
        %v2992 = vadd.f32 %v2562, %v2866
        %v2993 = vadd.f32 %v2563, %v2871
        %v2994 = vadd.f32 %v2564, %v2876
        %v2995 = vadd.f32 %v2565, %v2881
        %v2996 = vadd.f32 %v2566, %v2886
        %v2997 = vadd.f32 %v2567, %v2891
        %v2998 = vadd.f32 %v2568, %v2896
        %v2999 = vadd.f32 %v2569, %v2901
        %v3000 = vadd.f32 %v2570, %v2906
        %v3001 = vadd.f32 %v2571, %v2911
        %v3002 = vadd.f32 %v2572, %v2916
        %v3003 = vadd.f32 %v2573, %v2921
        %v3004 = vadd.f32 %v2574, %v2926
        %v3005 = vadd.f32 %v2575, %v2931
        %v3006 = vadd.f32 %v2576, %v2936
        %v3007 = vadd.f32 %v2577, %v2941
        %v3008 = vadd.f32 %v2578, %v2946
        %v3009 = vadd.f32 %v2579, %v2951
        %v3010 = vadd.f32 %v2580, %v2956
        %v3011 = vadd.f32 %v2581, %v2961
        %v3012 = vadd.f32 %v2582, %v2966
        %v3013 = vadd.f32 %v2583, %v2971
        %v3014 = vadd.f32 %v2584, %v2976
        %v3015 = vld [vmem:[#allocation2 + $0x35] sm:$0xff]
        %v3016 = vld [vmem:[#allocation2 + $0x3d] sm:$0xff]
        %v3017 = vld [vmem:[#allocation2 + $0x45] sm:$0xff]
        %v3018 = vld [vmem:[#allocation2 + $0x4d] sm:$0xff]
        %v3019 = vld [vmem:[#allocation2 + $0x55] sm:$0xff]
        %v3020 = vld [vmem:[#allocation2 + $0x5d] sm:$0xff]
        %v3021 = vld [vmem:[#allocation2 + $0x65] sm:$0xff]
        %v3022 = vld [vmem:[#allocation2 + $0x6d] sm:$0xff]
        %v3023 = vld [vmem:[#allocation2 + $0x75] sm:$0xff]
        %v3024 = vld [vmem:[#allocation2 + $0x7d] sm:$0xff]
        %v3025 = vld [vmem:[#allocation2 + $0x85] sm:$0xff]
        %v3026 = vld [vmem:[#allocation2 + $0x8d] sm:$0xff]
        %v3027 = vld [vmem:[#allocation2 + $0x95] sm:$0xff]
        %v3028 = vld [vmem:[#allocation2 + $0x9d] sm:$0xff]
        %v3029 = vld [vmem:[#allocation2 + $0xa5] sm:$0xff]
        %v3030 = vld [vmem:[#allocation2 + $0xad] sm:$0xff]
        %v3031 = vld [vmem:[#allocation2 + $0xb5] sm:$0xff]
        %v3032 = vld [vmem:[#allocation2 + $0xbd] sm:$0xff]
        %v3033 = vld [vmem:[#allocation2 + $0xc5] sm:$0xff]
        %v3034 = vld [vmem:[#allocation2 + $0xcd] sm:$0xff]
        %v3035 = vld [vmem:[#allocation2 + $0xd5] sm:$0xff]
        %v3036 = vld [vmem:[#allocation2 + $0xdd] sm:$0xff]
        %v3037 = vld [vmem:[#allocation2 + $0xe5] sm:$0xff]
        %v3038 = vld [vmem:[#allocation2 + $0xed] sm:$0xff]
        %v3039 = vld [vmem:[#allocation2 + $0xf5] sm:$0xff]
        %v3040 = vld [vmem:[#allocation2 + $0xfd] sm:$0xff]
        %v3041 = vld [vmem:[#allocation2 + $0x105] sm:$0xff]
        %v3042 = vld [vmem:[#allocation2 + $0x10d] sm:$0xff]
        %v3043 = vld [vmem:[#allocation2 + $0x115] sm:$0xff]
        %v3044 = vld [vmem:[#allocation2 + $0x11d] sm:$0xff]
        %v3045 = vld [vmem:[#allocation2 + $0x125] sm:$0xff]
        %v3046 = vld [vmem:[#allocation2 + $0x12d] sm:$0xff]
        %v3047 = vld [vmem:[#allocation2 + $0x135] sm:$0xff]
        %v3048 = vld [vmem:[#allocation2 + $0x13d] sm:$0xff]
        %v3049 = vld [vmem:[#allocation2 + $0x145] sm:$0xff]
        %v3050 = vld [vmem:[#allocation2 + $0x14d] sm:$0xff]
        %s3051 = scalar_lea.vmem %s1, 24
        %v3052 = vld [vmem:[%s3051] sm:$0xf]
        %v3054 = vsel %vm370, %v3015, 0
        %v3057 = vsel %vm370, %v3016, 0
        %v3060 = vsel %vm370, %v3017, 0
        %v3063 = vsel %vm370, %v3018, 0
        %v3066 = vsel %vm370, %v3019, 0
        %v3069 = vsel %vm370, %v3020, 0
        %v3072 = vsel %vm370, %v3021, 0
        %v3075 = vsel %vm370, %v3022, 0
        %v3078 = vsel %vm370, %v3023, 0
        %v3081 = vsel %vm370, %v3024, 0
        %v3084 = vsel %vm370, %v3025, 0
        %v3087 = vsel %vm370, %v3026, 0
        %v3090 = vsel %vm370, %v3027, 0
        %v3093 = vsel %vm370, %v3028, 0
        %v3096 = vsel %vm370, %v3029, 0
        %v3099 = vsel %vm370, %v3030, 0
        %v3102 = vsel %vm370, %v3031, 0
        %v3105 = vsel %vm370, %v3032, 0
        %v3108 = vsel %vm370, %v3033, 0
        %v3111 = vsel %vm370, %v3034, 0
        %v3114 = vsel %vm370, %v3035, 0
        %v3117 = vsel %vm370, %v3036, 0
        %v3120 = vsel %vm370, %v3037, 0
        %v3123 = vsel %vm370, %v3038, 0
        %v3126 = vsel %vm370, %v3039, 0
        %v3129 = vsel %vm370, %v3040, 0
        %v3132 = vsel %vm370, %v3041, 0
        %v3135 = vsel %vm370, %v3042, 0
        %v3138 = vsel %vm370, %v3043, 0
        %v3141 = vsel %vm370, %v3044, 0
        %v3144 = vsel %vm370, %v3045, 0
        %v3147 = vsel %vm370, %v3046, 0
        %v3150 = vsel %vm370, %v3047, 0
        %v3153 = vsel %vm370, %v3048, 0
        %v3156 = vsel %vm370, %v3049, 0
        %v3159 = vsel %vm370, %v3050, 0
        %v3162 = vsel %vm690, %v3052, 0
        %3164 = vmatprep.subr.mxu0 0.0
        %3165 = vmatpush1.msra.mxu0 %v3162
        %3166 = vmatprep.subr.mxu0 0.0
        %3167 = vmatpush1.msra.mxu0 0.0
        %3168 = vmatprep.subr.mxu0 0.0
        %3169 = vmatpush1.msra.mxu0 0.0
        %3170 = vmatprep.subr.mxu0 0.0
        %3171 = vmatpush1.msra.mxu0 0.0
        %3172 = vmatprep.subr.mxu0 0.0
        %3173 = vmatpush1.msra.mxu0 0.0
        %3174 = vmatprep.subr.mxu0 0.0
        %3175 = vmatpush1.msra.mxu0 0.0
        %3176 = vmatprep.subr.mxu0 0.0
        %3177 = vmatpush1.msra.mxu0 0.0
        %3178 = vmatprep.subr.mxu0 0.0
        %3179 = vmatpush1.msra.mxu0 0.0
        %3180 = vmatprep.subr.mxu0 0.0
        %3181 = vmatpush1.msra.mxu0 0.0
        %3182 = vmatprep.subr.mxu0 0.0
        %3183 = vmatpush1.msra.mxu0 0.0
        %3184 = vmatprep.subr.mxu0 0.0
        %3185 = vmatpush1.msra.mxu0 0.0
        %3186 = vmatprep.subr.mxu0 0.0
        %3187 = vmatpush1.msra.mxu0 0.0
        %3188 = vmatprep.subr.mxu0 0.0
        %3189 = vmatpush1.msra.mxu0 0.0
        %3190 = vmatprep.subr.mxu0 0.0
        %3191 = vmatpush1.msra.mxu0 0.0
        %3192 = vmatprep.subr.mxu0 0.0
        %3193 = vmatpush1.msra.mxu0 0.0
        %3194 = vmatprep.subr.mxu0 0.0
        %3195 = vmatpush1.msra.mxu0 0.0
        %3196 = vmatprep.subr.mxu0 0.0
        %3197 = vmatpush1.msra.mxu0 0.0
        %3198 = vmatprep.subr.mxu0 0.0
        %3199 = vmatpush1.msra.mxu0 0.0
        %3200 = vmatprep.subr.mxu0 0.0
        %3201 = vmatpush1.msra.mxu0 0.0
        %3202 = vmatprep.subr.mxu0 0.0
        %3203 = vmatpush1.msra.mxu0 0.0
        %3204 = vmatprep.subr.mxu0 0.0
        %3205 = vmatpush1.msra.mxu0 0.0
        %3206 = vmatprep.subr.mxu0 0.0
        %3207 = vmatpush1.msra.mxu0 0.0
        %3208 = vmatprep.subr.mxu0 0.0
        %3209 = vmatpush1.msra.mxu0 0.0
        %3210 = vmatprep.subr.mxu0 0.0
        %3211 = vmatpush1.msra.mxu0 0.0
        %3212 = vmatprep.subr.mxu0 0.0
        %3213 = vmatpush1.msra.mxu0 0.0
        %3214 = vmatprep.subr.mxu0 0.0
        %3215 = vmatpush1.msra.mxu0 0.0
        %3216 = vmatprep.subr.mxu0 0.0
        %3217 = vmatpush1.msra.mxu0 0.0
        %3218 = vmatprep.subr.mxu0 0.0
        %3219 = vmatpush1.msra.mxu0 0.0
        %3220 = vmatprep.subr.mxu0 0.0
        %3221 = vmatpush1.msra.mxu0 0.0
        %3222 = vmatprep.subr.mxu0 0.0
        %3223 = vmatpush1.msra.mxu0 0.0
        %3224 = vmatprep.subr.mxu0 0.0
        %3225 = vmatpush1.msra.mxu0 0.0
        %3226 = vmatprep.subr.mxu0 0.0
        %3227 = vmatpush1.msra.mxu0 0.0
        %3228 = vmatprep.mubr.f32.mxu0 0.0
        %3229 = vmatmul.mubr.f32.gmra.mrb[0].mxu0 %v3054
        %v3230 = vpop.f32.mrb[0].mxu0
        %v3231 = vadd.f32 0.0, %v3230
        %v3232 = vpop.f32.mrb[0].mxu0
        %3233 = vmatprep.mubr.f32.mxu0 0.0
        %3234 = vmatmul.mubr.f32.gmra.mrb[0].mxu0 %v3057
        %v3235 = vpop.f32.mrb[0].mxu0
        %v3236 = vadd.f32 0.0, %v3235
        %v3237 = vpop.f32.mrb[0].mxu0
        %3238 = vmatprep.mubr.f32.mxu0 0.0
        %3239 = vmatmul.mubr.f32.gmra.mrb[0].mxu0 %v3060
        %v3240 = vpop.f32.mrb[0].mxu0
        %v3241 = vadd.f32 0.0, %v3240
        %v3242 = vpop.f32.mrb[0].mxu0
        %3243 = vmatprep.mubr.f32.mxu0 0.0
        %3244 = vmatmul.mubr.f32.gmra.mrb[0].mxu0 %v3063
        %v3245 = vpop.f32.mrb[0].mxu0
        %v3246 = vadd.f32 0.0, %v3245
        %v3247 = vpop.f32.mrb[0].mxu0
        %3248 = vmatprep.mubr.f32.mxu0 0.0
        %3249 = vmatmul.mubr.f32.gmra.mrb[0].mxu0 %v3066
        %v3250 = vpop.f32.mrb[0].mxu0
        %v3251 = vadd.f32 0.0, %v3250
        %v3252 = vpop.f32.mrb[0].mxu0
        %3253 = vmatprep.mubr.f32.mxu0 0.0
        %3254 = vmatmul.mubr.f32.gmra.mrb[0].mxu0 %v3069
        %v3255 = vpop.f32.mrb[0].mxu0
        %v3256 = vadd.f32 0.0, %v3255
        %v3257 = vpop.f32.mrb[0].mxu0
        %3258 = vmatprep.mubr.f32.mxu0 0.0
        %3259 = vmatmul.mubr.f32.gmra.mrb[0].mxu0 %v3072
        %v3260 = vpop.f32.mrb[0].mxu0
        %v3261 = vadd.f32 0.0, %v3260
        %v3262 = vpop.f32.mrb[0].mxu0
        %3263 = vmatprep.mubr.f32.mxu0 0.0
        %3264 = vmatmul.mubr.f32.gmra.mrb[0].mxu0 %v3075
        %v3265 = vpop.f32.mrb[0].mxu0
        %v3266 = vadd.f32 0.0, %v3265
        %v3267 = vpop.f32.mrb[0].mxu0
        %3268 = vmatprep.mubr.f32.mxu0 0.0
        %3269 = vmatmul.mubr.f32.gmra.mrb[0].mxu0 %v3078
        %v3270 = vpop.f32.mrb[0].mxu0
        %v3271 = vadd.f32 0.0, %v3270
        %v3272 = vpop.f32.mrb[0].mxu0
        %3273 = vmatprep.mubr.f32.mxu0 0.0
        %3274 = vmatmul.mubr.f32.gmra.mrb[0].mxu0 %v3081
        %v3275 = vpop.f32.mrb[0].mxu0
        %v3276 = vadd.f32 0.0, %v3275
        %v3277 = vpop.f32.mrb[0].mxu0
        %3278 = vmatprep.mubr.f32.mxu0 0.0
        %3279 = vmatmul.mubr.f32.gmra.mrb[0].mxu0 %v3084
        %v3280 = vpop.f32.mrb[0].mxu0
        %v3281 = vadd.f32 0.0, %v3280
        %v3282 = vpop.f32.mrb[0].mxu0
        %3283 = vmatprep.mubr.f32.mxu0 0.0
        %3284 = vmatmul.mubr.f32.gmra.mrb[0].mxu0 %v3087
        %v3285 = vpop.f32.mrb[0].mxu0
        %v3286 = vadd.f32 0.0, %v3285
        %v3287 = vpop.f32.mrb[0].mxu0
        %3288 = vmatprep.mubr.f32.mxu0 0.0
        %3289 = vmatmul.mubr.f32.gmra.mrb[0].mxu0 %v3090
        %v3290 = vpop.f32.mrb[0].mxu0
        %v3291 = vadd.f32 0.0, %v3290
        %v3292 = vpop.f32.mrb[0].mxu0
        %3293 = vmatprep.mubr.f32.mxu0 0.0
        %3294 = vmatmul.mubr.f32.gmra.mrb[0].mxu0 %v3093
        %v3295 = vpop.f32.mrb[0].mxu0
        %v3296 = vadd.f32 0.0, %v3295
        %v3297 = vpop.f32.mrb[0].mxu0
        %3298 = vmatprep.mubr.f32.mxu0 0.0
        %3299 = vmatmul.mubr.f32.gmra.mrb[0].mxu0 %v3096
        %v3300 = vpop.f32.mrb[0].mxu0
        %v3301 = vadd.f32 0.0, %v3300
        %v3302 = vpop.f32.mrb[0].mxu0
        %3303 = vmatprep.mubr.f32.mxu0 0.0
        %3304 = vmatmul.mubr.f32.gmra.mrb[0].mxu0 %v3099
        %v3305 = vpop.f32.mrb[0].mxu0
        %v3306 = vadd.f32 0.0, %v3305
        %v3307 = vpop.f32.mrb[0].mxu0
        %3308 = vmatprep.mubr.f32.mxu0 0.0
        %3309 = vmatmul.mubr.f32.gmra.mrb[0].mxu0 %v3102
        %v3310 = vpop.f32.mrb[0].mxu0
        %v3311 = vadd.f32 0.0, %v3310
        %v3312 = vpop.f32.mrb[0].mxu0
        %3313 = vmatprep.mubr.f32.mxu0 0.0
        %3314 = vmatmul.mubr.f32.gmra.mrb[0].mxu0 %v3105
        %v3315 = vpop.f32.mrb[0].mxu0
        %v3316 = vadd.f32 0.0, %v3315
        %v3317 = vpop.f32.mrb[0].mxu0
        %3318 = vmatprep.mubr.f32.mxu0 0.0
        %3319 = vmatmul.mubr.f32.gmra.mrb[0].mxu0 %v3108
        %v3320 = vpop.f32.mrb[0].mxu0
        %v3321 = vadd.f32 0.0, %v3320
        %v3322 = vpop.f32.mrb[0].mxu0
        %3323 = vmatprep.mubr.f32.mxu0 0.0
        %3324 = vmatmul.mubr.f32.gmra.mrb[0].mxu0 %v3111
        %v3325 = vpop.f32.mrb[0].mxu0
        %v3326 = vadd.f32 0.0, %v3325
        %v3327 = vpop.f32.mrb[0].mxu0
        %3328 = vmatprep.mubr.f32.mxu0 0.0
        %3329 = vmatmul.mubr.f32.gmra.mrb[0].mxu0 %v3114
        %v3330 = vpop.f32.mrb[0].mxu0
        %v3331 = vadd.f32 0.0, %v3330
        %v3332 = vpop.f32.mrb[0].mxu0
        %3333 = vmatprep.mubr.f32.mxu0 0.0
        %3334 = vmatmul.mubr.f32.gmra.mrb[0].mxu0 %v3117
        %v3335 = vpop.f32.mrb[0].mxu0
        %v3336 = vadd.f32 0.0, %v3335
        %v3337 = vpop.f32.mrb[0].mxu0
        %3338 = vmatprep.mubr.f32.mxu0 0.0
        %3339 = vmatmul.mubr.f32.gmra.mrb[0].mxu0 %v3120
        %v3340 = vpop.f32.mrb[0].mxu0
        %v3341 = vadd.f32 0.0, %v3340
        %v3342 = vpop.f32.mrb[0].mxu0
        %3343 = vmatprep.mubr.f32.mxu0 0.0
        %3344 = vmatmul.mubr.f32.gmra.mrb[0].mxu0 %v3123
        %v3345 = vpop.f32.mrb[0].mxu0
        %v3346 = vadd.f32 0.0, %v3345
        %v3347 = vpop.f32.mrb[0].mxu0
        %3348 = vmatprep.mubr.f32.mxu0 0.0
        %3349 = vmatmul.mubr.f32.gmra.mrb[0].mxu0 %v3126
        %v3350 = vpop.f32.mrb[0].mxu0
        %v3351 = vadd.f32 0.0, %v3350
        %v3352 = vpop.f32.mrb[0].mxu0
        %3353 = vmatprep.mubr.f32.mxu0 0.0
        %3354 = vmatmul.mubr.f32.gmra.mrb[0].mxu0 %v3129
        %v3355 = vpop.f32.mrb[0].mxu0
        %v3356 = vadd.f32 0.0, %v3355
        %v3357 = vpop.f32.mrb[0].mxu0
        %3358 = vmatprep.mubr.f32.mxu0 0.0
        %3359 = vmatmul.mubr.f32.gmra.mrb[0].mxu0 %v3132
        %v3360 = vpop.f32.mrb[0].mxu0
        %v3361 = vadd.f32 0.0, %v3360
        %v3362 = vpop.f32.mrb[0].mxu0
        %3363 = vmatprep.mubr.f32.mxu0 0.0
        %3364 = vmatmul.mubr.f32.gmra.mrb[0].mxu0 %v3135
        %v3365 = vpop.f32.mrb[0].mxu0
        %v3366 = vadd.f32 0.0, %v3365
        %v3367 = vpop.f32.mrb[0].mxu0
        %3368 = vmatprep.mubr.f32.mxu0 0.0
        %3369 = vmatmul.mubr.f32.gmra.mrb[0].mxu0 %v3138
        %v3370 = vpop.f32.mrb[0].mxu0
        %v3371 = vadd.f32 0.0, %v3370
        %v3372 = vpop.f32.mrb[0].mxu0
        %3373 = vmatprep.mubr.f32.mxu0 0.0
        %3374 = vmatmul.mubr.f32.gmra.mrb[0].mxu0 %v3141
        %v3375 = vpop.f32.mrb[0].mxu0
        %v3376 = vadd.f32 0.0, %v3375
        %v3377 = vpop.f32.mrb[0].mxu0
        %3378 = vmatprep.mubr.f32.mxu0 0.0
        %3379 = vmatmul.mubr.f32.gmra.mrb[0].mxu0 %v3144
        %v3380 = vpop.f32.mrb[0].mxu0
        %v3381 = vadd.f32 0.0, %v3380
        %v3382 = vpop.f32.mrb[0].mxu0
        %3383 = vmatprep.mubr.f32.mxu0 0.0
        %3384 = vmatmul.mubr.f32.gmra.mrb[0].mxu0 %v3147
        %v3385 = vpop.f32.mrb[0].mxu0
        %v3386 = vadd.f32 0.0, %v3385
        %v3387 = vpop.f32.mrb[0].mxu0
        %3388 = vmatprep.mubr.f32.mxu0 0.0
        %3389 = vmatmul.mubr.f32.gmra.mrb[0].mxu0 %v3150
        %v3390 = vpop.f32.mrb[0].mxu0
        %v3391 = vadd.f32 0.0, %v3390
        %v3392 = vpop.f32.mrb[0].mxu0
        %3393 = vmatprep.mubr.f32.mxu0 0.0
        %3394 = vmatmul.mubr.f32.gmra.mrb[0].mxu0 %v3153
        %v3395 = vpop.f32.mrb[0].mxu0
        %v3396 = vadd.f32 0.0, %v3395
        %v3397 = vpop.f32.mrb[0].mxu0
        %3398 = vmatprep.mubr.f32.mxu0 0.0
        %3399 = vmatmul.mubr.f32.gmra.mrb[0].mxu0 %v3156
        %v3400 = vpop.f32.mrb[0].mxu0
        %v3401 = vadd.f32 0.0, %v3400
        %v3402 = vpop.f32.mrb[0].mxu0
        %3403 = vmatprep.mubr.f32.mxu0 0.0
        %3404 = vmatmul.mubr.f32.gmra.mrb[0].mxu0 %v3159
        %v3405 = vpop.f32.mrb[0].mxu0
        %v3406 = vadd.f32 0.0, %v3405
        %v3407 = vpop.f32.mrb[0].mxu0
        %3408 = vdwg.mxu0
        %v3409 = vadd.f32 %v2979, %v3231
        %v3410 = vadd.f32 %v2980, %v3236
        %v3411 = vadd.f32 %v2981, %v3241
        %v3412 = vadd.f32 %v2982, %v3246
        %v3413 = vadd.f32 %v2983, %v3251
        %v3414 = vadd.f32 %v2984, %v3256
        %v3415 = vadd.f32 %v2985, %v3261
        %v3416 = vadd.f32 %v2986, %v3266
        %v3417 = vadd.f32 %v2987, %v3271
        %v3418 = vadd.f32 %v2988, %v3276
        %v3419 = vadd.f32 %v2989, %v3281
        %v3420 = vadd.f32 %v2990, %v3286
        %v3421 = vadd.f32 %v2991, %v3291
        %v3422 = vadd.f32 %v2992, %v3296
        %v3423 = vadd.f32 %v2993, %v3301
        %v3424 = vadd.f32 %v2994, %v3306
        %v3425 = vadd.f32 %v2995, %v3311
        %v3426 = vadd.f32 %v2996, %v3316
        %v3427 = vadd.f32 %v2997, %v3321
        %v3428 = vadd.f32 %v2998, %v3326
        %v3429 = vadd.f32 %v2999, %v3331
        %v3430 = vadd.f32 %v3000, %v3336
        %v3431 = vadd.f32 %v3001, %v3341
        %v3432 = vadd.f32 %v3002, %v3346
        %v3433 = vadd.f32 %v3003, %v3351
        %v3434 = vadd.f32 %v3004, %v3356
        %v3435 = vadd.f32 %v3005, %v3361
        %v3436 = vadd.f32 %v3006, %v3366
        %v3437 = vadd.f32 %v3007, %v3371
        %v3438 = vadd.f32 %v3008, %v3376
        %v3439 = vadd.f32 %v3009, %v3381
        %v3440 = vadd.f32 %v3010, %v3386
        %v3441 = vadd.f32 %v3011, %v3391
        %v3442 = vadd.f32 %v3012, %v3396
        %v3443 = vadd.f32 %v3013, %v3401
        %v3444 = vadd.f32 %v3014, %v3406
        %v3445 = vld [vmem:[#allocation2 + $0x36] sm:$0xff]
        %v3446 = vld [vmem:[#allocation2 + $0x3e] sm:$0xff]
        %v3447 = vld [vmem:[#allocation2 + $0x46] sm:$0xff]
        %v3448 = vld [vmem:[#allocation2 + $0x4e] sm:$0xff]
        %v3449 = vld [vmem:[#allocation2 + $0x56] sm:$0xff]
        %v3450 = vld [vmem:[#allocation2 + $0x5e] sm:$0xff]
        %v3451 = vld [vmem:[#allocation2 + $0x66] sm:$0xff]
        %v3452 = vld [vmem:[#allocation2 + $0x6e] sm:$0xff]
        %v3453 = vld [vmem:[#allocation2 + $0x76] sm:$0xff]
        %v3454 = vld [vmem:[#allocation2 + $0x7e] sm:$0xff]
        %v3455 = vld [vmem:[#allocation2 + $0x86] sm:$0xff]
        %v3456 = vld [vmem:[#allocation2 + $0x8e] sm:$0xff]
        %v3457 = vld [vmem:[#allocation2 + $0x96] sm:$0xff]
        %v3458 = vld [vmem:[#allocation2 + $0x9e] sm:$0xff]
        %v3459 = vld [vmem:[#allocation2 + $0xa6] sm:$0xff]
        %v3460 = vld [vmem:[#allocation2 + $0xae] sm:$0xff]
        %v3461 = vld [vmem:[#allocation2 + $0xb6] sm:$0xff]
        %v3462 = vld [vmem:[#allocation2 + $0xbe] sm:$0xff]
        %v3463 = vld [vmem:[#allocation2 + $0xc6] sm:$0xff]
        %v3464 = vld [vmem:[#allocation2 + $0xce] sm:$0xff]
        %v3465 = vld [vmem:[#allocation2 + $0xd6] sm:$0xff]
        %v3466 = vld [vmem:[#allocation2 + $0xde] sm:$0xff]
        %v3467 = vld [vmem:[#allocation2 + $0xe6] sm:$0xff]
        %v3468 = vld [vmem:[#allocation2 + $0xee] sm:$0xff]
        %v3469 = vld [vmem:[#allocation2 + $0xf6] sm:$0xff]
        %v3470 = vld [vmem:[#allocation2 + $0xfe] sm:$0xff]
        %v3471 = vld [vmem:[#allocation2 + $0x106] sm:$0xff]
        %v3472 = vld [vmem:[#allocation2 + $0x10e] sm:$0xff]
        %v3473 = vld [vmem:[#allocation2 + $0x116] sm:$0xff]
        %v3474 = vld [vmem:[#allocation2 + $0x11e] sm:$0xff]
        %v3475 = vld [vmem:[#allocation2 + $0x126] sm:$0xff]
        %v3476 = vld [vmem:[#allocation2 + $0x12e] sm:$0xff]
        %v3477 = vld [vmem:[#allocation2 + $0x136] sm:$0xff]
        %v3478 = vld [vmem:[#allocation2 + $0x13e] sm:$0xff]
        %v3479 = vld [vmem:[#allocation2 + $0x146] sm:$0xff]
        %v3480 = vld [vmem:[#allocation2 + $0x14e] sm:$0xff]
        %s3481 = scalar_lea.vmem %s1, 28
        %v3482 = vld [vmem:[%s3481] sm:$0xf]
        %v3484 = vsel %vm370, %v3445, 0
        %v3487 = vsel %vm370, %v3446, 0
        %v3490 = vsel %vm370, %v3447, 0
        %v3493 = vsel %vm370, %v3448, 0
        %v3496 = vsel %vm370, %v3449, 0
        %v3499 = vsel %vm370, %v3450, 0
        %v3502 = vsel %vm370, %v3451, 0
        %v3505 = vsel %vm370, %v3452, 0
        %v3508 = vsel %vm370, %v3453, 0
        %v3511 = vsel %vm370, %v3454, 0
        %v3514 = vsel %vm370, %v3455, 0
        %v3517 = vsel %vm370, %v3456, 0
        %v3520 = vsel %vm370, %v3457, 0
        %v3523 = vsel %vm370, %v3458, 0
        %v3526 = vsel %vm370, %v3459, 0
        %v3529 = vsel %vm370, %v3460, 0
        %v3532 = vsel %vm370, %v3461, 0
        %v3535 = vsel %vm370, %v3462, 0
        %v3538 = vsel %vm370, %v3463, 0
        %v3541 = vsel %vm370, %v3464, 0
        %v3544 = vsel %vm370, %v3465, 0
        %v3547 = vsel %vm370, %v3466, 0
        %v3550 = vsel %vm370, %v3467, 0
        %v3553 = vsel %vm370, %v3468, 0
        %v3556 = vsel %vm370, %v3469, 0
        %v3559 = vsel %vm370, %v3470, 0
        %v3562 = vsel %vm370, %v3471, 0
        %v3565 = vsel %vm370, %v3472, 0
        %v3568 = vsel %vm370, %v3473, 0
        %v3571 = vsel %vm370, %v3474, 0
        %v3574 = vsel %vm370, %v3475, 0
        %v3577 = vsel %vm370, %v3476, 0
        %v3580 = vsel %vm370, %v3477, 0
        %v3583 = vsel %vm370, %v3478, 0
        %v3586 = vsel %vm370, %v3479, 0
        %v3589 = vsel %vm370, %v3480, 0
        %v3592 = vsel %vm690, %v3482, 0
        %3594 = vmatprep.subr.mxu0 0.0
        %3595 = vmatpush1.msra.mxu0 %v3592
        %3596 = vmatprep.subr.mxu0 0.0
        %3597 = vmatpush1.msra.mxu0 0.0
        %3598 = vmatprep.subr.mxu0 0.0
        %3599 = vmatpush1.msra.mxu0 0.0
        %3600 = vmatprep.subr.mxu0 0.0
        %3601 = vmatpush1.msra.mxu0 0.0
        %3602 = vmatprep.subr.mxu0 0.0
        %3603 = vmatpush1.msra.mxu0 0.0
        %3604 = vmatprep.subr.mxu0 0.0
        %3605 = vmatpush1.msra.mxu0 0.0
        %3606 = vmatprep.subr.mxu0 0.0
        %3607 = vmatpush1.msra.mxu0 0.0
        %3608 = vmatprep.subr.mxu0 0.0
        %3609 = vmatpush1.msra.mxu0 0.0
        %3610 = vmatprep.subr.mxu0 0.0
        %3611 = vmatpush1.msra.mxu0 0.0
        %3612 = vmatprep.subr.mxu0 0.0
        %3613 = vmatpush1.msra.mxu0 0.0
        %3614 = vmatprep.subr.mxu0 0.0
        %3615 = vmatpush1.msra.mxu0 0.0
        %3616 = vmatprep.subr.mxu0 0.0
        %3617 = vmatpush1.msra.mxu0 0.0
        %3618 = vmatprep.subr.mxu0 0.0
        %3619 = vmatpush1.msra.mxu0 0.0
        %3620 = vmatprep.subr.mxu0 0.0
        %3621 = vmatpush1.msra.mxu0 0.0
        %3622 = vmatprep.subr.mxu0 0.0
        %3623 = vmatpush1.msra.mxu0 0.0
        %3624 = vmatprep.subr.mxu0 0.0
        %3625 = vmatpush1.msra.mxu0 0.0
        %3626 = vmatprep.subr.mxu0 0.0
        %3627 = vmatpush1.msra.mxu0 0.0
        %3628 = vmatprep.subr.mxu0 0.0
        %3629 = vmatpush1.msra.mxu0 0.0
        %3630 = vmatprep.subr.mxu0 0.0
        %3631 = vmatpush1.msra.mxu0 0.0
        %3632 = vmatprep.subr.mxu0 0.0
        %3633 = vmatpush1.msra.mxu0 0.0
        %3634 = vmatprep.subr.mxu0 0.0
        %3635 = vmatpush1.msra.mxu0 0.0
        %3636 = vmatprep.subr.mxu0 0.0
        %3637 = vmatpush1.msra.mxu0 0.0
        %3638 = vmatprep.subr.mxu0 0.0
        %3639 = vmatpush1.msra.mxu0 0.0
        %3640 = vmatprep.subr.mxu0 0.0
        %3641 = vmatpush1.msra.mxu0 0.0
        %3642 = vmatprep.subr.mxu0 0.0
        %3643 = vmatpush1.msra.mxu0 0.0
        %3644 = vmatprep.subr.mxu0 0.0
        %3645 = vmatpush1.msra.mxu0 0.0
        %3646 = vmatprep.subr.mxu0 0.0
        %3647 = vmatpush1.msra.mxu0 0.0
        %3648 = vmatprep.subr.mxu0 0.0
        %3649 = vmatpush1.msra.mxu0 0.0
        %3650 = vmatprep.subr.mxu0 0.0
        %3651 = vmatpush1.msra.mxu0 0.0
        %3652 = vmatprep.subr.mxu0 0.0
        %3653 = vmatpush1.msra.mxu0 0.0
        %3654 = vmatprep.subr.mxu0 0.0
        %3655 = vmatpush1.msra.mxu0 0.0
        %3656 = vmatprep.subr.mxu0 0.0
        %3657 = vmatpush1.msra.mxu0 0.0
        %3658 = vmatprep.mubr.f32.mxu0 0.0
        %3659 = vmatmul.mubr.f32.gmra.mrb[0].mxu0 %v3484
        %v3660 = vpop.f32.mrb[0].mxu0
        %v3661 = vadd.f32 0.0, %v3660
        %v3662 = vpop.f32.mrb[0].mxu0
        %3663 = vmatprep.mubr.f32.mxu0 0.0
        %3664 = vmatmul.mubr.f32.gmra.mrb[0].mxu0 %v3487
        %v3665 = vpop.f32.mrb[0].mxu0
        %v3666 = vadd.f32 0.0, %v3665
        %v3667 = vpop.f32.mrb[0].mxu0
        %3668 = vmatprep.mubr.f32.mxu0 0.0
        %3669 = vmatmul.mubr.f32.gmra.mrb[0].mxu0 %v3490
        %v3670 = vpop.f32.mrb[0].mxu0
        %v3671 = vadd.f32 0.0, %v3670
        %v3672 = vpop.f32.mrb[0].mxu0
        %3673 = vmatprep.mubr.f32.mxu0 0.0
        %3674 = vmatmul.mubr.f32.gmra.mrb[0].mxu0 %v3493
        %v3675 = vpop.f32.mrb[0].mxu0
        %v3676 = vadd.f32 0.0, %v3675
        %v3677 = vpop.f32.mrb[0].mxu0
        %3678 = vmatprep.mubr.f32.mxu0 0.0
        %3679 = vmatmul.mubr.f32.gmra.mrb[0].mxu0 %v3496
        %v3680 = vpop.f32.mrb[0].mxu0
        %v3681 = vadd.f32 0.0, %v3680
        %v3682 = vpop.f32.mrb[0].mxu0
        %3683 = vmatprep.mubr.f32.mxu0 0.0
        %3684 = vmatmul.mubr.f32.gmra.mrb[0].mxu0 %v3499
        %v3685 = vpop.f32.mrb[0].mxu0
        %v3686 = vadd.f32 0.0, %v3685
        %v3687 = vpop.f32.mrb[0].mxu0
        %3688 = vmatprep.mubr.f32.mxu0 0.0
        %3689 = vmatmul.mubr.f32.gmra.mrb[0].mxu0 %v3502
        %v3690 = vpop.f32.mrb[0].mxu0
        %v3691 = vadd.f32 0.0, %v3690
        %v3692 = vpop.f32.mrb[0].mxu0
        %3693 = vmatprep.mubr.f32.mxu0 0.0
        %3694 = vmatmul.mubr.f32.gmra.mrb[0].mxu0 %v3505
        %v3695 = vpop.f32.mrb[0].mxu0
        %v3696 = vadd.f32 0.0, %v3695
        %v3697 = vpop.f32.mrb[0].mxu0
        %3698 = vmatprep.mubr.f32.mxu0 0.0
        %3699 = vmatmul.mubr.f32.gmra.mrb[0].mxu0 %v3508
        %v3700 = vpop.f32.mrb[0].mxu0
        %v3701 = vadd.f32 0.0, %v3700
        %v3702 = vpop.f32.mrb[0].mxu0
        %3703 = vmatprep.mubr.f32.mxu0 0.0
        %3704 = vmatmul.mubr.f32.gmra.mrb[0].mxu0 %v3511
        %v3705 = vpop.f32.mrb[0].mxu0
        %v3706 = vadd.f32 0.0, %v3705
        %v3707 = vpop.f32.mrb[0].mxu0
        %3708 = vmatprep.mubr.f32.mxu0 0.0
        %3709 = vmatmul.mubr.f32.gmra.mrb[0].mxu0 %v3514
        %v3710 = vpop.f32.mrb[0].mxu0
        %v3711 = vadd.f32 0.0, %v3710
        %v3712 = vpop.f32.mrb[0].mxu0
        %3713 = vmatprep.mubr.f32.mxu0 0.0
        %3714 = vmatmul.mubr.f32.gmra.mrb[0].mxu0 %v3517
        %v3715 = vpop.f32.mrb[0].mxu0
        %v3716 = vadd.f32 0.0, %v3715
        %v3717 = vpop.f32.mrb[0].mxu0
        %3718 = vmatprep.mubr.f32.mxu0 0.0
        %3719 = vmatmul.mubr.f32.gmra.mrb[0].mxu0 %v3520
        %v3720 = vpop.f32.mrb[0].mxu0
        %v3721 = vadd.f32 0.0, %v3720
        %v3722 = vpop.f32.mrb[0].mxu0
        %3723 = vmatprep.mubr.f32.mxu0 0.0
        %3724 = vmatmul.mubr.f32.gmra.mrb[0].mxu0 %v3523
        %v3725 = vpop.f32.mrb[0].mxu0
        %v3726 = vadd.f32 0.0, %v3725
        %v3727 = vpop.f32.mrb[0].mxu0
        %3728 = vmatprep.mubr.f32.mxu0 0.0
        %3729 = vmatmul.mubr.f32.gmra.mrb[0].mxu0 %v3526
        %v3730 = vpop.f32.mrb[0].mxu0
        %v3731 = vadd.f32 0.0, %v3730
        %v3732 = vpop.f32.mrb[0].mxu0
        %3733 = vmatprep.mubr.f32.mxu0 0.0
        %3734 = vmatmul.mubr.f32.gmra.mrb[0].mxu0 %v3529
        %v3735 = vpop.f32.mrb[0].mxu0
        %v3736 = vadd.f32 0.0, %v3735
        %v3737 = vpop.f32.mrb[0].mxu0
        %3738 = vmatprep.mubr.f32.mxu0 0.0
        %3739 = vmatmul.mubr.f32.gmra.mrb[0].mxu0 %v3532
        %v3740 = vpop.f32.mrb[0].mxu0
        %v3741 = vadd.f32 0.0, %v3740
        %v3742 = vpop.f32.mrb[0].mxu0
        %3743 = vmatprep.mubr.f32.mxu0 0.0
        %3744 = vmatmul.mubr.f32.gmra.mrb[0].mxu0 %v3535
        %v3745 = vpop.f32.mrb[0].mxu0
        %v3746 = vadd.f32 0.0, %v3745
        %v3747 = vpop.f32.mrb[0].mxu0
        %3748 = vmatprep.mubr.f32.mxu0 0.0
        %3749 = vmatmul.mubr.f32.gmra.mrb[0].mxu0 %v3538
        %v3750 = vpop.f32.mrb[0].mxu0
        %v3751 = vadd.f32 0.0, %v3750
        %v3752 = vpop.f32.mrb[0].mxu0
        %3753 = vmatprep.mubr.f32.mxu0 0.0
        %3754 = vmatmul.mubr.f32.gmra.mrb[0].mxu0 %v3541
        %v3755 = vpop.f32.mrb[0].mxu0
        %v3756 = vadd.f32 0.0, %v3755
        %v3757 = vpop.f32.mrb[0].mxu0
        %3758 = vmatprep.mubr.f32.mxu0 0.0
        %3759 = vmatmul.mubr.f32.gmra.mrb[0].mxu0 %v3544
        %v3760 = vpop.f32.mrb[0].mxu0
        %v3761 = vadd.f32 0.0, %v3760
        %v3762 = vpop.f32.mrb[0].mxu0
        %3763 = vmatprep.mubr.f32.mxu0 0.0
        %3764 = vmatmul.mubr.f32.gmra.mrb[0].mxu0 %v3547
        %v3765 = vpop.f32.mrb[0].mxu0
        %v3766 = vadd.f32 0.0, %v3765
        %v3767 = vpop.f32.mrb[0].mxu0
        %3768 = vmatprep.mubr.f32.mxu0 0.0
        %3769 = vmatmul.mubr.f32.gmra.mrb[0].mxu0 %v3550
        %v3770 = vpop.f32.mrb[0].mxu0
        %v3771 = vadd.f32 0.0, %v3770
        %v3772 = vpop.f32.mrb[0].mxu0
        %3773 = vmatprep.mubr.f32.mxu0 0.0
        %3774 = vmatmul.mubr.f32.gmra.mrb[0].mxu0 %v3553
        %v3775 = vpop.f32.mrb[0].mxu0
        %v3776 = vadd.f32 0.0, %v3775
        %v3777 = vpop.f32.mrb[0].mxu0
        %3778 = vmatprep.mubr.f32.mxu0 0.0
        %3779 = vmatmul.mubr.f32.gmra.mrb[0].mxu0 %v3556
        %v3780 = vpop.f32.mrb[0].mxu0
        %v3781 = vadd.f32 0.0, %v3780
        %v3782 = vpop.f32.mrb[0].mxu0
        %3783 = vmatprep.mubr.f32.mxu0 0.0
        %3784 = vmatmul.mubr.f32.gmra.mrb[0].mxu0 %v3559
        %v3785 = vpop.f32.mrb[0].mxu0
        %v3786 = vadd.f32 0.0, %v3785
        %v3787 = vpop.f32.mrb[0].mxu0
        %3788 = vmatprep.mubr.f32.mxu0 0.0
        %3789 = vmatmul.mubr.f32.gmra.mrb[0].mxu0 %v3562
        %v3790 = vpop.f32.mrb[0].mxu0
        %v3791 = vadd.f32 0.0, %v3790
        %v3792 = vpop.f32.mrb[0].mxu0
        %3793 = vmatprep.mubr.f32.mxu0 0.0
        %3794 = vmatmul.mubr.f32.gmra.mrb[0].mxu0 %v3565
        %v3795 = vpop.f32.mrb[0].mxu0
        %v3796 = vadd.f32 0.0, %v3795
        %v3797 = vpop.f32.mrb[0].mxu0
        %3798 = vmatprep.mubr.f32.mxu0 0.0
        %3799 = vmatmul.mubr.f32.gmra.mrb[0].mxu0 %v3568
        %v3800 = vpop.f32.mrb[0].mxu0
        %v3801 = vadd.f32 0.0, %v3800
        %v3802 = vpop.f32.mrb[0].mxu0
        %3803 = vmatprep.mubr.f32.mxu0 0.0
        %3804 = vmatmul.mubr.f32.gmra.mrb[0].mxu0 %v3571
        %v3805 = vpop.f32.mrb[0].mxu0
        %v3806 = vadd.f32 0.0, %v3805
        %v3807 = vpop.f32.mrb[0].mxu0
        %3808 = vmatprep.mubr.f32.mxu0 0.0
        %3809 = vmatmul.mubr.f32.gmra.mrb[0].mxu0 %v3574
        %v3810 = vpop.f32.mrb[0].mxu0
        %v3811 = vadd.f32 0.0, %v3810
        %v3812 = vpop.f32.mrb[0].mxu0
        %3813 = vmatprep.mubr.f32.mxu0 0.0
        %3814 = vmatmul.mubr.f32.gmra.mrb[0].mxu0 %v3577
        %v3815 = vpop.f32.mrb[0].mxu0
        %v3816 = vadd.f32 0.0, %v3815
        %v3817 = vpop.f32.mrb[0].mxu0
        %3818 = vmatprep.mubr.f32.mxu0 0.0
        %3819 = vmatmul.mubr.f32.gmra.mrb[0].mxu0 %v3580
        %v3820 = vpop.f32.mrb[0].mxu0
        %v3821 = vadd.f32 0.0, %v3820
        %v3822 = vpop.f32.mrb[0].mxu0
        %3823 = vmatprep.mubr.f32.mxu0 0.0
        %3824 = vmatmul.mubr.f32.gmra.mrb[0].mxu0 %v3583
        %v3825 = vpop.f32.mrb[0].mxu0
        %v3826 = vadd.f32 0.0, %v3825
        %v3827 = vpop.f32.mrb[0].mxu0
        %3828 = vmatprep.mubr.f32.mxu0 0.0
        %3829 = vmatmul.mubr.f32.gmra.mrb[0].mxu0 %v3586
        %v3830 = vpop.f32.mrb[0].mxu0
        %v3831 = vadd.f32 0.0, %v3830
        %v3832 = vpop.f32.mrb[0].mxu0
        %3833 = vmatprep.mubr.f32.mxu0 0.0
        %3834 = vmatmul.mubr.f32.gmra.mrb[0].mxu0 %v3589
        %v3835 = vpop.f32.mrb[0].mxu0
        %v3836 = vadd.f32 0.0, %v3835
        %v3837 = vpop.f32.mrb[0].mxu0
        %3838 = vdwg.mxu0
        %v3839 = vadd.f32 %v3409, %v3661
        %v3840 = vadd.f32 %v3410, %v3666
        %v3841 = vadd.f32 %v3411, %v3671
        %v3842 = vadd.f32 %v3412, %v3676
        %v3843 = vadd.f32 %v3413, %v3681
        %v3844 = vadd.f32 %v3414, %v3686
        %v3845 = vadd.f32 %v3415, %v3691
        %v3846 = vadd.f32 %v3416, %v3696
        %v3847 = vadd.f32 %v3417, %v3701
        %v3848 = vadd.f32 %v3418, %v3706
        %v3849 = vadd.f32 %v3419, %v3711
        %v3850 = vadd.f32 %v3420, %v3716
        %v3851 = vadd.f32 %v3421, %v3721
        %v3852 = vadd.f32 %v3422, %v3726
        %v3853 = vadd.f32 %v3423, %v3731
        %v3854 = vadd.f32 %v3424, %v3736
        %v3855 = vadd.f32 %v3425, %v3741
        %v3856 = vadd.f32 %v3426, %v3746
        %v3857 = vadd.f32 %v3427, %v3751
        %v3858 = vadd.f32 %v3428, %v3756
        %v3859 = vadd.f32 %v3429, %v3761
        %v3860 = vadd.f32 %v3430, %v3766
        %v3861 = vadd.f32 %v3431, %v3771
        %v3862 = vadd.f32 %v3432, %v3776
        %v3863 = vadd.f32 %v3433, %v3781
        %v3864 = vadd.f32 %v3434, %v3786
        %v3865 = vadd.f32 %v3435, %v3791
        %v3866 = vadd.f32 %v3436, %v3796
        %v3867 = vadd.f32 %v3437, %v3801
        %v3868 = vadd.f32 %v3438, %v3806
        %v3869 = vadd.f32 %v3439, %v3811
        %v3870 = vadd.f32 %v3440, %v3816
        %v3871 = vadd.f32 %v3441, %v3821
        %v3872 = vadd.f32 %v3442, %v3826
        %v3873 = vadd.f32 %v3443, %v3831
        %v3874 = vadd.f32 %v3444, %v3836
        %v3875 = vld [vmem:[#allocation2 + $0x37] sm:$0xff]
        %v3876 = vld [vmem:[#allocation2 + $0x3f] sm:$0xff]
        %v3877 = vld [vmem:[#allocation2 + $0x47] sm:$0xff]
        %v3878 = vld [vmem:[#allocation2 + $0x4f] sm:$0xff]
        %v3879 = vld [vmem:[#allocation2 + $0x57] sm:$0xff]
        %v3880 = vld [vmem:[#allocation2 + $0x5f] sm:$0xff]
        %v3881 = vld [vmem:[#allocation2 + $0x67] sm:$0xff]
        %v3882 = vld [vmem:[#allocation2 + $0x6f] sm:$0xff]
        %v3883 = vld [vmem:[#allocation2 + $0x77] sm:$0xff]
        %v3884 = vld [vmem:[#allocation2 + $0x7f] sm:$0xff]
        %v3885 = vld [vmem:[#allocation2 + $0x87] sm:$0xff]
        %v3886 = vld [vmem:[#allocation2 + $0x8f] sm:$0xff]
        %v3887 = vld [vmem:[#allocation2 + $0x97] sm:$0xff]
        %v3888 = vld [vmem:[#allocation2 + $0x9f] sm:$0xff]
        %v3889 = vld [vmem:[#allocation2 + $0xa7] sm:$0xff]
        %v3890 = vld [vmem:[#allocation2 + $0xaf] sm:$0xff]
        %v3891 = vld [vmem:[#allocation2 + $0xb7] sm:$0xff]
        %v3892 = vld [vmem:[#allocation2 + $0xbf] sm:$0xff]
        %v3893 = vld [vmem:[#allocation2 + $0xc7] sm:$0xff]
        %v3894 = vld [vmem:[#allocation2 + $0xcf] sm:$0xff]
        %v3895 = vld [vmem:[#allocation2 + $0xd7] sm:$0xff]
        %v3896 = vld [vmem:[#allocation2 + $0xdf] sm:$0xff]
        %v3897 = vld [vmem:[#allocation2 + $0xe7] sm:$0xff]
        %v3898 = vld [vmem:[#allocation2 + $0xef] sm:$0xff]
        %v3899 = vld [vmem:[#allocation2 + $0xf7] sm:$0xff]
        %v3900 = vld [vmem:[#allocation2 + $0xff] sm:$0xff]
        %v3901 = vld [vmem:[#allocation2 + $0x107] sm:$0xff]
        %v3902 = vld [vmem:[#allocation2 + $0x10f] sm:$0xff]
        %v3903 = vld [vmem:[#allocation2 + $0x117] sm:$0xff]
        %v3904 = vld [vmem:[#allocation2 + $0x11f] sm:$0xff]
        %v3905 = vld [vmem:[#allocation2 + $0x127] sm:$0xff]
        %v3906 = vld [vmem:[#allocation2 + $0x12f] sm:$0xff]
        %v3907 = vld [vmem:[#allocation2 + $0x137] sm:$0xff]
        %v3908 = vld [vmem:[#allocation2 + $0x13f] sm:$0xff]
        %v3909 = vld [vmem:[#allocation2 + $0x147] sm:$0xff]
        %v3910 = vld [vmem:[#allocation2 + $0x14f] sm:$0xff]
        %s3911 = scalar_lea.vmem %s1, 32
        %v3912 = vld [vmem:[%s3911] sm:$0xf]
        %v3914 = vsel %vm370, %v3875, 0
        %v3917 = vsel %vm370, %v3876, 0
        %v3920 = vsel %vm370, %v3877, 0
        %v3923 = vsel %vm370, %v3878, 0
        %v3926 = vsel %vm370, %v3879, 0
        %v3929 = vsel %vm370, %v3880, 0
        %v3932 = vsel %vm370, %v3881, 0
        %v3935 = vsel %vm370, %v3882, 0
        %v3938 = vsel %vm370, %v3883, 0
        %v3941 = vsel %vm370, %v3884, 0
        %v3944 = vsel %vm370, %v3885, 0
        %v3947 = vsel %vm370, %v3886, 0
        %v3950 = vsel %vm370, %v3887, 0
        %v3953 = vsel %vm370, %v3888, 0
        %v3956 = vsel %vm370, %v3889, 0
        %v3959 = vsel %vm370, %v3890, 0
        %v3962 = vsel %vm370, %v3891, 0
        %v3965 = vsel %vm370, %v3892, 0
        %v3968 = vsel %vm370, %v3893, 0
        %v3971 = vsel %vm370, %v3894, 0
        %v3974 = vsel %vm370, %v3895, 0
        %v3977 = vsel %vm370, %v3896, 0
        %v3980 = vsel %vm370, %v3897, 0
        %v3983 = vsel %vm370, %v3898, 0
        %v3986 = vsel %vm370, %v3899, 0
        %v3989 = vsel %vm370, %v3900, 0
        %v3992 = vsel %vm370, %v3901, 0
        %v3995 = vsel %vm370, %v3902, 0
        %v3998 = vsel %vm370, %v3903, 0
        %v4001 = vsel %vm370, %v3904, 0
        %v4004 = vsel %vm370, %v3905, 0
        %v4007 = vsel %vm370, %v3906, 0
        %v4010 = vsel %vm370, %v3907, 0
        %v4013 = vsel %vm370, %v3908, 0
        %v4016 = vsel %vm370, %v3909, 0
        %v4019 = vsel %vm370, %v3910, 0
        %v4022 = vsel %vm690, %v3912, 0
        %4024 = vmatprep.subr.mxu0 0.0
        %4025 = vmatpush1.msra.mxu0 %v4022
        %4026 = vmatprep.subr.mxu0 0.0
        %4027 = vmatpush1.msra.mxu0 0.0
        %4028 = vmatprep.subr.mxu0 0.0
        %4029 = vmatpush1.msra.mxu0 0.0
        %4030 = vmatprep.subr.mxu0 0.0
        %4031 = vmatpush1.msra.mxu0 0.0
        %4032 = vmatprep.subr.mxu0 0.0
        %4033 = vmatpush1.msra.mxu0 0.0
        %4034 = vmatprep.subr.mxu0 0.0
        %4035 = vmatpush1.msra.mxu0 0.0
        %4036 = vmatprep.subr.mxu0 0.0
        %4037 = vmatpush1.msra.mxu0 0.0
        %4038 = vmatprep.subr.mxu0 0.0
        %4039 = vmatpush1.msra.mxu0 0.0
        %4040 = vmatprep.subr.mxu0 0.0
        %4041 = vmatpush1.msra.mxu0 0.0
        %4042 = vmatprep.subr.mxu0 0.0
        %4043 = vmatpush1.msra.mxu0 0.0
        %4044 = vmatprep.subr.mxu0 0.0
        %4045 = vmatpush1.msra.mxu0 0.0
        %4046 = vmatprep.subr.mxu0 0.0
        %4047 = vmatpush1.msra.mxu0 0.0
        %4048 = vmatprep.subr.mxu0 0.0
        %4049 = vmatpush1.msra.mxu0 0.0
        %4050 = vmatprep.subr.mxu0 0.0
        %4051 = vmatpush1.msra.mxu0 0.0
        %4052 = vmatprep.subr.mxu0 0.0
        %4053 = vmatpush1.msra.mxu0 0.0
        %4054 = vmatprep.subr.mxu0 0.0
        %4055 = vmatpush1.msra.mxu0 0.0
        %4056 = vmatprep.subr.mxu0 0.0
        %4057 = vmatpush1.msra.mxu0 0.0
        %4058 = vmatprep.subr.mxu0 0.0
        %4059 = vmatpush1.msra.mxu0 0.0
        %4060 = vmatprep.subr.mxu0 0.0
        %4061 = vmatpush1.msra.mxu0 0.0
        %4062 = vmatprep.subr.mxu0 0.0
        %4063 = vmatpush1.msra.mxu0 0.0
        %4064 = vmatprep.subr.mxu0 0.0
        %4065 = vmatpush1.msra.mxu0 0.0
        %4066 = vmatprep.subr.mxu0 0.0
        %4067 = vmatpush1.msra.mxu0 0.0
        %4068 = vmatprep.subr.mxu0 0.0
        %4069 = vmatpush1.msra.mxu0 0.0
        %4070 = vmatprep.subr.mxu0 0.0
        %4071 = vmatpush1.msra.mxu0 0.0
        %4072 = vmatprep.subr.mxu0 0.0
        %4073 = vmatpush1.msra.mxu0 0.0
        %4074 = vmatprep.subr.mxu0 0.0
        %4075 = vmatpush1.msra.mxu0 0.0
        %4076 = vmatprep.subr.mxu0 0.0
        %4077 = vmatpush1.msra.mxu0 0.0
        %4078 = vmatprep.subr.mxu0 0.0
        %4079 = vmatpush1.msra.mxu0 0.0
        %4080 = vmatprep.subr.mxu0 0.0
        %4081 = vmatpush1.msra.mxu0 0.0
        %4082 = vmatprep.subr.mxu0 0.0
        %4083 = vmatpush1.msra.mxu0 0.0
        %4084 = vmatprep.subr.mxu0 0.0
        %4085 = vmatpush1.msra.mxu0 0.0
        %4086 = vmatprep.subr.mxu0 0.0
        %4087 = vmatpush1.msra.mxu0 0.0
        %4088 = vmatprep.mubr.f32.mxu0 0.0
        %4089 = vmatmul.mubr.f32.gmra.mrb[0].mxu0 %v3914
        %v4090 = vpop.f32.mrb[0].mxu0
        %v4091 = vadd.f32 0.0, %v4090
        %v4092 = vpop.f32.mrb[0].mxu0
        %4093 = vmatprep.mubr.f32.mxu0 0.0
        %4094 = vmatmul.mubr.f32.gmra.mrb[0].mxu0 %v3917
        %v4095 = vpop.f32.mrb[0].mxu0
        %v4096 = vadd.f32 0.0, %v4095
        %v4097 = vpop.f32.mrb[0].mxu0
        %4098 = vmatprep.mubr.f32.mxu0 0.0
        %4099 = vmatmul.mubr.f32.gmra.mrb[0].mxu0 %v3920
        %v4100 = vpop.f32.mrb[0].mxu0
        %v4101 = vadd.f32 0.0, %v4100
        %v4102 = vpop.f32.mrb[0].mxu0
        %4103 = vmatprep.mubr.f32.mxu0 0.0
        %4104 = vmatmul.mubr.f32.gmra.mrb[0].mxu0 %v3923
        %v4105 = vpop.f32.mrb[0].mxu0
        %v4106 = vadd.f32 0.0, %v4105
        %v4107 = vpop.f32.mrb[0].mxu0
        %4108 = vmatprep.mubr.f32.mxu0 0.0
        %4109 = vmatmul.mubr.f32.gmra.mrb[0].mxu0 %v3926
        %v4110 = vpop.f32.mrb[0].mxu0
        %v4111 = vadd.f32 0.0, %v4110
        %v4112 = vpop.f32.mrb[0].mxu0
        %4113 = vmatprep.mubr.f32.mxu0 0.0
        %4114 = vmatmul.mubr.f32.gmra.mrb[0].mxu0 %v3929
        %v4115 = vpop.f32.mrb[0].mxu0
        %v4116 = vadd.f32 0.0, %v4115
        %v4117 = vpop.f32.mrb[0].mxu0
        %4118 = vmatprep.mubr.f32.mxu0 0.0
        %4119 = vmatmul.mubr.f32.gmra.mrb[0].mxu0 %v3932
        %v4120 = vpop.f32.mrb[0].mxu0
        %v4121 = vadd.f32 0.0, %v4120
        %v4122 = vpop.f32.mrb[0].mxu0
        %4123 = vmatprep.mubr.f32.mxu0 0.0
        %4124 = vmatmul.mubr.f32.gmra.mrb[0].mxu0 %v3935
        %v4125 = vpop.f32.mrb[0].mxu0
        %v4126 = vadd.f32 0.0, %v4125
        %v4127 = vpop.f32.mrb[0].mxu0
        %4128 = vmatprep.mubr.f32.mxu0 0.0
        %4129 = vmatmul.mubr.f32.gmra.mrb[0].mxu0 %v3938
        %v4130 = vpop.f32.mrb[0].mxu0
        %v4131 = vadd.f32 0.0, %v4130
        %v4132 = vpop.f32.mrb[0].mxu0
        %4133 = vmatprep.mubr.f32.mxu0 0.0
        %4134 = vmatmul.mubr.f32.gmra.mrb[0].mxu0 %v3941
        %v4135 = vpop.f32.mrb[0].mxu0
        %v4136 = vadd.f32 0.0, %v4135
        %v4137 = vpop.f32.mrb[0].mxu0
        %4138 = vmatprep.mubr.f32.mxu0 0.0
        %4139 = vmatmul.mubr.f32.gmra.mrb[0].mxu0 %v3944
        %v4140 = vpop.f32.mrb[0].mxu0
        %v4141 = vadd.f32 0.0, %v4140
        %v4142 = vpop.f32.mrb[0].mxu0
        %4143 = vmatprep.mubr.f32.mxu0 0.0
        %4144 = vmatmul.mubr.f32.gmra.mrb[0].mxu0 %v3947
        %v4145 = vpop.f32.mrb[0].mxu0
        %v4146 = vadd.f32 0.0, %v4145
        %v4147 = vpop.f32.mrb[0].mxu0
        %4148 = vmatprep.mubr.f32.mxu0 0.0
        %4149 = vmatmul.mubr.f32.gmra.mrb[0].mxu0 %v3950
        %v4150 = vpop.f32.mrb[0].mxu0
        %v4151 = vadd.f32 0.0, %v4150
        %v4152 = vpop.f32.mrb[0].mxu0
        %4153 = vmatprep.mubr.f32.mxu0 0.0
        %4154 = vmatmul.mubr.f32.gmra.mrb[0].mxu0 %v3953
        %v4155 = vpop.f32.mrb[0].mxu0
        %v4156 = vadd.f32 0.0, %v4155
        %v4157 = vpop.f32.mrb[0].mxu0
        %4158 = vmatprep.mubr.f32.mxu0 0.0
        %4159 = vmatmul.mubr.f32.gmra.mrb[0].mxu0 %v3956
        %v4160 = vpop.f32.mrb[0].mxu0
        %v4161 = vadd.f32 0.0, %v4160
        %v4162 = vpop.f32.mrb[0].mxu0
        %4163 = vmatprep.mubr.f32.mxu0 0.0
        %4164 = vmatmul.mubr.f32.gmra.mrb[0].mxu0 %v3959
        %v4165 = vpop.f32.mrb[0].mxu0
        %v4166 = vadd.f32 0.0, %v4165
        %v4167 = vpop.f32.mrb[0].mxu0
        %4168 = vmatprep.mubr.f32.mxu0 0.0
        %4169 = vmatmul.mubr.f32.gmra.mrb[0].mxu0 %v3962
        %v4170 = vpop.f32.mrb[0].mxu0
        %v4171 = vadd.f32 0.0, %v4170
        %v4172 = vpop.f32.mrb[0].mxu0
        %4173 = vmatprep.mubr.f32.mxu0 0.0
        %4174 = vmatmul.mubr.f32.gmra.mrb[0].mxu0 %v3965
        %v4175 = vpop.f32.mrb[0].mxu0
        %v4176 = vadd.f32 0.0, %v4175
        %v4177 = vpop.f32.mrb[0].mxu0
        %4178 = vmatprep.mubr.f32.mxu0 0.0
        %4179 = vmatmul.mubr.f32.gmra.mrb[0].mxu0 %v3968
        %v4180 = vpop.f32.mrb[0].mxu0
        %v4181 = vadd.f32 0.0, %v4180
        %v4182 = vpop.f32.mrb[0].mxu0
        %4183 = vmatprep.mubr.f32.mxu0 0.0
        %4184 = vmatmul.mubr.f32.gmra.mrb[0].mxu0 %v3971
        %v4185 = vpop.f32.mrb[0].mxu0
        %v4186 = vadd.f32 0.0, %v4185
        %v4187 = vpop.f32.mrb[0].mxu0
        %4188 = vmatprep.mubr.f32.mxu0 0.0
        %4189 = vmatmul.mubr.f32.gmra.mrb[0].mxu0 %v3974
        %v4190 = vpop.f32.mrb[0].mxu0
        %v4191 = vadd.f32 0.0, %v4190
        %v4192 = vpop.f32.mrb[0].mxu0
        %4193 = vmatprep.mubr.f32.mxu0 0.0
        %4194 = vmatmul.mubr.f32.gmra.mrb[0].mxu0 %v3977
        %v4195 = vpop.f32.mrb[0].mxu0
        %v4196 = vadd.f32 0.0, %v4195
        %v4197 = vpop.f32.mrb[0].mxu0
        %4198 = vmatprep.mubr.f32.mxu0 0.0
        %4199 = vmatmul.mubr.f32.gmra.mrb[0].mxu0 %v3980
        %v4200 = vpop.f32.mrb[0].mxu0
        %v4201 = vadd.f32 0.0, %v4200
        %v4202 = vpop.f32.mrb[0].mxu0
        %4203 = vmatprep.mubr.f32.mxu0 0.0
        %4204 = vmatmul.mubr.f32.gmra.mrb[0].mxu0 %v3983
        %v4205 = vpop.f32.mrb[0].mxu0
        %v4206 = vadd.f32 0.0, %v4205
        %v4207 = vpop.f32.mrb[0].mxu0
        %4208 = vmatprep.mubr.f32.mxu0 0.0
        %4209 = vmatmul.mubr.f32.gmra.mrb[0].mxu0 %v3986
        %v4210 = vpop.f32.mrb[0].mxu0
        %v4211 = vadd.f32 0.0, %v4210
        %v4212 = vpop.f32.mrb[0].mxu0
        %4213 = vmatprep.mubr.f32.mxu0 0.0
        %4214 = vmatmul.mubr.f32.gmra.mrb[0].mxu0 %v3989
        %v4215 = vpop.f32.mrb[0].mxu0
        %v4216 = vadd.f32 0.0, %v4215
        %v4217 = vpop.f32.mrb[0].mxu0
        %4218 = vmatprep.mubr.f32.mxu0 0.0
        %4219 = vmatmul.mubr.f32.gmra.mrb[0].mxu0 %v3992
        %v4220 = vpop.f32.mrb[0].mxu0
        %v4221 = vadd.f32 0.0, %v4220
        %v4222 = vpop.f32.mrb[0].mxu0
        %4223 = vmatprep.mubr.f32.mxu0 0.0
        %4224 = vmatmul.mubr.f32.gmra.mrb[0].mxu0 %v3995
        %v4225 = vpop.f32.mrb[0].mxu0
        %v4226 = vadd.f32 0.0, %v4225
        %v4227 = vpop.f32.mrb[0].mxu0
        %4228 = vmatprep.mubr.f32.mxu0 0.0
        %4229 = vmatmul.mubr.f32.gmra.mrb[0].mxu0 %v3998
        %v4230 = vpop.f32.mrb[0].mxu0
        %v4231 = vadd.f32 0.0, %v4230
        %v4232 = vpop.f32.mrb[0].mxu0
        %4233 = vmatprep.mubr.f32.mxu0 0.0
        %4234 = vmatmul.mubr.f32.gmra.mrb[0].mxu0 %v4001
        %v4235 = vpop.f32.mrb[0].mxu0
        %v4236 = vadd.f32 0.0, %v4235
        %v4237 = vpop.f32.mrb[0].mxu0
        %4238 = vmatprep.mubr.f32.mxu0 0.0
        %4239 = vmatmul.mubr.f32.gmra.mrb[0].mxu0 %v4004
        %v4240 = vpop.f32.mrb[0].mxu0
        %v4241 = vadd.f32 0.0, %v4240
        %v4242 = vpop.f32.mrb[0].mxu0
        %4243 = vmatprep.mubr.f32.mxu0 0.0
        %4244 = vmatmul.mubr.f32.gmra.mrb[0].mxu0 %v4007
        %v4245 = vpop.f32.mrb[0].mxu0
        %v4246 = vadd.f32 0.0, %v4245
        %v4247 = vpop.f32.mrb[0].mxu0
        %4248 = vmatprep.mubr.f32.mxu0 0.0
        %4249 = vmatmul.mubr.f32.gmra.mrb[0].mxu0 %v4010
        %v4250 = vpop.f32.mrb[0].mxu0
        %v4251 = vadd.f32 0.0, %v4250
        %v4252 = vpop.f32.mrb[0].mxu0
        %4253 = vmatprep.mubr.f32.mxu0 0.0
        %4254 = vmatmul.mubr.f32.gmra.mrb[0].mxu0 %v4013
        %v4255 = vpop.f32.mrb[0].mxu0
        %v4256 = vadd.f32 0.0, %v4255
        %v4257 = vpop.f32.mrb[0].mxu0
        %4258 = vmatprep.mubr.f32.mxu0 0.0
        %4259 = vmatmul.mubr.f32.gmra.mrb[0].mxu0 %v4016
        %v4260 = vpop.f32.mrb[0].mxu0
        %v4261 = vadd.f32 0.0, %v4260
        %v4262 = vpop.f32.mrb[0].mxu0
        %4263 = vmatprep.mubr.f32.mxu0 0.0
        %4264 = vmatmul.mubr.f32.gmra.mrb[0].mxu0 %v4019
        %v4265 = vpop.f32.mrb[0].mxu0
        %v4266 = vadd.f32 0.0, %v4265
        %v4267 = vpop.f32.mrb[0].mxu0
        %4268 = vdwg.mxu0
        %v4269 = vadd.f32 %v3839, %v4091
        %v4270 = vadd.f32 %v3840, %v4096
        %v4271 = vadd.f32 %v3841, %v4101
        %v4272 = vadd.f32 %v3842, %v4106
        %v4273 = vadd.f32 %v3843, %v4111
        %v4274 = vadd.f32 %v3844, %v4116
        %v4275 = vadd.f32 %v3845, %v4121
        %v4276 = vadd.f32 %v3846, %v4126
        %v4277 = vadd.f32 %v3847, %v4131
        %v4278 = vadd.f32 %v3848, %v4136
        %v4279 = vadd.f32 %v3849, %v4141
        %v4280 = vadd.f32 %v3850, %v4146
        %v4281 = vadd.f32 %v3851, %v4151
        %v4282 = vadd.f32 %v3852, %v4156
        %v4283 = vadd.f32 %v3853, %v4161
        %v4284 = vadd.f32 %v3854, %v4166
        %v4285 = vadd.f32 %v3855, %v4171
        %v4286 = vadd.f32 %v3856, %v4176
        %v4287 = vadd.f32 %v3857, %v4181
        %v4288 = vadd.f32 %v3858, %v4186
        %v4289 = vadd.f32 %v3859, %v4191
        %v4290 = vadd.f32 %v3860, %v4196
        %v4291 = vadd.f32 %v3861, %v4201
        %v4292 = vadd.f32 %v3862, %v4206
        %v4293 = vadd.f32 %v3863, %v4211
        %v4294 = vadd.f32 %v3864, %v4216
        %v4295 = vadd.f32 %v3865, %v4221
        %v4296 = vadd.f32 %v3866, %v4226
        %v4297 = vadd.f32 %v3867, %v4231
        %v4298 = vadd.f32 %v3868, %v4236
        %v4299 = vadd.f32 %v3869, %v4241
        %v4300 = vadd.f32 %v3870, %v4246
        %v4301 = vadd.f32 %v3871, %v4251
        %v4302 = vadd.f32 %v3872, %v4256
        %v4303 = vadd.f32 %v3873, %v4261
        %v4304 = vadd.f32 %v3874, %v4266
        %v4305 = vld [vmem:[%s2] sm:$0x1]
        %v4307 = vlaneseq
        %v4308 = vshrl.u32 %v4307, 7
        %v4309 = vsub.s32 0, %v4308
        %v4310 = vrot.slane %v4305, %v4309
        %v4312 = vadd.f32 %v4269, %v4310
        %v4313 = vadd.f32 %v4270, %v4310
        %v4314 = vadd.f32 %v4271, %v4310
        %v4315 = vadd.f32 %v4272, %v4310
        %v4316 = vadd.f32 %v4273, %v4310
        %v4317 = vadd.f32 %v4274, %v4310
        %v4318 = vadd.f32 %v4275, %v4310
        %v4319 = vadd.f32 %v4276, %v4310
        %v4320 = vadd.f32 %v4277, %v4310
        %v4321 = vadd.f32 %v4278, %v4310
        %v4322 = vadd.f32 %v4279, %v4310
        %v4323 = vadd.f32 %v4280, %v4310
        %v4324 = vadd.f32 %v4281, %v4310
        %v4325 = vadd.f32 %v4282, %v4310
        %v4326 = vadd.f32 %v4283, %v4310
        %v4327 = vadd.f32 %v4284, %v4310
        %v4328 = vadd.f32 %v4285, %v4310
        %v4329 = vadd.f32 %v4286, %v4310
        %v4330 = vadd.f32 %v4287, %v4310
        %v4331 = vadd.f32 %v4288, %v4310
        %v4332 = vadd.f32 %v4289, %v4310
        %v4333 = vadd.f32 %v4290, %v4310
        %v4334 = vadd.f32 %v4291, %v4310
        %v4335 = vadd.f32 %v4292, %v4310
        %v4336 = vadd.f32 %v4293, %v4310
        %v4337 = vadd.f32 %v4294, %v4310
        %v4338 = vadd.f32 %v4295, %v4310
        %v4339 = vadd.f32 %v4296, %v4310
        %v4340 = vadd.f32 %v4297, %v4310
        %v4341 = vadd.f32 %v4298, %v4310
        %v4342 = vadd.f32 %v4299, %v4310
        %v4343 = vadd.f32 %v4300, %v4310
        %v4344 = vadd.f32 %v4301, %v4310
        %v4345 = vadd.f32 %v4302, %v4310
        %v4346 = vadd.f32 %v4303, %v4310
        %v4347 = vadd.f32 %v4304, %v4310
        %v4348 = vmax.f32 %v4312, 0.0
        %v4349 = vmax.f32 %v4313, 0.0
        %v4350 = vmax.f32 %v4314, 0.0
        %v4351 = vmax.f32 %v4315, 0.0
        %v4352 = vmax.f32 %v4316, 0.0
        %v4353 = vmax.f32 %v4317, 0.0
        %v4354 = vmax.f32 %v4318, 0.0
        %v4355 = vmax.f32 %v4319, 0.0
        %v4356 = vmax.f32 %v4320, 0.0
        %v4357 = vmax.f32 %v4321, 0.0
        %v4358 = vmax.f32 %v4322, 0.0
        %v4359 = vmax.f32 %v4323, 0.0
        %v4360 = vmax.f32 %v4324, 0.0
        %v4361 = vmax.f32 %v4325, 0.0
        %v4362 = vmax.f32 %v4326, 0.0
        %v4363 = vmax.f32 %v4327, 0.0
        %v4364 = vmax.f32 %v4328, 0.0
        %v4365 = vmax.f32 %v4329, 0.0
        %v4366 = vmax.f32 %v4330, 0.0
        %v4367 = vmax.f32 %v4331, 0.0
        %v4368 = vmax.f32 %v4332, 0.0
        %v4369 = vmax.f32 %v4333, 0.0
        %v4370 = vmax.f32 %v4334, 0.0
        %v4371 = vmax.f32 %v4335, 0.0
        %v4372 = vmax.f32 %v4336, 0.0
        %v4373 = vmax.f32 %v4337, 0.0
        %v4374 = vmax.f32 %v4338, 0.0
        %v4375 = vmax.f32 %v4339, 0.0
        %v4376 = vmax.f32 %v4340, 0.0
        %v4377 = vmax.f32 %v4341, 0.0
        %v4378 = vmax.f32 %v4342, 0.0
        %v4379 = vmax.f32 %v4343, 0.0
        %v4380 = vmax.f32 %v4344, 0.0
        %v4381 = vmax.f32 %v4345, 0.0
        %v4382 = vmax.f32 %v4346, 0.0
        %v4383 = vmax.f32 %v4347, 0.0
        %4384 = vst.msk [vmem:[#allocation3] sm:$0xff] %vm416, %v4348
        %4385 = vst.msk [vmem:[#allocation3 + $0x8] sm:$0xff] %vm416, %v4349
        %4386 = vst.msk [vmem:[#allocation3 + $0x10] sm:$0xff] %vm416, %v4350
        %4387 = vst.msk [vmem:[#allocation3 + $0x18] sm:$0xff] %vm416, %v4351
        %4388 = vst.msk [vmem:[#allocation3 + $0x20] sm:$0xff] %vm416, %v4352
        %4389 = vst.msk [vmem:[#allocation3 + $0x28] sm:$0xff] %vm416, %v4353
        %4390 = vst.msk [vmem:[#allocation3 + $0x30] sm:$0xff] %vm416, %v4354
        %4391 = vst.msk [vmem:[#allocation3 + $0x38] sm:$0xff] %vm416, %v4355
        %4392 = vst.msk [vmem:[#allocation3 + $0x40] sm:$0xff] %vm416, %v4356
        %4393 = vst.msk [vmem:[#allocation3 + $0x48] sm:$0xff] %vm416, %v4357
        %4394 = vst.msk [vmem:[#allocation3 + $0x50] sm:$0xff] %vm416, %v4358
        %4395 = vst.msk [vmem:[#allocation3 + $0x58] sm:$0xff] %vm416, %v4359
        %4396 = vst.msk [vmem:[#allocation3 + $0x60] sm:$0xff] %vm416, %v4360
        %4397 = vst.msk [vmem:[#allocation3 + $0x68] sm:$0xff] %vm416, %v4361
        %4398 = vst.msk [vmem:[#allocation3 + $0x70] sm:$0xff] %vm416, %v4362
        %4399 = vst.msk [vmem:[#allocation3 + $0x78] sm:$0xff] %vm416, %v4363
        %4400 = vst.msk [vmem:[#allocation3 + $0x80] sm:$0xff] %vm416, %v4364
        %4401 = vst.msk [vmem:[#allocation3 + $0x88] sm:$0xff] %vm416, %v4365
        %4402 = vst.msk [vmem:[#allocation3 + $0x90] sm:$0xff] %vm416, %v4366
        %4403 = vst.msk [vmem:[#allocation3 + $0x98] sm:$0xff] %vm416, %v4367
        %4404 = vst.msk [vmem:[#allocation3 + $0xa0] sm:$0xff] %vm416, %v4368
        %4405 = vst.msk [vmem:[#allocation3 + $0xa8] sm:$0xff] %vm416, %v4369
        %4406 = vst.msk [vmem:[#allocation3 + $0xb0] sm:$0xff] %vm416, %v4370
        %4407 = vst.msk [vmem:[#allocation3 + $0xb8] sm:$0xff] %vm416, %v4371
        %4408 = vst.msk [vmem:[#allocation3 + $0xc0] sm:$0xff] %vm416, %v4372
        %4409 = vst.msk [vmem:[#allocation3 + $0xc8] sm:$0xff] %vm416, %v4373
        %4410 = vst.msk [vmem:[#allocation3 + $0xd0] sm:$0xff] %vm416, %v4374
        %4411 = vst.msk [vmem:[#allocation3 + $0xd8] sm:$0xff] %vm416, %v4375
        %4412 = vst.msk [vmem:[#allocation3 + $0xe0] sm:$0xff] %vm416, %v4376
        %4413 = vst.msk [vmem:[#allocation3 + $0xe8] sm:$0xff] %vm416, %v4377
        %4414 = vst.msk [vmem:[#allocation3 + $0xf0] sm:$0xff] %vm416, %v4378
        %4415 = vst.msk [vmem:[#allocation3 + $0xf8] sm:$0xff] %vm416, %v4379
        %4416 = vst.msk [vmem:[#allocation3 + $0x100] sm:$0xff] %vm416, %v4380
        %4417 = vst.msk [vmem:[#allocation3 + $0x108] sm:$0xff] %vm416, %v4381
        %4418 = vst.msk [vmem:[#allocation3 + $0x110] sm:$0xff] %vm416, %v4382
        %4419 = vst.msk [vmem:[#allocation3 + $0x118] sm:$0xff] %vm416, %v4383
        %s4420 = scalar_lea.vmem [#allocation3], 1
        %v4421 = vld [vmem:[%s4420] ss:$2 sm:$0xff]
        %s4422 = scalar_lea.vmem [#allocation3], 2
        %v4423 = vld [vmem:[%s4422] ss:$2 sm:$0xff]
        %s4424 = scalar_lea.vmem [#allocation3], 19
        %v4425 = vld [vmem:[%s4424] ss:$2 sm:$0xff]
        %s4426 = scalar_lea.vmem [#allocation3], 20
        %v4427 = vld [vmem:[%s4426] ss:$2 sm:$0xff]
        %v4428 = vmax.f32 %v4421, %v4423
        %v4429 = vmax.f32 %v4425, %v4427
        %v4430 = vmax.f32 %v4428, %v4429
        %4431 = vst.msk [vmem:[#allocation4 + $0x15] sm:$0xff] %vm416, %v4430
        %v4432 = vsel %vm416, %v4430, 0.0
        %4433 = vadd.xlane.f32.xlu0 %v4432
        %v4434 = vpop.xlane.xlu0 %4433
        %v4435 = vrcp.pop 8.0
        %v4436 = vmul.f32 %v4434, %v4435
        %vm4437 = vcmask 7168
        %4438 = vst.msk [vmem:[#allocation10] sm:$0xff] %vm4437, %v4436
        %s4439 = scalar_lea.vmem [#allocation3], 37
        %v4440 = vld [vmem:[%s4439] ss:$2 sm:$0xff]
        %s4441 = scalar_lea.vmem [#allocation3], 38
        %v4442 = vld [vmem:[%s4441] ss:$2 sm:$0xff]
        %s4443 = scalar_lea.vmem [#allocation3], 55
        %v4444 = vld [vmem:[%s4443] ss:$2 sm:$0xff]
        %s4445 = scalar_lea.vmem [#allocation3], 56
        %v4446 = vld [vmem:[%s4445] ss:$2 sm:$0xff]
        %v4447 = vmax.f32 %v4440, %v4442
        %v4448 = vmax.f32 %v4444, %v4446
        %v4449 = vmax.f32 %v4447, %v4448
        %4450 = vst.msk [vmem:[#allocation4 + $0x1f] sm:$0xff] %vm416, %v4449
        %v4451 = vsel %vm416, %v4449, 0.0
        %4452 = vadd.xlane.f32.xlu0 %v4451
        %v4453 = vpop.xlane.xlu0 %4452
        %v4454 = vmul.f32 %v4453, %v4435
        %4455 = vst.msk [vmem:[#allocation10 + $0x8] sm:$0xff] %vm4437, %v4454
        %s4456 = scalar_lea.vmem [#allocation3], 73
        %v4457 = vld [vmem:[%s4456] ss:$2 sm:$0xff]
        %s4458 = scalar_lea.vmem [#allocation3], 74
        %v4459 = vld [vmem:[%s4458] ss:$2 sm:$0xff]
        %s4460 = scalar_lea.vmem [#allocation3], 91
        %v4461 = vld [vmem:[%s4460] ss:$2 sm:$0xff]
        %s4462 = scalar_lea.vmem [#allocation3], 92
        %v4463 = vld [vmem:[%s4462] ss:$2 sm:$0xff]
        %v4464 = vmax.f32 %v4457, %v4459
        %v4465 = vmax.f32 %v4461, %v4463
        %v4466 = vmax.f32 %v4464, %v4465
        %4467 = vst.msk [vmem:[#allocation4 + $0x29] sm:$0xff] %vm416, %v4466
        %v4468 = vsel %vm416, %v4466, 0.0
        %4469 = vadd.xlane.f32.xlu0 %v4468
        %v4470 = vpop.xlane.xlu0 %4469
        %v4471 = vmul.f32 %v4470, %v4435
        %4472 = vst.msk [vmem:[#allocation10 + $0x10] sm:$0xff] %vm4437, %v4471
        %s4473 = scalar_lea.vmem [#allocation3], 109
        %v4474 = vld [vmem:[%s4473] ss:$2 sm:$0xff]
        %s4475 = scalar_lea.vmem [#allocation3], 110
        %v4476 = vld [vmem:[%s4475] ss:$2 sm:$0xff]
        %s4477 = scalar_lea.vmem [#allocation3], 127
        %v4478 = vld [vmem:[%s4477] ss:$2 sm:$0xff]
        %s4479 = scalar_lea.vmem [#allocation3], 128
        %v4480 = vld [vmem:[%s4479] ss:$2 sm:$0xff]
        %v4481 = vmax.f32 %v4474, %v4476
        %v4482 = vmax.f32 %v4478, %v4480
        %v4483 = vmax.f32 %v4481, %v4482
        %4484 = vst.msk [vmem:[#allocation4 + $0x33] sm:$0xff] %vm416, %v4483
        %v4485 = vsel %vm416, %v4483, 0.0
        %4486 = vadd.xlane.f32.xlu0 %v4485
        %v4487 = vpop.xlane.xlu0 %4486
        %v4488 = vmul.f32 %v4487, %v4435
        %4489 = vst.msk [vmem:[#allocation10 + $0x18] sm:$0xff] %vm4437, %v4488
        %s4490 = scalar_lea.vmem [#allocation3], 145
        %v4491 = vld [vmem:[%s4490] ss:$2 sm:$0xff]
        %s4492 = scalar_lea.vmem [#allocation3], 146
        %v4493 = vld [vmem:[%s4492] ss:$2 sm:$0xff]
        %s4494 = scalar_lea.vmem [#allocation3], 163
        %v4495 = vld [vmem:[%s4494] ss:$2 sm:$0xff]
        %s4496 = scalar_lea.vmem [#allocation3], 164
        %v4497 = vld [vmem:[%s4496] ss:$2 sm:$0xff]
        %v4498 = vmax.f32 %v4491, %v4493
        %v4499 = vmax.f32 %v4495, %v4497
        %v4500 = vmax.f32 %v4498, %v4499
        %4501 = vst.msk [vmem:[#allocation4 + $0x3d] sm:$0xff] %vm416, %v4500
        %v4502 = vsel %vm416, %v4500, 0.0
        %4503 = vadd.xlane.f32.xlu0 %v4502
        %v4504 = vpop.xlane.xlu0 %4503
        %v4505 = vmul.f32 %v4504, %v4435
        %4506 = vst.msk [vmem:[#allocation10 + $0x20] sm:$0xff] %vm4437, %v4505
        %s4507 = scalar_lea.vmem [#allocation3], 181
        %v4508 = vld [vmem:[%s4507] ss:$2 sm:$0xff]
        %s4509 = scalar_lea.vmem [#allocation3], 182
        %v4510 = vld [vmem:[%s4509] ss:$2 sm:$0xff]
        %s4511 = scalar_lea.vmem [#allocation3], 199
        %v4512 = vld [vmem:[%s4511] ss:$2 sm:$0xff]
        %s4513 = scalar_lea.vmem [#allocation3], 200
        %v4514 = vld [vmem:[%s4513] ss:$2 sm:$0xff]
        %v4515 = vmax.f32 %v4508, %v4510
        %v4516 = vmax.f32 %v4512, %v4514
        %v4517 = vmax.f32 %v4515, %v4516
        %4518 = vst.msk [vmem:[#allocation4 + $0x47] sm:$0xff] %vm416, %v4517
        %v4519 = vsel %vm416, %v4517, 0.0
        %4520 = vadd.xlane.f32.xlu0 %v4519
        %v4521 = vpop.xlane.xlu0 %4520
        %v4522 = vmul.f32 %v4521, %v4435
        %4523 = vst.msk [vmem:[#allocation10 + $0x28] sm:$0xff] %vm4437, %v4522
        %s4524 = scalar_lea.vmem [#allocation3], 217
        %v4525 = vld [vmem:[%s4524] ss:$2 sm:$0xff]
        %s4526 = scalar_lea.vmem [#allocation3], 218
        %v4527 = vld [vmem:[%s4526] ss:$2 sm:$0xff]
        %s4528 = scalar_lea.vmem [#allocation3], 235
        %v4529 = vld [vmem:[%s4528] ss:$2 sm:$0xff]
        %s4530 = scalar_lea.vmem [#allocation3], 236
        %v4531 = vld [vmem:[%s4530] ss:$2 sm:$0xff]
        %v4532 = vmax.f32 %v4525, %v4527
        %v4533 = vmax.f32 %v4529, %v4531
        %v4534 = vmax.f32 %v4532, %v4533
        %4535 = vst.msk [vmem:[#allocation4 + $0x51] sm:$0xff] %vm416, %v4534
        %v4536 = vsel %vm416, %v4534, 0.0
        %4537 = vadd.xlane.f32.xlu0 %v4536
        %v4538 = vpop.xlane.xlu0 %4537
        %v4539 = vmul.f32 %v4538, %v4435
        %4540 = vst.msk [vmem:[#allocation10 + $0x30] sm:$0xff] %vm4437, %v4539
        %s4541 = scalar_lea.vmem [#allocation3], 253
        %v4542 = vld [vmem:[%s4541] ss:$2 sm:$0xff]
        %s4543 = scalar_lea.vmem [#allocation3], 254
        %v4544 = vld [vmem:[%s4543] ss:$2 sm:$0xff]
        %s4545 = scalar_lea.vmem [#allocation3], 271
        %v4546 = vld [vmem:[%s4545] ss:$2 sm:$0xff]
        %s4547 = scalar_lea.vmem [#allocation3], 272
        %v4548 = vld [vmem:[%s4547] ss:$2 sm:$0xff]
        %v4549 = vmax.f32 %v4542, %v4544
        %v4550 = vmax.f32 %v4546, %v4548
        %v4551 = vmax.f32 %v4549, %v4550
        %4552 = vst.msk [vmem:[#allocation4 + $0x5b] sm:$0xff] %vm416, %v4551
        %v4553 = vsel %vm416, %v4551, 0.0
        %4554 = vadd.xlane.f32.xlu0 %v4553
        %v4555 = vpop.xlane.xlu0 %4554
        %v4556 = vmul.f32 %v4555, %v4435
        %4557 = vst.msk [vmem:[#allocation10 + $0x38] sm:$0xff] %vm4437, %v4556
        %v4558 = vld [vmem:[#allocation4 + $0x9] sm:$0xff]
        %v4559 = vld [vmem:[#allocation4 + $0x11] sm:$0xff]
        %v4560 = vld [vmem:[#allocation4 + $0x19] sm:$0xff]
        %v4561 = vld [vmem:[#allocation4 + $0x21] sm:$0xff]
        %v4562 = vld [vmem:[#allocation4 + $0x29] sm:$0xff]
        %v4563 = vld [vmem:[#allocation4 + $0x31] sm:$0xff]
        %v4564 = vld [vmem:[#allocation4 + $0x39] sm:$0xff]
        %v4565 = vld [vmem:[#allocation4 + $0x41] sm:$0xff]
        %v4566 = vld [vmem:[#allocation4 + $0x49] sm:$0xff]
        %v4567 = vld [vmem:[#allocation4 + $0x51] sm:$0xff]
        %v4568 = vld [vmem:[%s3] sm:$0xff]
        %v4569 = vld [vmem:[#allocation4 + $0xa] sm:$0xff]
        %v4570 = vld [vmem:[#allocation4 + $0x12] sm:$0xff]
        %v4571 = vld [vmem:[#allocation4 + $0x1a] sm:$0xff]
        %v4572 = vld [vmem:[#allocation4 + $0x22] sm:$0xff]
        %v4573 = vld [vmem:[#allocation4 + $0x2a] sm:$0xff]
        %v4574 = vld [vmem:[#allocation4 + $0x32] sm:$0xff]
        %v4575 = vld [vmem:[#allocation4 + $0x3a] sm:$0xff]
        %v4576 = vld [vmem:[#allocation4 + $0x42] sm:$0xff]
        %v4577 = vld [vmem:[#allocation4 + $0x4a] sm:$0xff]
        %v4578 = vld [vmem:[#allocation4 + $0x52] sm:$0xff]
        %s4579 = scalar_lea.vmem %s3, 8
        %v4580 = vld [vmem:[%s4579] sm:$0xff]
        %v4582 = vsel %vm416, %v4569, 0
        %v4585 = vsel %vm416, %v4570, 0
        %v4588 = vsel %vm416, %v4571, 0
        %v4591 = vsel %vm416, %v4572, 0
        %v4594 = vsel %vm416, %v4573, 0
        %v4597 = vsel %vm416, %v4574, 0
        %v4600 = vsel %vm416, %v4575, 0
        %v4603 = vsel %vm416, %v4576, 0
        %v4606 = vsel %vm416, %v4577, 0
        %v4609 = vsel %vm416, %v4578, 0
        %4611 = vmatprep.subr.mxu0 0.0
        %4612 = vmatpush1.msra.mxu0 %v4580
        %4613 = vmatprep.subr.mxu0 0.0
        %4614 = vmatpush1.msra.mxu0 0.0
        %4615 = vmatprep.subr.mxu0 0.0
        %4616 = vmatpush1.msra.mxu0 0.0
        %4617 = vmatprep.subr.mxu0 0.0
        %4618 = vmatpush1.msra.mxu0 0.0
        %4619 = vmatprep.subr.mxu0 0.0
        %4620 = vmatpush1.msra.mxu0 0.0
        %4621 = vmatprep.subr.mxu0 0.0
        %4622 = vmatpush1.msra.mxu0 0.0
        %4623 = vmatprep.subr.mxu0 0.0
        %4624 = vmatpush1.msra.mxu0 0.0
        %4625 = vmatprep.subr.mxu0 0.0
        %4626 = vmatpush1.msra.mxu0 0.0
        %4627 = vmatprep.subr.mxu0 0.0
        %4628 = vmatpush1.msra.mxu0 0.0
        %4629 = vmatprep.subr.mxu0 0.0
        %4630 = vmatpush1.msra.mxu0 0.0
        %4631 = vmatprep.subr.mxu0 0.0
        %4632 = vmatpush1.msra.mxu0 0.0
        %4633 = vmatprep.subr.mxu0 0.0
        %4634 = vmatpush1.msra.mxu0 0.0
        %4635 = vmatprep.subr.mxu0 0.0
        %4636 = vmatpush1.msra.mxu0 0.0
        %4637 = vmatprep.subr.mxu0 0.0
        %4638 = vmatpush1.msra.mxu0 0.0
        %4639 = vmatprep.subr.mxu0 0.0
        %4640 = vmatpush1.msra.mxu0 0.0
        %4641 = vmatprep.subr.mxu0 0.0
        %4642 = vmatpush1.msra.mxu0 0.0
        %4643 = vmatprep.subr.mxu0 0.0
        %4644 = vmatpush1.msra.mxu0 0.0
        %4645 = vmatprep.subr.mxu0 0.0
        %4646 = vmatpush1.msra.mxu0 0.0
        %4647 = vmatprep.subr.mxu0 0.0
        %4648 = vmatpush1.msra.mxu0 0.0
        %4649 = vmatprep.subr.mxu0 0.0
        %4650 = vmatpush1.msra.mxu0 0.0
        %4651 = vmatprep.subr.mxu0 0.0
        %4652 = vmatpush1.msra.mxu0 0.0
        %4653 = vmatprep.subr.mxu0 0.0
        %4654 = vmatpush1.msra.mxu0 0.0
        %4655 = vmatprep.subr.mxu0 0.0
        %4656 = vmatpush1.msra.mxu0 0.0
        %4657 = vmatprep.subr.mxu0 0.0
        %4658 = vmatpush1.msra.mxu0 0.0
        %4659 = vmatprep.subr.mxu0 0.0
        %4660 = vmatpush1.msra.mxu0 0.0
        %4661 = vmatprep.subr.mxu0 0.0
        %4662 = vmatpush1.msra.mxu0 0.0
        %4663 = vmatprep.subr.mxu0 0.0
        %4664 = vmatpush1.msra.mxu0 0.0
        %4665 = vmatprep.subr.mxu0 0.0
        %4666 = vmatpush1.msra.mxu0 0.0
        %4667 = vmatprep.subr.mxu0 0.0
        %4668 = vmatpush1.msra.mxu0 0.0
        %4669 = vmatprep.subr.mxu0 0.0
        %4670 = vmatpush1.msra.mxu0 0.0
        %4671 = vmatprep.subr.mxu0 0.0
        %4672 = vmatpush1.msra.mxu0 0.0
        %4673 = vmatprep.subr.mxu0 0.0
        %4674 = vmatpush1.msra.mxu0 0.0
        %4675 = vmatprep.mubr.f32.mxu0 0.0
        %4676 = vmatmul.mubr.f32.gmra.mrb[0].mxu0 %v4582
        %v4677 = vpop.f32.mrb[0].mxu0
        %v4678 = vadd.f32 0.0, %v4677
        %v4679 = vpop.f32.mrb[0].mxu0
        %4680 = vmatprep.mubr.f32.mxu0 0.0
        %4681 = vmatmul.mubr.f32.gmra.mrb[0].mxu0 %v4585
        %v4682 = vpop.f32.mrb[0].mxu0
        %v4683 = vadd.f32 0.0, %v4682
        %v4684 = vpop.f32.mrb[0].mxu0
        %4685 = vmatprep.mubr.f32.mxu0 0.0
        %4686 = vmatmul.mubr.f32.gmra.mrb[0].mxu0 %v4588
        %v4687 = vpop.f32.mrb[0].mxu0
        %v4688 = vadd.f32 0.0, %v4687
        %v4689 = vpop.f32.mrb[0].mxu0
        %4690 = vmatprep.mubr.f32.mxu0 0.0
        %4691 = vmatmul.mubr.f32.gmra.mrb[0].mxu0 %v4591
        %v4692 = vpop.f32.mrb[0].mxu0
        %v4693 = vadd.f32 0.0, %v4692
        %v4694 = vpop.f32.mrb[0].mxu0
        %4695 = vmatprep.mubr.f32.mxu0 0.0
        %4696 = vmatmul.mubr.f32.gmra.mrb[0].mxu0 %v4594
        %v4697 = vpop.f32.mrb[0].mxu0
        %v4698 = vadd.f32 0.0, %v4697
        %v4699 = vpop.f32.mrb[0].mxu0
        %4700 = vmatprep.mubr.f32.mxu0 0.0
        %4701 = vmatmul.mubr.f32.gmra.mrb[0].mxu0 %v4597
        %v4702 = vpop.f32.mrb[0].mxu0
        %v4703 = vadd.f32 0.0, %v4702
        %v4704 = vpop.f32.mrb[0].mxu0
        %4705 = vmatprep.mubr.f32.mxu0 0.0
        %4706 = vmatmul.mubr.f32.gmra.mrb[0].mxu0 %v4600
        %v4707 = vpop.f32.mrb[0].mxu0
        %v4708 = vadd.f32 0.0, %v4707
        %v4709 = vpop.f32.mrb[0].mxu0
        %4710 = vmatprep.mubr.f32.mxu0 0.0
        %4711 = vmatmul.mubr.f32.gmra.mrb[0].mxu0 %v4603
        %v4712 = vpop.f32.mrb[0].mxu0
        %v4713 = vadd.f32 0.0, %v4712
        %v4714 = vpop.f32.mrb[0].mxu0
        %4715 = vmatprep.mubr.f32.mxu0 0.0
        %4716 = vmatmul.mubr.f32.gmra.mrb[0].mxu0 %v4606
        %v4717 = vpop.f32.mrb[0].mxu0
        %v4718 = vadd.f32 0.0, %v4717
        %v4719 = vpop.f32.mrb[0].mxu0
        %4720 = vmatprep.mubr.f32.mxu0 0.0
        %4721 = vmatmul.mubr.f32.gmra.mrb[0].mxu0 %v4609
        %v4722 = vpop.f32.mrb[0].mxu0
        %v4723 = vadd.f32 0.0, %v4722
        %v4724 = vpop.f32.mrb[0].mxu0
        %4725 = vdwg.mxu0
        %v4727 = vsel %vm416, %v4558, 0
        %v4730 = vsel %vm416, %v4559, 0
        %v4733 = vsel %vm416, %v4560, 0
        %v4736 = vsel %vm416, %v4561, 0
        %v4739 = vsel %vm416, %v4562, 0
        %v4742 = vsel %vm416, %v4563, 0
        %v4745 = vsel %vm416, %v4564, 0
        %v4748 = vsel %vm416, %v4565, 0
        %v4751 = vsel %vm416, %v4566, 0
        %v4754 = vsel %vm416, %v4567, 0
        %4756 = vmatprep.subr.mxu0 0.0
        %4757 = vmatpush1.msra.mxu0 %v4568
        %4758 = vmatprep.subr.mxu0 0.0
        %4759 = vmatpush1.msra.mxu0 0.0
        %4760 = vmatprep.subr.mxu0 0.0
        %4761 = vmatpush1.msra.mxu0 0.0
        %4762 = vmatprep.subr.mxu0 0.0
        %4763 = vmatpush1.msra.mxu0 0.0
        %4764 = vmatprep.subr.mxu0 0.0
        %4765 = vmatpush1.msra.mxu0 0.0
        %4766 = vmatprep.subr.mxu0 0.0
        %4767 = vmatpush1.msra.mxu0 0.0
        %4768 = vmatprep.subr.mxu0 0.0
        %4769 = vmatpush1.msra.mxu0 0.0
        %4770 = vmatprep.subr.mxu0 0.0
        %4771 = vmatpush1.msra.mxu0 0.0
        %4772 = vmatprep.subr.mxu0 0.0
        %4773 = vmatpush1.msra.mxu0 0.0
        %4774 = vmatprep.subr.mxu0 0.0
        %4775 = vmatpush1.msra.mxu0 0.0
        %4776 = vmatprep.subr.mxu0 0.0
        %4777 = vmatpush1.msra.mxu0 0.0
        %4778 = vmatprep.subr.mxu0 0.0
        %4779 = vmatpush1.msra.mxu0 0.0
        %4780 = vmatprep.subr.mxu0 0.0
        %4781 = vmatpush1.msra.mxu0 0.0
        %4782 = vmatprep.subr.mxu0 0.0
        %4783 = vmatpush1.msra.mxu0 0.0
        %4784 = vmatprep.subr.mxu0 0.0
        %4785 = vmatpush1.msra.mxu0 0.0
        %4786 = vmatprep.subr.mxu0 0.0
        %4787 = vmatpush1.msra.mxu0 0.0
        %4788 = vmatprep.subr.mxu0 0.0
        %4789 = vmatpush1.msra.mxu0 0.0
        %4790 = vmatprep.subr.mxu0 0.0
        %4791 = vmatpush1.msra.mxu0 0.0
        %4792 = vmatprep.subr.mxu0 0.0
        %4793 = vmatpush1.msra.mxu0 0.0
        %4794 = vmatprep.subr.mxu0 0.0
        %4795 = vmatpush1.msra.mxu0 0.0
        %4796 = vmatprep.subr.mxu0 0.0
        %4797 = vmatpush1.msra.mxu0 0.0
        %4798 = vmatprep.subr.mxu0 0.0
        %4799 = vmatpush1.msra.mxu0 0.0
        %4800 = vmatprep.subr.mxu0 0.0
        %4801 = vmatpush1.msra.mxu0 0.0
        %4802 = vmatprep.subr.mxu0 0.0
        %4803 = vmatpush1.msra.mxu0 0.0
        %4804 = vmatprep.subr.mxu0 0.0
        %4805 = vmatpush1.msra.mxu0 0.0
        %4806 = vmatprep.subr.mxu0 0.0
        %4807 = vmatpush1.msra.mxu0 0.0
        %4808 = vmatprep.subr.mxu0 0.0
        %4809 = vmatpush1.msra.mxu0 0.0
        %4810 = vmatprep.subr.mxu0 0.0
        %4811 = vmatpush1.msra.mxu0 0.0
        %4812 = vmatprep.subr.mxu0 0.0
        %4813 = vmatpush1.msra.mxu0 0.0
        %4814 = vmatprep.subr.mxu0 0.0
        %4815 = vmatpush1.msra.mxu0 0.0
        %4816 = vmatprep.subr.mxu0 0.0
        %4817 = vmatpush1.msra.mxu0 0.0
        %4818 = vmatprep.subr.mxu0 0.0
        %4819 = vmatpush1.msra.mxu0 0.0
        %4820 = vmatprep.mubr.f32.mxu0 0.0
        %4821 = vmatmul.mubr.f32.gmra.mrb[0].mxu0 %v4727
        %v4822 = vpop.f32.mrb[0].mxu0
        %v4823 = vadd.f32 %v4678, %v4822
        %v4824 = vpop.f32.mrb[0].mxu0
        %4825 = vmatprep.mubr.f32.mxu0 0.0
        %4826 = vmatmul.mubr.f32.gmra.mrb[0].mxu0 %v4730
        %v4827 = vpop.f32.mrb[0].mxu0
        %v4828 = vadd.f32 %v4683, %v4827
        %v4829 = vpop.f32.mrb[0].mxu0
        %4830 = vmatprep.mubr.f32.mxu0 0.0
        %4831 = vmatmul.mubr.f32.gmra.mrb[0].mxu0 %v4733
        %v4832 = vpop.f32.mrb[0].mxu0
        %v4833 = vadd.f32 %v4688, %v4832
        %v4834 = vpop.f32.mrb[0].mxu0
        %4835 = vmatprep.mubr.f32.mxu0 0.0
        %4836 = vmatmul.mubr.f32.gmra.mrb[0].mxu0 %v4736
        %v4837 = vpop.f32.mrb[0].mxu0
        %v4838 = vadd.f32 %v4693, %v4837
        %v4839 = vpop.f32.mrb[0].mxu0
        %4840 = vmatprep.mubr.f32.mxu0 0.0
        %4841 = vmatmul.mubr.f32.gmra.mrb[0].mxu0 %v4739
        %v4842 = vpop.f32.mrb[0].mxu0
        %v4843 = vadd.f32 %v4698, %v4842
        %v4844 = vpop.f32.mrb[0].mxu0
        %4845 = vmatprep.mubr.f32.mxu0 0.0
        %4846 = vmatmul.mubr.f32.gmra.mrb[0].mxu0 %v4742
        %v4847 = vpop.f32.mrb[0].mxu0
        %v4848 = vadd.f32 %v4703, %v4847
        %v4849 = vpop.f32.mrb[0].mxu0
        %4850 = vmatprep.mubr.f32.mxu0 0.0
        %4851 = vmatmul.mubr.f32.gmra.mrb[0].mxu0 %v4745
        %v4852 = vpop.f32.mrb[0].mxu0
        %v4853 = vadd.f32 %v4708, %v4852
        %v4854 = vpop.f32.mrb[0].mxu0
        %4855 = vmatprep.mubr.f32.mxu0 0.0
        %4856 = vmatmul.mubr.f32.gmra.mrb[0].mxu0 %v4748
        %v4857 = vpop.f32.mrb[0].mxu0
        %v4858 = vadd.f32 %v4713, %v4857
        %v4859 = vpop.f32.mrb[0].mxu0
        %4860 = vmatprep.mubr.f32.mxu0 0.0
        %4861 = vmatmul.mubr.f32.gmra.mrb[0].mxu0 %v4751
        %v4862 = vpop.f32.mrb[0].mxu0
        %v4863 = vadd.f32 %v4718, %v4862
        %v4864 = vpop.f32.mrb[0].mxu0
        %4865 = vmatprep.mubr.f32.mxu0 0.0
        %4866 = vmatmul.mubr.f32.gmra.mrb[0].mxu0 %v4754
        %v4867 = vpop.f32.mrb[0].mxu0
        %v4868 = vadd.f32 %v4723, %v4867
        %v4869 = vpop.f32.mrb[0].mxu0
        %4870 = vdwg.mxu0
        %v4871 = vld [vmem:[#allocation4 + $0xb] sm:$0xff]
        %v4872 = vld [vmem:[#allocation4 + $0x13] sm:$0xff]
        %v4873 = vld [vmem:[#allocation4 + $0x1b] sm:$0xff]
        %v4874 = vld [vmem:[#allocation4 + $0x23] sm:$0xff]
        %v4875 = vld [vmem:[#allocation4 + $0x2b] sm:$0xff]
        %v4876 = vld [vmem:[#allocation4 + $0x33] sm:$0xff]
        %v4877 = vld [vmem:[#allocation4 + $0x3b] sm:$0xff]
        %v4878 = vld [vmem:[#allocation4 + $0x43] sm:$0xff]
        %v4879 = vld [vmem:[#allocation4 + $0x4b] sm:$0xff]
        %v4880 = vld [vmem:[#allocation4 + $0x53] sm:$0xff]
        %s4881 = scalar_lea.vmem %s3, 16
        %v4882 = vld [vmem:[%s4881] sm:$0xff]
        %v4884 = vsel %vm416, %v4871, 0
        %v4887 = vsel %vm416, %v4872, 0
        %v4890 = vsel %vm416, %v4873, 0
        %v4893 = vsel %vm416, %v4874, 0
        %v4896 = vsel %vm416, %v4875, 0
        %v4899 = vsel %vm416, %v4876, 0
        %v4902 = vsel %vm416, %v4877, 0
        %v4905 = vsel %vm416, %v4878, 0
        %v4908 = vsel %vm416, %v4879, 0
        %v4911 = vsel %vm416, %v4880, 0
        %4913 = vmatprep.subr.mxu0 0.0
        %4914 = vmatpush1.msra.mxu0 %v4882
        %4915 = vmatprep.subr.mxu0 0.0
        %4916 = vmatpush1.msra.mxu0 0.0
        %4917 = vmatprep.subr.mxu0 0.0
        %4918 = vmatpush1.msra.mxu0 0.0
        %4919 = vmatprep.subr.mxu0 0.0
        %4920 = vmatpush1.msra.mxu0 0.0
        %4921 = vmatprep.subr.mxu0 0.0
        %4922 = vmatpush1.msra.mxu0 0.0
        %4923 = vmatprep.subr.mxu0 0.0
        %4924 = vmatpush1.msra.mxu0 0.0
        %4925 = vmatprep.subr.mxu0 0.0
        %4926 = vmatpush1.msra.mxu0 0.0
        %4927 = vmatprep.subr.mxu0 0.0
        %4928 = vmatpush1.msra.mxu0 0.0
        %4929 = vmatprep.subr.mxu0 0.0
        %4930 = vmatpush1.msra.mxu0 0.0
        %4931 = vmatprep.subr.mxu0 0.0
        %4932 = vmatpush1.msra.mxu0 0.0
        %4933 = vmatprep.subr.mxu0 0.0
        %4934 = vmatpush1.msra.mxu0 0.0
        %4935 = vmatprep.subr.mxu0 0.0
        %4936 = vmatpush1.msra.mxu0 0.0
        %4937 = vmatprep.subr.mxu0 0.0
        %4938 = vmatpush1.msra.mxu0 0.0
        %4939 = vmatprep.subr.mxu0 0.0
        %4940 = vmatpush1.msra.mxu0 0.0
        %4941 = vmatprep.subr.mxu0 0.0
        %4942 = vmatpush1.msra.mxu0 0.0
        %4943 = vmatprep.subr.mxu0 0.0
        %4944 = vmatpush1.msra.mxu0 0.0
        %4945 = vmatprep.subr.mxu0 0.0
        %4946 = vmatpush1.msra.mxu0 0.0
        %4947 = vmatprep.subr.mxu0 0.0
        %4948 = vmatpush1.msra.mxu0 0.0
        %4949 = vmatprep.subr.mxu0 0.0
        %4950 = vmatpush1.msra.mxu0 0.0
        %4951 = vmatprep.subr.mxu0 0.0
        %4952 = vmatpush1.msra.mxu0 0.0
        %4953 = vmatprep.subr.mxu0 0.0
        %4954 = vmatpush1.msra.mxu0 0.0
        %4955 = vmatprep.subr.mxu0 0.0
        %4956 = vmatpush1.msra.mxu0 0.0
        %4957 = vmatprep.subr.mxu0 0.0
        %4958 = vmatpush1.msra.mxu0 0.0
        %4959 = vmatprep.subr.mxu0 0.0
        %4960 = vmatpush1.msra.mxu0 0.0
        %4961 = vmatprep.subr.mxu0 0.0
        %4962 = vmatpush1.msra.mxu0 0.0
        %4963 = vmatprep.subr.mxu0 0.0
        %4964 = vmatpush1.msra.mxu0 0.0
        %4965 = vmatprep.subr.mxu0 0.0
        %4966 = vmatpush1.msra.mxu0 0.0
        %4967 = vmatprep.subr.mxu0 0.0
        %4968 = vmatpush1.msra.mxu0 0.0
        %4969 = vmatprep.subr.mxu0 0.0
        %4970 = vmatpush1.msra.mxu0 0.0
        %4971 = vmatprep.subr.mxu0 0.0
        %4972 = vmatpush1.msra.mxu0 0.0
        %4973 = vmatprep.subr.mxu0 0.0
        %4974 = vmatpush1.msra.mxu0 0.0
        %4975 = vmatprep.subr.mxu0 0.0
        %4976 = vmatpush1.msra.mxu0 0.0
        %4977 = vmatprep.mubr.f32.mxu0 0.0
        %4978 = vmatmul.mubr.f32.gmra.mrb[0].mxu0 %v4884
        %v4979 = vpop.f32.mrb[0].mxu0
        %v4980 = vadd.f32 0.0, %v4979
        %v4981 = vpop.f32.mrb[0].mxu0
        %4982 = vmatprep.mubr.f32.mxu0 0.0
        %4983 = vmatmul.mubr.f32.gmra.mrb[0].mxu0 %v4887
        %v4984 = vpop.f32.mrb[0].mxu0
        %v4985 = vadd.f32 0.0, %v4984
        %v4986 = vpop.f32.mrb[0].mxu0
        %4987 = vmatprep.mubr.f32.mxu0 0.0
        %4988 = vmatmul.mubr.f32.gmra.mrb[0].mxu0 %v4890
        %v4989 = vpop.f32.mrb[0].mxu0
        %v4990 = vadd.f32 0.0, %v4989
        %v4991 = vpop.f32.mrb[0].mxu0
        %4992 = vmatprep.mubr.f32.mxu0 0.0
        %4993 = vmatmul.mubr.f32.gmra.mrb[0].mxu0 %v4893
        %v4994 = vpop.f32.mrb[0].mxu0
        %v4995 = vadd.f32 0.0, %v4994
        %v4996 = vpop.f32.mrb[0].mxu0
        %4997 = vmatprep.mubr.f32.mxu0 0.0
        %4998 = vmatmul.mubr.f32.gmra.mrb[0].mxu0 %v4896
        %v4999 = vpop.f32.mrb[0].mxu0
        %v5000 = vadd.f32 0.0, %v4999
        %v5001 = vpop.f32.mrb[0].mxu0
        %5002 = vmatprep.mubr.f32.mxu0 0.0
        %5003 = vmatmul.mubr.f32.gmra.mrb[0].mxu0 %v4899
        %v5004 = vpop.f32.mrb[0].mxu0
        %v5005 = vadd.f32 0.0, %v5004
        %v5006 = vpop.f32.mrb[0].mxu0
        %5007 = vmatprep.mubr.f32.mxu0 0.0
        %5008 = vmatmul.mubr.f32.gmra.mrb[0].mxu0 %v4902
        %v5009 = vpop.f32.mrb[0].mxu0
        %v5010 = vadd.f32 0.0, %v5009
        %v5011 = vpop.f32.mrb[0].mxu0
        %5012 = vmatprep.mubr.f32.mxu0 0.0
        %5013 = vmatmul.mubr.f32.gmra.mrb[0].mxu0 %v4905
        %v5014 = vpop.f32.mrb[0].mxu0
        %v5015 = vadd.f32 0.0, %v5014
        %v5016 = vpop.f32.mrb[0].mxu0
        %5017 = vmatprep.mubr.f32.mxu0 0.0
        %5018 = vmatmul.mubr.f32.gmra.mrb[0].mxu0 %v4908
        %v5019 = vpop.f32.mrb[0].mxu0
        %v5020 = vadd.f32 0.0, %v5019
        %v5021 = vpop.f32.mrb[0].mxu0
        %5022 = vmatprep.mubr.f32.mxu0 0.0
        %5023 = vmatmul.mubr.f32.gmra.mrb[0].mxu0 %v4911
        %v5024 = vpop.f32.mrb[0].mxu0
        %v5025 = vadd.f32 0.0, %v5024
        %v5026 = vpop.f32.mrb[0].mxu0
        %5027 = vdwg.mxu0
        %v5028 = vadd.f32 %v4823, %v4980
        %v5029 = vadd.f32 %v4828, %v4985
        %v5030 = vadd.f32 %v4833, %v4990
        %v5031 = vadd.f32 %v4838, %v4995
        %v5032 = vadd.f32 %v4843, %v5000
        %v5033 = vadd.f32 %v4848, %v5005
        %v5034 = vadd.f32 %v4853, %v5010
        %v5035 = vadd.f32 %v4858, %v5015
        %v5036 = vadd.f32 %v4863, %v5020
        %v5037 = vadd.f32 %v4868, %v5025
        %v5038 = vld [vmem:[#allocation4 + $0x13] sm:$0xff]
        %v5039 = vld [vmem:[#allocation4 + $0x1b] sm:$0xff]
        %v5040 = vld [vmem:[#allocation4 + $0x23] sm:$0xff]
        %v5041 = vld [vmem:[#allocation4 + $0x2b] sm:$0xff]
        %v5042 = vld [vmem:[#allocation4 + $0x33] sm:$0xff]
        %v5043 = vld [vmem:[#allocation4 + $0x3b] sm:$0xff]
        %v5044 = vld [vmem:[#allocation4 + $0x43] sm:$0xff]
        %v5045 = vld [vmem:[#allocation4 + $0x4b] sm:$0xff]
        %v5046 = vld [vmem:[#allocation4 + $0x53] sm:$0xff]
        %v5047 = vld [vmem:[#allocation4 + $0x5b] sm:$0xff]
        %s5048 = scalar_lea.vmem %s3, 24
        %v5049 = vld [vmem:[%s5048] sm:$0xff]
        %v5051 = vsel %vm416, %v5038, 0
        %v5054 = vsel %vm416, %v5039, 0
        %v5057 = vsel %vm416, %v5040, 0
        %v5060 = vsel %vm416, %v5041, 0
        %v5063 = vsel %vm416, %v5042, 0
        %v5066 = vsel %vm416, %v5043, 0
        %v5069 = vsel %vm416, %v5044, 0
        %v5072 = vsel %vm416, %v5045, 0
        %v5075 = vsel %vm416, %v5046, 0
        %v5078 = vsel %vm416, %v5047, 0
        %5080 = vmatprep.subr.mxu0 0.0
        %5081 = vmatpush1.msra.mxu0 %v5049
        %5082 = vmatprep.subr.mxu0 0.0
        %5083 = vmatpush1.msra.mxu0 0.0
        %5084 = vmatprep.subr.mxu0 0.0
        %5085 = vmatpush1.msra.mxu0 0.0
        %5086 = vmatprep.subr.mxu0 0.0
        %5087 = vmatpush1.msra.mxu0 0.0
        %5088 = vmatprep.subr.mxu0 0.0
        %5089 = vmatpush1.msra.mxu0 0.0
        %5090 = vmatprep.subr.mxu0 0.0
        %5091 = vmatpush1.msra.mxu0 0.0
        %5092 = vmatprep.subr.mxu0 0.0
        %5093 = vmatpush1.msra.mxu0 0.0
        %5094 = vmatprep.subr.mxu0 0.0
        %5095 = vmatpush1.msra.mxu0 0.0
        %5096 = vmatprep.subr.mxu0 0.0
        %5097 = vmatpush1.msra.mxu0 0.0
        %5098 = vmatprep.subr.mxu0 0.0
        %5099 = vmatpush1.msra.mxu0 0.0
        %5100 = vmatprep.subr.mxu0 0.0
        %5101 = vmatpush1.msra.mxu0 0.0
        %5102 = vmatprep.subr.mxu0 0.0
        %5103 = vmatpush1.msra.mxu0 0.0
        %5104 = vmatprep.subr.mxu0 0.0
        %5105 = vmatpush1.msra.mxu0 0.0
        %5106 = vmatprep.subr.mxu0 0.0
        %5107 = vmatpush1.msra.mxu0 0.0
        %5108 = vmatprep.subr.mxu0 0.0
        %5109 = vmatpush1.msra.mxu0 0.0
        %5110 = vmatprep.subr.mxu0 0.0
        %5111 = vmatpush1.msra.mxu0 0.0
        %5112 = vmatprep.subr.mxu0 0.0
        %5113 = vmatpush1.msra.mxu0 0.0
        %5114 = vmatprep.subr.mxu0 0.0
        %5115 = vmatpush1.msra.mxu0 0.0
        %5116 = vmatprep.subr.mxu0 0.0
        %5117 = vmatpush1.msra.mxu0 0.0
        %5118 = vmatprep.subr.mxu0 0.0
        %5119 = vmatpush1.msra.mxu0 0.0
        %5120 = vmatprep.subr.mxu0 0.0
        %5121 = vmatpush1.msra.mxu0 0.0
        %5122 = vmatprep.subr.mxu0 0.0
        %5123 = vmatpush1.msra.mxu0 0.0
        %5124 = vmatprep.subr.mxu0 0.0
        %5125 = vmatpush1.msra.mxu0 0.0
        %5126 = vmatprep.subr.mxu0 0.0
        %5127 = vmatpush1.msra.mxu0 0.0
        %5128 = vmatprep.subr.mxu0 0.0
        %5129 = vmatpush1.msra.mxu0 0.0
        %5130 = vmatprep.subr.mxu0 0.0
        %5131 = vmatpush1.msra.mxu0 0.0
        %5132 = vmatprep.subr.mxu0 0.0
        %5133 = vmatpush1.msra.mxu0 0.0
        %5134 = vmatprep.subr.mxu0 0.0
        %5135 = vmatpush1.msra.mxu0 0.0
        %5136 = vmatprep.subr.mxu0 0.0
        %5137 = vmatpush1.msra.mxu0 0.0
        %5138 = vmatprep.subr.mxu0 0.0
        %5139 = vmatpush1.msra.mxu0 0.0
        %5140 = vmatprep.subr.mxu0 0.0
        %5141 = vmatpush1.msra.mxu0 0.0
        %5142 = vmatprep.subr.mxu0 0.0
        %5143 = vmatpush1.msra.mxu0 0.0
        %5144 = vmatprep.mubr.f32.mxu0 0.0
        %5145 = vmatmul.mubr.f32.gmra.mrb[0].mxu0 %v5051
        %v5146 = vpop.f32.mrb[0].mxu0
        %v5147 = vadd.f32 0.0, %v5146
        %v5148 = vpop.f32.mrb[0].mxu0
        %5149 = vmatprep.mubr.f32.mxu0 0.0
        %5150 = vmatmul.mubr.f32.gmra.mrb[0].mxu0 %v5054
        %v5151 = vpop.f32.mrb[0].mxu0
        %v5152 = vadd.f32 0.0, %v5151
        %v5153 = vpop.f32.mrb[0].mxu0
        %5154 = vmatprep.mubr.f32.mxu0 0.0
        %5155 = vmatmul.mubr.f32.gmra.mrb[0].mxu0 %v5057
        %v5156 = vpop.f32.mrb[0].mxu0
        %v5157 = vadd.f32 0.0, %v5156
        %v5158 = vpop.f32.mrb[0].mxu0
        %5159 = vmatprep.mubr.f32.mxu0 0.0
        %5160 = vmatmul.mubr.f32.gmra.mrb[0].mxu0 %v5060
        %v5161 = vpop.f32.mrb[0].mxu0
        %v5162 = vadd.f32 0.0, %v5161
        %v5163 = vpop.f32.mrb[0].mxu0
        %5164 = vmatprep.mubr.f32.mxu0 0.0
        %5165 = vmatmul.mubr.f32.gmra.mrb[0].mxu0 %v5063
        %v5166 = vpop.f32.mrb[0].mxu0
        %v5167 = vadd.f32 0.0, %v5166
        %v5168 = vpop.f32.mrb[0].mxu0
        %5169 = vmatprep.mubr.f32.mxu0 0.0
        %5170 = vmatmul.mubr.f32.gmra.mrb[0].mxu0 %v5066
        %v5171 = vpop.f32.mrb[0].mxu0
        %v5172 = vadd.f32 0.0, %v5171
        %v5173 = vpop.f32.mrb[0].mxu0
        %5174 = vmatprep.mubr.f32.mxu0 0.0
        %5175 = vmatmul.mubr.f32.gmra.mrb[0].mxu0 %v5069
        %v5176 = vpop.f32.mrb[0].mxu0
        %v5177 = vadd.f32 0.0, %v5176
        %v5178 = vpop.f32.mrb[0].mxu0
        %5179 = vmatprep.mubr.f32.mxu0 0.0
        %5180 = vmatmul.mubr.f32.gmra.mrb[0].mxu0 %v5072
        %v5181 = vpop.f32.mrb[0].mxu0
        %v5182 = vadd.f32 0.0, %v5181
        %v5183 = vpop.f32.mrb[0].mxu0
        %5184 = vmatprep.mubr.f32.mxu0 0.0
        %5185 = vmatmul.mubr.f32.gmra.mrb[0].mxu0 %v5075
        %v5186 = vpop.f32.mrb[0].mxu0
        %v5187 = vadd.f32 0.0, %v5186
        %v5188 = vpop.f32.mrb[0].mxu0
        %5189 = vmatprep.mubr.f32.mxu0 0.0
        %5190 = vmatmul.mubr.f32.gmra.mrb[0].mxu0 %v5078
        %v5191 = vpop.f32.mrb[0].mxu0
        %v5192 = vadd.f32 0.0, %v5191
        %v5193 = vpop.f32.mrb[0].mxu0
        %5194 = vdwg.mxu0
        %v5195 = vadd.f32 %v5028, %v5147
        %v5196 = vadd.f32 %v5029, %v5152
        %v5197 = vadd.f32 %v5030, %v5157
        %v5198 = vadd.f32 %v5031, %v5162
        %v5199 = vadd.f32 %v5032, %v5167
        %v5200 = vadd.f32 %v5033, %v5172
        %v5201 = vadd.f32 %v5034, %v5177
        %v5202 = vadd.f32 %v5035, %v5182
        %v5203 = vadd.f32 %v5036, %v5187
        %v5204 = vadd.f32 %v5037, %v5192
        %v5205 = vld [vmem:[#allocation4 + $0x14] sm:$0xff]
        %v5206 = vld [vmem:[#allocation4 + $0x1c] sm:$0xff]
        %v5207 = vld [vmem:[#allocation4 + $0x24] sm:$0xff]
        %v5208 = vld [vmem:[#allocation4 + $0x2c] sm:$0xff]
        %v5209 = vld [vmem:[#allocation4 + $0x34] sm:$0xff]
        %v5210 = vld [vmem:[#allocation4 + $0x3c] sm:$0xff]
        %v5211 = vld [vmem:[#allocation4 + $0x44] sm:$0xff]
        %v5212 = vld [vmem:[#allocation4 + $0x4c] sm:$0xff]
        %v5213 = vld [vmem:[#allocation4 + $0x54] sm:$0xff]
        %v5214 = vld [vmem:[#allocation4 + $0x5c] sm:$0xff]
        %s5215 = scalar_lea.vmem %s3, 32
        %v5216 = vld [vmem:[%s5215] sm:$0xff]
        %v5218 = vsel %vm416, %v5205, 0
        %v5221 = vsel %vm416, %v5206, 0
        %v5224 = vsel %vm416, %v5207, 0
        %v5227 = vsel %vm416, %v5208, 0
        %v5230 = vsel %vm416, %v5209, 0
        %v5233 = vsel %vm416, %v5210, 0
        %v5236 = vsel %vm416, %v5211, 0
        %v5239 = vsel %vm416, %v5212, 0
        %v5242 = vsel %vm416, %v5213, 0
        %v5245 = vsel %vm416, %v5214, 0
        %5247 = vmatprep.subr.mxu0 0.0
        %5248 = vmatpush1.msra.mxu0 %v5216
        %5249 = vmatprep.subr.mxu0 0.0
        %5250 = vmatpush1.msra.mxu0 0.0
        %5251 = vmatprep.subr.mxu0 0.0
        %5252 = vmatpush1.msra.mxu0 0.0
        %5253 = vmatprep.subr.mxu0 0.0
        %5254 = vmatpush1.msra.mxu0 0.0
        %5255 = vmatprep.subr.mxu0 0.0
        %5256 = vmatpush1.msra.mxu0 0.0
        %5257 = vmatprep.subr.mxu0 0.0
        %5258 = vmatpush1.msra.mxu0 0.0
        %5259 = vmatprep.subr.mxu0 0.0
        %5260 = vmatpush1.msra.mxu0 0.0
        %5261 = vmatprep.subr.mxu0 0.0
        %5262 = vmatpush1.msra.mxu0 0.0
        %5263 = vmatprep.subr.mxu0 0.0
        %5264 = vmatpush1.msra.mxu0 0.0
        %5265 = vmatprep.subr.mxu0 0.0
        %5266 = vmatpush1.msra.mxu0 0.0
        %5267 = vmatprep.subr.mxu0 0.0
        %5268 = vmatpush1.msra.mxu0 0.0
        %5269 = vmatprep.subr.mxu0 0.0
        %5270 = vmatpush1.msra.mxu0 0.0
        %5271 = vmatprep.subr.mxu0 0.0
        %5272 = vmatpush1.msra.mxu0 0.0
        %5273 = vmatprep.subr.mxu0 0.0
        %5274 = vmatpush1.msra.mxu0 0.0
        %5275 = vmatprep.subr.mxu0 0.0
        %5276 = vmatpush1.msra.mxu0 0.0
        %5277 = vmatprep.subr.mxu0 0.0
        %5278 = vmatpush1.msra.mxu0 0.0
        %5279 = vmatprep.subr.mxu0 0.0
        %5280 = vmatpush1.msra.mxu0 0.0
        %5281 = vmatprep.subr.mxu0 0.0
        %5282 = vmatpush1.msra.mxu0 0.0
        %5283 = vmatprep.subr.mxu0 0.0
        %5284 = vmatpush1.msra.mxu0 0.0
        %5285 = vmatprep.subr.mxu0 0.0
        %5286 = vmatpush1.msra.mxu0 0.0
        %5287 = vmatprep.subr.mxu0 0.0
        %5288 = vmatpush1.msra.mxu0 0.0
        %5289 = vmatprep.subr.mxu0 0.0
        %5290 = vmatpush1.msra.mxu0 0.0
        %5291 = vmatprep.subr.mxu0 0.0
        %5292 = vmatpush1.msra.mxu0 0.0
        %5293 = vmatprep.subr.mxu0 0.0
        %5294 = vmatpush1.msra.mxu0 0.0
        %5295 = vmatprep.subr.mxu0 0.0
        %5296 = vmatpush1.msra.mxu0 0.0
        %5297 = vmatprep.subr.mxu0 0.0
        %5298 = vmatpush1.msra.mxu0 0.0
        %5299 = vmatprep.subr.mxu0 0.0
        %5300 = vmatpush1.msra.mxu0 0.0
        %5301 = vmatprep.subr.mxu0 0.0
        %5302 = vmatpush1.msra.mxu0 0.0
        %5303 = vmatprep.subr.mxu0 0.0
        %5304 = vmatpush1.msra.mxu0 0.0
        %5305 = vmatprep.subr.mxu0 0.0
        %5306 = vmatpush1.msra.mxu0 0.0
        %5307 = vmatprep.subr.mxu0 0.0
        %5308 = vmatpush1.msra.mxu0 0.0
        %5309 = vmatprep.subr.mxu0 0.0
        %5310 = vmatpush1.msra.mxu0 0.0
        %5311 = vmatprep.mubr.f32.mxu0 0.0
        %5312 = vmatmul.mubr.f32.gmra.mrb[0].mxu0 %v5218
        %v5313 = vpop.f32.mrb[0].mxu0
        %v5314 = vadd.f32 0.0, %v5313
        %v5315 = vpop.f32.mrb[0].mxu0
        %5316 = vmatprep.mubr.f32.mxu0 0.0
        %5317 = vmatmul.mubr.f32.gmra.mrb[0].mxu0 %v5221
        %v5318 = vpop.f32.mrb[0].mxu0
        %v5319 = vadd.f32 0.0, %v5318
        %v5320 = vpop.f32.mrb[0].mxu0
        %5321 = vmatprep.mubr.f32.mxu0 0.0
        %5322 = vmatmul.mubr.f32.gmra.mrb[0].mxu0 %v5224
        %v5323 = vpop.f32.mrb[0].mxu0
        %v5324 = vadd.f32 0.0, %v5323
        %v5325 = vpop.f32.mrb[0].mxu0
        %5326 = vmatprep.mubr.f32.mxu0 0.0
        %5327 = vmatmul.mubr.f32.gmra.mrb[0].mxu0 %v5227
        %v5328 = vpop.f32.mrb[0].mxu0
        %v5329 = vadd.f32 0.0, %v5328
        %v5330 = vpop.f32.mrb[0].mxu0
        %5331 = vmatprep.mubr.f32.mxu0 0.0
        %5332 = vmatmul.mubr.f32.gmra.mrb[0].mxu0 %v5230
        %v5333 = vpop.f32.mrb[0].mxu0
        %v5334 = vadd.f32 0.0, %v5333
        %v5335 = vpop.f32.mrb[0].mxu0
        %5336 = vmatprep.mubr.f32.mxu0 0.0
        %5337 = vmatmul.mubr.f32.gmra.mrb[0].mxu0 %v5233
        %v5338 = vpop.f32.mrb[0].mxu0
        %v5339 = vadd.f32 0.0, %v5338
        %v5340 = vpop.f32.mrb[0].mxu0
        %5341 = vmatprep.mubr.f32.mxu0 0.0
        %5342 = vmatmul.mubr.f32.gmra.mrb[0].mxu0 %v5236
        %v5343 = vpop.f32.mrb[0].mxu0
        %v5344 = vadd.f32 0.0, %v5343
        %v5345 = vpop.f32.mrb[0].mxu0
        %5346 = vmatprep.mubr.f32.mxu0 0.0
        %5347 = vmatmul.mubr.f32.gmra.mrb[0].mxu0 %v5239
        %v5348 = vpop.f32.mrb[0].mxu0
        %v5349 = vadd.f32 0.0, %v5348
        %v5350 = vpop.f32.mrb[0].mxu0
        %5351 = vmatprep.mubr.f32.mxu0 0.0
        %5352 = vmatmul.mubr.f32.gmra.mrb[0].mxu0 %v5242
        %v5353 = vpop.f32.mrb[0].mxu0
        %v5354 = vadd.f32 0.0, %v5353
        %v5355 = vpop.f32.mrb[0].mxu0
        %5356 = vmatprep.mubr.f32.mxu0 0.0
        %5357 = vmatmul.mubr.f32.gmra.mrb[0].mxu0 %v5245
        %v5358 = vpop.f32.mrb[0].mxu0
        %v5359 = vadd.f32 0.0, %v5358
        %v5360 = vpop.f32.mrb[0].mxu0
        %5361 = vdwg.mxu0
        %v5362 = vadd.f32 %v5195, %v5314
        %v5363 = vadd.f32 %v5196, %v5319
        %v5364 = vadd.f32 %v5197, %v5324
        %v5365 = vadd.f32 %v5198, %v5329
        %v5366 = vadd.f32 %v5199, %v5334
        %v5367 = vadd.f32 %v5200, %v5339
        %v5368 = vadd.f32 %v5201, %v5344
        %v5369 = vadd.f32 %v5202, %v5349
        %v5370 = vadd.f32 %v5203, %v5354
        %v5371 = vadd.f32 %v5204, %v5359
        %v5372 = vld [vmem:[#allocation4 + $0x15] sm:$0xff]
        %v5373 = vld [vmem:[#allocation4 + $0x1d] sm:$0xff]
        %v5374 = vld [vmem:[#allocation4 + $0x25] sm:$0xff]
        %v5375 = vld [vmem:[#allocation4 + $0x2d] sm:$0xff]
        %v5376 = vld [vmem:[#allocation4 + $0x35] sm:$0xff]
        %v5377 = vld [vmem:[#allocation4 + $0x3d] sm:$0xff]
        %v5378 = vld [vmem:[#allocation4 + $0x45] sm:$0xff]
        %v5379 = vld [vmem:[#allocation4 + $0x4d] sm:$0xff]
        %v5380 = vld [vmem:[#allocation4 + $0x55] sm:$0xff]
        %v5381 = vld [vmem:[#allocation4 + $0x5d] sm:$0xff]
        %s5382 = scalar_lea.vmem %s3, 40
        %v5383 = vld [vmem:[%s5382] sm:$0xff]
        %v5385 = vsel %vm416, %v5372, 0
        %v5388 = vsel %vm416, %v5373, 0
        %v5391 = vsel %vm416, %v5374, 0
        %v5394 = vsel %vm416, %v5375, 0
        %v5397 = vsel %vm416, %v5376, 0
        %v5400 = vsel %vm416, %v5377, 0
        %v5403 = vsel %vm416, %v5378, 0
        %v5406 = vsel %vm416, %v5379, 0
        %v5409 = vsel %vm416, %v5380, 0
        %v5412 = vsel %vm416, %v5381, 0
        %5414 = vmatprep.subr.mxu0 0.0
        %5415 = vmatpush1.msra.mxu0 %v5383
        %5416 = vmatprep.subr.mxu0 0.0
        %5417 = vmatpush1.msra.mxu0 0.0
        %5418 = vmatprep.subr.mxu0 0.0
        %5419 = vmatpush1.msra.mxu0 0.0
        %5420 = vmatprep.subr.mxu0 0.0
        %5421 = vmatpush1.msra.mxu0 0.0
        %5422 = vmatprep.subr.mxu0 0.0
        %5423 = vmatpush1.msra.mxu0 0.0
        %5424 = vmatprep.subr.mxu0 0.0
        %5425 = vmatpush1.msra.mxu0 0.0
        %5426 = vmatprep.subr.mxu0 0.0
        %5427 = vmatpush1.msra.mxu0 0.0
        %5428 = vmatprep.subr.mxu0 0.0
        %5429 = vmatpush1.msra.mxu0 0.0
        %5430 = vmatprep.subr.mxu0 0.0
        %5431 = vmatpush1.msra.mxu0 0.0
        %5432 = vmatprep.subr.mxu0 0.0
        %5433 = vmatpush1.msra.mxu0 0.0
        %5434 = vmatprep.subr.mxu0 0.0
        %5435 = vmatpush1.msra.mxu0 0.0
        %5436 = vmatprep.subr.mxu0 0.0
        %5437 = vmatpush1.msra.mxu0 0.0
        %5438 = vmatprep.subr.mxu0 0.0
        %5439 = vmatpush1.msra.mxu0 0.0
        %5440 = vmatprep.subr.mxu0 0.0
        %5441 = vmatpush1.msra.mxu0 0.0
        %5442 = vmatprep.subr.mxu0 0.0
        %5443 = vmatpush1.msra.mxu0 0.0
        %5444 = vmatprep.subr.mxu0 0.0
        %5445 = vmatpush1.msra.mxu0 0.0
        %5446 = vmatprep.subr.mxu0 0.0
        %5447 = vmatpush1.msra.mxu0 0.0
        %5448 = vmatprep.subr.mxu0 0.0
        %5449 = vmatpush1.msra.mxu0 0.0
        %5450 = vmatprep.subr.mxu0 0.0
        %5451 = vmatpush1.msra.mxu0 0.0
        %5452 = vmatprep.subr.mxu0 0.0
        %5453 = vmatpush1.msra.mxu0 0.0
        %5454 = vmatprep.subr.mxu0 0.0
        %5455 = vmatpush1.msra.mxu0 0.0
        %5456 = vmatprep.subr.mxu0 0.0
        %5457 = vmatpush1.msra.mxu0 0.0
        %5458 = vmatprep.subr.mxu0 0.0
        %5459 = vmatpush1.msra.mxu0 0.0
        %5460 = vmatprep.subr.mxu0 0.0
        %5461 = vmatpush1.msra.mxu0 0.0
        %5462 = vmatprep.subr.mxu0 0.0
        %5463 = vmatpush1.msra.mxu0 0.0
        %5464 = vmatprep.subr.mxu0 0.0
        %5465 = vmatpush1.msra.mxu0 0.0
        %5466 = vmatprep.subr.mxu0 0.0
        %5467 = vmatpush1.msra.mxu0 0.0
        %5468 = vmatprep.subr.mxu0 0.0
        %5469 = vmatpush1.msra.mxu0 0.0
        %5470 = vmatprep.subr.mxu0 0.0
        %5471 = vmatpush1.msra.mxu0 0.0
        %5472 = vmatprep.subr.mxu0 0.0
        %5473 = vmatpush1.msra.mxu0 0.0
        %5474 = vmatprep.subr.mxu0 0.0
        %5475 = vmatpush1.msra.mxu0 0.0
        %5476 = vmatprep.subr.mxu0 0.0
        %5477 = vmatpush1.msra.mxu0 0.0
        %5478 = vmatprep.mubr.f32.mxu0 0.0
        %5479 = vmatmul.mubr.f32.gmra.mrb[0].mxu0 %v5385
        %v5480 = vpop.f32.mrb[0].mxu0
        %v5481 = vadd.f32 0.0, %v5480
        %v5482 = vpop.f32.mrb[0].mxu0
        %5483 = vmatprep.mubr.f32.mxu0 0.0
        %5484 = vmatmul.mubr.f32.gmra.mrb[0].mxu0 %v5388
        %v5485 = vpop.f32.mrb[0].mxu0
        %v5486 = vadd.f32 0.0, %v5485
        %v5487 = vpop.f32.mrb[0].mxu0
        %5488 = vmatprep.mubr.f32.mxu0 0.0
        %5489 = vmatmul.mubr.f32.gmra.mrb[0].mxu0 %v5391
        %v5490 = vpop.f32.mrb[0].mxu0
        %v5491 = vadd.f32 0.0, %v5490
        %v5492 = vpop.f32.mrb[0].mxu0
        %5493 = vmatprep.mubr.f32.mxu0 0.0
        %5494 = vmatmul.mubr.f32.gmra.mrb[0].mxu0 %v5394
        %v5495 = vpop.f32.mrb[0].mxu0
        %v5496 = vadd.f32 0.0, %v5495
        %v5497 = vpop.f32.mrb[0].mxu0
        %5498 = vmatprep.mubr.f32.mxu0 0.0
        %5499 = vmatmul.mubr.f32.gmra.mrb[0].mxu0 %v5397
        %v5500 = vpop.f32.mrb[0].mxu0
        %v5501 = vadd.f32 0.0, %v5500
        %v5502 = vpop.f32.mrb[0].mxu0
        %5503 = vmatprep.mubr.f32.mxu0 0.0
        %5504 = vmatmul.mubr.f32.gmra.mrb[0].mxu0 %v5400
        %v5505 = vpop.f32.mrb[0].mxu0
        %v5506 = vadd.f32 0.0, %v5505
        %v5507 = vpop.f32.mrb[0].mxu0
        %5508 = vmatprep.mubr.f32.mxu0 0.0
        %5509 = vmatmul.mubr.f32.gmra.mrb[0].mxu0 %v5403
        %v5510 = vpop.f32.mrb[0].mxu0
        %v5511 = vadd.f32 0.0, %v5510
        %v5512 = vpop.f32.mrb[0].mxu0
        %5513 = vmatprep.mubr.f32.mxu0 0.0
        %5514 = vmatmul.mubr.f32.gmra.mrb[0].mxu0 %v5406
        %v5515 = vpop.f32.mrb[0].mxu0
        %v5516 = vadd.f32 0.0, %v5515
        %v5517 = vpop.f32.mrb[0].mxu0
        %5518 = vmatprep.mubr.f32.mxu0 0.0
        %5519 = vmatmul.mubr.f32.gmra.mrb[0].mxu0 %v5409
        %v5520 = vpop.f32.mrb[0].mxu0
        %v5521 = vadd.f32 0.0, %v5520
        %v5522 = vpop.f32.mrb[0].mxu0
        %5523 = vmatprep.mubr.f32.mxu0 0.0
        %5524 = vmatmul.mubr.f32.gmra.mrb[0].mxu0 %v5412
        %v5525 = vpop.f32.mrb[0].mxu0
        %v5526 = vadd.f32 0.0, %v5525
        %v5527 = vpop.f32.mrb[0].mxu0
        %5528 = vdwg.mxu0
        %v5529 = vadd.f32 %v5362, %v5481
        %v5530 = vadd.f32 %v5363, %v5486
        %v5531 = vadd.f32 %v5364, %v5491
        %v5532 = vadd.f32 %v5365, %v5496
        %v5533 = vadd.f32 %v5366, %v5501
        %v5534 = vadd.f32 %v5367, %v5506
        %v5535 = vadd.f32 %v5368, %v5511
        %v5536 = vadd.f32 %v5369, %v5516
        %v5537 = vadd.f32 %v5370, %v5521
        %v5538 = vadd.f32 %v5371, %v5526
        %v5539 = vld [vmem:[#allocation4 + $0x1d] sm:$0xff]
        %v5540 = vld [vmem:[#allocation4 + $0x25] sm:$0xff]
        %v5541 = vld [vmem:[#allocation4 + $0x2d] sm:$0xff]
        %v5542 = vld [vmem:[#allocation4 + $0x35] sm:$0xff]
        %v5543 = vld [vmem:[#allocation4 + $0x3d] sm:$0xff]
        %v5544 = vld [vmem:[#allocation4 + $0x45] sm:$0xff]
        %v5545 = vld [vmem:[#allocation4 + $0x4d] sm:$0xff]
        %v5546 = vld [vmem:[#allocation4 + $0x55] sm:$0xff]
        %v5547 = vld [vmem:[#allocation4 + $0x5d] sm:$0xff]
        %v5548 = vld [vmem:[#allocation4 + $0x65] sm:$0xff]
        %s5549 = scalar_lea.vmem %s3, 48
        %v5550 = vld [vmem:[%s5549] sm:$0xff]
        %v5552 = vsel %vm416, %v5539, 0
        %v5555 = vsel %vm416, %v5540, 0
        %v5558 = vsel %vm416, %v5541, 0
        %v5561 = vsel %vm416, %v5542, 0
        %v5564 = vsel %vm416, %v5543, 0
        %v5567 = vsel %vm416, %v5544, 0
        %v5570 = vsel %vm416, %v5545, 0
        %v5573 = vsel %vm416, %v5546, 0
        %v5576 = vsel %vm416, %v5547, 0
        %v5579 = vsel %vm416, %v5548, 0
        %5581 = vmatprep.subr.mxu0 0.0
        %5582 = vmatpush1.msra.mxu0 %v5550
        %5583 = vmatprep.subr.mxu0 0.0
        %5584 = vmatpush1.msra.mxu0 0.0
        %5585 = vmatprep.subr.mxu0 0.0
        %5586 = vmatpush1.msra.mxu0 0.0
        %5587 = vmatprep.subr.mxu0 0.0
        %5588 = vmatpush1.msra.mxu0 0.0
        %5589 = vmatprep.subr.mxu0 0.0
        %5590 = vmatpush1.msra.mxu0 0.0
        %5591 = vmatprep.subr.mxu0 0.0
        %5592 = vmatpush1.msra.mxu0 0.0
        %5593 = vmatprep.subr.mxu0 0.0
        %5594 = vmatpush1.msra.mxu0 0.0
        %5595 = vmatprep.subr.mxu0 0.0
        %5596 = vmatpush1.msra.mxu0 0.0
        %5597 = vmatprep.subr.mxu0 0.0
        %5598 = vmatpush1.msra.mxu0 0.0
        %5599 = vmatprep.subr.mxu0 0.0
        %5600 = vmatpush1.msra.mxu0 0.0
        %5601 = vmatprep.subr.mxu0 0.0
        %5602 = vmatpush1.msra.mxu0 0.0
        %5603 = vmatprep.subr.mxu0 0.0
        %5604 = vmatpush1.msra.mxu0 0.0
        %5605 = vmatprep.subr.mxu0 0.0
        %5606 = vmatpush1.msra.mxu0 0.0
        %5607 = vmatprep.subr.mxu0 0.0
        %5608 = vmatpush1.msra.mxu0 0.0
        %5609 = vmatprep.subr.mxu0 0.0
        %5610 = vmatpush1.msra.mxu0 0.0
        %5611 = vmatprep.subr.mxu0 0.0
        %5612 = vmatpush1.msra.mxu0 0.0
        %5613 = vmatprep.subr.mxu0 0.0
        %5614 = vmatpush1.msra.mxu0 0.0
        %5615 = vmatprep.subr.mxu0 0.0
        %5616 = vmatpush1.msra.mxu0 0.0
        %5617 = vmatprep.subr.mxu0 0.0
        %5618 = vmatpush1.msra.mxu0 0.0
        %5619 = vmatprep.subr.mxu0 0.0
        %5620 = vmatpush1.msra.mxu0 0.0
        %5621 = vmatprep.subr.mxu0 0.0
        %5622 = vmatpush1.msra.mxu0 0.0
        %5623 = vmatprep.subr.mxu0 0.0
        %5624 = vmatpush1.msra.mxu0 0.0
        %5625 = vmatprep.subr.mxu0 0.0
        %5626 = vmatpush1.msra.mxu0 0.0
        %5627 = vmatprep.subr.mxu0 0.0
        %5628 = vmatpush1.msra.mxu0 0.0
        %5629 = vmatprep.subr.mxu0 0.0
        %5630 = vmatpush1.msra.mxu0 0.0
        %5631 = vmatprep.subr.mxu0 0.0
        %5632 = vmatpush1.msra.mxu0 0.0
        %5633 = vmatprep.subr.mxu0 0.0
        %5634 = vmatpush1.msra.mxu0 0.0
        %5635 = vmatprep.subr.mxu0 0.0
        %5636 = vmatpush1.msra.mxu0 0.0
        %5637 = vmatprep.subr.mxu0 0.0
        %5638 = vmatpush1.msra.mxu0 0.0
        %5639 = vmatprep.subr.mxu0 0.0
        %5640 = vmatpush1.msra.mxu0 0.0
        %5641 = vmatprep.subr.mxu0 0.0
        %5642 = vmatpush1.msra.mxu0 0.0
        %5643 = vmatprep.subr.mxu0 0.0
        %5644 = vmatpush1.msra.mxu0 0.0
        %5645 = vmatprep.mubr.f32.mxu0 0.0
        %5646 = vmatmul.mubr.f32.gmra.mrb[0].mxu0 %v5552
        %v5647 = vpop.f32.mrb[0].mxu0
        %v5648 = vadd.f32 0.0, %v5647
        %v5649 = vpop.f32.mrb[0].mxu0
        %5650 = vmatprep.mubr.f32.mxu0 0.0
        %5651 = vmatmul.mubr.f32.gmra.mrb[0].mxu0 %v5555
        %v5652 = vpop.f32.mrb[0].mxu0
        %v5653 = vadd.f32 0.0, %v5652
        %v5654 = vpop.f32.mrb[0].mxu0
        %5655 = vmatprep.mubr.f32.mxu0 0.0
        %5656 = vmatmul.mubr.f32.gmra.mrb[0].mxu0 %v5558
        %v5657 = vpop.f32.mrb[0].mxu0
        %v5658 = vadd.f32 0.0, %v5657
        %v5659 = vpop.f32.mrb[0].mxu0
        %5660 = vmatprep.mubr.f32.mxu0 0.0
        %5661 = vmatmul.mubr.f32.gmra.mrb[0].mxu0 %v5561
        %v5662 = vpop.f32.mrb[0].mxu0
        %v5663 = vadd.f32 0.0, %v5662
        %v5664 = vpop.f32.mrb[0].mxu0
        %5665 = vmatprep.mubr.f32.mxu0 0.0
        %5666 = vmatmul.mubr.f32.gmra.mrb[0].mxu0 %v5564
        %v5667 = vpop.f32.mrb[0].mxu0
        %v5668 = vadd.f32 0.0, %v5667
        %v5669 = vpop.f32.mrb[0].mxu0
        %5670 = vmatprep.mubr.f32.mxu0 0.0
        %5671 = vmatmul.mubr.f32.gmra.mrb[0].mxu0 %v5567
        %v5672 = vpop.f32.mrb[0].mxu0
        %v5673 = vadd.f32 0.0, %v5672
        %v5674 = vpop.f32.mrb[0].mxu0
        %5675 = vmatprep.mubr.f32.mxu0 0.0
        %5676 = vmatmul.mubr.f32.gmra.mrb[0].mxu0 %v5570
        %v5677 = vpop.f32.mrb[0].mxu0
        %v5678 = vadd.f32 0.0, %v5677
        %v5679 = vpop.f32.mrb[0].mxu0
        %5680 = vmatprep.mubr.f32.mxu0 0.0
        %5681 = vmatmul.mubr.f32.gmra.mrb[0].mxu0 %v5573
        %v5682 = vpop.f32.mrb[0].mxu0
        %v5683 = vadd.f32 0.0, %v5682
        %v5684 = vpop.f32.mrb[0].mxu0
        %5685 = vmatprep.mubr.f32.mxu0 0.0
        %5686 = vmatmul.mubr.f32.gmra.mrb[0].mxu0 %v5576
        %v5687 = vpop.f32.mrb[0].mxu0
        %v5688 = vadd.f32 0.0, %v5687
        %v5689 = vpop.f32.mrb[0].mxu0
        %5690 = vmatprep.mubr.f32.mxu0 0.0
        %5691 = vmatmul.mubr.f32.gmra.mrb[0].mxu0 %v5579
        %v5692 = vpop.f32.mrb[0].mxu0
        %v5693 = vadd.f32 0.0, %v5692
        %v5694 = vpop.f32.mrb[0].mxu0
        %5695 = vdwg.mxu0
        %v5696 = vadd.f32 %v5529, %v5648
        %v5697 = vadd.f32 %v5530, %v5653
        %v5698 = vadd.f32 %v5531, %v5658
        %v5699 = vadd.f32 %v5532, %v5663
        %v5700 = vadd.f32 %v5533, %v5668
        %v5701 = vadd.f32 %v5534, %v5673
        %v5702 = vadd.f32 %v5535, %v5678
        %v5703 = vadd.f32 %v5536, %v5683
        %v5704 = vadd.f32 %v5537, %v5688
        %v5705 = vadd.f32 %v5538, %v5693
        %v5706 = vld [vmem:[#allocation4 + $0x1e] sm:$0xff]
        %v5707 = vld [vmem:[#allocation4 + $0x26] sm:$0xff]
        %v5708 = vld [vmem:[#allocation4 + $0x2e] sm:$0xff]
        %v5709 = vld [vmem:[#allocation4 + $0x36] sm:$0xff]
        %v5710 = vld [vmem:[#allocation4 + $0x3e] sm:$0xff]
        %v5711 = vld [vmem:[#allocation4 + $0x46] sm:$0xff]
        %v5712 = vld [vmem:[#allocation4 + $0x4e] sm:$0xff]
        %v5713 = vld [vmem:[#allocation4 + $0x56] sm:$0xff]
        %v5714 = vld [vmem:[#allocation4 + $0x5e] sm:$0xff]
        %v5715 = vld [vmem:[#allocation4 + $0x66] sm:$0xff]
        %s5716 = scalar_lea.vmem %s3, 56
        %v5717 = vld [vmem:[%s5716] sm:$0xff]
        %v5719 = vsel %vm416, %v5706, 0
        %v5722 = vsel %vm416, %v5707, 0
        %v5725 = vsel %vm416, %v5708, 0
        %v5728 = vsel %vm416, %v5709, 0
        %v5731 = vsel %vm416, %v5710, 0
        %v5734 = vsel %vm416, %v5711, 0
        %v5737 = vsel %vm416, %v5712, 0
        %v5740 = vsel %vm416, %v5713, 0
        %v5743 = vsel %vm416, %v5714, 0
        %v5746 = vsel %vm416, %v5715, 0
        %5748 = vmatprep.subr.mxu0 0.0
        %5749 = vmatpush1.msra.mxu0 %v5717
        %5750 = vmatprep.subr.mxu0 0.0
        %5751 = vmatpush1.msra.mxu0 0.0
        %5752 = vmatprep.subr.mxu0 0.0
        %5753 = vmatpush1.msra.mxu0 0.0
        %5754 = vmatprep.subr.mxu0 0.0
        %5755 = vmatpush1.msra.mxu0 0.0
        %5756 = vmatprep.subr.mxu0 0.0
        %5757 = vmatpush1.msra.mxu0 0.0
        %5758 = vmatprep.subr.mxu0 0.0
        %5759 = vmatpush1.msra.mxu0 0.0
        %5760 = vmatprep.subr.mxu0 0.0
        %5761 = vmatpush1.msra.mxu0 0.0
        %5762 = vmatprep.subr.mxu0 0.0
        %5763 = vmatpush1.msra.mxu0 0.0
        %5764 = vmatprep.subr.mxu0 0.0
        %5765 = vmatpush1.msra.mxu0 0.0
        %5766 = vmatprep.subr.mxu0 0.0
        %5767 = vmatpush1.msra.mxu0 0.0
        %5768 = vmatprep.subr.mxu0 0.0
        %5769 = vmatpush1.msra.mxu0 0.0
        %5770 = vmatprep.subr.mxu0 0.0
        %5771 = vmatpush1.msra.mxu0 0.0
        %5772 = vmatprep.subr.mxu0 0.0
        %5773 = vmatpush1.msra.mxu0 0.0
        %5774 = vmatprep.subr.mxu0 0.0
        %5775 = vmatpush1.msra.mxu0 0.0
        %5776 = vmatprep.subr.mxu0 0.0
        %5777 = vmatpush1.msra.mxu0 0.0
        %5778 = vmatprep.subr.mxu0 0.0
        %5779 = vmatpush1.msra.mxu0 0.0
        %5780 = vmatprep.subr.mxu0 0.0
        %5781 = vmatpush1.msra.mxu0 0.0
        %5782 = vmatprep.subr.mxu0 0.0
        %5783 = vmatpush1.msra.mxu0 0.0
        %5784 = vmatprep.subr.mxu0 0.0
        %5785 = vmatpush1.msra.mxu0 0.0
        %5786 = vmatprep.subr.mxu0 0.0
        %5787 = vmatpush1.msra.mxu0 0.0
        %5788 = vmatprep.subr.mxu0 0.0
        %5789 = vmatpush1.msra.mxu0 0.0
        %5790 = vmatprep.subr.mxu0 0.0
        %5791 = vmatpush1.msra.mxu0 0.0
        %5792 = vmatprep.subr.mxu0 0.0
        %5793 = vmatpush1.msra.mxu0 0.0
        %5794 = vmatprep.subr.mxu0 0.0
        %5795 = vmatpush1.msra.mxu0 0.0
        %5796 = vmatprep.subr.mxu0 0.0
        %5797 = vmatpush1.msra.mxu0 0.0
        %5798 = vmatprep.subr.mxu0 0.0
        %5799 = vmatpush1.msra.mxu0 0.0
        %5800 = vmatprep.subr.mxu0 0.0
        %5801 = vmatpush1.msra.mxu0 0.0
        %5802 = vmatprep.subr.mxu0 0.0
        %5803 = vmatpush1.msra.mxu0 0.0
        %5804 = vmatprep.subr.mxu0 0.0
        %5805 = vmatpush1.msra.mxu0 0.0
        %5806 = vmatprep.subr.mxu0 0.0
        %5807 = vmatpush1.msra.mxu0 0.0
        %5808 = vmatprep.subr.mxu0 0.0
        %5809 = vmatpush1.msra.mxu0 0.0
        %5810 = vmatprep.subr.mxu0 0.0
        %5811 = vmatpush1.msra.mxu0 0.0
        %5812 = vmatprep.mubr.f32.mxu0 0.0
        %5813 = vmatmul.mubr.f32.gmra.mrb[0].mxu0 %v5719
        %v5814 = vpop.f32.mrb[0].mxu0
        %v5815 = vadd.f32 0.0, %v5814
        %v5816 = vpop.f32.mrb[0].mxu0
        %5817 = vmatprep.mubr.f32.mxu0 0.0
        %5818 = vmatmul.mubr.f32.gmra.mrb[0].mxu0 %v5722
        %v5819 = vpop.f32.mrb[0].mxu0
        %v5820 = vadd.f32 0.0, %v5819
        %v5821 = vpop.f32.mrb[0].mxu0
        %5822 = vmatprep.mubr.f32.mxu0 0.0
        %5823 = vmatmul.mubr.f32.gmra.mrb[0].mxu0 %v5725
        %v5824 = vpop.f32.mrb[0].mxu0
        %v5825 = vadd.f32 0.0, %v5824
        %v5826 = vpop.f32.mrb[0].mxu0
        %5827 = vmatprep.mubr.f32.mxu0 0.0
        %5828 = vmatmul.mubr.f32.gmra.mrb[0].mxu0 %v5728
        %v5829 = vpop.f32.mrb[0].mxu0
        %v5830 = vadd.f32 0.0, %v5829
        %v5831 = vpop.f32.mrb[0].mxu0
        %5832 = vmatprep.mubr.f32.mxu0 0.0
        %5833 = vmatmul.mubr.f32.gmra.mrb[0].mxu0 %v5731
        %v5834 = vpop.f32.mrb[0].mxu0
        %v5835 = vadd.f32 0.0, %v5834
        %v5836 = vpop.f32.mrb[0].mxu0
        %5837 = vmatprep.mubr.f32.mxu0 0.0
        %5838 = vmatmul.mubr.f32.gmra.mrb[0].mxu0 %v5734
        %v5839 = vpop.f32.mrb[0].mxu0
        %v5840 = vadd.f32 0.0, %v5839
        %v5841 = vpop.f32.mrb[0].mxu0
        %5842 = vmatprep.mubr.f32.mxu0 0.0
        %5843 = vmatmul.mubr.f32.gmra.mrb[0].mxu0 %v5737
        %v5844 = vpop.f32.mrb[0].mxu0
        %v5845 = vadd.f32 0.0, %v5844
        %v5846 = vpop.f32.mrb[0].mxu0
        %5847 = vmatprep.mubr.f32.mxu0 0.0
        %5848 = vmatmul.mubr.f32.gmra.mrb[0].mxu0 %v5740
        %v5849 = vpop.f32.mrb[0].mxu0
        %v5850 = vadd.f32 0.0, %v5849
        %v5851 = vpop.f32.mrb[0].mxu0
        %5852 = vmatprep.mubr.f32.mxu0 0.0
        %5853 = vmatmul.mubr.f32.gmra.mrb[0].mxu0 %v5743
        %v5854 = vpop.f32.mrb[0].mxu0
        %v5855 = vadd.f32 0.0, %v5854
        %v5856 = vpop.f32.mrb[0].mxu0
        %5857 = vmatprep.mubr.f32.mxu0 0.0
        %5858 = vmatmul.mubr.f32.gmra.mrb[0].mxu0 %v5746
        %v5859 = vpop.f32.mrb[0].mxu0
        %v5860 = vadd.f32 0.0, %v5859
        %v5861 = vpop.f32.mrb[0].mxu0
        %5862 = vdwg.mxu0
        %v5863 = vadd.f32 %v5696, %v5815
        %v5864 = vadd.f32 %v5697, %v5820
        %v5865 = vadd.f32 %v5698, %v5825
        %v5866 = vadd.f32 %v5699, %v5830
        %v5867 = vadd.f32 %v5700, %v5835
        %v5868 = vadd.f32 %v5701, %v5840
        %v5869 = vadd.f32 %v5702, %v5845
        %v5870 = vadd.f32 %v5703, %v5850
        %v5871 = vadd.f32 %v5704, %v5855
        %v5872 = vadd.f32 %v5705, %v5860
        %v5873 = vld [vmem:[#allocation4 + $0x1f] sm:$0xff]
        %v5874 = vld [vmem:[#allocation4 + $0x27] sm:$0xff]
        %v5875 = vld [vmem:[#allocation4 + $0x2f] sm:$0xff]
        %v5876 = vld [vmem:[#allocation4 + $0x37] sm:$0xff]
        %v5877 = vld [vmem:[#allocation4 + $0x3f] sm:$0xff]
        %v5878 = vld [vmem:[#allocation4 + $0x47] sm:$0xff]
        %v5879 = vld [vmem:[#allocation4 + $0x4f] sm:$0xff]
        %v5880 = vld [vmem:[#allocation4 + $0x57] sm:$0xff]
        %v5881 = vld [vmem:[#allocation4 + $0x5f] sm:$0xff]
        %v5882 = vld [vmem:[#allocation4 + $0x67] sm:$0xff]
        %s5883 = scalar_lea.vmem %s3, 64
        %v5884 = vld [vmem:[%s5883] sm:$0xff]
        %v5886 = vsel %vm416, %v5873, 0
        %v5889 = vsel %vm416, %v5874, 0
        %v5892 = vsel %vm416, %v5875, 0
        %v5895 = vsel %vm416, %v5876, 0
        %v5898 = vsel %vm416, %v5877, 0
        %v5901 = vsel %vm416, %v5878, 0
        %v5904 = vsel %vm416, %v5879, 0
        %v5907 = vsel %vm416, %v5880, 0
        %v5910 = vsel %vm416, %v5881, 0
        %v5913 = vsel %vm416, %v5882, 0
        %5915 = vmatprep.subr.mxu0 0.0
        %5916 = vmatpush1.msra.mxu0 %v5884
        %5917 = vmatprep.subr.mxu0 0.0
        %5918 = vmatpush1.msra.mxu0 0.0
        %5919 = vmatprep.subr.mxu0 0.0
        %5920 = vmatpush1.msra.mxu0 0.0
        %5921 = vmatprep.subr.mxu0 0.0
        %5922 = vmatpush1.msra.mxu0 0.0
        %5923 = vmatprep.subr.mxu0 0.0
        %5924 = vmatpush1.msra.mxu0 0.0
        %5925 = vmatprep.subr.mxu0 0.0
        %5926 = vmatpush1.msra.mxu0 0.0
        %5927 = vmatprep.subr.mxu0 0.0
        %5928 = vmatpush1.msra.mxu0 0.0
        %5929 = vmatprep.subr.mxu0 0.0
        %5930 = vmatpush1.msra.mxu0 0.0
        %5931 = vmatprep.subr.mxu0 0.0
        %5932 = vmatpush1.msra.mxu0 0.0
        %5933 = vmatprep.subr.mxu0 0.0
        %5934 = vmatpush1.msra.mxu0 0.0
        %5935 = vmatprep.subr.mxu0 0.0
        %5936 = vmatpush1.msra.mxu0 0.0
        %5937 = vmatprep.subr.mxu0 0.0
        %5938 = vmatpush1.msra.mxu0 0.0
        %5939 = vmatprep.subr.mxu0 0.0
        %5940 = vmatpush1.msra.mxu0 0.0
        %5941 = vmatprep.subr.mxu0 0.0
        %5942 = vmatpush1.msra.mxu0 0.0
        %5943 = vmatprep.subr.mxu0 0.0
        %5944 = vmatpush1.msra.mxu0 0.0
        %5945 = vmatprep.subr.mxu0 0.0
        %5946 = vmatpush1.msra.mxu0 0.0
        %5947 = vmatprep.subr.mxu0 0.0
        %5948 = vmatpush1.msra.mxu0 0.0
        %5949 = vmatprep.subr.mxu0 0.0
        %5950 = vmatpush1.msra.mxu0 0.0
        %5951 = vmatprep.subr.mxu0 0.0
        %5952 = vmatpush1.msra.mxu0 0.0
        %5953 = vmatprep.subr.mxu0 0.0
        %5954 = vmatpush1.msra.mxu0 0.0
        %5955 = vmatprep.subr.mxu0 0.0
        %5956 = vmatpush1.msra.mxu0 0.0
        %5957 = vmatprep.subr.mxu0 0.0
        %5958 = vmatpush1.msra.mxu0 0.0
        %5959 = vmatprep.subr.mxu0 0.0
        %5960 = vmatpush1.msra.mxu0 0.0
        %5961 = vmatprep.subr.mxu0 0.0
        %5962 = vmatpush1.msra.mxu0 0.0
        %5963 = vmatprep.subr.mxu0 0.0
        %5964 = vmatpush1.msra.mxu0 0.0
        %5965 = vmatprep.subr.mxu0 0.0
        %5966 = vmatpush1.msra.mxu0 0.0
        %5967 = vmatprep.subr.mxu0 0.0
        %5968 = vmatpush1.msra.mxu0 0.0
        %5969 = vmatprep.subr.mxu0 0.0
        %5970 = vmatpush1.msra.mxu0 0.0
        %5971 = vmatprep.subr.mxu0 0.0
        %5972 = vmatpush1.msra.mxu0 0.0
        %5973 = vmatprep.subr.mxu0 0.0
        %5974 = vmatpush1.msra.mxu0 0.0
        %5975 = vmatprep.subr.mxu0 0.0
        %5976 = vmatpush1.msra.mxu0 0.0
        %5977 = vmatprep.subr.mxu0 0.0
        %5978 = vmatpush1.msra.mxu0 0.0
        %5979 = vmatprep.mubr.f32.mxu0 0.0
        %5980 = vmatmul.mubr.f32.gmra.mrb[0].mxu0 %v5886
        %v5981 = vpop.f32.mrb[0].mxu0
        %v5982 = vadd.f32 0.0, %v5981
        %v5983 = vpop.f32.mrb[0].mxu0
        %5984 = vmatprep.mubr.f32.mxu0 0.0
        %5985 = vmatmul.mubr.f32.gmra.mrb[0].mxu0 %v5889
        %v5986 = vpop.f32.mrb[0].mxu0
        %v5987 = vadd.f32 0.0, %v5986
        %v5988 = vpop.f32.mrb[0].mxu0
        %5989 = vmatprep.mubr.f32.mxu0 0.0
        %5990 = vmatmul.mubr.f32.gmra.mrb[0].mxu0 %v5892
        %v5991 = vpop.f32.mrb[0].mxu0
        %v5992 = vadd.f32 0.0, %v5991
        %v5993 = vpop.f32.mrb[0].mxu0
        %5994 = vmatprep.mubr.f32.mxu0 0.0
        %5995 = vmatmul.mubr.f32.gmra.mrb[0].mxu0 %v5895
        %v5996 = vpop.f32.mrb[0].mxu0
        %v5997 = vadd.f32 0.0, %v5996
        %v5998 = vpop.f32.mrb[0].mxu0
        %5999 = vmatprep.mubr.f32.mxu0 0.0
        %6000 = vmatmul.mubr.f32.gmra.mrb[0].mxu0 %v5898
        %v6001 = vpop.f32.mrb[0].mxu0
        %v6002 = vadd.f32 0.0, %v6001
        %v6003 = vpop.f32.mrb[0].mxu0
        %6004 = vmatprep.mubr.f32.mxu0 0.0
        %6005 = vmatmul.mubr.f32.gmra.mrb[0].mxu0 %v5901
        %v6006 = vpop.f32.mrb[0].mxu0
        %v6007 = vadd.f32 0.0, %v6006
        %v6008 = vpop.f32.mrb[0].mxu0
        %6009 = vmatprep.mubr.f32.mxu0 0.0
        %6010 = vmatmul.mubr.f32.gmra.mrb[0].mxu0 %v5904
        %v6011 = vpop.f32.mrb[0].mxu0
        %v6012 = vadd.f32 0.0, %v6011
        %v6013 = vpop.f32.mrb[0].mxu0
        %6014 = vmatprep.mubr.f32.mxu0 0.0
        %6015 = vmatmul.mubr.f32.gmra.mrb[0].mxu0 %v5907
        %v6016 = vpop.f32.mrb[0].mxu0
        %v6017 = vadd.f32 0.0, %v6016
        %v6018 = vpop.f32.mrb[0].mxu0
        %6019 = vmatprep.mubr.f32.mxu0 0.0
        %6020 = vmatmul.mubr.f32.gmra.mrb[0].mxu0 %v5910
        %v6021 = vpop.f32.mrb[0].mxu0
        %v6022 = vadd.f32 0.0, %v6021
        %v6023 = vpop.f32.mrb[0].mxu0
        %6024 = vmatprep.mubr.f32.mxu0 0.0
        %6025 = vmatmul.mubr.f32.gmra.mrb[0].mxu0 %v5913
        %v6026 = vpop.f32.mrb[0].mxu0
        %v6027 = vadd.f32 0.0, %v6026
        %v6028 = vpop.f32.mrb[0].mxu0
        %6029 = vdwg.mxu0
        %v6030 = vadd.f32 %v5863, %v5982
        %v6031 = vadd.f32 %v5864, %v5987
        %v6032 = vadd.f32 %v5865, %v5992
        %v6033 = vadd.f32 %v5866, %v5997
        %v6034 = vadd.f32 %v5867, %v6002
        %v6035 = vadd.f32 %v5868, %v6007
        %v6036 = vadd.f32 %v5869, %v6012
        %v6037 = vadd.f32 %v5870, %v6017
        %v6038 = vadd.f32 %v5871, %v6022
        %v6039 = vadd.f32 %v5872, %v6027
        %v6040 = vld [vmem:[%s4] sm:$0x1]
        %v6042 = vlaneseq
        %v6043 = vshrl.u32 %v6042, 7
        %v6044 = vsub.s32 0, %v6043
        %v6045 = vrot.slane %v6040, %v6044
        %v6047 = vadd.f32 %v6030, %v6045
        %v6048 = vadd.f32 %v6031, %v6045
        %v6049 = vadd.f32 %v6032, %v6045
        %v6050 = vadd.f32 %v6033, %v6045
        %v6051 = vadd.f32 %v6034, %v6045
        %v6052 = vadd.f32 %v6035, %v6045
        %v6053 = vadd.f32 %v6036, %v6045
        %v6054 = vadd.f32 %v6037, %v6045
        %v6055 = vadd.f32 %v6038, %v6045
        %v6056 = vadd.f32 %v6039, %v6045
        %v6057 = vmax.f32 %v6047, 0.0
        %v6058 = vmax.f32 %v6048, 0.0
        %v6059 = vmax.f32 %v6049, 0.0
        %v6060 = vmax.f32 %v6050, 0.0
        %v6061 = vmax.f32 %v6051, 0.0
        %v6062 = vmax.f32 %v6052, 0.0
        %v6063 = vmax.f32 %v6053, 0.0
        %v6064 = vmax.f32 %v6054, 0.0
        %v6065 = vmax.f32 %v6055, 0.0
        %v6066 = vmax.f32 %v6056, 0.0
        %6067 = vst.msk [vmem:[#allocation5] sm:$0xff] %vm432, %v6057
        %6068 = vst.msk [vmem:[#allocation5 + $0x8] sm:$0xff] %vm432, %v6058
        %6069 = vst.msk [vmem:[#allocation5 + $0x10] sm:$0xff] %vm432, %v6059
        %6070 = vst.msk [vmem:[#allocation5 + $0x18] sm:$0xff] %vm432, %v6060
        %6071 = vst.msk [vmem:[#allocation5 + $0x20] sm:$0xff] %vm432, %v6061
        %6072 = vst.msk [vmem:[#allocation5 + $0x28] sm:$0xff] %vm432, %v6062
        %6073 = vst.msk [vmem:[#allocation5 + $0x30] sm:$0xff] %vm432, %v6063
        %6074 = vst.msk [vmem:[#allocation5 + $0x38] sm:$0xff] %vm432, %v6064
        %6075 = vst.msk [vmem:[#allocation5 + $0x40] sm:$0xff] %vm432, %v6065
        %6076 = vst.msk [vmem:[#allocation5 + $0x48] sm:$0xff] %vm432, %v6066
        %s6077 = scalar_lea.vmem [#allocation5], 1
        %v6078 = vld [vmem:[%s6077] ss:$2 sm:$0xf]
        %s6079 = scalar_lea.vmem [#allocation5], 2
        %v6080 = vld [vmem:[%s6079] ss:$2 sm:$0xf]
        %s6081 = scalar_lea.vmem [#allocation5], 11
        %v6082 = vld [vmem:[%s6081] ss:$2 sm:$0xf]
        %s6083 = scalar_lea.vmem [#allocation5], 12
        %v6084 = vld [vmem:[%s6083] ss:$2 sm:$0xf]
        %v6085 = vmax.f32 %v6078, %v6080
        %v6086 = vmax.f32 %v6082, %v6084
        %v6087 = vmax.f32 %v6085, %v6086
        %vm6088 = vcmask 125952
        %6089 = vst.msk [vmem:[#allocation6 + $0xd] sm:$0xf] %vm6088, %v6087
        %v6090 = vsel %vm6088, %v6087, 0.0
        %6091 = vadd.xlane.f32.xlu0 %v6090
        %v6092 = vpop.xlane.xlu0 %6091
        %v6093 = vrcp.pop 16.0
        %v6094 = vmul.f32 %v6092, %v6093
        %vm6095 = vcmask 3072
        %6096 = vst.msk [vmem:[#allocation11] sm:$0xf] %vm6095, %v6094
        %s6097 = scalar_lea.vmem [#allocation5], 21
        %v6098 = vld [vmem:[%s6097] ss:$2 sm:$0xf]
        %s6099 = scalar_lea.vmem [#allocation5], 22
        %v6100 = vld [vmem:[%s6099] ss:$2 sm:$0xf]
        %s6101 = scalar_lea.vmem [#allocation5], 31
        %v6102 = vld [vmem:[%s6101] ss:$2 sm:$0xf]
        %s6103 = scalar_lea.vmem [#allocation5], 32
        %v6104 = vld [vmem:[%s6103] ss:$2 sm:$0xf]
        %v6105 = vmax.f32 %v6098, %v6100
        %v6106 = vmax.f32 %v6102, %v6104
        %v6107 = vmax.f32 %v6105, %v6106
        %6108 = vst.msk [vmem:[#allocation6 + $0x13] sm:$0xf] %vm6088, %v6107
        %v6109 = vsel %vm6088, %v6107, 0.0
        %6110 = vadd.xlane.f32.xlu0 %v6109
        %v6111 = vpop.xlane.xlu0 %6110
        %v6112 = vmul.f32 %v6111, %v6093
        %6113 = vst.msk [vmem:[#allocation11 + $0x4] sm:$0xf] %vm6095, %v6112
        %s6114 = scalar_lea.vmem [#allocation5], 41
        %v6115 = vld [vmem:[%s6114] ss:$2 sm:$0xf]
        %s6116 = scalar_lea.vmem [#allocation5], 42
        %v6117 = vld [vmem:[%s6116] ss:$2 sm:$0xf]
        %s6118 = scalar_lea.vmem [#allocation5], 51
        %v6119 = vld [vmem:[%s6118] ss:$2 sm:$0xf]
        %s6120 = scalar_lea.vmem [#allocation5], 52
        %v6121 = vld [vmem:[%s6120] ss:$2 sm:$0xf]
        %v6122 = vmax.f32 %v6115, %v6117
        %v6123 = vmax.f32 %v6119, %v6121
        %v6124 = vmax.f32 %v6122, %v6123
        %6125 = vst.msk [vmem:[#allocation6 + $0x19] sm:$0xf] %vm6088, %v6124
        %v6126 = vsel %vm6088, %v6124, 0.0
        %6127 = vadd.xlane.f32.xlu0 %v6126
        %v6128 = vpop.xlane.xlu0 %6127
        %v6129 = vmul.f32 %v6128, %v6093
        %6130 = vst.msk [vmem:[#allocation11 + $0x8] sm:$0xf] %vm6095, %v6129
        %s6131 = scalar_lea.vmem [#allocation5], 61
        %v6132 = vld [vmem:[%s6131] ss:$2 sm:$0xf]
        %s6133 = scalar_lea.vmem [#allocation5], 62
        %v6134 = vld [vmem:[%s6133] ss:$2 sm:$0xf]
        %s6135 = scalar_lea.vmem [#allocation5], 71
        %v6136 = vld [vmem:[%s6135] ss:$2 sm:$0xf]
        %s6137 = scalar_lea.vmem [#allocation5], 72
        %v6138 = vld [vmem:[%s6137] ss:$2 sm:$0xf]
        %v6139 = vmax.f32 %v6132, %v6134
        %v6140 = vmax.f32 %v6136, %v6138
        %v6141 = vmax.f32 %v6139, %v6140
        %6142 = vst.msk [vmem:[#allocation6 + $0x1f] sm:$0xf] %vm6088, %v6141
        %v6143 = vsel %vm6088, %v6141, 0.0
        %6144 = vadd.xlane.f32.xlu0 %v6143
        %v6145 = vpop.xlane.xlu0 %6144
        %v6146 = vmul.f32 %v6145, %v6093
        %6147 = vst.msk [vmem:[#allocation11 + $0xc] sm:$0xf] %vm6095, %v6146
        %v6148 = vld [vmem:[#allocation6 + $0x5] sm:$0xff]
        %v6149 = vld [vmem:[#allocation6 + $0xd] sm:$0xff]
        %v6150 = vld [vmem:[#allocation6 + $0x15] sm:$0xff]
        %v6151 = vld [vmem:[%s5] sm:$0xff]
        %v6152 = vld [vmem:[%s5 + $0x8] sm:$0xff]
        %v6153 = vld [vmem:[#allocation6 + $0x6] sm:$0xff]
        %v6154 = vld [vmem:[#allocation6 + $0xe] sm:$0xff]
        %v6155 = vld [vmem:[#allocation6 + $0x16] sm:$0xff]
        %s6156 = scalar_lea.vmem %s5, 16
        %v6157 = vld [vmem:[%s6156] sm:$0xff]
        %v6158 = vld [vmem:[%s6156 + $0x8] sm:$0xff]
        %v6160 = vsel %vm432, %v6153, 0
        %v6163 = vsel %vm432, %v6154, 0
        %v6166 = vsel %vm432, %v6155, 0
        %6168 = vmatprep.subr.mxu0 0.0
        %6169 = vmatpush1.msra.mxu0 %v6157
        %6170 = vmatprep.subr.mxu0 0.0
        %6171 = vmatpush1.msra.mxu0 %v6158
        %6172 = vmatprep.subr.mxu0 0.0
        %6173 = vmatpush1.msra.mxu0 0.0
        %6174 = vmatprep.subr.mxu0 0.0
        %6175 = vmatpush1.msra.mxu0 0.0
        %6176 = vmatprep.subr.mxu0 0.0
        %6177 = vmatpush1.msra.mxu0 0.0
        %6178 = vmatprep.subr.mxu0 0.0
        %6179 = vmatpush1.msra.mxu0 0.0
        %6180 = vmatprep.subr.mxu0 0.0
        %6181 = vmatpush1.msra.mxu0 0.0
        %6182 = vmatprep.subr.mxu0 0.0
        %6183 = vmatpush1.msra.mxu0 0.0
        %6184 = vmatprep.subr.mxu0 0.0
        %6185 = vmatpush1.msra.mxu0 0.0
        %6186 = vmatprep.subr.mxu0 0.0
        %6187 = vmatpush1.msra.mxu0 0.0
        %6188 = vmatprep.subr.mxu0 0.0
        %6189 = vmatpush1.msra.mxu0 0.0
        %6190 = vmatprep.subr.mxu0 0.0
        %6191 = vmatpush1.msra.mxu0 0.0
        %6192 = vmatprep.subr.mxu0 0.0
        %6193 = vmatpush1.msra.mxu0 0.0
        %6194 = vmatprep.subr.mxu0 0.0
        %6195 = vmatpush1.msra.mxu0 0.0
        %6196 = vmatprep.subr.mxu0 0.0
        %6197 = vmatpush1.msra.mxu0 0.0
        %6198 = vmatprep.subr.mxu0 0.0
        %6199 = vmatpush1.msra.mxu0 0.0
        %6200 = vmatprep.subr.mxu0 0.0
        %6201 = vmatpush1.msra.mxu0 0.0
        %6202 = vmatprep.subr.mxu0 0.0
        %6203 = vmatpush1.msra.mxu0 0.0
        %6204 = vmatprep.subr.mxu0 0.0
        %6205 = vmatpush1.msra.mxu0 0.0
        %6206 = vmatprep.subr.mxu0 0.0
        %6207 = vmatpush1.msra.mxu0 0.0
        %6208 = vmatprep.subr.mxu0 0.0
        %6209 = vmatpush1.msra.mxu0 0.0
        %6210 = vmatprep.subr.mxu0 0.0
        %6211 = vmatpush1.msra.mxu0 0.0
        %6212 = vmatprep.subr.mxu0 0.0
        %6213 = vmatpush1.msra.mxu0 0.0
        %6214 = vmatprep.subr.mxu0 0.0
        %6215 = vmatpush1.msra.mxu0 0.0
        %6216 = vmatprep.subr.mxu0 0.0
        %6217 = vmatpush1.msra.mxu0 0.0
        %6218 = vmatprep.subr.mxu0 0.0
        %6219 = vmatpush1.msra.mxu0 0.0
        %6220 = vmatprep.subr.mxu0 0.0
        %6221 = vmatpush1.msra.mxu0 0.0
        %6222 = vmatprep.subr.mxu0 0.0
        %6223 = vmatpush1.msra.mxu0 0.0
        %6224 = vmatprep.subr.mxu0 0.0
        %6225 = vmatpush1.msra.mxu0 0.0
        %6226 = vmatprep.subr.mxu0 0.0
        %6227 = vmatpush1.msra.mxu0 0.0
        %6228 = vmatprep.subr.mxu0 0.0
        %6229 = vmatpush1.msra.mxu0 0.0
        %6230 = vmatprep.subr.mxu0 0.0
        %6231 = vmatpush1.msra.mxu0 0.0
        %6232 = vmatprep.mubr.f32.mxu0 0.0
        %6233 = vmatmul.mubr.f32.gmra.mrb[0].mxu0 %v6160
        %v6234 = vpop.f32.mrb[0].mxu0
        %v6235 = vadd.f32 0.0, %v6234
        %v6236 = vpop.f32.mrb[0].mxu0
        %6237 = vmatprep.mubr.f32.mxu0 0.0
        %6238 = vmatmul.mubr.f32.gmra.mrb[0].mxu0 %v6163
        %v6239 = vpop.f32.mrb[0].mxu0
        %v6240 = vadd.f32 0.0, %v6239
        %v6241 = vpop.f32.mrb[0].mxu0
        %6242 = vmatprep.mubr.f32.mxu0 0.0
        %6243 = vmatmul.mubr.f32.gmra.mrb[0].mxu0 %v6166
        %v6244 = vpop.f32.mrb[0].mxu0
        %v6245 = vadd.f32 0.0, %v6244
        %v6246 = vpop.f32.mrb[0].mxu0
        %6247 = vdwg.mxu0
        %v6249 = vsel %vm432, %v6148, 0
        %v6252 = vsel %vm432, %v6149, 0
        %v6255 = vsel %vm432, %v6150, 0
        %6257 = vmatprep.subr.mxu0 0.0
        %6258 = vmatpush1.msra.mxu0 %v6151
        %6259 = vmatprep.subr.mxu0 0.0
        %6260 = vmatpush1.msra.mxu0 %v6152
        %6261 = vmatprep.subr.mxu0 0.0
        %6262 = vmatpush1.msra.mxu0 0.0
        %6263 = vmatprep.subr.mxu0 0.0
        %6264 = vmatpush1.msra.mxu0 0.0
        %6265 = vmatprep.subr.mxu0 0.0
        %6266 = vmatpush1.msra.mxu0 0.0
        %6267 = vmatprep.subr.mxu0 0.0
        %6268 = vmatpush1.msra.mxu0 0.0
        %6269 = vmatprep.subr.mxu0 0.0
        %6270 = vmatpush1.msra.mxu0 0.0
        %6271 = vmatprep.subr.mxu0 0.0
        %6272 = vmatpush1.msra.mxu0 0.0
        %6273 = vmatprep.subr.mxu0 0.0
        %6274 = vmatpush1.msra.mxu0 0.0
        %6275 = vmatprep.subr.mxu0 0.0
        %6276 = vmatpush1.msra.mxu0 0.0
        %6277 = vmatprep.subr.mxu0 0.0
        %6278 = vmatpush1.msra.mxu0 0.0
        %6279 = vmatprep.subr.mxu0 0.0
        %6280 = vmatpush1.msra.mxu0 0.0
        %6281 = vmatprep.subr.mxu0 0.0
        %6282 = vmatpush1.msra.mxu0 0.0
        %6283 = vmatprep.subr.mxu0 0.0
        %6284 = vmatpush1.msra.mxu0 0.0
        %6285 = vmatprep.subr.mxu0 0.0
        %6286 = vmatpush1.msra.mxu0 0.0
        %6287 = vmatprep.subr.mxu0 0.0
        %6288 = vmatpush1.msra.mxu0 0.0
        %6289 = vmatprep.subr.mxu0 0.0
        %6290 = vmatpush1.msra.mxu0 0.0
        %6291 = vmatprep.subr.mxu0 0.0
        %6292 = vmatpush1.msra.mxu0 0.0
        %6293 = vmatprep.subr.mxu0 0.0
        %6294 = vmatpush1.msra.mxu0 0.0
        %6295 = vmatprep.subr.mxu0 0.0
        %6296 = vmatpush1.msra.mxu0 0.0
        %6297 = vmatprep.subr.mxu0 0.0
        %6298 = vmatpush1.msra.mxu0 0.0
        %6299 = vmatprep.subr.mxu0 0.0
        %6300 = vmatpush1.msra.mxu0 0.0
        %6301 = vmatprep.subr.mxu0 0.0
        %6302 = vmatpush1.msra.mxu0 0.0
        %6303 = vmatprep.subr.mxu0 0.0
        %6304 = vmatpush1.msra.mxu0 0.0
        %6305 = vmatprep.subr.mxu0 0.0
        %6306 = vmatpush1.msra.mxu0 0.0
        %6307 = vmatprep.subr.mxu0 0.0
        %6308 = vmatpush1.msra.mxu0 0.0
        %6309 = vmatprep.subr.mxu0 0.0
        %6310 = vmatpush1.msra.mxu0 0.0
        %6311 = vmatprep.subr.mxu0 0.0
        %6312 = vmatpush1.msra.mxu0 0.0
        %6313 = vmatprep.subr.mxu0 0.0
        %6314 = vmatpush1.msra.mxu0 0.0
        %6315 = vmatprep.subr.mxu0 0.0
        %6316 = vmatpush1.msra.mxu0 0.0
        %6317 = vmatprep.subr.mxu0 0.0
        %6318 = vmatpush1.msra.mxu0 0.0
        %6319 = vmatprep.subr.mxu0 0.0
        %6320 = vmatpush1.msra.mxu0 0.0
        %6321 = vmatprep.mubr.f32.mxu0 0.0
        %6322 = vmatmul.mubr.f32.gmra.mrb[0].mxu0 %v6249
        %v6323 = vpop.f32.mrb[0].mxu0
        %v6324 = vadd.f32 %v6235, %v6323
        %v6325 = vpop.f32.mrb[0].mxu0
        %6326 = vmatprep.mubr.f32.mxu0 0.0
        %6327 = vmatmul.mubr.f32.gmra.mrb[0].mxu0 %v6252
        %v6328 = vpop.f32.mrb[0].mxu0
        %v6329 = vadd.f32 %v6240, %v6328
        %v6330 = vpop.f32.mrb[0].mxu0
        %6331 = vmatprep.mubr.f32.mxu0 0.0
        %6332 = vmatmul.mubr.f32.gmra.mrb[0].mxu0 %v6255
        %v6333 = vpop.f32.mrb[0].mxu0
        %v6334 = vadd.f32 %v6245, %v6333
        %v6335 = vpop.f32.mrb[0].mxu0
        %6336 = vdwg.mxu0
        %v6337 = vld [vmem:[#allocation6 + $0x7] sm:$0xff]
        %v6338 = vld [vmem:[#allocation6 + $0xf] sm:$0xff]
        %v6339 = vld [vmem:[#allocation6 + $0x17] sm:$0xff]
        %s6340 = scalar_lea.vmem %s5, 32
        %v6341 = vld [vmem:[%s6340] sm:$0xff]
        %v6342 = vld [vmem:[%s6340 + $0x8] sm:$0xff]
        %v6344 = vsel %vm432, %v6337, 0
        %v6347 = vsel %vm432, %v6338, 0
        %v6350 = vsel %vm432, %v6339, 0
        %6352 = vmatprep.subr.mxu0 0.0
        %6353 = vmatpush1.msra.mxu0 %v6341
        %6354 = vmatprep.subr.mxu0 0.0
        %6355 = vmatpush1.msra.mxu0 %v6342
        %6356 = vmatprep.subr.mxu0 0.0
        %6357 = vmatpush1.msra.mxu0 0.0
        %6358 = vmatprep.subr.mxu0 0.0
        %6359 = vmatpush1.msra.mxu0 0.0
        %6360 = vmatprep.subr.mxu0 0.0
        %6361 = vmatpush1.msra.mxu0 0.0
        %6362 = vmatprep.subr.mxu0 0.0
        %6363 = vmatpush1.msra.mxu0 0.0
        %6364 = vmatprep.subr.mxu0 0.0
        %6365 = vmatpush1.msra.mxu0 0.0
        %6366 = vmatprep.subr.mxu0 0.0
        %6367 = vmatpush1.msra.mxu0 0.0
        %6368 = vmatprep.subr.mxu0 0.0
        %6369 = vmatpush1.msra.mxu0 0.0
        %6370 = vmatprep.subr.mxu0 0.0
        %6371 = vmatpush1.msra.mxu0 0.0
        %6372 = vmatprep.subr.mxu0 0.0
        %6373 = vmatpush1.msra.mxu0 0.0
        %6374 = vmatprep.subr.mxu0 0.0
        %6375 = vmatpush1.msra.mxu0 0.0
        %6376 = vmatprep.subr.mxu0 0.0
        %6377 = vmatpush1.msra.mxu0 0.0
        %6378 = vmatprep.subr.mxu0 0.0
        %6379 = vmatpush1.msra.mxu0 0.0
        %6380 = vmatprep.subr.mxu0 0.0
        %6381 = vmatpush1.msra.mxu0 0.0
        %6382 = vmatprep.subr.mxu0 0.0
        %6383 = vmatpush1.msra.mxu0 0.0
        %6384 = vmatprep.subr.mxu0 0.0
        %6385 = vmatpush1.msra.mxu0 0.0
        %6386 = vmatprep.subr.mxu0 0.0
        %6387 = vmatpush1.msra.mxu0 0.0
        %6388 = vmatprep.subr.mxu0 0.0
        %6389 = vmatpush1.msra.mxu0 0.0
        %6390 = vmatprep.subr.mxu0 0.0
        %6391 = vmatpush1.msra.mxu0 0.0
        %6392 = vmatprep.subr.mxu0 0.0
        %6393 = vmatpush1.msra.mxu0 0.0
        %6394 = vmatprep.subr.mxu0 0.0
        %6395 = vmatpush1.msra.mxu0 0.0
        %6396 = vmatprep.subr.mxu0 0.0
        %6397 = vmatpush1.msra.mxu0 0.0
        %6398 = vmatprep.subr.mxu0 0.0
        %6399 = vmatpush1.msra.mxu0 0.0
        %6400 = vmatprep.subr.mxu0 0.0
        %6401 = vmatpush1.msra.mxu0 0.0
        %6402 = vmatprep.subr.mxu0 0.0
        %6403 = vmatpush1.msra.mxu0 0.0
        %6404 = vmatprep.subr.mxu0 0.0
        %6405 = vmatpush1.msra.mxu0 0.0
        %6406 = vmatprep.subr.mxu0 0.0
        %6407 = vmatpush1.msra.mxu0 0.0
        %6408 = vmatprep.subr.mxu0 0.0
        %6409 = vmatpush1.msra.mxu0 0.0
        %6410 = vmatprep.subr.mxu0 0.0
        %6411 = vmatpush1.msra.mxu0 0.0
        %6412 = vmatprep.subr.mxu0 0.0
        %6413 = vmatpush1.msra.mxu0 0.0
        %6414 = vmatprep.subr.mxu0 0.0
        %6415 = vmatpush1.msra.mxu0 0.0
        %6416 = vmatprep.mubr.f32.mxu0 0.0
        %6417 = vmatmul.mubr.f32.gmra.mrb[0].mxu0 %v6344
        %v6418 = vpop.f32.mrb[0].mxu0
        %v6419 = vadd.f32 0.0, %v6418
        %v6420 = vpop.f32.mrb[0].mxu0
        %6421 = vmatprep.mubr.f32.mxu0 0.0
        %6422 = vmatmul.mubr.f32.gmra.mrb[0].mxu0 %v6347
        %v6423 = vpop.f32.mrb[0].mxu0
        %v6424 = vadd.f32 0.0, %v6423
        %v6425 = vpop.f32.mrb[0].mxu0
        %6426 = vmatprep.mubr.f32.mxu0 0.0
        %6427 = vmatmul.mubr.f32.gmra.mrb[0].mxu0 %v6350
        %v6428 = vpop.f32.mrb[0].mxu0
        %v6429 = vadd.f32 0.0, %v6428
        %v6430 = vpop.f32.mrb[0].mxu0
        %6431 = vdwg.mxu0
        %v6432 = vadd.f32 %v6324, %v6419
        %v6433 = vadd.f32 %v6329, %v6424
        %v6434 = vadd.f32 %v6334, %v6429
        %v6435 = vld [vmem:[#allocation6 + $0xb] sm:$0xff]
        %v6436 = vld [vmem:[#allocation6 + $0x13] sm:$0xff]
        %v6437 = vld [vmem:[#allocation6 + $0x1b] sm:$0xff]
        %s6438 = scalar_lea.vmem %s5, 48
        %v6439 = vld [vmem:[%s6438] sm:$0xff]
        %v6440 = vld [vmem:[%s6438 + $0x8] sm:$0xff]
        %v6442 = vsel %vm432, %v6435, 0
        %v6445 = vsel %vm432, %v6436, 0
        %v6448 = vsel %vm432, %v6437, 0
        %6450 = vmatprep.subr.mxu0 0.0
        %6451 = vmatpush1.msra.mxu0 %v6439
        %6452 = vmatprep.subr.mxu0 0.0
        %6453 = vmatpush1.msra.mxu0 %v6440
        %6454 = vmatprep.subr.mxu0 0.0
        %6455 = vmatpush1.msra.mxu0 0.0
        %6456 = vmatprep.subr.mxu0 0.0
        %6457 = vmatpush1.msra.mxu0 0.0
        %6458 = vmatprep.subr.mxu0 0.0
        %6459 = vmatpush1.msra.mxu0 0.0
        %6460 = vmatprep.subr.mxu0 0.0
        %6461 = vmatpush1.msra.mxu0 0.0
        %6462 = vmatprep.subr.mxu0 0.0
        %6463 = vmatpush1.msra.mxu0 0.0
        %6464 = vmatprep.subr.mxu0 0.0
        %6465 = vmatpush1.msra.mxu0 0.0
        %6466 = vmatprep.subr.mxu0 0.0
        %6467 = vmatpush1.msra.mxu0 0.0
        %6468 = vmatprep.subr.mxu0 0.0
        %6469 = vmatpush1.msra.mxu0 0.0
        %6470 = vmatprep.subr.mxu0 0.0
        %6471 = vmatpush1.msra.mxu0 0.0
        %6472 = vmatprep.subr.mxu0 0.0
        %6473 = vmatpush1.msra.mxu0 0.0
        %6474 = vmatprep.subr.mxu0 0.0
        %6475 = vmatpush1.msra.mxu0 0.0
        %6476 = vmatprep.subr.mxu0 0.0
        %6477 = vmatpush1.msra.mxu0 0.0
        %6478 = vmatprep.subr.mxu0 0.0
        %6479 = vmatpush1.msra.mxu0 0.0
        %6480 = vmatprep.subr.mxu0 0.0
        %6481 = vmatpush1.msra.mxu0 0.0
        %6482 = vmatprep.subr.mxu0 0.0
        %6483 = vmatpush1.msra.mxu0 0.0
        %6484 = vmatprep.subr.mxu0 0.0
        %6485 = vmatpush1.msra.mxu0 0.0
        %6486 = vmatprep.subr.mxu0 0.0
        %6487 = vmatpush1.msra.mxu0 0.0
        %6488 = vmatprep.subr.mxu0 0.0
        %6489 = vmatpush1.msra.mxu0 0.0
        %6490 = vmatprep.subr.mxu0 0.0
        %6491 = vmatpush1.msra.mxu0 0.0
        %6492 = vmatprep.subr.mxu0 0.0
        %6493 = vmatpush1.msra.mxu0 0.0
        %6494 = vmatprep.subr.mxu0 0.0
        %6495 = vmatpush1.msra.mxu0 0.0
        %6496 = vmatprep.subr.mxu0 0.0
        %6497 = vmatpush1.msra.mxu0 0.0
        %6498 = vmatprep.subr.mxu0 0.0
        %6499 = vmatpush1.msra.mxu0 0.0
        %6500 = vmatprep.subr.mxu0 0.0
        %6501 = vmatpush1.msra.mxu0 0.0
        %6502 = vmatprep.subr.mxu0 0.0
        %6503 = vmatpush1.msra.mxu0 0.0
        %6504 = vmatprep.subr.mxu0 0.0
        %6505 = vmatpush1.msra.mxu0 0.0
        %6506 = vmatprep.subr.mxu0 0.0
        %6507 = vmatpush1.msra.mxu0 0.0
        %6508 = vmatprep.subr.mxu0 0.0
        %6509 = vmatpush1.msra.mxu0 0.0
        %6510 = vmatprep.subr.mxu0 0.0
        %6511 = vmatpush1.msra.mxu0 0.0
        %6512 = vmatprep.subr.mxu0 0.0
        %6513 = vmatpush1.msra.mxu0 0.0
        %6514 = vmatprep.mubr.f32.mxu0 0.0
        %6515 = vmatmul.mubr.f32.gmra.mrb[0].mxu0 %v6442
        %v6516 = vpop.f32.mrb[0].mxu0
        %v6517 = vadd.f32 0.0, %v6516
        %v6518 = vpop.f32.mrb[0].mxu0
        %6519 = vmatprep.mubr.f32.mxu0 0.0
        %6520 = vmatmul.mubr.f32.gmra.mrb[0].mxu0 %v6445
        %v6521 = vpop.f32.mrb[0].mxu0
        %v6522 = vadd.f32 0.0, %v6521
        %v6523 = vpop.f32.mrb[0].mxu0
        %6524 = vmatprep.mubr.f32.mxu0 0.0
        %6525 = vmatmul.mubr.f32.gmra.mrb[0].mxu0 %v6448
        %v6526 = vpop.f32.mrb[0].mxu0
        %v6527 = vadd.f32 0.0, %v6526
        %v6528 = vpop.f32.mrb[0].mxu0
        %6529 = vdwg.mxu0
        %v6530 = vadd.f32 %v6432, %v6517
        %v6531 = vadd.f32 %v6433, %v6522
        %v6532 = vadd.f32 %v6434, %v6527
        %v6533 = vld [vmem:[#allocation6 + $0xc] sm:$0xff]
        %v6534 = vld [vmem:[#allocation6 + $0x14] sm:$0xff]
        %v6535 = vld [vmem:[#allocation6 + $0x1c] sm:$0xff]
        %s6536 = scalar_lea.vmem %s5, 64
        %v6537 = vld [vmem:[%s6536] sm:$0xff]
        %v6538 = vld [vmem:[%s6536 + $0x8] sm:$0xff]
        %v6540 = vsel %vm432, %v6533, 0
        %v6543 = vsel %vm432, %v6534, 0
        %v6546 = vsel %vm432, %v6535, 0
        %6548 = vmatprep.subr.mxu0 0.0
        %6549 = vmatpush1.msra.mxu0 %v6537
        %6550 = vmatprep.subr.mxu0 0.0
        %6551 = vmatpush1.msra.mxu0 %v6538
        %6552 = vmatprep.subr.mxu0 0.0
        %6553 = vmatpush1.msra.mxu0 0.0
        %6554 = vmatprep.subr.mxu0 0.0
        %6555 = vmatpush1.msra.mxu0 0.0
        %6556 = vmatprep.subr.mxu0 0.0
        %6557 = vmatpush1.msra.mxu0 0.0
        %6558 = vmatprep.subr.mxu0 0.0
        %6559 = vmatpush1.msra.mxu0 0.0
        %6560 = vmatprep.subr.mxu0 0.0
        %6561 = vmatpush1.msra.mxu0 0.0
        %6562 = vmatprep.subr.mxu0 0.0
        %6563 = vmatpush1.msra.mxu0 0.0
        %6564 = vmatprep.subr.mxu0 0.0
        %6565 = vmatpush1.msra.mxu0 0.0
        %6566 = vmatprep.subr.mxu0 0.0
        %6567 = vmatpush1.msra.mxu0 0.0
        %6568 = vmatprep.subr.mxu0 0.0
        %6569 = vmatpush1.msra.mxu0 0.0
        %6570 = vmatprep.subr.mxu0 0.0
        %6571 = vmatpush1.msra.mxu0 0.0
        %6572 = vmatprep.subr.mxu0 0.0
        %6573 = vmatpush1.msra.mxu0 0.0
        %6574 = vmatprep.subr.mxu0 0.0
        %6575 = vmatpush1.msra.mxu0 0.0
        %6576 = vmatprep.subr.mxu0 0.0
        %6577 = vmatpush1.msra.mxu0 0.0
        %6578 = vmatprep.subr.mxu0 0.0
        %6579 = vmatpush1.msra.mxu0 0.0
        %6580 = vmatprep.subr.mxu0 0.0
        %6581 = vmatpush1.msra.mxu0 0.0
        %6582 = vmatprep.subr.mxu0 0.0
        %6583 = vmatpush1.msra.mxu0 0.0
        %6584 = vmatprep.subr.mxu0 0.0
        %6585 = vmatpush1.msra.mxu0 0.0
        %6586 = vmatprep.subr.mxu0 0.0
        %6587 = vmatpush1.msra.mxu0 0.0
        %6588 = vmatprep.subr.mxu0 0.0
        %6589 = vmatpush1.msra.mxu0 0.0
        %6590 = vmatprep.subr.mxu0 0.0
        %6591 = vmatpush1.msra.mxu0 0.0
        %6592 = vmatprep.subr.mxu0 0.0
        %6593 = vmatpush1.msra.mxu0 0.0
        %6594 = vmatprep.subr.mxu0 0.0
        %6595 = vmatpush1.msra.mxu0 0.0
        %6596 = vmatprep.subr.mxu0 0.0
        %6597 = vmatpush1.msra.mxu0 0.0
        %6598 = vmatprep.subr.mxu0 0.0
        %6599 = vmatpush1.msra.mxu0 0.0
        %6600 = vmatprep.subr.mxu0 0.0
        %6601 = vmatpush1.msra.mxu0 0.0
        %6602 = vmatprep.subr.mxu0 0.0
        %6603 = vmatpush1.msra.mxu0 0.0
        %6604 = vmatprep.subr.mxu0 0.0
        %6605 = vmatpush1.msra.mxu0 0.0
        %6606 = vmatprep.subr.mxu0 0.0
        %6607 = vmatpush1.msra.mxu0 0.0
        %6608 = vmatprep.subr.mxu0 0.0
        %6609 = vmatpush1.msra.mxu0 0.0
        %6610 = vmatprep.subr.mxu0 0.0
        %6611 = vmatpush1.msra.mxu0 0.0
        %6612 = vmatprep.mubr.f32.mxu0 0.0
        %6613 = vmatmul.mubr.f32.gmra.mrb[0].mxu0 %v6540
        %v6614 = vpop.f32.mrb[0].mxu0
        %v6615 = vadd.f32 0.0, %v6614
        %v6616 = vpop.f32.mrb[0].mxu0
        %6617 = vmatprep.mubr.f32.mxu0 0.0
        %6618 = vmatmul.mubr.f32.gmra.mrb[0].mxu0 %v6543
        %v6619 = vpop.f32.mrb[0].mxu0
        %v6620 = vadd.f32 0.0, %v6619
        %v6621 = vpop.f32.mrb[0].mxu0
        %6622 = vmatprep.mubr.f32.mxu0 0.0
        %6623 = vmatmul.mubr.f32.gmra.mrb[0].mxu0 %v6546
        %v6624 = vpop.f32.mrb[0].mxu0
        %v6625 = vadd.f32 0.0, %v6624
        %v6626 = vpop.f32.mrb[0].mxu0
        %6627 = vdwg.mxu0
        %v6628 = vadd.f32 %v6530, %v6615
        %v6629 = vadd.f32 %v6531, %v6620
        %v6630 = vadd.f32 %v6532, %v6625
        %v6631 = vld [vmem:[#allocation6 + $0xd] sm:$0xff]
        %v6632 = vld [vmem:[#allocation6 + $0x15] sm:$0xff]
        %v6633 = vld [vmem:[#allocation6 + $0x1d] sm:$0xff]
        %s6634 = scalar_lea.vmem %s5, 80
        %v6635 = vld [vmem:[%s6634] sm:$0xff]
        %v6636 = vld [vmem:[%s6634 + $0x8] sm:$0xff]
        %v6638 = vsel %vm432, %v6631, 0
        %v6641 = vsel %vm432, %v6632, 0
        %v6644 = vsel %vm432, %v6633, 0
        %6646 = vmatprep.subr.mxu0 0.0
        %6647 = vmatpush1.msra.mxu0 %v6635
        %6648 = vmatprep.subr.mxu0 0.0
        %6649 = vmatpush1.msra.mxu0 %v6636
        %6650 = vmatprep.subr.mxu0 0.0
        %6651 = vmatpush1.msra.mxu0 0.0
        %6652 = vmatprep.subr.mxu0 0.0
        %6653 = vmatpush1.msra.mxu0 0.0
        %6654 = vmatprep.subr.mxu0 0.0
        %6655 = vmatpush1.msra.mxu0 0.0
        %6656 = vmatprep.subr.mxu0 0.0
        %6657 = vmatpush1.msra.mxu0 0.0
        %6658 = vmatprep.subr.mxu0 0.0
        %6659 = vmatpush1.msra.mxu0 0.0
        %6660 = vmatprep.subr.mxu0 0.0
        %6661 = vmatpush1.msra.mxu0 0.0
        %6662 = vmatprep.subr.mxu0 0.0
        %6663 = vmatpush1.msra.mxu0 0.0
        %6664 = vmatprep.subr.mxu0 0.0
        %6665 = vmatpush1.msra.mxu0 0.0
        %6666 = vmatprep.subr.mxu0 0.0
        %6667 = vmatpush1.msra.mxu0 0.0
        %6668 = vmatprep.subr.mxu0 0.0
        %6669 = vmatpush1.msra.mxu0 0.0
        %6670 = vmatprep.subr.mxu0 0.0
        %6671 = vmatpush1.msra.mxu0 0.0
        %6672 = vmatprep.subr.mxu0 0.0
        %6673 = vmatpush1.msra.mxu0 0.0
        %6674 = vmatprep.subr.mxu0 0.0
        %6675 = vmatpush1.msra.mxu0 0.0
        %6676 = vmatprep.subr.mxu0 0.0
        %6677 = vmatpush1.msra.mxu0 0.0
        %6678 = vmatprep.subr.mxu0 0.0
        %6679 = vmatpush1.msra.mxu0 0.0
        %6680 = vmatprep.subr.mxu0 0.0
        %6681 = vmatpush1.msra.mxu0 0.0
        %6682 = vmatprep.subr.mxu0 0.0
        %6683 = vmatpush1.msra.mxu0 0.0
        %6684 = vmatprep.subr.mxu0 0.0
        %6685 = vmatpush1.msra.mxu0 0.0
        %6686 = vmatprep.subr.mxu0 0.0
        %6687 = vmatpush1.msra.mxu0 0.0
        %6688 = vmatprep.subr.mxu0 0.0
        %6689 = vmatpush1.msra.mxu0 0.0
        %6690 = vmatprep.subr.mxu0 0.0
        %6691 = vmatpush1.msra.mxu0 0.0
        %6692 = vmatprep.subr.mxu0 0.0
        %6693 = vmatpush1.msra.mxu0 0.0
        %6694 = vmatprep.subr.mxu0 0.0
        %6695 = vmatpush1.msra.mxu0 0.0
        %6696 = vmatprep.subr.mxu0 0.0
        %6697 = vmatpush1.msra.mxu0 0.0
        %6698 = vmatprep.subr.mxu0 0.0
        %6699 = vmatpush1.msra.mxu0 0.0
        %6700 = vmatprep.subr.mxu0 0.0
        %6701 = vmatpush1.msra.mxu0 0.0
        %6702 = vmatprep.subr.mxu0 0.0
        %6703 = vmatpush1.msra.mxu0 0.0
        %6704 = vmatprep.subr.mxu0 0.0
        %6705 = vmatpush1.msra.mxu0 0.0
        %6706 = vmatprep.subr.mxu0 0.0
        %6707 = vmatpush1.msra.mxu0 0.0
        %6708 = vmatprep.subr.mxu0 0.0
        %6709 = vmatpush1.msra.mxu0 0.0
        %6710 = vmatprep.mubr.f32.mxu0 0.0
        %6711 = vmatmul.mubr.f32.gmra.mrb[0].mxu0 %v6638
        %v6712 = vpop.f32.mrb[0].mxu0
        %v6713 = vadd.f32 0.0, %v6712
        %v6714 = vpop.f32.mrb[0].mxu0
        %6715 = vmatprep.mubr.f32.mxu0 0.0
        %6716 = vmatmul.mubr.f32.gmra.mrb[0].mxu0 %v6641
        %v6717 = vpop.f32.mrb[0].mxu0
        %v6718 = vadd.f32 0.0, %v6717
        %v6719 = vpop.f32.mrb[0].mxu0
        %6720 = vmatprep.mubr.f32.mxu0 0.0
        %6721 = vmatmul.mubr.f32.gmra.mrb[0].mxu0 %v6644
        %v6722 = vpop.f32.mrb[0].mxu0
        %v6723 = vadd.f32 0.0, %v6722
        %v6724 = vpop.f32.mrb[0].mxu0
        %6725 = vdwg.mxu0
        %v6726 = vadd.f32 %v6628, %v6713
        %v6727 = vadd.f32 %v6629, %v6718
        %v6728 = vadd.f32 %v6630, %v6723
        %v6729 = vld [vmem:[#allocation6 + $0x11] sm:$0xff]
        %v6730 = vld [vmem:[#allocation6 + $0x19] sm:$0xff]
        %v6731 = vld [vmem:[#allocation6 + $0x21] sm:$0xff]
        %s6732 = scalar_lea.vmem %s5, 96
        %v6733 = vld [vmem:[%s6732] sm:$0xff]
        %v6734 = vld [vmem:[%s6732 + $0x8] sm:$0xff]
        %v6736 = vsel %vm432, %v6729, 0
        %v6739 = vsel %vm432, %v6730, 0
        %v6742 = vsel %vm432, %v6731, 0
        %6744 = vmatprep.subr.mxu0 0.0
        %6745 = vmatpush1.msra.mxu0 %v6733
        %6746 = vmatprep.subr.mxu0 0.0
        %6747 = vmatpush1.msra.mxu0 %v6734
        %6748 = vmatprep.subr.mxu0 0.0
        %6749 = vmatpush1.msra.mxu0 0.0
        %6750 = vmatprep.subr.mxu0 0.0
        %6751 = vmatpush1.msra.mxu0 0.0
        %6752 = vmatprep.subr.mxu0 0.0
        %6753 = vmatpush1.msra.mxu0 0.0
        %6754 = vmatprep.subr.mxu0 0.0
        %6755 = vmatpush1.msra.mxu0 0.0
        %6756 = vmatprep.subr.mxu0 0.0
        %6757 = vmatpush1.msra.mxu0 0.0
        %6758 = vmatprep.subr.mxu0 0.0
        %6759 = vmatpush1.msra.mxu0 0.0
        %6760 = vmatprep.subr.mxu0 0.0
        %6761 = vmatpush1.msra.mxu0 0.0
        %6762 = vmatprep.subr.mxu0 0.0
        %6763 = vmatpush1.msra.mxu0 0.0
        %6764 = vmatprep.subr.mxu0 0.0
        %6765 = vmatpush1.msra.mxu0 0.0
        %6766 = vmatprep.subr.mxu0 0.0
        %6767 = vmatpush1.msra.mxu0 0.0
        %6768 = vmatprep.subr.mxu0 0.0
        %6769 = vmatpush1.msra.mxu0 0.0
        %6770 = vmatprep.subr.mxu0 0.0
        %6771 = vmatpush1.msra.mxu0 0.0
        %6772 = vmatprep.subr.mxu0 0.0
        %6773 = vmatpush1.msra.mxu0 0.0
        %6774 = vmatprep.subr.mxu0 0.0
        %6775 = vmatpush1.msra.mxu0 0.0
        %6776 = vmatprep.subr.mxu0 0.0
        %6777 = vmatpush1.msra.mxu0 0.0
        %6778 = vmatprep.subr.mxu0 0.0
        %6779 = vmatpush1.msra.mxu0 0.0
        %6780 = vmatprep.subr.mxu0 0.0
        %6781 = vmatpush1.msra.mxu0 0.0
        %6782 = vmatprep.subr.mxu0 0.0
        %6783 = vmatpush1.msra.mxu0 0.0
        %6784 = vmatprep.subr.mxu0 0.0
        %6785 = vmatpush1.msra.mxu0 0.0
        %6786 = vmatprep.subr.mxu0 0.0
        %6787 = vmatpush1.msra.mxu0 0.0
        %6788 = vmatprep.subr.mxu0 0.0
        %6789 = vmatpush1.msra.mxu0 0.0
        %6790 = vmatprep.subr.mxu0 0.0
        %6791 = vmatpush1.msra.mxu0 0.0
        %6792 = vmatprep.subr.mxu0 0.0
        %6793 = vmatpush1.msra.mxu0 0.0
        %6794 = vmatprep.subr.mxu0 0.0
        %6795 = vmatpush1.msra.mxu0 0.0
        %6796 = vmatprep.subr.mxu0 0.0
        %6797 = vmatpush1.msra.mxu0 0.0
        %6798 = vmatprep.subr.mxu0 0.0
        %6799 = vmatpush1.msra.mxu0 0.0
        %6800 = vmatprep.subr.mxu0 0.0
        %6801 = vmatpush1.msra.mxu0 0.0
        %6802 = vmatprep.subr.mxu0 0.0
        %6803 = vmatpush1.msra.mxu0 0.0
        %6804 = vmatprep.subr.mxu0 0.0
        %6805 = vmatpush1.msra.mxu0 0.0
        %6806 = vmatprep.subr.mxu0 0.0
        %6807 = vmatpush1.msra.mxu0 0.0
        %6808 = vmatprep.mubr.f32.mxu0 0.0
        %6809 = vmatmul.mubr.f32.gmra.mrb[0].mxu0 %v6736
        %v6810 = vpop.f32.mrb[0].mxu0
        %v6811 = vadd.f32 0.0, %v6810
        %v6812 = vpop.f32.mrb[0].mxu0
        %6813 = vmatprep.mubr.f32.mxu0 0.0
        %6814 = vmatmul.mubr.f32.gmra.mrb[0].mxu0 %v6739
        %v6815 = vpop.f32.mrb[0].mxu0
        %v6816 = vadd.f32 0.0, %v6815
        %v6817 = vpop.f32.mrb[0].mxu0
        %6818 = vmatprep.mubr.f32.mxu0 0.0
        %6819 = vmatmul.mubr.f32.gmra.mrb[0].mxu0 %v6742
        %v6820 = vpop.f32.mrb[0].mxu0
        %v6821 = vadd.f32 0.0, %v6820
        %v6822 = vpop.f32.mrb[0].mxu0
        %6823 = vdwg.mxu0
        %v6824 = vadd.f32 %v6726, %v6811
        %v6825 = vadd.f32 %v6727, %v6816
        %v6826 = vadd.f32 %v6728, %v6821
        %v6827 = vld [vmem:[#allocation6 + $0x12] sm:$0xff]
        %v6828 = vld [vmem:[#allocation6 + $0x1a] sm:$0xff]
        %v6829 = vld [vmem:[#allocation6 + $0x22] sm:$0xff]
        %s6830 = scalar_lea.vmem %s5, 112
        %v6831 = vld [vmem:[%s6830] sm:$0xff]
        %v6832 = vld [vmem:[%s6830 + $0x8] sm:$0xff]
        %v6834 = vsel %vm432, %v6827, 0
        %v6837 = vsel %vm432, %v6828, 0
        %v6840 = vsel %vm432, %v6829, 0
        %6842 = vmatprep.subr.mxu0 0.0
        %6843 = vmatpush1.msra.mxu0 %v6831
        %6844 = vmatprep.subr.mxu0 0.0
        %6845 = vmatpush1.msra.mxu0 %v6832
        %6846 = vmatprep.subr.mxu0 0.0
        %6847 = vmatpush1.msra.mxu0 0.0
        %6848 = vmatprep.subr.mxu0 0.0
        %6849 = vmatpush1.msra.mxu0 0.0
        %6850 = vmatprep.subr.mxu0 0.0
        %6851 = vmatpush1.msra.mxu0 0.0
        %6852 = vmatprep.subr.mxu0 0.0
        %6853 = vmatpush1.msra.mxu0 0.0
        %6854 = vmatprep.subr.mxu0 0.0
        %6855 = vmatpush1.msra.mxu0 0.0
        %6856 = vmatprep.subr.mxu0 0.0
        %6857 = vmatpush1.msra.mxu0 0.0
        %6858 = vmatprep.subr.mxu0 0.0
        %6859 = vmatpush1.msra.mxu0 0.0
        %6860 = vmatprep.subr.mxu0 0.0
        %6861 = vmatpush1.msra.mxu0 0.0
        %6862 = vmatprep.subr.mxu0 0.0
        %6863 = vmatpush1.msra.mxu0 0.0
        %6864 = vmatprep.subr.mxu0 0.0
        %6865 = vmatpush1.msra.mxu0 0.0
        %6866 = vmatprep.subr.mxu0 0.0
        %6867 = vmatpush1.msra.mxu0 0.0
        %6868 = vmatprep.subr.mxu0 0.0
        %6869 = vmatpush1.msra.mxu0 0.0
        %6870 = vmatprep.subr.mxu0 0.0
        %6871 = vmatpush1.msra.mxu0 0.0
        %6872 = vmatprep.subr.mxu0 0.0
        %6873 = vmatpush1.msra.mxu0 0.0
        %6874 = vmatprep.subr.mxu0 0.0
        %6875 = vmatpush1.msra.mxu0 0.0
        %6876 = vmatprep.subr.mxu0 0.0
        %6877 = vmatpush1.msra.mxu0 0.0
        %6878 = vmatprep.subr.mxu0 0.0
        %6879 = vmatpush1.msra.mxu0 0.0
        %6880 = vmatprep.subr.mxu0 0.0
        %6881 = vmatpush1.msra.mxu0 0.0
        %6882 = vmatprep.subr.mxu0 0.0
        %6883 = vmatpush1.msra.mxu0 0.0
        %6884 = vmatprep.subr.mxu0 0.0
        %6885 = vmatpush1.msra.mxu0 0.0
        %6886 = vmatprep.subr.mxu0 0.0
        %6887 = vmatpush1.msra.mxu0 0.0
        %6888 = vmatprep.subr.mxu0 0.0
        %6889 = vmatpush1.msra.mxu0 0.0
        %6890 = vmatprep.subr.mxu0 0.0
        %6891 = vmatpush1.msra.mxu0 0.0
        %6892 = vmatprep.subr.mxu0 0.0
        %6893 = vmatpush1.msra.mxu0 0.0
        %6894 = vmatprep.subr.mxu0 0.0
        %6895 = vmatpush1.msra.mxu0 0.0
        %6896 = vmatprep.subr.mxu0 0.0
        %6897 = vmatpush1.msra.mxu0 0.0
        %6898 = vmatprep.subr.mxu0 0.0
        %6899 = vmatpush1.msra.mxu0 0.0
        %6900 = vmatprep.subr.mxu0 0.0
        %6901 = vmatpush1.msra.mxu0 0.0
        %6902 = vmatprep.subr.mxu0 0.0
        %6903 = vmatpush1.msra.mxu0 0.0
        %6904 = vmatprep.subr.mxu0 0.0
        %6905 = vmatpush1.msra.mxu0 0.0
        %6906 = vmatprep.mubr.f32.mxu0 0.0
        %6907 = vmatmul.mubr.f32.gmra.mrb[0].mxu0 %v6834
        %v6908 = vpop.f32.mrb[0].mxu0
        %v6909 = vadd.f32 0.0, %v6908
        %v6910 = vpop.f32.mrb[0].mxu0
        %6911 = vmatprep.mubr.f32.mxu0 0.0
        %6912 = vmatmul.mubr.f32.gmra.mrb[0].mxu0 %v6837
        %v6913 = vpop.f32.mrb[0].mxu0
        %v6914 = vadd.f32 0.0, %v6913
        %v6915 = vpop.f32.mrb[0].mxu0
        %6916 = vmatprep.mubr.f32.mxu0 0.0
        %6917 = vmatmul.mubr.f32.gmra.mrb[0].mxu0 %v6840
        %v6918 = vpop.f32.mrb[0].mxu0
        %v6919 = vadd.f32 0.0, %v6918
        %v6920 = vpop.f32.mrb[0].mxu0
        %6921 = vdwg.mxu0
        %v6922 = vadd.f32 %v6824, %v6909
        %v6923 = vadd.f32 %v6825, %v6914
        %v6924 = vadd.f32 %v6826, %v6919
        %v6925 = vld [vmem:[#allocation6 + $0x13] sm:$0xff]
        %v6926 = vld [vmem:[#allocation6 + $0x1b] sm:$0xff]
        %v6927 = vld [vmem:[#allocation6 + $0x23] sm:$0xff]
        %s6928 = scalar_lea.vmem %s5, 128
        %v6929 = vld [vmem:[%s6928] sm:$0xff]
        %v6930 = vld [vmem:[%s6928 + $0x8] sm:$0xff]
        %v6932 = vsel %vm432, %v6925, 0
        %v6935 = vsel %vm432, %v6926, 0
        %v6938 = vsel %vm432, %v6927, 0
        %6940 = vmatprep.subr.mxu0 0.0
        %6941 = vmatpush1.msra.mxu0 %v6929
        %6942 = vmatprep.subr.mxu0 0.0
        %6943 = vmatpush1.msra.mxu0 %v6930
        %6944 = vmatprep.subr.mxu0 0.0
        %6945 = vmatpush1.msra.mxu0 0.0
        %6946 = vmatprep.subr.mxu0 0.0
        %6947 = vmatpush1.msra.mxu0 0.0
        %6948 = vmatprep.subr.mxu0 0.0
        %6949 = vmatpush1.msra.mxu0 0.0
        %6950 = vmatprep.subr.mxu0 0.0
        %6951 = vmatpush1.msra.mxu0 0.0
        %6952 = vmatprep.subr.mxu0 0.0
        %6953 = vmatpush1.msra.mxu0 0.0
        %6954 = vmatprep.subr.mxu0 0.0
        %6955 = vmatpush1.msra.mxu0 0.0
        %6956 = vmatprep.subr.mxu0 0.0
        %6957 = vmatpush1.msra.mxu0 0.0
        %6958 = vmatprep.subr.mxu0 0.0
        %6959 = vmatpush1.msra.mxu0 0.0
        %6960 = vmatprep.subr.mxu0 0.0
        %6961 = vmatpush1.msra.mxu0 0.0
        %6962 = vmatprep.subr.mxu0 0.0
        %6963 = vmatpush1.msra.mxu0 0.0
        %6964 = vmatprep.subr.mxu0 0.0
        %6965 = vmatpush1.msra.mxu0 0.0
        %6966 = vmatprep.subr.mxu0 0.0
        %6967 = vmatpush1.msra.mxu0 0.0
        %6968 = vmatprep.subr.mxu0 0.0
        %6969 = vmatpush1.msra.mxu0 0.0
        %6970 = vmatprep.subr.mxu0 0.0
        %6971 = vmatpush1.msra.mxu0 0.0
        %6972 = vmatprep.subr.mxu0 0.0
        %6973 = vmatpush1.msra.mxu0 0.0
        %6974 = vmatprep.subr.mxu0 0.0
        %6975 = vmatpush1.msra.mxu0 0.0
        %6976 = vmatprep.subr.mxu0 0.0
        %6977 = vmatpush1.msra.mxu0 0.0
        %6978 = vmatprep.subr.mxu0 0.0
        %6979 = vmatpush1.msra.mxu0 0.0
        %6980 = vmatprep.subr.mxu0 0.0
        %6981 = vmatpush1.msra.mxu0 0.0
        %6982 = vmatprep.subr.mxu0 0.0
        %6983 = vmatpush1.msra.mxu0 0.0
        %6984 = vmatprep.subr.mxu0 0.0
        %6985 = vmatpush1.msra.mxu0 0.0
        %6986 = vmatprep.subr.mxu0 0.0
        %6987 = vmatpush1.msra.mxu0 0.0
        %6988 = vmatprep.subr.mxu0 0.0
        %6989 = vmatpush1.msra.mxu0 0.0
        %6990 = vmatprep.subr.mxu0 0.0
        %6991 = vmatpush1.msra.mxu0 0.0
        %6992 = vmatprep.subr.mxu0 0.0
        %6993 = vmatpush1.msra.mxu0 0.0
        %6994 = vmatprep.subr.mxu0 0.0
        %6995 = vmatpush1.msra.mxu0 0.0
        %6996 = vmatprep.subr.mxu0 0.0
        %6997 = vmatpush1.msra.mxu0 0.0
        %6998 = vmatprep.subr.mxu0 0.0
        %6999 = vmatpush1.msra.mxu0 0.0
        %7000 = vmatprep.subr.mxu0 0.0
        %7001 = vmatpush1.msra.mxu0 0.0
        %7002 = vmatprep.subr.mxu0 0.0
        %7003 = vmatpush1.msra.mxu0 0.0
        %7004 = vmatprep.mubr.f32.mxu0 0.0
        %7005 = vmatmul.mubr.f32.gmra.mrb[0].mxu0 %v6932
        %v7006 = vpop.f32.mrb[0].mxu0
        %v7007 = vadd.f32 0.0, %v7006
        %v7008 = vpop.f32.mrb[0].mxu0
        %7009 = vmatprep.mubr.f32.mxu0 0.0
        %7010 = vmatmul.mubr.f32.gmra.mrb[0].mxu0 %v6935
        %v7011 = vpop.f32.mrb[0].mxu0
        %v7012 = vadd.f32 0.0, %v7011
        %v7013 = vpop.f32.mrb[0].mxu0
        %7014 = vmatprep.mubr.f32.mxu0 0.0
        %7015 = vmatmul.mubr.f32.gmra.mrb[0].mxu0 %v6938
        %v7016 = vpop.f32.mrb[0].mxu0
        %v7017 = vadd.f32 0.0, %v7016
        %v7018 = vpop.f32.mrb[0].mxu0
        %7019 = vdwg.mxu0
        %v7020 = vadd.f32 %v6922, %v7007
        %v7021 = vadd.f32 %v6923, %v7012
        %v7022 = vadd.f32 %v6924, %v7017
        %v7023 = vld [vmem:[%s6] sm:$0x1]
        %v7025 = vlaneseq
        %v7026 = vshrl.u32 %v7025, 7
        %v7027 = vsub.s32 0, %v7026
        %v7028 = vrot.slane %v7023, %v7027
        %v7030 = vadd.f32 %v7020, %v7028
        %v7031 = vadd.f32 %v7021, %v7028
        %v7032 = vadd.f32 %v7022, %v7028
        %v7033 = vmax.f32 %v7030, 0.0
        %v7034 = vmax.f32 %v7031, 0.0
        %v7035 = vmax.f32 %v7032, 0.0
        %7036 = vst.msk [vmem:[#allocation7] sm:$0xff] %vm439, %v7033
        %7037 = vst.msk [vmem:[#allocation7 + $0x8] sm:$0xff] %vm439, %v7034
        %7038 = vst.msk [vmem:[#allocation7 + $0x10] sm:$0xff] %vm439, %v7035
        %s7039 = scalar_lea.vmem [#allocation7], 1
        %v7040 = vld [vmem:[%s7039] ss:$2 sm:$0x3]
        %s7041 = scalar_lea.vmem [#allocation7], 2
        %v7042 = vld [vmem:[%s7041] ss:$2 sm:$0x3]
        %s7043 = scalar_lea.vmem [#allocation7], 7
        %v7044 = vld [vmem:[%s7043] ss:$2 sm:$0x3]
        %s7045 = scalar_lea.vmem [#allocation7], 8
        %v7046 = vld [vmem:[%s7045] ss:$2 sm:$0x3]
        %v7047 = vmax.f32 %v7040, %v7042
        %v7048 = vmax.f32 %v7044, %v7046
        %v7049 = vmax.f32 %v7047, %v7048
        %vm7050 = vcmask 254976
        %7051 = vst.msk [vmem:[#allocation8 + $0x9] sm:$0x3] %vm7050, %v7049
        %v7052 = vsel %vm7050, %v7049, 0.0
        %7053 = vadd.xlane.f32.xlu0 %v7052
        %v7054 = vpop.xlane.xlu0 %7053
        %v7055 = vrcp.pop 32.0
        %v7056 = vmul.f32 %v7054, %v7055
        %vm7057 = vcmask 1024
        %7058 = vst.msk [vmem:[#allocation12] sm:$0x3] %vm7057, %v7056
        %s7059 = scalar_lea.vmem [#allocation7], 13
        %v7060 = vld [vmem:[%s7059] ss:$2 sm:$0x3]
        %s7061 = scalar_lea.vmem [#allocation7], 14
        %v7062 = vld [vmem:[%s7061] ss:$2 sm:$0x3]
        %s7063 = scalar_lea.vmem [#allocation7], 19
        %v7064 = vld [vmem:[%s7063] ss:$2 sm:$0x3]
        %s7065 = scalar_lea.vmem [#allocation7], 20
        %v7066 = vld [vmem:[%s7065] ss:$2 sm:$0x3]
        %v7067 = vmax.f32 %v7060, %v7062
        %v7068 = vmax.f32 %v7064, %v7066
        %v7069 = vmax.f32 %v7067, %v7068
        %7070 = vst.msk [vmem:[#allocation8 + $0xd] sm:$0x3] %vm7050, %v7069
        %v7071 = vsel %vm7050, %v7069, 0.0
        %7072 = vadd.xlane.f32.xlu0 %v7071
        %v7073 = vpop.xlane.xlu0 %7072
        %v7074 = vmul.f32 %v7073, %v7055
        %7075 = vst.msk [vmem:[#allocation12 + $0x2] sm:$0x3] %vm7057, %v7074
        %v7076 = vld [vmem:[#allocation8 + $0x3] sm:$0xff]
        %v7077 = vld [vmem:[%s7] sm:$0xff]
        %v7078 = vld [vmem:[%s7 + $0x8] sm:$0xff]
        %v7079 = vld [vmem:[%s7 + $0x10] sm:$0xff]
        %v7080 = vld [vmem:[%s7 + $0x18] sm:$0xff]
        %v7081 = vld [vmem:[#allocation8 + $0x4] sm:$0xff]
        %s7082 = scalar_lea.vmem %s7, 32
        %v7083 = vld [vmem:[%s7082] sm:$0xff]
        %v7084 = vld [vmem:[%s7082 + $0x8] sm:$0xff]
        %v7085 = vld [vmem:[%s7082 + $0x10] sm:$0xff]
        %v7086 = vld [vmem:[%s7082 + $0x18] sm:$0xff]
        %v7088 = vsel %vm439, %v7081, 0
        %7090 = vmatprep.subr.mxu0 0.0
        %7091 = vmatpush1.msra.mxu0 %v7083
        %7092 = vmatprep.subr.mxu0 0.0
        %7093 = vmatpush1.msra.mxu0 %v7084
        %7094 = vmatprep.subr.mxu0 0.0
        %7095 = vmatpush1.msra.mxu0 %v7085
        %7096 = vmatprep.subr.mxu0 0.0
        %7097 = vmatpush1.msra.mxu0 %v7086
        %7098 = vmatprep.subr.mxu0 0.0
        %7099 = vmatpush1.msra.mxu0 0.0
        %7100 = vmatprep.subr.mxu0 0.0
        %7101 = vmatpush1.msra.mxu0 0.0
        %7102 = vmatprep.subr.mxu0 0.0
        %7103 = vmatpush1.msra.mxu0 0.0
        %7104 = vmatprep.subr.mxu0 0.0
        %7105 = vmatpush1.msra.mxu0 0.0
        %7106 = vmatprep.subr.mxu0 0.0
        %7107 = vmatpush1.msra.mxu0 0.0
        %7108 = vmatprep.subr.mxu0 0.0
        %7109 = vmatpush1.msra.mxu0 0.0
        %7110 = vmatprep.subr.mxu0 0.0
        %7111 = vmatpush1.msra.mxu0 0.0
        %7112 = vmatprep.subr.mxu0 0.0
        %7113 = vmatpush1.msra.mxu0 0.0
        %7114 = vmatprep.subr.mxu0 0.0
        %7115 = vmatpush1.msra.mxu0 0.0
        %7116 = vmatprep.subr.mxu0 0.0
        %7117 = vmatpush1.msra.mxu0 0.0
        %7118 = vmatprep.subr.mxu0 0.0
        %7119 = vmatpush1.msra.mxu0 0.0
        %7120 = vmatprep.subr.mxu0 0.0
        %7121 = vmatpush1.msra.mxu0 0.0
        %7122 = vmatprep.subr.mxu0 0.0
        %7123 = vmatpush1.msra.mxu0 0.0
        %7124 = vmatprep.subr.mxu0 0.0
        %7125 = vmatpush1.msra.mxu0 0.0
        %7126 = vmatprep.subr.mxu0 0.0
        %7127 = vmatpush1.msra.mxu0 0.0
        %7128 = vmatprep.subr.mxu0 0.0
        %7129 = vmatpush1.msra.mxu0 0.0
        %7130 = vmatprep.subr.mxu0 0.0
        %7131 = vmatpush1.msra.mxu0 0.0
        %7132 = vmatprep.subr.mxu0 0.0
        %7133 = vmatpush1.msra.mxu0 0.0
        %7134 = vmatprep.subr.mxu0 0.0
        %7135 = vmatpush1.msra.mxu0 0.0
        %7136 = vmatprep.subr.mxu0 0.0
        %7137 = vmatpush1.msra.mxu0 0.0
        %7138 = vmatprep.subr.mxu0 0.0
        %7139 = vmatpush1.msra.mxu0 0.0
        %7140 = vmatprep.subr.mxu0 0.0
        %7141 = vmatpush1.msra.mxu0 0.0
        %7142 = vmatprep.subr.mxu0 0.0
        %7143 = vmatpush1.msra.mxu0 0.0
        %7144 = vmatprep.subr.mxu0 0.0
        %7145 = vmatpush1.msra.mxu0 0.0
        %7146 = vmatprep.subr.mxu0 0.0
        %7147 = vmatpush1.msra.mxu0 0.0
        %7148 = vmatprep.subr.mxu0 0.0
        %7149 = vmatpush1.msra.mxu0 0.0
        %7150 = vmatprep.subr.mxu0 0.0
        %7151 = vmatpush1.msra.mxu0 0.0
        %7152 = vmatprep.subr.mxu0 0.0
        %7153 = vmatpush1.msra.mxu0 0.0
        %7154 = vmatprep.mubr.f32.mxu0 0.0
        %7155 = vmatmul.mubr.f32.gmra.mrb[0].mxu0 %v7088
        %v7156 = vpop.f32.mrb[0].mxu0
        %v7157 = vadd.f32 0.0, %v7156
        %v7158 = vpop.f32.mrb[0].mxu0
        %7159 = vdwg.mxu0
        %v7161 = vsel %vm439, %v7076, 0
        %7163 = vmatprep.subr.mxu0 0.0
        %7164 = vmatpush1.msra.mxu0 %v7077
        %7165 = vmatprep.subr.mxu0 0.0
        %7166 = vmatpush1.msra.mxu0 %v7078
        %7167 = vmatprep.subr.mxu0 0.0
        %7168 = vmatpush1.msra.mxu0 %v7079
        %7169 = vmatprep.subr.mxu0 0.0
        %7170 = vmatpush1.msra.mxu0 %v7080
        %7171 = vmatprep.subr.mxu0 0.0
        %7172 = vmatpush1.msra.mxu0 0.0
        %7173 = vmatprep.subr.mxu0 0.0
        %7174 = vmatpush1.msra.mxu0 0.0
        %7175 = vmatprep.subr.mxu0 0.0
        %7176 = vmatpush1.msra.mxu0 0.0
        %7177 = vmatprep.subr.mxu0 0.0
        %7178 = vmatpush1.msra.mxu0 0.0
        %7179 = vmatprep.subr.mxu0 0.0
        %7180 = vmatpush1.msra.mxu0 0.0
        %7181 = vmatprep.subr.mxu0 0.0
        %7182 = vmatpush1.msra.mxu0 0.0
        %7183 = vmatprep.subr.mxu0 0.0
        %7184 = vmatpush1.msra.mxu0 0.0
        %7185 = vmatprep.subr.mxu0 0.0
        %7186 = vmatpush1.msra.mxu0 0.0
        %7187 = vmatprep.subr.mxu0 0.0
        %7188 = vmatpush1.msra.mxu0 0.0
        %7189 = vmatprep.subr.mxu0 0.0
        %7190 = vmatpush1.msra.mxu0 0.0
        %7191 = vmatprep.subr.mxu0 0.0
        %7192 = vmatpush1.msra.mxu0 0.0
        %7193 = vmatprep.subr.mxu0 0.0
        %7194 = vmatpush1.msra.mxu0 0.0
        %7195 = vmatprep.subr.mxu0 0.0
        %7196 = vmatpush1.msra.mxu0 0.0
        %7197 = vmatprep.subr.mxu0 0.0
        %7198 = vmatpush1.msra.mxu0 0.0
        %7199 = vmatprep.subr.mxu0 0.0
        %7200 = vmatpush1.msra.mxu0 0.0
        %7201 = vmatprep.subr.mxu0 0.0
        %7202 = vmatpush1.msra.mxu0 0.0
        %7203 = vmatprep.subr.mxu0 0.0
        %7204 = vmatpush1.msra.mxu0 0.0
        %7205 = vmatprep.subr.mxu0 0.0
        %7206 = vmatpush1.msra.mxu0 0.0
        %7207 = vmatprep.subr.mxu0 0.0
        %7208 = vmatpush1.msra.mxu0 0.0
        %7209 = vmatprep.subr.mxu0 0.0
        %7210 = vmatpush1.msra.mxu0 0.0
        %7211 = vmatprep.subr.mxu0 0.0
        %7212 = vmatpush1.msra.mxu0 0.0
        %7213 = vmatprep.subr.mxu0 0.0
        %7214 = vmatpush1.msra.mxu0 0.0
        %7215 = vmatprep.subr.mxu0 0.0
        %7216 = vmatpush1.msra.mxu0 0.0
        %7217 = vmatprep.subr.mxu0 0.0
        %7218 = vmatpush1.msra.mxu0 0.0
        %7219 = vmatprep.subr.mxu0 0.0
        %7220 = vmatpush1.msra.mxu0 0.0
        %7221 = vmatprep.subr.mxu0 0.0
        %7222 = vmatpush1.msra.mxu0 0.0
        %7223 = vmatprep.subr.mxu0 0.0
        %7224 = vmatpush1.msra.mxu0 0.0
        %7225 = vmatprep.subr.mxu0 0.0
        %7226 = vmatpush1.msra.mxu0 0.0
        %7227 = vmatprep.mubr.f32.mxu0 0.0
        %7228 = vmatmul.mubr.f32.gmra.mrb[0].mxu0 %v7161
        %v7229 = vpop.f32.mrb[0].mxu0
        %v7230 = vadd.f32 %v7157, %v7229
        %v7231 = vpop.f32.mrb[0].mxu0
        %7232 = vdwg.mxu0
        %v7233 = vld [vmem:[#allocation8 + $0x5] sm:$0xff]
        %s7234 = scalar_lea.vmem %s7, 64
        %v7235 = vld [vmem:[%s7234] sm:$0xff]
        %v7236 = vld [vmem:[%s7234 + $0x8] sm:$0xff]
        %v7237 = vld [vmem:[%s7234 + $0x10] sm:$0xff]
        %v7238 = vld [vmem:[%s7234 + $0x18] sm:$0xff]
        %v7240 = vsel %vm439, %v7233, 0
        %7242 = vmatprep.subr.mxu0 0.0
        %7243 = vmatpush1.msra.mxu0 %v7235
        %7244 = vmatprep.subr.mxu0 0.0
        %7245 = vmatpush1.msra.mxu0 %v7236
        %7246 = vmatprep.subr.mxu0 0.0
        %7247 = vmatpush1.msra.mxu0 %v7237
        %7248 = vmatprep.subr.mxu0 0.0
        %7249 = vmatpush1.msra.mxu0 %v7238
        %7250 = vmatprep.subr.mxu0 0.0
        %7251 = vmatpush1.msra.mxu0 0.0
        %7252 = vmatprep.subr.mxu0 0.0
        %7253 = vmatpush1.msra.mxu0 0.0
        %7254 = vmatprep.subr.mxu0 0.0
        %7255 = vmatpush1.msra.mxu0 0.0
        %7256 = vmatprep.subr.mxu0 0.0
        %7257 = vmatpush1.msra.mxu0 0.0
        %7258 = vmatprep.subr.mxu0 0.0
        %7259 = vmatpush1.msra.mxu0 0.0
        %7260 = vmatprep.subr.mxu0 0.0
        %7261 = vmatpush1.msra.mxu0 0.0
        %7262 = vmatprep.subr.mxu0 0.0
        %7263 = vmatpush1.msra.mxu0 0.0
        %7264 = vmatprep.subr.mxu0 0.0
        %7265 = vmatpush1.msra.mxu0 0.0
        %7266 = vmatprep.subr.mxu0 0.0
        %7267 = vmatpush1.msra.mxu0 0.0
        %7268 = vmatprep.subr.mxu0 0.0
        %7269 = vmatpush1.msra.mxu0 0.0
        %7270 = vmatprep.subr.mxu0 0.0
        %7271 = vmatpush1.msra.mxu0 0.0
        %7272 = vmatprep.subr.mxu0 0.0
        %7273 = vmatpush1.msra.mxu0 0.0
        %7274 = vmatprep.subr.mxu0 0.0
        %7275 = vmatpush1.msra.mxu0 0.0
        %7276 = vmatprep.subr.mxu0 0.0
        %7277 = vmatpush1.msra.mxu0 0.0
        %7278 = vmatprep.subr.mxu0 0.0
        %7279 = vmatpush1.msra.mxu0 0.0
        %7280 = vmatprep.subr.mxu0 0.0
        %7281 = vmatpush1.msra.mxu0 0.0
        %7282 = vmatprep.subr.mxu0 0.0
        %7283 = vmatpush1.msra.mxu0 0.0
        %7284 = vmatprep.subr.mxu0 0.0
        %7285 = vmatpush1.msra.mxu0 0.0
        %7286 = vmatprep.subr.mxu0 0.0
        %7287 = vmatpush1.msra.mxu0 0.0
        %7288 = vmatprep.subr.mxu0 0.0
        %7289 = vmatpush1.msra.mxu0 0.0
        %7290 = vmatprep.subr.mxu0 0.0
        %7291 = vmatpush1.msra.mxu0 0.0
        %7292 = vmatprep.subr.mxu0 0.0
        %7293 = vmatpush1.msra.mxu0 0.0
        %7294 = vmatprep.subr.mxu0 0.0
        %7295 = vmatpush1.msra.mxu0 0.0
        %7296 = vmatprep.subr.mxu0 0.0
        %7297 = vmatpush1.msra.mxu0 0.0
        %7298 = vmatprep.subr.mxu0 0.0
        %7299 = vmatpush1.msra.mxu0 0.0
        %7300 = vmatprep.subr.mxu0 0.0
        %7301 = vmatpush1.msra.mxu0 0.0
        %7302 = vmatprep.subr.mxu0 0.0
        %7303 = vmatpush1.msra.mxu0 0.0
        %7304 = vmatprep.subr.mxu0 0.0
        %7305 = vmatpush1.msra.mxu0 0.0
        %7306 = vmatprep.mubr.f32.mxu0 0.0
        %7307 = vmatmul.mubr.f32.gmra.mrb[0].mxu0 %v7240
        %v7308 = vpop.f32.mrb[0].mxu0
        %v7309 = vadd.f32 0.0, %v7308
        %v7310 = vpop.f32.mrb[0].mxu0
        %7311 = vdwg.mxu0
        %v7312 = vadd.f32 %v7230, %v7309
        %v7313 = vld [vmem:[#allocation8 + $0x7] sm:$0xff]
        %s7314 = scalar_lea.vmem %s7, 96
        %v7315 = vld [vmem:[%s7314] sm:$0xff]
        %v7316 = vld [vmem:[%s7314 + $0x8] sm:$0xff]
        %v7317 = vld [vmem:[%s7314 + $0x10] sm:$0xff]
        %v7318 = vld [vmem:[%s7314 + $0x18] sm:$0xff]
        %v7320 = vsel %vm439, %v7313, 0
        %7322 = vmatprep.subr.mxu0 0.0
        %7323 = vmatpush1.msra.mxu0 %v7315
        %7324 = vmatprep.subr.mxu0 0.0
        %7325 = vmatpush1.msra.mxu0 %v7316
        %7326 = vmatprep.subr.mxu0 0.0
        %7327 = vmatpush1.msra.mxu0 %v7317
        %7328 = vmatprep.subr.mxu0 0.0
        %7329 = vmatpush1.msra.mxu0 %v7318
        %7330 = vmatprep.subr.mxu0 0.0
        %7331 = vmatpush1.msra.mxu0 0.0
        %7332 = vmatprep.subr.mxu0 0.0
        %7333 = vmatpush1.msra.mxu0 0.0
        %7334 = vmatprep.subr.mxu0 0.0
        %7335 = vmatpush1.msra.mxu0 0.0
        %7336 = vmatprep.subr.mxu0 0.0
        %7337 = vmatpush1.msra.mxu0 0.0
        %7338 = vmatprep.subr.mxu0 0.0
        %7339 = vmatpush1.msra.mxu0 0.0
        %7340 = vmatprep.subr.mxu0 0.0
        %7341 = vmatpush1.msra.mxu0 0.0
        %7342 = vmatprep.subr.mxu0 0.0
        %7343 = vmatpush1.msra.mxu0 0.0
        %7344 = vmatprep.subr.mxu0 0.0
        %7345 = vmatpush1.msra.mxu0 0.0
        %7346 = vmatprep.subr.mxu0 0.0
        %7347 = vmatpush1.msra.mxu0 0.0
        %7348 = vmatprep.subr.mxu0 0.0
        %7349 = vmatpush1.msra.mxu0 0.0
        %7350 = vmatprep.subr.mxu0 0.0
        %7351 = vmatpush1.msra.mxu0 0.0
        %7352 = vmatprep.subr.mxu0 0.0
        %7353 = vmatpush1.msra.mxu0 0.0
        %7354 = vmatprep.subr.mxu0 0.0
        %7355 = vmatpush1.msra.mxu0 0.0
        %7356 = vmatprep.subr.mxu0 0.0
        %7357 = vmatpush1.msra.mxu0 0.0
        %7358 = vmatprep.subr.mxu0 0.0
        %7359 = vmatpush1.msra.mxu0 0.0
        %7360 = vmatprep.subr.mxu0 0.0
        %7361 = vmatpush1.msra.mxu0 0.0
        %7362 = vmatprep.subr.mxu0 0.0
        %7363 = vmatpush1.msra.mxu0 0.0
        %7364 = vmatprep.subr.mxu0 0.0
        %7365 = vmatpush1.msra.mxu0 0.0
        %7366 = vmatprep.subr.mxu0 0.0
        %7367 = vmatpush1.msra.mxu0 0.0
        %7368 = vmatprep.subr.mxu0 0.0
        %7369 = vmatpush1.msra.mxu0 0.0
        %7370 = vmatprep.subr.mxu0 0.0
        %7371 = vmatpush1.msra.mxu0 0.0
        %7372 = vmatprep.subr.mxu0 0.0
        %7373 = vmatpush1.msra.mxu0 0.0
        %7374 = vmatprep.subr.mxu0 0.0
        %7375 = vmatpush1.msra.mxu0 0.0
        %7376 = vmatprep.subr.mxu0 0.0
        %7377 = vmatpush1.msra.mxu0 0.0
        %7378 = vmatprep.subr.mxu0 0.0
        %7379 = vmatpush1.msra.mxu0 0.0
        %7380 = vmatprep.subr.mxu0 0.0
        %7381 = vmatpush1.msra.mxu0 0.0
        %7382 = vmatprep.subr.mxu0 0.0
        %7383 = vmatpush1.msra.mxu0 0.0
        %7384 = vmatprep.subr.mxu0 0.0
        %7385 = vmatpush1.msra.mxu0 0.0
        %7386 = vmatprep.mubr.f32.mxu0 0.0
        %7387 = vmatmul.mubr.f32.gmra.mrb[0].mxu0 %v7320
        %v7388 = vpop.f32.mrb[0].mxu0
        %v7389 = vadd.f32 0.0, %v7388
        %v7390 = vpop.f32.mrb[0].mxu0
        %7391 = vdwg.mxu0
        %v7392 = vadd.f32 %v7312, %v7389
        %v7393 = vld [vmem:[#allocation8 + $0x8] sm:$0xff]
        %s7394 = scalar_lea.vmem %s7, 128
        %v7395 = vld [vmem:[%s7394] sm:$0xff]
        %v7396 = vld [vmem:[%s7394 + $0x8] sm:$0xff]
        %v7397 = vld [vmem:[%s7394 + $0x10] sm:$0xff]
        %v7398 = vld [vmem:[%s7394 + $0x18] sm:$0xff]
        %v7400 = vsel %vm439, %v7393, 0
        %7402 = vmatprep.subr.mxu0 0.0
        %7403 = vmatpush1.msra.mxu0 %v7395
        %7404 = vmatprep.subr.mxu0 0.0
        %7405 = vmatpush1.msra.mxu0 %v7396
        %7406 = vmatprep.subr.mxu0 0.0
        %7407 = vmatpush1.msra.mxu0 %v7397
        %7408 = vmatprep.subr.mxu0 0.0
        %7409 = vmatpush1.msra.mxu0 %v7398
        %7410 = vmatprep.subr.mxu0 0.0
        %7411 = vmatpush1.msra.mxu0 0.0
        %7412 = vmatprep.subr.mxu0 0.0
        %7413 = vmatpush1.msra.mxu0 0.0
        %7414 = vmatprep.subr.mxu0 0.0
        %7415 = vmatpush1.msra.mxu0 0.0
        %7416 = vmatprep.subr.mxu0 0.0
        %7417 = vmatpush1.msra.mxu0 0.0
        %7418 = vmatprep.subr.mxu0 0.0
        %7419 = vmatpush1.msra.mxu0 0.0
        %7420 = vmatprep.subr.mxu0 0.0
        %7421 = vmatpush1.msra.mxu0 0.0
        %7422 = vmatprep.subr.mxu0 0.0
        %7423 = vmatpush1.msra.mxu0 0.0
        %7424 = vmatprep.subr.mxu0 0.0
        %7425 = vmatpush1.msra.mxu0 0.0
        %7426 = vmatprep.subr.mxu0 0.0
        %7427 = vmatpush1.msra.mxu0 0.0
        %7428 = vmatprep.subr.mxu0 0.0
        %7429 = vmatpush1.msra.mxu0 0.0
        %7430 = vmatprep.subr.mxu0 0.0
        %7431 = vmatpush1.msra.mxu0 0.0
        %7432 = vmatprep.subr.mxu0 0.0
        %7433 = vmatpush1.msra.mxu0 0.0
        %7434 = vmatprep.subr.mxu0 0.0
        %7435 = vmatpush1.msra.mxu0 0.0
        %7436 = vmatprep.subr.mxu0 0.0
        %7437 = vmatpush1.msra.mxu0 0.0
        %7438 = vmatprep.subr.mxu0 0.0
        %7439 = vmatpush1.msra.mxu0 0.0
        %7440 = vmatprep.subr.mxu0 0.0
        %7441 = vmatpush1.msra.mxu0 0.0
        %7442 = vmatprep.subr.mxu0 0.0
        %7443 = vmatpush1.msra.mxu0 0.0
        %7444 = vmatprep.subr.mxu0 0.0
        %7445 = vmatpush1.msra.mxu0 0.0
        %7446 = vmatprep.subr.mxu0 0.0
        %7447 = vmatpush1.msra.mxu0 0.0
        %7448 = vmatprep.subr.mxu0 0.0
        %7449 = vmatpush1.msra.mxu0 0.0
        %7450 = vmatprep.subr.mxu0 0.0
        %7451 = vmatpush1.msra.mxu0 0.0
        %7452 = vmatprep.subr.mxu0 0.0
        %7453 = vmatpush1.msra.mxu0 0.0
        %7454 = vmatprep.subr.mxu0 0.0
        %7455 = vmatpush1.msra.mxu0 0.0
        %7456 = vmatprep.subr.mxu0 0.0
        %7457 = vmatpush1.msra.mxu0 0.0
        %7458 = vmatprep.subr.mxu0 0.0
        %7459 = vmatpush1.msra.mxu0 0.0
        %7460 = vmatprep.subr.mxu0 0.0
        %7461 = vmatpush1.msra.mxu0 0.0
        %7462 = vmatprep.subr.mxu0 0.0
        %7463 = vmatpush1.msra.mxu0 0.0
        %7464 = vmatprep.subr.mxu0 0.0
        %7465 = vmatpush1.msra.mxu0 0.0
        %7466 = vmatprep.mubr.f32.mxu0 0.0
        %7467 = vmatmul.mubr.f32.gmra.mrb[0].mxu0 %v7400
        %v7468 = vpop.f32.mrb[0].mxu0
        %v7469 = vadd.f32 0.0, %v7468
        %v7470 = vpop.f32.mrb[0].mxu0
        %7471 = vdwg.mxu0
        %v7472 = vadd.f32 %v7392, %v7469
        %v7473 = vld [vmem:[#allocation8 + $0x9] sm:$0xff]
        %s7474 = scalar_lea.vmem %s7, 160
        %v7475 = vld [vmem:[%s7474] sm:$0xff]
        %v7476 = vld [vmem:[%s7474 + $0x8] sm:$0xff]
        %v7477 = vld [vmem:[%s7474 + $0x10] sm:$0xff]
        %v7478 = vld [vmem:[%s7474 + $0x18] sm:$0xff]
        %v7480 = vsel %vm439, %v7473, 0
        %7482 = vmatprep.subr.mxu0 0.0
        %7483 = vmatpush1.msra.mxu0 %v7475
        %7484 = vmatprep.subr.mxu0 0.0
        %7485 = vmatpush1.msra.mxu0 %v7476
        %7486 = vmatprep.subr.mxu0 0.0
        %7487 = vmatpush1.msra.mxu0 %v7477
        %7488 = vmatprep.subr.mxu0 0.0
        %7489 = vmatpush1.msra.mxu0 %v7478
        %7490 = vmatprep.subr.mxu0 0.0
        %7491 = vmatpush1.msra.mxu0 0.0
        %7492 = vmatprep.subr.mxu0 0.0
        %7493 = vmatpush1.msra.mxu0 0.0
        %7494 = vmatprep.subr.mxu0 0.0
        %7495 = vmatpush1.msra.mxu0 0.0
        %7496 = vmatprep.subr.mxu0 0.0
        %7497 = vmatpush1.msra.mxu0 0.0
        %7498 = vmatprep.subr.mxu0 0.0
        %7499 = vmatpush1.msra.mxu0 0.0
        %7500 = vmatprep.subr.mxu0 0.0
        %7501 = vmatpush1.msra.mxu0 0.0
        %7502 = vmatprep.subr.mxu0 0.0
        %7503 = vmatpush1.msra.mxu0 0.0
        %7504 = vmatprep.subr.mxu0 0.0
        %7505 = vmatpush1.msra.mxu0 0.0
        %7506 = vmatprep.subr.mxu0 0.0
        %7507 = vmatpush1.msra.mxu0 0.0
        %7508 = vmatprep.subr.mxu0 0.0
        %7509 = vmatpush1.msra.mxu0 0.0
        %7510 = vmatprep.subr.mxu0 0.0
        %7511 = vmatpush1.msra.mxu0 0.0
        %7512 = vmatprep.subr.mxu0 0.0
        %7513 = vmatpush1.msra.mxu0 0.0
        %7514 = vmatprep.subr.mxu0 0.0
        %7515 = vmatpush1.msra.mxu0 0.0
        %7516 = vmatprep.subr.mxu0 0.0
        %7517 = vmatpush1.msra.mxu0 0.0
        %7518 = vmatprep.subr.mxu0 0.0
        %7519 = vmatpush1.msra.mxu0 0.0
        %7520 = vmatprep.subr.mxu0 0.0
        %7521 = vmatpush1.msra.mxu0 0.0
        %7522 = vmatprep.subr.mxu0 0.0
        %7523 = vmatpush1.msra.mxu0 0.0
        %7524 = vmatprep.subr.mxu0 0.0
        %7525 = vmatpush1.msra.mxu0 0.0
        %7526 = vmatprep.subr.mxu0 0.0
        %7527 = vmatpush1.msra.mxu0 0.0
        %7528 = vmatprep.subr.mxu0 0.0
        %7529 = vmatpush1.msra.mxu0 0.0
        %7530 = vmatprep.subr.mxu0 0.0
        %7531 = vmatpush1.msra.mxu0 0.0
        %7532 = vmatprep.subr.mxu0 0.0
        %7533 = vmatpush1.msra.mxu0 0.0
        %7534 = vmatprep.subr.mxu0 0.0
        %7535 = vmatpush1.msra.mxu0 0.0
        %7536 = vmatprep.subr.mxu0 0.0
        %7537 = vmatpush1.msra.mxu0 0.0
        %7538 = vmatprep.subr.mxu0 0.0
        %7539 = vmatpush1.msra.mxu0 0.0
        %7540 = vmatprep.subr.mxu0 0.0
        %7541 = vmatpush1.msra.mxu0 0.0
        %7542 = vmatprep.subr.mxu0 0.0
        %7543 = vmatpush1.msra.mxu0 0.0
        %7544 = vmatprep.subr.mxu0 0.0
        %7545 = vmatpush1.msra.mxu0 0.0
        %7546 = vmatprep.mubr.f32.mxu0 0.0
        %7547 = vmatmul.mubr.f32.gmra.mrb[0].mxu0 %v7480
        %v7548 = vpop.f32.mrb[0].mxu0
        %v7549 = vadd.f32 0.0, %v7548
        %v7550 = vpop.f32.mrb[0].mxu0
        %7551 = vdwg.mxu0
        %v7552 = vadd.f32 %v7472, %v7549
        %v7553 = vld [vmem:[#allocation8 + $0xb] sm:$0xff]
        %s7554 = scalar_lea.vmem %s7, 192
        %v7555 = vld [vmem:[%s7554] sm:$0xff]
        %v7556 = vld [vmem:[%s7554 + $0x8] sm:$0xff]
        %v7557 = vld [vmem:[%s7554 + $0x10] sm:$0xff]
        %v7558 = vld [vmem:[%s7554 + $0x18] sm:$0xff]
        %v7560 = vsel %vm439, %v7553, 0
        %7562 = vmatprep.subr.mxu0 0.0
        %7563 = vmatpush1.msra.mxu0 %v7555
        %7564 = vmatprep.subr.mxu0 0.0
        %7565 = vmatpush1.msra.mxu0 %v7556
        %7566 = vmatprep.subr.mxu0 0.0
        %7567 = vmatpush1.msra.mxu0 %v7557
        %7568 = vmatprep.subr.mxu0 0.0
        %7569 = vmatpush1.msra.mxu0 %v7558
        %7570 = vmatprep.subr.mxu0 0.0
        %7571 = vmatpush1.msra.mxu0 0.0
        %7572 = vmatprep.subr.mxu0 0.0
        %7573 = vmatpush1.msra.mxu0 0.0
        %7574 = vmatprep.subr.mxu0 0.0
        %7575 = vmatpush1.msra.mxu0 0.0
        %7576 = vmatprep.subr.mxu0 0.0
        %7577 = vmatpush1.msra.mxu0 0.0
        %7578 = vmatprep.subr.mxu0 0.0
        %7579 = vmatpush1.msra.mxu0 0.0
        %7580 = vmatprep.subr.mxu0 0.0
        %7581 = vmatpush1.msra.mxu0 0.0
        %7582 = vmatprep.subr.mxu0 0.0
        %7583 = vmatpush1.msra.mxu0 0.0
        %7584 = vmatprep.subr.mxu0 0.0
        %7585 = vmatpush1.msra.mxu0 0.0
        %7586 = vmatprep.subr.mxu0 0.0
        %7587 = vmatpush1.msra.mxu0 0.0
        %7588 = vmatprep.subr.mxu0 0.0
        %7589 = vmatpush1.msra.mxu0 0.0
        %7590 = vmatprep.subr.mxu0 0.0
        %7591 = vmatpush1.msra.mxu0 0.0
        %7592 = vmatprep.subr.mxu0 0.0
        %7593 = vmatpush1.msra.mxu0 0.0
        %7594 = vmatprep.subr.mxu0 0.0
        %7595 = vmatpush1.msra.mxu0 0.0
        %7596 = vmatprep.subr.mxu0 0.0
        %7597 = vmatpush1.msra.mxu0 0.0
        %7598 = vmatprep.subr.mxu0 0.0
        %7599 = vmatpush1.msra.mxu0 0.0
        %7600 = vmatprep.subr.mxu0 0.0
        %7601 = vmatpush1.msra.mxu0 0.0
        %7602 = vmatprep.subr.mxu0 0.0
        %7603 = vmatpush1.msra.mxu0 0.0
        %7604 = vmatprep.subr.mxu0 0.0
        %7605 = vmatpush1.msra.mxu0 0.0
        %7606 = vmatprep.subr.mxu0 0.0
        %7607 = vmatpush1.msra.mxu0 0.0
        %7608 = vmatprep.subr.mxu0 0.0
        %7609 = vmatpush1.msra.mxu0 0.0
        %7610 = vmatprep.subr.mxu0 0.0
        %7611 = vmatpush1.msra.mxu0 0.0
        %7612 = vmatprep.subr.mxu0 0.0
        %7613 = vmatpush1.msra.mxu0 0.0
        %7614 = vmatprep.subr.mxu0 0.0
        %7615 = vmatpush1.msra.mxu0 0.0
        %7616 = vmatprep.subr.mxu0 0.0
        %7617 = vmatpush1.msra.mxu0 0.0
        %7618 = vmatprep.subr.mxu0 0.0
        %7619 = vmatpush1.msra.mxu0 0.0
        %7620 = vmatprep.subr.mxu0 0.0
        %7621 = vmatpush1.msra.mxu0 0.0
        %7622 = vmatprep.subr.mxu0 0.0
        %7623 = vmatpush1.msra.mxu0 0.0
        %7624 = vmatprep.subr.mxu0 0.0
        %7625 = vmatpush1.msra.mxu0 0.0
        %7626 = vmatprep.mubr.f32.mxu0 0.0
        %7627 = vmatmul.mubr.f32.gmra.mrb[0].mxu0 %v7560
        %v7628 = vpop.f32.mrb[0].mxu0
        %v7629 = vadd.f32 0.0, %v7628
        %v7630 = vpop.f32.mrb[0].mxu0
        %7631 = vdwg.mxu0
        %v7632 = vadd.f32 %v7552, %v7629
        %v7633 = vld [vmem:[#allocation8 + $0xc] sm:$0xff]
        %s7634 = scalar_lea.vmem %s7, 224
        %v7635 = vld [vmem:[%s7634] sm:$0xff]
        %v7636 = vld [vmem:[%s7634 + $0x8] sm:$0xff]
        %v7637 = vld [vmem:[%s7634 + $0x10] sm:$0xff]
        %v7638 = vld [vmem:[%s7634 + $0x18] sm:$0xff]
        %v7640 = vsel %vm439, %v7633, 0
        %7642 = vmatprep.subr.mxu0 0.0
        %7643 = vmatpush1.msra.mxu0 %v7635
        %7644 = vmatprep.subr.mxu0 0.0
        %7645 = vmatpush1.msra.mxu0 %v7636
        %7646 = vmatprep.subr.mxu0 0.0
        %7647 = vmatpush1.msra.mxu0 %v7637
        %7648 = vmatprep.subr.mxu0 0.0
        %7649 = vmatpush1.msra.mxu0 %v7638
        %7650 = vmatprep.subr.mxu0 0.0
        %7651 = vmatpush1.msra.mxu0 0.0
        %7652 = vmatprep.subr.mxu0 0.0
        %7653 = vmatpush1.msra.mxu0 0.0
        %7654 = vmatprep.subr.mxu0 0.0
        %7655 = vmatpush1.msra.mxu0 0.0
        %7656 = vmatprep.subr.mxu0 0.0
        %7657 = vmatpush1.msra.mxu0 0.0
        %7658 = vmatprep.subr.mxu0 0.0
        %7659 = vmatpush1.msra.mxu0 0.0
        %7660 = vmatprep.subr.mxu0 0.0
        %7661 = vmatpush1.msra.mxu0 0.0
        %7662 = vmatprep.subr.mxu0 0.0
        %7663 = vmatpush1.msra.mxu0 0.0
        %7664 = vmatprep.subr.mxu0 0.0
        %7665 = vmatpush1.msra.mxu0 0.0
        %7666 = vmatprep.subr.mxu0 0.0
        %7667 = vmatpush1.msra.mxu0 0.0
        %7668 = vmatprep.subr.mxu0 0.0
        %7669 = vmatpush1.msra.mxu0 0.0
        %7670 = vmatprep.subr.mxu0 0.0
        %7671 = vmatpush1.msra.mxu0 0.0
        %7672 = vmatprep.subr.mxu0 0.0
        %7673 = vmatpush1.msra.mxu0 0.0
        %7674 = vmatprep.subr.mxu0 0.0
        %7675 = vmatpush1.msra.mxu0 0.0
        %7676 = vmatprep.subr.mxu0 0.0
        %7677 = vmatpush1.msra.mxu0 0.0
        %7678 = vmatprep.subr.mxu0 0.0
        %7679 = vmatpush1.msra.mxu0 0.0
        %7680 = vmatprep.subr.mxu0 0.0
        %7681 = vmatpush1.msra.mxu0 0.0
        %7682 = vmatprep.subr.mxu0 0.0
        %7683 = vmatpush1.msra.mxu0 0.0
        %7684 = vmatprep.subr.mxu0 0.0
        %7685 = vmatpush1.msra.mxu0 0.0
        %7686 = vmatprep.subr.mxu0 0.0
        %7687 = vmatpush1.msra.mxu0 0.0
        %7688 = vmatprep.subr.mxu0 0.0
        %7689 = vmatpush1.msra.mxu0 0.0
        %7690 = vmatprep.subr.mxu0 0.0
        %7691 = vmatpush1.msra.mxu0 0.0
        %7692 = vmatprep.subr.mxu0 0.0
        %7693 = vmatpush1.msra.mxu0 0.0
        %7694 = vmatprep.subr.mxu0 0.0
        %7695 = vmatpush1.msra.mxu0 0.0
        %7696 = vmatprep.subr.mxu0 0.0
        %7697 = vmatpush1.msra.mxu0 0.0
        %7698 = vmatprep.subr.mxu0 0.0
        %7699 = vmatpush1.msra.mxu0 0.0
        %7700 = vmatprep.subr.mxu0 0.0
        %7701 = vmatpush1.msra.mxu0 0.0
        %7702 = vmatprep.subr.mxu0 0.0
        %7703 = vmatpush1.msra.mxu0 0.0
        %7704 = vmatprep.subr.mxu0 0.0
        %7705 = vmatpush1.msra.mxu0 0.0
        %7706 = vmatprep.mubr.f32.mxu0 0.0
        %7707 = vmatmul.mubr.f32.gmra.mrb[0].mxu0 %v7640
        %v7708 = vpop.f32.mrb[0].mxu0
        %v7709 = vadd.f32 0.0, %v7708
        %v7710 = vpop.f32.mrb[0].mxu0
        %7711 = vdwg.mxu0
        %v7712 = vadd.f32 %v7632, %v7709
        %v7713 = vld [vmem:[#allocation8 + $0xd] sm:$0xff]
        %s7714 = scalar_lea.vmem %s7, 256
        %v7715 = vld [vmem:[%s7714] sm:$0xff]
        %v7716 = vld [vmem:[%s7714 + $0x8] sm:$0xff]
        %v7717 = vld [vmem:[%s7714 + $0x10] sm:$0xff]
        %v7718 = vld [vmem:[%s7714 + $0x18] sm:$0xff]
        %v7720 = vsel %vm439, %v7713, 0
        %7722 = vmatprep.subr.mxu0 0.0
        %7723 = vmatpush1.msra.mxu0 %v7715
        %7724 = vmatprep.subr.mxu0 0.0
        %7725 = vmatpush1.msra.mxu0 %v7716
        %7726 = vmatprep.subr.mxu0 0.0
        %7727 = vmatpush1.msra.mxu0 %v7717
        %7728 = vmatprep.subr.mxu0 0.0
        %7729 = vmatpush1.msra.mxu0 %v7718
        %7730 = vmatprep.subr.mxu0 0.0
        %7731 = vmatpush1.msra.mxu0 0.0
        %7732 = vmatprep.subr.mxu0 0.0
        %7733 = vmatpush1.msra.mxu0 0.0
        %7734 = vmatprep.subr.mxu0 0.0
        %7735 = vmatpush1.msra.mxu0 0.0
        %7736 = vmatprep.subr.mxu0 0.0
        %7737 = vmatpush1.msra.mxu0 0.0
        %7738 = vmatprep.subr.mxu0 0.0
        %7739 = vmatpush1.msra.mxu0 0.0
        %7740 = vmatprep.subr.mxu0 0.0
        %7741 = vmatpush1.msra.mxu0 0.0
        %7742 = vmatprep.subr.mxu0 0.0
        %7743 = vmatpush1.msra.mxu0 0.0
        %7744 = vmatprep.subr.mxu0 0.0
        %7745 = vmatpush1.msra.mxu0 0.0
        %7746 = vmatprep.subr.mxu0 0.0
        %7747 = vmatpush1.msra.mxu0 0.0
        %7748 = vmatprep.subr.mxu0 0.0
        %7749 = vmatpush1.msra.mxu0 0.0
        %7750 = vmatprep.subr.mxu0 0.0
        %7751 = vmatpush1.msra.mxu0 0.0
        %7752 = vmatprep.subr.mxu0 0.0
        %7753 = vmatpush1.msra.mxu0 0.0
        %7754 = vmatprep.subr.mxu0 0.0
        %7755 = vmatpush1.msra.mxu0 0.0
        %7756 = vmatprep.subr.mxu0 0.0
        %7757 = vmatpush1.msra.mxu0 0.0
        %7758 = vmatprep.subr.mxu0 0.0
        %7759 = vmatpush1.msra.mxu0 0.0
        %7760 = vmatprep.subr.mxu0 0.0
        %7761 = vmatpush1.msra.mxu0 0.0
        %7762 = vmatprep.subr.mxu0 0.0
        %7763 = vmatpush1.msra.mxu0 0.0
        %7764 = vmatprep.subr.mxu0 0.0
        %7765 = vmatpush1.msra.mxu0 0.0
        %7766 = vmatprep.subr.mxu0 0.0
        %7767 = vmatpush1.msra.mxu0 0.0
        %7768 = vmatprep.subr.mxu0 0.0
        %7769 = vmatpush1.msra.mxu0 0.0
        %7770 = vmatprep.subr.mxu0 0.0
        %7771 = vmatpush1.msra.mxu0 0.0
        %7772 = vmatprep.subr.mxu0 0.0
        %7773 = vmatpush1.msra.mxu0 0.0
        %7774 = vmatprep.subr.mxu0 0.0
        %7775 = vmatpush1.msra.mxu0 0.0
        %7776 = vmatprep.subr.mxu0 0.0
        %7777 = vmatpush1.msra.mxu0 0.0
        %7778 = vmatprep.subr.mxu0 0.0
        %7779 = vmatpush1.msra.mxu0 0.0
        %7780 = vmatprep.subr.mxu0 0.0
        %7781 = vmatpush1.msra.mxu0 0.0
        %7782 = vmatprep.subr.mxu0 0.0
        %7783 = vmatpush1.msra.mxu0 0.0
        %7784 = vmatprep.subr.mxu0 0.0
        %7785 = vmatpush1.msra.mxu0 0.0
        %7786 = vmatprep.mubr.f32.mxu0 0.0
        %7787 = vmatmul.mubr.f32.gmra.mrb[0].mxu0 %v7720
        %v7788 = vpop.f32.mrb[0].mxu0
        %v7789 = vadd.f32 0.0, %v7788
        %v7790 = vpop.f32.mrb[0].mxu0
        %7791 = vdwg.mxu0
        %v7792 = vadd.f32 %v7712, %v7789
        %v7793 = vld [vmem:[%s8] sm:$0x1]
        %v7795 = vlaneseq
        %v7796 = vshrl.u32 %v7795, 7
        %v7797 = vsub.s32 0, %v7796
        %v7798 = vrot.slane %v7793, %v7797
        %v7800 = vadd.f32 %v7792, %v7798
        %v7801 = vmax.f32 %v7800, 0.0
        %vm7802 = vcmask 523264
        %7803 = vst.msk [vmem:[#allocation9] sm:$0xff] %vm7802, %v7801
        %v7804 = vld [vmem:[#allocation9 + $0x1] sm:$0x1]
        %v7805 = vld [vmem:[#allocation9 + $0x2] sm:$0x1]
        %v7806 = vld [vmem:[#allocation9 + $0x5] sm:$0x1]
        %v7807 = vld [vmem:[#allocation9 + $0x6] sm:$0x1]
        %v7808 = vmax.f32 %v7804, %v7805
        %v7809 = vmax.f32 %v7806, %v7807
        %v7810 = vmax.f32 %v7808, %v7809
        %vm7811 = vcmask 516096
        %7812 = vst.msk [vmem:[%s352] sm:$0x1] %vm7811, %v7810
        %v7813 = vld [vmem:[%s364] sm:$0xff]
        %v7814 = vld [vmem:[%s364 + $0x8] sm:$0xff]
        %v7815 = vld [vmem:[%s364 + $0x10] sm:$0xff]
        %v7816 = vld [vmem:[%s364 + $0x18] sm:$0xff]
        %v7817 = vld [vmem:[%s364 + $0x20] sm:$0xff]
        %v7818 = vld [vmem:[%s364 + $0x28] sm:$0xff]
        %v7819 = vld [vmem:[%s364 + $0x30] sm:$0xff]
        %v7820 = vld [vmem:[%s364 + $0x38] sm:$0xff]
        %v7821 = vld [vmem:[%s364 + $0x40] sm:$0xff]
        %v7822 = vld [vmem:[%s364 + $0x48] sm:$0xff]
        %v7823 = vld [vmem:[%s364 + $0x50] sm:$0xff]
        %v7824 = vld [vmem:[%s364 + $0x58] sm:$0xff]
        %v7825 = vld [vmem:[%s364 + $0x60] sm:$0xff]
        %v7826 = vld [vmem:[%s364 + $0x68] sm:$0xff]
        %v7827 = vld [vmem:[%s364 + $0x70] sm:$0xff]
        %v7828 = vld [vmem:[%s364 + $0x78] sm:$0xff]
        %v7829 = vld [vmem:[%s364 + $0x80] sm:$0xff]
        %v7830 = vld [vmem:[%s364 + $0x88] sm:$0xff]
        %v7831 = vld [vmem:[%s364 + $0x90] sm:$0xff]
        %v7832 = vld [vmem:[%s364 + $0x98] sm:$0xff]
        %v7833 = vld [vmem:[%s364 + $0xa0] sm:$0xff]
        %v7834 = vld [vmem:[%s364 + $0xa8] sm:$0xff]
        %v7835 = vld [vmem:[%s364 + $0xb0] sm:$0xff]
        %v7836 = vld [vmem:[%s364 + $0xb8] sm:$0xff]
        %v7837 = vld [vmem:[%s364 + $0xc0] sm:$0xff]
        %v7838 = vld [vmem:[%s364 + $0xc8] sm:$0xff]
        %v7839 = vld [vmem:[%s364 + $0xd0] sm:$0xff]
        %v7840 = vld [vmem:[%s364 + $0xd8] sm:$0xff]
        %v7841 = vld [vmem:[%s364 + $0xe0] sm:$0xff]
        %v7842 = vld [vmem:[%s364 + $0xe8] sm:$0xff]
        %v7843 = vld [vmem:[%s364 + $0xf0] sm:$0xff]
        %v7844 = vld [vmem:[%s364 + $0xf8] sm:$0xff]
        %v7845 = vsel %vm370, %v7813, 0.0
        %7846 = vadd.xlane.f32.xlu0 %v7845
        %v7847 = vpop.xlane.xlu0 %7846
        %v7848 = vsel %vm370, %v7814, 0.0
        %7849 = vadd.xlane.f32.xlu0 %v7848
        %v7850 = vpop.xlane.xlu0 %7849
        %v7851 = vsel %vm370, %v7815, 0.0
        %7852 = vadd.xlane.f32.xlu0 %v7851
        %v7853 = vpop.xlane.xlu0 %7852
        %v7854 = vsel %vm370, %v7816, 0.0
        %7855 = vadd.xlane.f32.xlu0 %v7854
        %v7856 = vpop.xlane.xlu0 %7855
        %v7857 = vsel %vm370, %v7817, 0.0
        %7858 = vadd.xlane.f32.xlu0 %v7857
        %v7859 = vpop.xlane.xlu0 %7858
        %v7860 = vsel %vm370, %v7818, 0.0
        %7861 = vadd.xlane.f32.xlu0 %v7860
        %v7862 = vpop.xlane.xlu0 %7861
        %v7863 = vsel %vm370, %v7819, 0.0
        %7864 = vadd.xlane.f32.xlu0 %v7863
        %v7865 = vpop.xlane.xlu0 %7864
        %v7866 = vsel %vm370, %v7820, 0.0
        %7867 = vadd.xlane.f32.xlu0 %v7866
        %v7868 = vpop.xlane.xlu0 %7867
        %v7869 = vsel %vm370, %v7821, 0.0
        %7870 = vadd.xlane.f32.xlu0 %v7869
        %v7871 = vpop.xlane.xlu0 %7870
        %v7872 = vsel %vm370, %v7822, 0.0
        %7873 = vadd.xlane.f32.xlu0 %v7872
        %v7874 = vpop.xlane.xlu0 %7873
        %v7875 = vsel %vm370, %v7823, 0.0
        %7876 = vadd.xlane.f32.xlu0 %v7875
        %v7877 = vpop.xlane.xlu0 %7876
        %v7878 = vsel %vm370, %v7824, 0.0
        %7879 = vadd.xlane.f32.xlu0 %v7878
        %v7880 = vpop.xlane.xlu0 %7879
        %v7881 = vsel %vm370, %v7825, 0.0
        %7882 = vadd.xlane.f32.xlu0 %v7881
        %v7883 = vpop.xlane.xlu0 %7882
        %v7884 = vsel %vm370, %v7826, 0.0
        %7885 = vadd.xlane.f32.xlu0 %v7884
        %v7886 = vpop.xlane.xlu0 %7885
        %v7887 = vsel %vm370, %v7827, 0.0
        %7888 = vadd.xlane.f32.xlu0 %v7887
        %v7889 = vpop.xlane.xlu0 %7888
        %v7890 = vsel %vm370, %v7828, 0.0
        %7891 = vadd.xlane.f32.xlu0 %v7890
        %v7892 = vpop.xlane.xlu0 %7891
        %v7893 = vsel %vm370, %v7829, 0.0
        %7894 = vadd.xlane.f32.xlu0 %v7893
        %v7895 = vpop.xlane.xlu0 %7894
        %v7896 = vsel %vm370, %v7830, 0.0
        %7897 = vadd.xlane.f32.xlu0 %v7896
        %v7898 = vpop.xlane.xlu0 %7897
        %v7899 = vsel %vm370, %v7831, 0.0
        %7900 = vadd.xlane.f32.xlu0 %v7899
        %v7901 = vpop.xlane.xlu0 %7900
        %v7902 = vsel %vm370, %v7832, 0.0
        %7903 = vadd.xlane.f32.xlu0 %v7902
        %v7904 = vpop.xlane.xlu0 %7903
        %v7905 = vsel %vm370, %v7833, 0.0
        %7906 = vadd.xlane.f32.xlu0 %v7905
        %v7907 = vpop.xlane.xlu0 %7906
        %v7908 = vsel %vm370, %v7834, 0.0
        %7909 = vadd.xlane.f32.xlu0 %v7908
        %v7910 = vpop.xlane.xlu0 %7909
        %v7911 = vsel %vm370, %v7835, 0.0
        %7912 = vadd.xlane.f32.xlu0 %v7911
        %v7913 = vpop.xlane.xlu0 %7912
        %v7914 = vsel %vm370, %v7836, 0.0
        %7915 = vadd.xlane.f32.xlu0 %v7914
        %v7916 = vpop.xlane.xlu0 %7915
        %v7917 = vsel %vm370, %v7837, 0.0
        %7918 = vadd.xlane.f32.xlu0 %v7917
        %v7919 = vpop.xlane.xlu0 %7918
        %v7920 = vsel %vm370, %v7838, 0.0
        %7921 = vadd.xlane.f32.xlu0 %v7920
        %v7922 = vpop.xlane.xlu0 %7921
        %v7923 = vsel %vm370, %v7839, 0.0
        %7924 = vadd.xlane.f32.xlu0 %v7923
        %v7925 = vpop.xlane.xlu0 %7924
        %v7926 = vsel %vm370, %v7840, 0.0
        %7927 = vadd.xlane.f32.xlu0 %v7926
        %v7928 = vpop.xlane.xlu0 %7927
        %v7929 = vsel %vm370, %v7841, 0.0
        %7930 = vadd.xlane.f32.xlu0 %v7929
        %v7931 = vpop.xlane.xlu0 %7930
        %v7932 = vsel %vm370, %v7842, 0.0
        %7933 = vadd.xlane.f32.xlu0 %v7932
        %v7934 = vpop.xlane.xlu0 %7933
        %v7935 = vsel %vm370, %v7843, 0.0
        %7936 = vadd.xlane.f32.xlu0 %v7935
        %v7937 = vpop.xlane.xlu0 %7936
        %v7938 = vsel %vm370, %v7844, 0.0
        %7939 = vadd.xlane.f32.xlu0 %v7938
        %v7940 = vpop.xlane.xlu0 %7939
        %v7941 = vrcp.pop 4.0
        %v7942 = vmul.f32 %v7847, %v7941
        %v7943 = vmul.f32 %v7850, %v7941
        %v7944 = vmul.f32 %v7853, %v7941
        %v7945 = vmul.f32 %v7856, %v7941
        %v7946 = vmul.f32 %v7859, %v7941
        %v7947 = vmul.f32 %v7862, %v7941
        %v7948 = vmul.f32 %v7865, %v7941
        %v7949 = vmul.f32 %v7868, %v7941
        %v7950 = vmul.f32 %v7871, %v7941
        %v7951 = vmul.f32 %v7874, %v7941
        %v7952 = vmul.f32 %v7877, %v7941
        %v7953 = vmul.f32 %v7880, %v7941
        %v7954 = vmul.f32 %v7883, %v7941
        %v7955 = vmul.f32 %v7886, %v7941
        %v7956 = vmul.f32 %v7889, %v7941
        %v7957 = vmul.f32 %v7892, %v7941
        %v7958 = vmul.f32 %v7895, %v7941
        %v7959 = vmul.f32 %v7898, %v7941
        %v7960 = vmul.f32 %v7901, %v7941
        %v7961 = vmul.f32 %v7904, %v7941
        %v7962 = vmul.f32 %v7907, %v7941
        %v7963 = vmul.f32 %v7910, %v7941
        %v7964 = vmul.f32 %v7913, %v7941
        %v7965 = vmul.f32 %v7916, %v7941
        %v7966 = vmul.f32 %v7919, %v7941
        %v7967 = vmul.f32 %v7922, %v7941
        %v7968 = vmul.f32 %v7925, %v7941
        %v7969 = vmul.f32 %v7928, %v7941
        %v7970 = vmul.f32 %v7931, %v7941
        %v7971 = vmul.f32 %v7934, %v7941
        %v7972 = vmul.f32 %v7937, %v7941
        %v7973 = vmul.f32 %v7940, %v7941
        %v7974 = vlaneseq
        %v7975 = vshrl.u32 %v7974, 7
        %v7976 = vadd.s32 %v7975, 8
        %v7977 = vadd.s32 %v7975, 16
        %v7978 = vadd.s32 %v7975, 24
        %v7979 = vadd.s32 %v7975, 32
        %v7980 = vadd.s32 %v7975, 40
        %v7981 = vadd.s32 %v7975, 48
        %v7982 = vadd.s32 %v7975, 56
        %v7983 = vadd.s32 %v7975, 64
        %v7984 = vadd.s32 %v7975, 72
        %v7985 = vadd.s32 %v7975, 80
        %v7986 = vadd.s32 %v7975, 88
        %v7987 = vadd.s32 %v7975, 96
        %v7988 = vadd.s32 %v7975, 104
        %v7989 = vadd.s32 %v7975, 112
        %v7990 = vadd.s32 %v7975, 120
        %v7991 = vadd.s32 %v7975, 128
        %v7992 = vadd.s32 %v7975, 136
        %v7993 = vadd.s32 %v7975, 144
        %v7994 = vadd.s32 %v7975, 152
        %v7995 = vadd.s32 %v7975, 160
        %v7996 = vadd.s32 %v7975, 168
        %v7997 = vadd.s32 %v7975, 176
        %v7998 = vadd.s32 %v7975, 184
        %v7999 = vadd.s32 %v7975, 192
        %v8000 = vadd.s32 %v7975, 200
        %v8001 = vadd.s32 %v7975, 208
        %v8002 = vadd.s32 %v7975, 216
        %v8003 = vadd.s32 %v7975, 224
        %v8004 = vadd.s32 %v7975, 232
        %v8005 = vadd.s32 %v7975, 240
        %v8006 = vadd.s32 %v7975, 248
        %v8007 = vlaneseq
        %v8008 = vand.u32 %v8007, 127
        %v8009 = vshra.s32 %v7975, 5
        %v8010 = vshra.s32 %v7976, 5
        %v8011 = vshra.s32 %v7977, 5
        %v8012 = vshra.s32 %v7978, 5
        %v8013 = vshra.s32 %v7979, 5
        %v8014 = vshra.s32 %v7980, 5
        %v8015 = vshra.s32 %v7981, 5
        %v8016 = vshra.s32 %v7982, 5
        %v8017 = vshra.s32 %v7983, 5
        %v8018 = vshra.s32 %v7984, 5
        %v8019 = vshra.s32 %v7985, 5
        %v8020 = vshra.s32 %v7986, 5
        %v8021 = vshra.s32 %v7987, 5
        %v8022 = vshra.s32 %v7988, 5
        %v8023 = vshra.s32 %v7989, 5
        %v8024 = vshra.s32 %v7990, 5
        %v8025 = vshra.s32 %v7991, 5
        %v8026 = vshra.s32 %v7992, 5
        %v8027 = vshra.s32 %v7993, 5
        %v8028 = vshra.s32 %v7994, 5
        %v8029 = vshra.s32 %v7995, 5
        %v8030 = vshra.s32 %v7996, 5
        %v8031 = vshra.s32 %v7997, 5
        %v8032 = vshra.s32 %v7998, 5
        %v8033 = vshra.s32 %v7999, 5
        %v8034 = vshra.s32 %v8000, 5
        %v8035 = vshra.s32 %v8001, 5
        %v8036 = vshra.s32 %v8002, 5
        %v8037 = vshra.s32 %v8003, 5
        %v8038 = vshra.s32 %v8004, 5
        %v8039 = vshra.s32 %v8005, 5
        %v8040 = vshra.s32 %v8006, 5
        %v8041 = vand.u32 %v7975, 15
        %v8042 = vand.u32 %v7976, 15
        %v8043 = vand.u32 %v7977, 15
        %v8044 = vand.u32 %v7978, 15
        %v8045 = vand.u32 %v7979, 15
        %v8046 = vand.u32 %v7980, 15
        %v8047 = vand.u32 %v7981, 15
        %v8048 = vand.u32 %v7982, 15
        %v8049 = vand.u32 %v7983, 15
        %v8050 = vand.u32 %v7984, 15
        %v8051 = vand.u32 %v7985, 15
        %v8052 = vand.u32 %v7986, 15
        %v8053 = vand.u32 %v7987, 15
        %v8054 = vand.u32 %v7988, 15
        %v8055 = vand.u32 %v7989, 15
        %v8056 = vand.u32 %v7990, 15
        %v8057 = vand.u32 %v7991, 15
        %v8058 = vand.u32 %v7992, 15
        %v8059 = vand.u32 %v7993, 15
        %v8060 = vand.u32 %v7994, 15
        %v8061 = vand.u32 %v7995, 15
        %v8062 = vand.u32 %v7996, 15
        %v8063 = vand.u32 %v7997, 15
        %v8064 = vand.u32 %v7998, 15
        %v8065 = vand.u32 %v7999, 15
        %v8066 = vand.u32 %v8000, 15
        %v8067 = vand.u32 %v8001, 15
        %v8068 = vand.u32 %v8002, 15
        %v8069 = vand.u32 %v8003, 15
        %v8070 = vand.u32 %v8004, 15
        %v8071 = vand.u32 %v8005, 15
        %v8072 = vand.u32 %v8006, 15
        %v8073 = vshra.s32 %v8041, 1
        %v8074 = vshra.s32 %v8042, 1
        %v8075 = vshra.s32 %v8043, 1
        %v8076 = vshra.s32 %v8044, 1
        %v8077 = vshra.s32 %v8045, 1
        %v8078 = vshra.s32 %v8046, 1
        %v8079 = vshra.s32 %v8047, 1
        %v8080 = vshra.s32 %v8048, 1
        %v8081 = vshra.s32 %v8049, 1
        %v8082 = vshra.s32 %v8050, 1
        %v8083 = vshra.s32 %v8051, 1
        %v8084 = vshra.s32 %v8052, 1
        %v8085 = vshra.s32 %v8053, 1
        %v8086 = vshra.s32 %v8054, 1
        %v8087 = vshra.s32 %v8055, 1
        %v8088 = vshra.s32 %v8056, 1
        %v8089 = vshra.s32 %v8057, 1
        %v8090 = vshra.s32 %v8058, 1
        %v8091 = vshra.s32 %v8059, 1
        %v8092 = vshra.s32 %v8060, 1
        %v8093 = vshra.s32 %v8061, 1
        %v8094 = vshra.s32 %v8062, 1
        %v8095 = vshra.s32 %v8063, 1
        %v8096 = vshra.s32 %v8064, 1
        %v8097 = vshra.s32 %v8065, 1
        %v8098 = vshra.s32 %v8066, 1
        %v8099 = vshra.s32 %v8067, 1
        %v8100 = vshra.s32 %v8068, 1
        %v8101 = vshra.s32 %v8069, 1
        %v8102 = vshra.s32 %v8070, 1
        %v8103 = vshra.s32 %v8071, 1
        %v8104 = vshra.s32 %v8072, 1
        %v8105 = vmul.u32 %v8009, 8
        %v8106 = vmul.u32 %v8010, 8
        %v8107 = vmul.u32 %v8011, 8
        %v8108 = vmul.u32 %v8012, 8
        %v8109 = vmul.u32 %v8013, 8
        %v8110 = vmul.u32 %v8014, 8
        %v8111 = vmul.u32 %v8015, 8
        %v8112 = vmul.u32 %v8016, 8
        %v8113 = vmul.u32 %v8017, 8
        %v8114 = vmul.u32 %v8018, 8
        %v8115 = vmul.u32 %v8019, 8
        %v8116 = vmul.u32 %v8020, 8
        %v8117 = vmul.u32 %v8021, 8
        %v8118 = vmul.u32 %v8022, 8
        %v8119 = vmul.u32 %v8023, 8
        %v8120 = vmul.u32 %v8024, 8
        %v8121 = vmul.u32 %v8025, 8
        %v8122 = vmul.u32 %v8026, 8
        %v8123 = vmul.u32 %v8027, 8
        %v8124 = vmul.u32 %v8028, 8
        %v8125 = vmul.u32 %v8029, 8
        %v8126 = vmul.u32 %v8030, 8
        %v8127 = vmul.u32 %v8031, 8
        %v8128 = vmul.u32 %v8032, 8
        %v8129 = vmul.u32 %v8033, 8
        %v8130 = vmul.u32 %v8034, 8
        %v8131 = vmul.u32 %v8035, 8
        %v8132 = vmul.u32 %v8036, 8
        %v8133 = vmul.u32 %v8037, 8
        %v8134 = vmul.u32 %v8038, 8
        %v8135 = vmul.u32 %v8039, 8
        %v8136 = vmul.u32 %v8040, 8
        %v8137 = vadd.s32 %v8105, %v8073
        %v8138 = vadd.s32 %v8106, %v8074
        %v8139 = vadd.s32 %v8107, %v8075
        %v8140 = vadd.s32 %v8108, %v8076
        %v8141 = vadd.s32 %v8109, %v8077
        %v8142 = vadd.s32 %v8110, %v8078
        %v8143 = vadd.s32 %v8111, %v8079
        %v8144 = vadd.s32 %v8112, %v8080
        %v8145 = vadd.s32 %v8113, %v8081
        %v8146 = vadd.s32 %v8114, %v8082
        %v8147 = vadd.s32 %v8115, %v8083
        %v8148 = vadd.s32 %v8116, %v8084
        %v8149 = vadd.s32 %v8117, %v8085
        %v8150 = vadd.s32 %v8118, %v8086
        %v8151 = vadd.s32 %v8119, %v8087
        %v8152 = vadd.s32 %v8120, %v8088
        %v8153 = vadd.s32 %v8121, %v8089
        %v8154 = vadd.s32 %v8122, %v8090
        %v8155 = vadd.s32 %v8123, %v8091
        %v8156 = vadd.s32 %v8124, %v8092
        %v8157 = vadd.s32 %v8125, %v8093
        %v8158 = vadd.s32 %v8126, %v8094
        %v8159 = vadd.s32 %v8127, %v8095
        %v8160 = vadd.s32 %v8128, %v8096
        %v8161 = vadd.s32 %v8129, %v8097
        %v8162 = vadd.s32 %v8130, %v8098
        %v8163 = vadd.s32 %v8131, %v8099
        %v8164 = vadd.s32 %v8132, %v8100
        %v8165 = vadd.s32 %v8133, %v8101
        %v8166 = vadd.s32 %v8134, %v8102
        %v8167 = vadd.s32 %v8135, %v8103
        %v8168 = vadd.s32 %v8136, %v8104
        %vm8169 = vcmp.eq.s32.totalorder %v8008, %v8137
        %vm8170 = vcmp.eq.s32.totalorder %v8008, %v8138
        %vm8171 = vcmp.eq.s32.totalorder %v8008, %v8139
        %vm8172 = vcmp.eq.s32.totalorder %v8008, %v8140
        %vm8173 = vcmp.eq.s32.totalorder %v8008, %v8141
        %vm8174 = vcmp.eq.s32.totalorder %v8008, %v8142
        %vm8175 = vcmp.eq.s32.totalorder %v8008, %v8143
        %vm8176 = vcmp.eq.s32.totalorder %v8008, %v8144
        %vm8177 = vcmp.eq.s32.totalorder %v8008, %v8145
        %vm8178 = vcmp.eq.s32.totalorder %v8008, %v8146
        %vm8179 = vcmp.eq.s32.totalorder %v8008, %v8147
        %vm8180 = vcmp.eq.s32.totalorder %v8008, %v8148
        %vm8181 = vcmp.eq.s32.totalorder %v8008, %v8149
        %vm8182 = vcmp.eq.s32.totalorder %v8008, %v8150
        %vm8183 = vcmp.eq.s32.totalorder %v8008, %v8151
        %vm8184 = vcmp.eq.s32.totalorder %v8008, %v8152
        %vm8185 = vcmp.eq.s32.totalorder %v8008, %v8153
        %vm8186 = vcmp.eq.s32.totalorder %v8008, %v8154
        %vm8187 = vcmp.eq.s32.totalorder %v8008, %v8155
        %vm8188 = vcmp.eq.s32.totalorder %v8008, %v8156
        %vm8189 = vcmp.eq.s32.totalorder %v8008, %v8157
        %vm8190 = vcmp.eq.s32.totalorder %v8008, %v8158
        %vm8191 = vcmp.eq.s32.totalorder %v8008, %v8159
        %vm8192 = vcmp.eq.s32.totalorder %v8008, %v8160
        %vm8193 = vcmp.eq.s32.totalorder %v8008, %v8161
        %vm8194 = vcmp.eq.s32.totalorder %v8008, %v8162
        %vm8195 = vcmp.eq.s32.totalorder %v8008, %v8163
        %vm8196 = vcmp.eq.s32.totalorder %v8008, %v8164
        %vm8197 = vcmp.eq.s32.totalorder %v8008, %v8165
        %vm8198 = vcmp.eq.s32.totalorder %v8008, %v8166
        %vm8199 = vcmp.eq.s32.totalorder %v8008, %v8167
        %vm8200 = vcmp.eq.s32.totalorder %v8008, %v8168
        %v8201 = vsel %vm8169, 1.0, 0.0
        %v8202 = vsel %vm8170, 1.0, 0.0
        %v8203 = vsel %vm8171, 1.0, 0.0
        %v8204 = vsel %vm8172, 1.0, 0.0
        %v8205 = vsel %vm8173, 1.0, 0.0
        %v8206 = vsel %vm8174, 1.0, 0.0
        %v8207 = vsel %vm8175, 1.0, 0.0
        %v8208 = vsel %vm8176, 1.0, 0.0
        %v8209 = vsel %vm8177, 1.0, 0.0
        %v8210 = vsel %vm8178, 1.0, 0.0
        %v8211 = vsel %vm8179, 1.0, 0.0
        %v8212 = vsel %vm8180, 1.0, 0.0
        %v8213 = vsel %vm8181, 1.0, 0.0
        %v8214 = vsel %vm8182, 1.0, 0.0
        %v8215 = vsel %vm8183, 1.0, 0.0
        %v8216 = vsel %vm8184, 1.0, 0.0
        %v8217 = vsel %vm8185, 1.0, 0.0
        %v8218 = vsel %vm8186, 1.0, 0.0
        %v8219 = vsel %vm8187, 1.0, 0.0
        %v8220 = vsel %vm8188, 1.0, 0.0
        %v8221 = vsel %vm8189, 1.0, 0.0
        %v8222 = vsel %vm8190, 1.0, 0.0
        %v8223 = vsel %vm8191, 1.0, 0.0
        %v8224 = vsel %vm8192, 1.0, 0.0
        %v8225 = vsel %vm8193, 1.0, 0.0
        %v8226 = vsel %vm8194, 1.0, 0.0
        %v8227 = vsel %vm8195, 1.0, 0.0
        %v8228 = vsel %vm8196, 1.0, 0.0
        %v8229 = vsel %vm8197, 1.0, 0.0
        %v8230 = vsel %vm8198, 1.0, 0.0
        %v8231 = vsel %vm8199, 1.0, 0.0
        %v8232 = vsel %vm8200, 1.0, 0.0
        %v8233 = vld [vmem:[#allocation10] sm:$0xff]
        %v8234 = vld [vmem:[#allocation10 + $0x8] sm:$0xff]
        %v8235 = vld [vmem:[#allocation10 + $0x10] sm:$0xff]
        %v8236 = vld [vmem:[#allocation10 + $0x18] sm:$0xff]
        %v8237 = vld [vmem:[#allocation10 + $0x20] sm:$0xff]
        %v8238 = vld [vmem:[#allocation10 + $0x28] sm:$0xff]
        %v8239 = vld [vmem:[#allocation10 + $0x30] sm:$0xff]
        %v8240 = vld [vmem:[#allocation10 + $0x38] sm:$0xff]
        %v8242 = vsel %vm7802, %v8201, 0
        %v8245 = vsel %vm7802, %v8202, 0
        %v8248 = vsel %vm7802, %v8203, 0
        %v8251 = vsel %vm7802, %v8204, 0
        %v8254 = vsel %vm7802, %v8205, 0
        %v8257 = vsel %vm7802, %v8206, 0
        %v8260 = vsel %vm7802, %v8207, 0
        %v8263 = vsel %vm7802, %v8208, 0
        %v8266 = vsel %vm7802, %v8209, 0
        %v8269 = vsel %vm7802, %v8210, 0
        %v8272 = vsel %vm7802, %v8211, 0
        %v8275 = vsel %vm7802, %v8212, 0
        %v8278 = vsel %vm7802, %v8213, 0
        %v8281 = vsel %vm7802, %v8214, 0
        %v8284 = vsel %vm7802, %v8215, 0
        %v8287 = vsel %vm7802, %v8216, 0
        %v8290 = vsel %vm7802, %v8217, 0
        %v8293 = vsel %vm7802, %v8218, 0
        %v8296 = vsel %vm7802, %v8219, 0
        %v8299 = vsel %vm7802, %v8220, 0
        %v8302 = vsel %vm7802, %v8221, 0
        %v8305 = vsel %vm7802, %v8222, 0
        %v8308 = vsel %vm7802, %v8223, 0
        %v8311 = vsel %vm7802, %v8224, 0
        %v8314 = vsel %vm7802, %v8225, 0
        %v8317 = vsel %vm7802, %v8226, 0
        %v8320 = vsel %vm7802, %v8227, 0
        %v8323 = vsel %vm7802, %v8228, 0
        %v8326 = vsel %vm7802, %v8229, 0
        %v8329 = vsel %vm7802, %v8230, 0
        %v8332 = vsel %vm7802, %v8231, 0
        %v8335 = vsel %vm7802, %v8232, 0
        %8337 = vmatprep.subr.mxu0 0.0
        %8338 = vmatpush1.msra.mxu0 %v8233
        %8339 = vmatprep.subr.mxu0 0.0
        %8340 = vmatpush1.msra.mxu0 %v8234
        %8341 = vmatprep.subr.mxu0 0.0
        %8342 = vmatpush1.msra.mxu0 %v8235
        %8343 = vmatprep.subr.mxu0 0.0
        %8344 = vmatpush1.msra.mxu0 %v8236
        %8345 = vmatprep.subr.mxu0 0.0
        %8346 = vmatpush1.msra.mxu0 %v8237
        %8347 = vmatprep.subr.mxu0 0.0
        %8348 = vmatpush1.msra.mxu0 %v8238
        %8349 = vmatprep.subr.mxu0 0.0
        %8350 = vmatpush1.msra.mxu0 %v8239
        %8351 = vmatprep.subr.mxu0 0.0
        %8352 = vmatpush1.msra.mxu0 %v8240
        %8353 = vmatprep.subr.mxu0 0.0
        %8354 = vmatpush1.msra.mxu0 0.0
        %8355 = vmatprep.subr.mxu0 0.0
        %8356 = vmatpush1.msra.mxu0 0.0
        %8357 = vmatprep.subr.mxu0 0.0
        %8358 = vmatpush1.msra.mxu0 0.0
        %8359 = vmatprep.subr.mxu0 0.0
        %8360 = vmatpush1.msra.mxu0 0.0
        %8361 = vmatprep.subr.mxu0 0.0
        %8362 = vmatpush1.msra.mxu0 0.0
        %8363 = vmatprep.subr.mxu0 0.0
        %8364 = vmatpush1.msra.mxu0 0.0
        %8365 = vmatprep.subr.mxu0 0.0
        %8366 = vmatpush1.msra.mxu0 0.0
        %8367 = vmatprep.subr.mxu0 0.0
        %8368 = vmatpush1.msra.mxu0 0.0
        %8369 = vmatprep.subr.mxu0 0.0
        %8370 = vmatpush1.msra.mxu0 0.0
        %8371 = vmatprep.subr.mxu0 0.0
        %8372 = vmatpush1.msra.mxu0 0.0
        %8373 = vmatprep.subr.mxu0 0.0
        %8374 = vmatpush1.msra.mxu0 0.0
        %8375 = vmatprep.subr.mxu0 0.0
        %8376 = vmatpush1.msra.mxu0 0.0
        %8377 = vmatprep.subr.mxu0 0.0
        %8378 = vmatpush1.msra.mxu0 0.0
        %8379 = vmatprep.subr.mxu0 0.0
        %8380 = vmatpush1.msra.mxu0 0.0
        %8381 = vmatprep.subr.mxu0 0.0
        %8382 = vmatpush1.msra.mxu0 0.0
        %8383 = vmatprep.subr.mxu0 0.0
        %8384 = vmatpush1.msra.mxu0 0.0
        %8385 = vmatprep.subr.mxu0 0.0
        %8386 = vmatpush1.msra.mxu0 0.0
        %8387 = vmatprep.subr.mxu0 0.0
        %8388 = vmatpush1.msra.mxu0 0.0
        %8389 = vmatprep.subr.mxu0 0.0
        %8390 = vmatpush1.msra.mxu0 0.0
        %8391 = vmatprep.subr.mxu0 0.0
        %8392 = vmatpush1.msra.mxu0 0.0
        %8393 = vmatprep.subr.mxu0 0.0
        %8394 = vmatpush1.msra.mxu0 0.0
        %8395 = vmatprep.subr.mxu0 0.0
        %8396 = vmatpush1.msra.mxu0 0.0
        %8397 = vmatprep.subr.mxu0 0.0
        %8398 = vmatpush1.msra.mxu0 0.0
        %8399 = vmatprep.subr.mxu0 0.0
        %8400 = vmatpush1.msra.mxu0 0.0
        %8401 = vmatprep.mubr.f32.mxu0 0.0
        %8402 = vmatmul.mubr.f32.gmra.mrb[0].mxu0 %v8242
        %v8403 = vpop.f32.mrb[0].mxu0
        %v8404 = vadd.f32 0.0, %v8403
        %v8405 = vpop.f32.mrb[0].mxu0
        %8406 = vmatprep.mubr.f32.mxu0 0.0
        %8407 = vmatmul.mubr.f32.gmra.mrb[0].mxu0 %v8245
        %v8408 = vpop.f32.mrb[0].mxu0
        %v8409 = vadd.f32 0.0, %v8408
        %v8410 = vpop.f32.mrb[0].mxu0
        %8411 = vmatprep.mubr.f32.mxu0 0.0
        %8412 = vmatmul.mubr.f32.gmra.mrb[0].mxu0 %v8248
        %v8413 = vpop.f32.mrb[0].mxu0
        %v8414 = vadd.f32 0.0, %v8413
        %v8415 = vpop.f32.mrb[0].mxu0
        %8416 = vmatprep.mubr.f32.mxu0 0.0
        %8417 = vmatmul.mubr.f32.gmra.mrb[0].mxu0 %v8251
        %v8418 = vpop.f32.mrb[0].mxu0
        %v8419 = vadd.f32 0.0, %v8418
        %v8420 = vpop.f32.mrb[0].mxu0
        %8421 = vmatprep.mubr.f32.mxu0 0.0
        %8422 = vmatmul.mubr.f32.gmra.mrb[0].mxu0 %v8254
        %v8423 = vpop.f32.mrb[0].mxu0
        %v8424 = vadd.f32 0.0, %v8423
        %v8425 = vpop.f32.mrb[0].mxu0
        %8426 = vmatprep.mubr.f32.mxu0 0.0
        %8427 = vmatmul.mubr.f32.gmra.mrb[0].mxu0 %v8257
        %v8428 = vpop.f32.mrb[0].mxu0
        %v8429 = vadd.f32 0.0, %v8428
        %v8430 = vpop.f32.mrb[0].mxu0
        %8431 = vmatprep.mubr.f32.mxu0 0.0
        %8432 = vmatmul.mubr.f32.gmra.mrb[0].mxu0 %v8260
        %v8433 = vpop.f32.mrb[0].mxu0
        %v8434 = vadd.f32 0.0, %v8433
        %v8435 = vpop.f32.mrb[0].mxu0
        %8436 = vmatprep.mubr.f32.mxu0 0.0
        %8437 = vmatmul.mubr.f32.gmra.mrb[0].mxu0 %v8263
        %v8438 = vpop.f32.mrb[0].mxu0
        %v8439 = vadd.f32 0.0, %v8438
        %v8440 = vpop.f32.mrb[0].mxu0
        %8441 = vmatprep.mubr.f32.mxu0 0.0
        %8442 = vmatmul.mubr.f32.gmra.mrb[0].mxu0 %v8266
        %v8443 = vpop.f32.mrb[0].mxu0
        %v8444 = vadd.f32 0.0, %v8443
        %v8445 = vpop.f32.mrb[0].mxu0
        %8446 = vmatprep.mubr.f32.mxu0 0.0
        %8447 = vmatmul.mubr.f32.gmra.mrb[0].mxu0 %v8269
        %v8448 = vpop.f32.mrb[0].mxu0
        %v8449 = vadd.f32 0.0, %v8448
        %v8450 = vpop.f32.mrb[0].mxu0
        %8451 = vmatprep.mubr.f32.mxu0 0.0
        %8452 = vmatmul.mubr.f32.gmra.mrb[0].mxu0 %v8272
        %v8453 = vpop.f32.mrb[0].mxu0
        %v8454 = vadd.f32 0.0, %v8453
        %v8455 = vpop.f32.mrb[0].mxu0
        %8456 = vmatprep.mubr.f32.mxu0 0.0
        %8457 = vmatmul.mubr.f32.gmra.mrb[0].mxu0 %v8275
        %v8458 = vpop.f32.mrb[0].mxu0
        %v8459 = vadd.f32 0.0, %v8458
        %v8460 = vpop.f32.mrb[0].mxu0
        %8461 = vmatprep.mubr.f32.mxu0 0.0
        %8462 = vmatmul.mubr.f32.gmra.mrb[0].mxu0 %v8278
        %v8463 = vpop.f32.mrb[0].mxu0
        %v8464 = vadd.f32 0.0, %v8463
        %v8465 = vpop.f32.mrb[0].mxu0
        %8466 = vmatprep.mubr.f32.mxu0 0.0
        %8467 = vmatmul.mubr.f32.gmra.mrb[0].mxu0 %v8281
        %v8468 = vpop.f32.mrb[0].mxu0
        %v8469 = vadd.f32 0.0, %v8468
        %v8470 = vpop.f32.mrb[0].mxu0
        %8471 = vmatprep.mubr.f32.mxu0 0.0
        %8472 = vmatmul.mubr.f32.gmra.mrb[0].mxu0 %v8284
        %v8473 = vpop.f32.mrb[0].mxu0
        %v8474 = vadd.f32 0.0, %v8473
        %v8475 = vpop.f32.mrb[0].mxu0
        %8476 = vmatprep.mubr.f32.mxu0 0.0
        %8477 = vmatmul.mubr.f32.gmra.mrb[0].mxu0 %v8287
        %v8478 = vpop.f32.mrb[0].mxu0
        %v8479 = vadd.f32 0.0, %v8478
        %v8480 = vpop.f32.mrb[0].mxu0
        %8481 = vmatprep.mubr.f32.mxu0 0.0
        %8482 = vmatmul.mubr.f32.gmra.mrb[0].mxu0 %v8290
        %v8483 = vpop.f32.mrb[0].mxu0
        %v8484 = vadd.f32 0.0, %v8483
        %v8485 = vpop.f32.mrb[0].mxu0
        %8486 = vmatprep.mubr.f32.mxu0 0.0
        %8487 = vmatmul.mubr.f32.gmra.mrb[0].mxu0 %v8293
        %v8488 = vpop.f32.mrb[0].mxu0
        %v8489 = vadd.f32 0.0, %v8488
        %v8490 = vpop.f32.mrb[0].mxu0
        %8491 = vmatprep.mubr.f32.mxu0 0.0
        %8492 = vmatmul.mubr.f32.gmra.mrb[0].mxu0 %v8296
        %v8493 = vpop.f32.mrb[0].mxu0
        %v8494 = vadd.f32 0.0, %v8493
        %v8495 = vpop.f32.mrb[0].mxu0
        %8496 = vmatprep.mubr.f32.mxu0 0.0
        %8497 = vmatmul.mubr.f32.gmra.mrb[0].mxu0 %v8299
        %v8498 = vpop.f32.mrb[0].mxu0
        %v8499 = vadd.f32 0.0, %v8498
        %v8500 = vpop.f32.mrb[0].mxu0
        %8501 = vmatprep.mubr.f32.mxu0 0.0
        %8502 = vmatmul.mubr.f32.gmra.mrb[0].mxu0 %v8302
        %v8503 = vpop.f32.mrb[0].mxu0
        %v8504 = vadd.f32 0.0, %v8503
        %v8505 = vpop.f32.mrb[0].mxu0
        %8506 = vmatprep.mubr.f32.mxu0 0.0
        %8507 = vmatmul.mubr.f32.gmra.mrb[0].mxu0 %v8305
        %v8508 = vpop.f32.mrb[0].mxu0
        %v8509 = vadd.f32 0.0, %v8508
        %v8510 = vpop.f32.mrb[0].mxu0
        %8511 = vmatprep.mubr.f32.mxu0 0.0
        %8512 = vmatmul.mubr.f32.gmra.mrb[0].mxu0 %v8308
        %v8513 = vpop.f32.mrb[0].mxu0
        %v8514 = vadd.f32 0.0, %v8513
        %v8515 = vpop.f32.mrb[0].mxu0
        %8516 = vmatprep.mubr.f32.mxu0 0.0
        %8517 = vmatmul.mubr.f32.gmra.mrb[0].mxu0 %v8311
        %v8518 = vpop.f32.mrb[0].mxu0
        %v8519 = vadd.f32 0.0, %v8518
        %v8520 = vpop.f32.mrb[0].mxu0
        %8521 = vmatprep.mubr.f32.mxu0 0.0
        %8522 = vmatmul.mubr.f32.gmra.mrb[0].mxu0 %v8314
        %v8523 = vpop.f32.mrb[0].mxu0
        %v8524 = vadd.f32 0.0, %v8523
        %v8525 = vpop.f32.mrb[0].mxu0
        %8526 = vmatprep.mubr.f32.mxu0 0.0
        %8527 = vmatmul.mubr.f32.gmra.mrb[0].mxu0 %v8317
        %v8528 = vpop.f32.mrb[0].mxu0
        %v8529 = vadd.f32 0.0, %v8528
        %v8530 = vpop.f32.mrb[0].mxu0
        %8531 = vmatprep.mubr.f32.mxu0 0.0
        %8532 = vmatmul.mubr.f32.gmra.mrb[0].mxu0 %v8320
        %v8533 = vpop.f32.mrb[0].mxu0
        %v8534 = vadd.f32 0.0, %v8533
        %v8535 = vpop.f32.mrb[0].mxu0
        %8536 = vmatprep.mubr.f32.mxu0 0.0
        %8537 = vmatmul.mubr.f32.gmra.mrb[0].mxu0 %v8323
        %v8538 = vpop.f32.mrb[0].mxu0
        %v8539 = vadd.f32 0.0, %v8538
        %v8540 = vpop.f32.mrb[0].mxu0
        %8541 = vmatprep.mubr.f32.mxu0 0.0
        %8542 = vmatmul.mubr.f32.gmra.mrb[0].mxu0 %v8326
        %v8543 = vpop.f32.mrb[0].mxu0
        %v8544 = vadd.f32 0.0, %v8543
        %v8545 = vpop.f32.mrb[0].mxu0
        %8546 = vmatprep.mubr.f32.mxu0 0.0
        %8547 = vmatmul.mubr.f32.gmra.mrb[0].mxu0 %v8329
        %v8548 = vpop.f32.mrb[0].mxu0
        %v8549 = vadd.f32 0.0, %v8548
        %v8550 = vpop.f32.mrb[0].mxu0
        %8551 = vmatprep.mubr.f32.mxu0 0.0
        %8552 = vmatmul.mubr.f32.gmra.mrb[0].mxu0 %v8332
        %v8553 = vpop.f32.mrb[0].mxu0
        %v8554 = vadd.f32 0.0, %v8553
        %v8555 = vpop.f32.mrb[0].mxu0
        %8556 = vmatprep.mubr.f32.mxu0 0.0
        %8557 = vmatmul.mubr.f32.gmra.mrb[0].mxu0 %v8335
        %v8558 = vpop.f32.mrb[0].mxu0
        %v8559 = vadd.f32 0.0, %v8558
        %v8560 = vpop.f32.mrb[0].mxu0
        %8561 = vdwg.mxu0
        %v8562 = vshra.s32 %v7975, 6
        %v8563 = vshra.s32 %v7976, 6
        %v8564 = vshra.s32 %v7977, 6
        %v8565 = vshra.s32 %v7978, 6
        %v8566 = vshra.s32 %v7979, 6
        %v8567 = vshra.s32 %v7980, 6
        %v8568 = vshra.s32 %v7981, 6
        %v8569 = vshra.s32 %v7982, 6
        %v8570 = vshra.s32 %v7983, 6
        %v8571 = vshra.s32 %v7984, 6
        %v8572 = vshra.s32 %v7985, 6
        %v8573 = vshra.s32 %v7986, 6
        %v8574 = vshra.s32 %v7987, 6
        %v8575 = vshra.s32 %v7988, 6
        %v8576 = vshra.s32 %v7989, 6
        %v8577 = vshra.s32 %v7990, 6
        %v8578 = vshra.s32 %v7991, 6
        %v8579 = vshra.s32 %v7992, 6
        %v8580 = vshra.s32 %v7993, 6
        %v8581 = vshra.s32 %v7994, 6
        %v8582 = vshra.s32 %v7995, 6
        %v8583 = vshra.s32 %v7996, 6
        %v8584 = vshra.s32 %v7997, 6
        %v8585 = vshra.s32 %v7998, 6
        %v8586 = vshra.s32 %v7999, 6
        %v8587 = vshra.s32 %v8000, 6
        %v8588 = vshra.s32 %v8001, 6
        %v8589 = vshra.s32 %v8002, 6
        %v8590 = vshra.s32 %v8003, 6
        %v8591 = vshra.s32 %v8004, 6
        %v8592 = vshra.s32 %v8005, 6
        %v8593 = vshra.s32 %v8006, 6
        %v8594 = vshra.s32 %v8041, 2
        %v8595 = vshra.s32 %v8042, 2
        %v8596 = vshra.s32 %v8043, 2
        %v8597 = vshra.s32 %v8044, 2
        %v8598 = vshra.s32 %v8045, 2
        %v8599 = vshra.s32 %v8046, 2
        %v8600 = vshra.s32 %v8047, 2
        %v8601 = vshra.s32 %v8048, 2
        %v8602 = vshra.s32 %v8049, 2
        %v8603 = vshra.s32 %v8050, 2
        %v8604 = vshra.s32 %v8051, 2
        %v8605 = vshra.s32 %v8052, 2
        %v8606 = vshra.s32 %v8053, 2
        %v8607 = vshra.s32 %v8054, 2
        %v8608 = vshra.s32 %v8055, 2
        %v8609 = vshra.s32 %v8056, 2
        %v8610 = vshra.s32 %v8057, 2
        %v8611 = vshra.s32 %v8058, 2
        %v8612 = vshra.s32 %v8059, 2
        %v8613 = vshra.s32 %v8060, 2
        %v8614 = vshra.s32 %v8061, 2
        %v8615 = vshra.s32 %v8062, 2
        %v8616 = vshra.s32 %v8063, 2
        %v8617 = vshra.s32 %v8064, 2
        %v8618 = vshra.s32 %v8065, 2
        %v8619 = vshra.s32 %v8066, 2
        %v8620 = vshra.s32 %v8067, 2
        %v8621 = vshra.s32 %v8068, 2
        %v8622 = vshra.s32 %v8069, 2
        %v8623 = vshra.s32 %v8070, 2
        %v8624 = vshra.s32 %v8071, 2
        %v8625 = vshra.s32 %v8072, 2
        %v8626 = vmul.u32 %v8562, 4
        %v8627 = vmul.u32 %v8563, 4
        %v8628 = vmul.u32 %v8564, 4
        %v8629 = vmul.u32 %v8565, 4
        %v8630 = vmul.u32 %v8566, 4
        %v8631 = vmul.u32 %v8567, 4
        %v8632 = vmul.u32 %v8568, 4
        %v8633 = vmul.u32 %v8569, 4
        %v8634 = vmul.u32 %v8570, 4
        %v8635 = vmul.u32 %v8571, 4
        %v8636 = vmul.u32 %v8572, 4
        %v8637 = vmul.u32 %v8573, 4
        %v8638 = vmul.u32 %v8574, 4
        %v8639 = vmul.u32 %v8575, 4
        %v8640 = vmul.u32 %v8576, 4
        %v8641 = vmul.u32 %v8577, 4
        %v8642 = vmul.u32 %v8578, 4
        %v8643 = vmul.u32 %v8579, 4
        %v8644 = vmul.u32 %v8580, 4
        %v8645 = vmul.u32 %v8581, 4
        %v8646 = vmul.u32 %v8582, 4
        %v8647 = vmul.u32 %v8583, 4
        %v8648 = vmul.u32 %v8584, 4
        %v8649 = vmul.u32 %v8585, 4
        %v8650 = vmul.u32 %v8586, 4
        %v8651 = vmul.u32 %v8587, 4
        %v8652 = vmul.u32 %v8588, 4
        %v8653 = vmul.u32 %v8589, 4
        %v8654 = vmul.u32 %v8590, 4
        %v8655 = vmul.u32 %v8591, 4
        %v8656 = vmul.u32 %v8592, 4
        %v8657 = vmul.u32 %v8593, 4
        %v8658 = vadd.s32 %v8626, %v8594
        %v8659 = vadd.s32 %v8627, %v8595
        %v8660 = vadd.s32 %v8628, %v8596
        %v8661 = vadd.s32 %v8629, %v8597
        %v8662 = vadd.s32 %v8630, %v8598
        %v8663 = vadd.s32 %v8631, %v8599
        %v8664 = vadd.s32 %v8632, %v8600
        %v8665 = vadd.s32 %v8633, %v8601
        %v8666 = vadd.s32 %v8634, %v8602
        %v8667 = vadd.s32 %v8635, %v8603
        %v8668 = vadd.s32 %v8636, %v8604
        %v8669 = vadd.s32 %v8637, %v8605
        %v8670 = vadd.s32 %v8638, %v8606
        %v8671 = vadd.s32 %v8639, %v8607
        %v8672 = vadd.s32 %v8640, %v8608
        %v8673 = vadd.s32 %v8641, %v8609
        %v8674 = vadd.s32 %v8642, %v8610
        %v8675 = vadd.s32 %v8643, %v8611
        %v8676 = vadd.s32 %v8644, %v8612
        %v8677 = vadd.s32 %v8645, %v8613
        %v8678 = vadd.s32 %v8646, %v8614
        %v8679 = vadd.s32 %v8647, %v8615
        %v8680 = vadd.s32 %v8648, %v8616
        %v8681 = vadd.s32 %v8649, %v8617
        %v8682 = vadd.s32 %v8650, %v8618
        %v8683 = vadd.s32 %v8651, %v8619
        %v8684 = vadd.s32 %v8652, %v8620
        %v8685 = vadd.s32 %v8653, %v8621
        %v8686 = vadd.s32 %v8654, %v8622
        %v8687 = vadd.s32 %v8655, %v8623
        %v8688 = vadd.s32 %v8656, %v8624
        %v8689 = vadd.s32 %v8657, %v8625
        %vm8690 = vcmp.eq.s32.totalorder %v8008, %v8658
        %vm8691 = vcmp.eq.s32.totalorder %v8008, %v8659
        %vm8692 = vcmp.eq.s32.totalorder %v8008, %v8660
        %vm8693 = vcmp.eq.s32.totalorder %v8008, %v8661
        %vm8694 = vcmp.eq.s32.totalorder %v8008, %v8662
        %vm8695 = vcmp.eq.s32.totalorder %v8008, %v8663
        %vm8696 = vcmp.eq.s32.totalorder %v8008, %v8664
        %vm8697 = vcmp.eq.s32.totalorder %v8008, %v8665
        %vm8698 = vcmp.eq.s32.totalorder %v8008, %v8666
        %vm8699 = vcmp.eq.s32.totalorder %v8008, %v8667
        %vm8700 = vcmp.eq.s32.totalorder %v8008, %v8668
        %vm8701 = vcmp.eq.s32.totalorder %v8008, %v8669
        %vm8702 = vcmp.eq.s32.totalorder %v8008, %v8670
        %vm8703 = vcmp.eq.s32.totalorder %v8008, %v8671
        %vm8704 = vcmp.eq.s32.totalorder %v8008, %v8672
        %vm8705 = vcmp.eq.s32.totalorder %v8008, %v8673
        %vm8706 = vcmp.eq.s32.totalorder %v8008, %v8674
        %vm8707 = vcmp.eq.s32.totalorder %v8008, %v8675
        %vm8708 = vcmp.eq.s32.totalorder %v8008, %v8676
        %vm8709 = vcmp.eq.s32.totalorder %v8008, %v8677
        %vm8710 = vcmp.eq.s32.totalorder %v8008, %v8678
        %vm8711 = vcmp.eq.s32.totalorder %v8008, %v8679
        %vm8712 = vcmp.eq.s32.totalorder %v8008, %v8680
        %vm8713 = vcmp.eq.s32.totalorder %v8008, %v8681
        %vm8714 = vcmp.eq.s32.totalorder %v8008, %v8682
        %vm8715 = vcmp.eq.s32.totalorder %v8008, %v8683
        %vm8716 = vcmp.eq.s32.totalorder %v8008, %v8684
        %vm8717 = vcmp.eq.s32.totalorder %v8008, %v8685
        %vm8718 = vcmp.eq.s32.totalorder %v8008, %v8686
        %vm8719 = vcmp.eq.s32.totalorder %v8008, %v8687
        %vm8720 = vcmp.eq.s32.totalorder %v8008, %v8688
        %vm8721 = vcmp.eq.s32.totalorder %v8008, %v8689
        %v8722 = vsel %vm8690, 1.0, 0.0
        %v8723 = vsel %vm8691, 1.0, 0.0
        %v8724 = vsel %vm8692, 1.0, 0.0
        %v8725 = vsel %vm8693, 1.0, 0.0
        %v8726 = vsel %vm8694, 1.0, 0.0
        %v8727 = vsel %vm8695, 1.0, 0.0
        %v8728 = vsel %vm8696, 1.0, 0.0
        %v8729 = vsel %vm8697, 1.0, 0.0
        %v8730 = vsel %vm8698, 1.0, 0.0
        %v8731 = vsel %vm8699, 1.0, 0.0
        %v8732 = vsel %vm8700, 1.0, 0.0
        %v8733 = vsel %vm8701, 1.0, 0.0
        %v8734 = vsel %vm8702, 1.0, 0.0
        %v8735 = vsel %vm8703, 1.0, 0.0
        %v8736 = vsel %vm8704, 1.0, 0.0
        %v8737 = vsel %vm8705, 1.0, 0.0
        %v8738 = vsel %vm8706, 1.0, 0.0
        %v8739 = vsel %vm8707, 1.0, 0.0
        %v8740 = vsel %vm8708, 1.0, 0.0
        %v8741 = vsel %vm8709, 1.0, 0.0
        %v8742 = vsel %vm8710, 1.0, 0.0
        %v8743 = vsel %vm8711, 1.0, 0.0
        %v8744 = vsel %vm8712, 1.0, 0.0
        %v8745 = vsel %vm8713, 1.0, 0.0
        %v8746 = vsel %vm8714, 1.0, 0.0
        %v8747 = vsel %vm8715, 1.0, 0.0
        %v8748 = vsel %vm8716, 1.0, 0.0
        %v8749 = vsel %vm8717, 1.0, 0.0
        %v8750 = vsel %vm8718, 1.0, 0.0
        %v8751 = vsel %vm8719, 1.0, 0.0
        %v8752 = vsel %vm8720, 1.0, 0.0
        %v8753 = vsel %vm8721, 1.0, 0.0
        %v8754 = vld [vmem:[#allocation11] sm:$0xff]
        %v8755 = vld [vmem:[#allocation11 + $0x8] sm:$0xff]
        %v8757 = vsel %vm432, %v8722, 0
        %v8760 = vsel %vm432, %v8723, 0
        %v8763 = vsel %vm432, %v8724, 0
        %v8766 = vsel %vm432, %v8725, 0
        %v8769 = vsel %vm432, %v8726, 0
        %v8772 = vsel %vm432, %v8727, 0
        %v8775 = vsel %vm432, %v8728, 0
        %v8778 = vsel %vm432, %v8729, 0
        %v8781 = vsel %vm432, %v8730, 0
        %v8784 = vsel %vm432, %v8731, 0
        %v8787 = vsel %vm432, %v8732, 0
        %v8790 = vsel %vm432, %v8733, 0
        %v8793 = vsel %vm432, %v8734, 0
        %v8796 = vsel %vm432, %v8735, 0
        %v8799 = vsel %vm432, %v8736, 0
        %v8802 = vsel %vm432, %v8737, 0
        %v8805 = vsel %vm432, %v8738, 0
        %v8808 = vsel %vm432, %v8739, 0
        %v8811 = vsel %vm432, %v8740, 0
        %v8814 = vsel %vm432, %v8741, 0
        %v8817 = vsel %vm432, %v8742, 0
        %v8820 = vsel %vm432, %v8743, 0
        %v8823 = vsel %vm432, %v8744, 0
        %v8826 = vsel %vm432, %v8745, 0
        %v8829 = vsel %vm432, %v8746, 0
        %v8832 = vsel %vm432, %v8747, 0
        %v8835 = vsel %vm432, %v8748, 0
        %v8838 = vsel %vm432, %v8749, 0
        %v8841 = vsel %vm432, %v8750, 0
        %v8844 = vsel %vm432, %v8751, 0
        %v8847 = vsel %vm432, %v8752, 0
        %v8850 = vsel %vm432, %v8753, 0
        %8852 = vmatprep.subr.mxu0 0.0
        %8853 = vmatpush1.msra.mxu0 %v8754
        %8854 = vmatprep.subr.mxu0 0.0
        %8855 = vmatpush1.msra.mxu0 %v8755
        %8856 = vmatprep.subr.mxu0 0.0
        %8857 = vmatpush1.msra.mxu0 0.0
        %8858 = vmatprep.subr.mxu0 0.0
        %8859 = vmatpush1.msra.mxu0 0.0
        %8860 = vmatprep.subr.mxu0 0.0
        %8861 = vmatpush1.msra.mxu0 0.0
        %8862 = vmatprep.subr.mxu0 0.0
        %8863 = vmatpush1.msra.mxu0 0.0
        %8864 = vmatprep.subr.mxu0 0.0
        %8865 = vmatpush1.msra.mxu0 0.0
        %8866 = vmatprep.subr.mxu0 0.0
        %8867 = vmatpush1.msra.mxu0 0.0
        %8868 = vmatprep.subr.mxu0 0.0
        %8869 = vmatpush1.msra.mxu0 0.0
        %8870 = vmatprep.subr.mxu0 0.0
        %8871 = vmatpush1.msra.mxu0 0.0
        %8872 = vmatprep.subr.mxu0 0.0
        %8873 = vmatpush1.msra.mxu0 0.0
        %8874 = vmatprep.subr.mxu0 0.0
        %8875 = vmatpush1.msra.mxu0 0.0
        %8876 = vmatprep.subr.mxu0 0.0
        %8877 = vmatpush1.msra.mxu0 0.0
        %8878 = vmatprep.subr.mxu0 0.0
        %8879 = vmatpush1.msra.mxu0 0.0
        %8880 = vmatprep.subr.mxu0 0.0
        %8881 = vmatpush1.msra.mxu0 0.0
        %8882 = vmatprep.subr.mxu0 0.0
        %8883 = vmatpush1.msra.mxu0 0.0
        %8884 = vmatprep.subr.mxu0 0.0
        %8885 = vmatpush1.msra.mxu0 0.0
        %8886 = vmatprep.subr.mxu0 0.0
        %8887 = vmatpush1.msra.mxu0 0.0
        %8888 = vmatprep.subr.mxu0 0.0
        %8889 = vmatpush1.msra.mxu0 0.0
        %8890 = vmatprep.subr.mxu0 0.0
        %8891 = vmatpush1.msra.mxu0 0.0
        %8892 = vmatprep.subr.mxu0 0.0
        %8893 = vmatpush1.msra.mxu0 0.0
        %8894 = vmatprep.subr.mxu0 0.0
        %8895 = vmatpush1.msra.mxu0 0.0
        %8896 = vmatprep.subr.mxu0 0.0
        %8897 = vmatpush1.msra.mxu0 0.0
        %8898 = vmatprep.subr.mxu0 0.0
        %8899 = vmatpush1.msra.mxu0 0.0
        %8900 = vmatprep.subr.mxu0 0.0
        %8901 = vmatpush1.msra.mxu0 0.0
        %8902 = vmatprep.subr.mxu0 0.0
        %8903 = vmatpush1.msra.mxu0 0.0
        %8904 = vmatprep.subr.mxu0 0.0
        %8905 = vmatpush1.msra.mxu0 0.0
        %8906 = vmatprep.subr.mxu0 0.0
        %8907 = vmatpush1.msra.mxu0 0.0
        %8908 = vmatprep.subr.mxu0 0.0
        %8909 = vmatpush1.msra.mxu0 0.0
        %8910 = vmatprep.subr.mxu0 0.0
        %8911 = vmatpush1.msra.mxu0 0.0
        %8912 = vmatprep.subr.mxu0 0.0
        %8913 = vmatpush1.msra.mxu0 0.0
        %8914 = vmatprep.subr.mxu0 0.0
        %8915 = vmatpush1.msra.mxu0 0.0
        %8916 = vmatprep.mubr.f32.mxu0 0.0
        %8917 = vmatmul.mubr.f32.gmra.mrb[0].mxu0 %v8757
        %v8918 = vpop.f32.mrb[0].mxu0
        %v8919 = vadd.f32 0.0, %v8918
        %v8920 = vpop.f32.mrb[0].mxu0
        %8921 = vmatprep.mubr.f32.mxu0 0.0
        %8922 = vmatmul.mubr.f32.gmra.mrb[0].mxu0 %v8760
        %v8923 = vpop.f32.mrb[0].mxu0
        %v8924 = vadd.f32 0.0, %v8923
        %v8925 = vpop.f32.mrb[0].mxu0
        %8926 = vmatprep.mubr.f32.mxu0 0.0
        %8927 = vmatmul.mubr.f32.gmra.mrb[0].mxu0 %v8763
        %v8928 = vpop.f32.mrb[0].mxu0
        %v8929 = vadd.f32 0.0, %v8928
        %v8930 = vpop.f32.mrb[0].mxu0
        %8931 = vmatprep.mubr.f32.mxu0 0.0
        %8932 = vmatmul.mubr.f32.gmra.mrb[0].mxu0 %v8766
        %v8933 = vpop.f32.mrb[0].mxu0
        %v8934 = vadd.f32 0.0, %v8933
        %v8935 = vpop.f32.mrb[0].mxu0
        %8936 = vmatprep.mubr.f32.mxu0 0.0
        %8937 = vmatmul.mubr.f32.gmra.mrb[0].mxu0 %v8769
        %v8938 = vpop.f32.mrb[0].mxu0
        %v8939 = vadd.f32 0.0, %v8938
        %v8940 = vpop.f32.mrb[0].mxu0
        %8941 = vmatprep.mubr.f32.mxu0 0.0
        %8942 = vmatmul.mubr.f32.gmra.mrb[0].mxu0 %v8772
        %v8943 = vpop.f32.mrb[0].mxu0
        %v8944 = vadd.f32 0.0, %v8943
        %v8945 = vpop.f32.mrb[0].mxu0
        %8946 = vmatprep.mubr.f32.mxu0 0.0
        %8947 = vmatmul.mubr.f32.gmra.mrb[0].mxu0 %v8775
        %v8948 = vpop.f32.mrb[0].mxu0
        %v8949 = vadd.f32 0.0, %v8948
        %v8950 = vpop.f32.mrb[0].mxu0
        %8951 = vmatprep.mubr.f32.mxu0 0.0
        %8952 = vmatmul.mubr.f32.gmra.mrb[0].mxu0 %v8778
        %v8953 = vpop.f32.mrb[0].mxu0
        %v8954 = vadd.f32 0.0, %v8953
        %v8955 = vpop.f32.mrb[0].mxu0
        %8956 = vmatprep.mubr.f32.mxu0 0.0
        %8957 = vmatmul.mubr.f32.gmra.mrb[0].mxu0 %v8781
        %v8958 = vpop.f32.mrb[0].mxu0
        %v8959 = vadd.f32 0.0, %v8958
        %v8960 = vpop.f32.mrb[0].mxu0
        %8961 = vmatprep.mubr.f32.mxu0 0.0
        %8962 = vmatmul.mubr.f32.gmra.mrb[0].mxu0 %v8784
        %v8963 = vpop.f32.mrb[0].mxu0
        %v8964 = vadd.f32 0.0, %v8963
        %v8965 = vpop.f32.mrb[0].mxu0
        %8966 = vmatprep.mubr.f32.mxu0 0.0
        %8967 = vmatmul.mubr.f32.gmra.mrb[0].mxu0 %v8787
        %v8968 = vpop.f32.mrb[0].mxu0
        %v8969 = vadd.f32 0.0, %v8968
        %v8970 = vpop.f32.mrb[0].mxu0
        %8971 = vmatprep.mubr.f32.mxu0 0.0
        %8972 = vmatmul.mubr.f32.gmra.mrb[0].mxu0 %v8790
        %v8973 = vpop.f32.mrb[0].mxu0
        %v8974 = vadd.f32 0.0, %v8973
        %v8975 = vpop.f32.mrb[0].mxu0
        %8976 = vmatprep.mubr.f32.mxu0 0.0
        %8977 = vmatmul.mubr.f32.gmra.mrb[0].mxu0 %v8793
        %v8978 = vpop.f32.mrb[0].mxu0
        %v8979 = vadd.f32 0.0, %v8978
        %v8980 = vpop.f32.mrb[0].mxu0
        %8981 = vmatprep.mubr.f32.mxu0 0.0
        %8982 = vmatmul.mubr.f32.gmra.mrb[0].mxu0 %v8796
        %v8983 = vpop.f32.mrb[0].mxu0
        %v8984 = vadd.f32 0.0, %v8983
        %v8985 = vpop.f32.mrb[0].mxu0
        %8986 = vmatprep.mubr.f32.mxu0 0.0
        %8987 = vmatmul.mubr.f32.gmra.mrb[0].mxu0 %v8799
        %v8988 = vpop.f32.mrb[0].mxu0
        %v8989 = vadd.f32 0.0, %v8988
        %v8990 = vpop.f32.mrb[0].mxu0
        %8991 = vmatprep.mubr.f32.mxu0 0.0
        %8992 = vmatmul.mubr.f32.gmra.mrb[0].mxu0 %v8802
        %v8993 = vpop.f32.mrb[0].mxu0
        %v8994 = vadd.f32 0.0, %v8993
        %v8995 = vpop.f32.mrb[0].mxu0
        %8996 = vmatprep.mubr.f32.mxu0 0.0
        %8997 = vmatmul.mubr.f32.gmra.mrb[0].mxu0 %v8805
        %v8998 = vpop.f32.mrb[0].mxu0
        %v8999 = vadd.f32 0.0, %v8998
        %v9000 = vpop.f32.mrb[0].mxu0
        %9001 = vmatprep.mubr.f32.mxu0 0.0
        %9002 = vmatmul.mubr.f32.gmra.mrb[0].mxu0 %v8808
        %v9003 = vpop.f32.mrb[0].mxu0
        %v9004 = vadd.f32 0.0, %v9003
        %v9005 = vpop.f32.mrb[0].mxu0
        %9006 = vmatprep.mubr.f32.mxu0 0.0
        %9007 = vmatmul.mubr.f32.gmra.mrb[0].mxu0 %v8811
        %v9008 = vpop.f32.mrb[0].mxu0
        %v9009 = vadd.f32 0.0, %v9008
        %v9010 = vpop.f32.mrb[0].mxu0
        %9011 = vmatprep.mubr.f32.mxu0 0.0
        %9012 = vmatmul.mubr.f32.gmra.mrb[0].mxu0 %v8814
        %v9013 = vpop.f32.mrb[0].mxu0
        %v9014 = vadd.f32 0.0, %v9013
        %v9015 = vpop.f32.mrb[0].mxu0
        %9016 = vmatprep.mubr.f32.mxu0 0.0
        %9017 = vmatmul.mubr.f32.gmra.mrb[0].mxu0 %v8817
        %v9018 = vpop.f32.mrb[0].mxu0
        %v9019 = vadd.f32 0.0, %v9018
        %v9020 = vpop.f32.mrb[0].mxu0
        %9021 = vmatprep.mubr.f32.mxu0 0.0
        %9022 = vmatmul.mubr.f32.gmra.mrb[0].mxu0 %v8820
        %v9023 = vpop.f32.mrb[0].mxu0
        %v9024 = vadd.f32 0.0, %v9023
        %v9025 = vpop.f32.mrb[0].mxu0
        %9026 = vmatprep.mubr.f32.mxu0 0.0
        %9027 = vmatmul.mubr.f32.gmra.mrb[0].mxu0 %v8823
        %v9028 = vpop.f32.mrb[0].mxu0
        %v9029 = vadd.f32 0.0, %v9028
        %v9030 = vpop.f32.mrb[0].mxu0
        %9031 = vmatprep.mubr.f32.mxu0 0.0
        %9032 = vmatmul.mubr.f32.gmra.mrb[0].mxu0 %v8826
        %v9033 = vpop.f32.mrb[0].mxu0
        %v9034 = vadd.f32 0.0, %v9033
        %v9035 = vpop.f32.mrb[0].mxu0
        %9036 = vmatprep.mubr.f32.mxu0 0.0
        %9037 = vmatmul.mubr.f32.gmra.mrb[0].mxu0 %v8829
        %v9038 = vpop.f32.mrb[0].mxu0
        %v9039 = vadd.f32 0.0, %v9038
        %v9040 = vpop.f32.mrb[0].mxu0
        %9041 = vmatprep.mubr.f32.mxu0 0.0
        %9042 = vmatmul.mubr.f32.gmra.mrb[0].mxu0 %v8832
        %v9043 = vpop.f32.mrb[0].mxu0
        %v9044 = vadd.f32 0.0, %v9043
        %v9045 = vpop.f32.mrb[0].mxu0
        %9046 = vmatprep.mubr.f32.mxu0 0.0
        %9047 = vmatmul.mubr.f32.gmra.mrb[0].mxu0 %v8835
        %v9048 = vpop.f32.mrb[0].mxu0
        %v9049 = vadd.f32 0.0, %v9048
        %v9050 = vpop.f32.mrb[0].mxu0
        %9051 = vmatprep.mubr.f32.mxu0 0.0
        %9052 = vmatmul.mubr.f32.gmra.mrb[0].mxu0 %v8838
        %v9053 = vpop.f32.mrb[0].mxu0
        %v9054 = vadd.f32 0.0, %v9053
        %v9055 = vpop.f32.mrb[0].mxu0
        %9056 = vmatprep.mubr.f32.mxu0 0.0
        %9057 = vmatmul.mubr.f32.gmra.mrb[0].mxu0 %v8841
        %v9058 = vpop.f32.mrb[0].mxu0
        %v9059 = vadd.f32 0.0, %v9058
        %v9060 = vpop.f32.mrb[0].mxu0
        %9061 = vmatprep.mubr.f32.mxu0 0.0
        %9062 = vmatmul.mubr.f32.gmra.mrb[0].mxu0 %v8844
        %v9063 = vpop.f32.mrb[0].mxu0
        %v9064 = vadd.f32 0.0, %v9063
        %v9065 = vpop.f32.mrb[0].mxu0
        %9066 = vmatprep.mubr.f32.mxu0 0.0
        %9067 = vmatmul.mubr.f32.gmra.mrb[0].mxu0 %v8847
        %v9068 = vpop.f32.mrb[0].mxu0
        %v9069 = vadd.f32 0.0, %v9068
        %v9070 = vpop.f32.mrb[0].mxu0
        %9071 = vmatprep.mubr.f32.mxu0 0.0
        %9072 = vmatmul.mubr.f32.gmra.mrb[0].mxu0 %v8850
        %v9073 = vpop.f32.mrb[0].mxu0
        %v9074 = vadd.f32 0.0, %v9073
        %v9075 = vpop.f32.mrb[0].mxu0
        %9076 = vdwg.mxu0
        %v9077 = vshra.s32 %v7975, 7
        %v9078 = vshra.s32 %v7976, 7
        %v9079 = vshra.s32 %v7977, 7
        %v9080 = vshra.s32 %v7978, 7
        %v9081 = vshra.s32 %v7979, 7
        %v9082 = vshra.s32 %v7980, 7
        %v9083 = vshra.s32 %v7981, 7
        %v9084 = vshra.s32 %v7982, 7
        %v9085 = vshra.s32 %v7983, 7
        %v9086 = vshra.s32 %v7984, 7
        %v9087 = vshra.s32 %v7985, 7
        %v9088 = vshra.s32 %v7986, 7
        %v9089 = vshra.s32 %v7987, 7
        %v9090 = vshra.s32 %v7988, 7
        %v9091 = vshra.s32 %v7989, 7
        %v9092 = vshra.s32 %v7990, 7
        %v9093 = vshra.s32 %v7991, 7
        %v9094 = vshra.s32 %v7992, 7
        %v9095 = vshra.s32 %v7993, 7
        %v9096 = vshra.s32 %v7994, 7
        %v9097 = vshra.s32 %v7995, 7
        %v9098 = vshra.s32 %v7996, 7
        %v9099 = vshra.s32 %v7997, 7
        %v9100 = vshra.s32 %v7998, 7
        %v9101 = vshra.s32 %v7999, 7
        %v9102 = vshra.s32 %v8000, 7
        %v9103 = vshra.s32 %v8001, 7
        %v9104 = vshra.s32 %v8002, 7
        %v9105 = vshra.s32 %v8003, 7
        %v9106 = vshra.s32 %v8004, 7
        %v9107 = vshra.s32 %v8005, 7
        %v9108 = vshra.s32 %v8006, 7
        %v9109 = vshra.s32 %v8041, 3
        %v9110 = vshra.s32 %v8042, 3
        %v9111 = vshra.s32 %v8043, 3
        %v9112 = vshra.s32 %v8044, 3
        %v9113 = vshra.s32 %v8045, 3
        %v9114 = vshra.s32 %v8046, 3
        %v9115 = vshra.s32 %v8047, 3
        %v9116 = vshra.s32 %v8048, 3
        %v9117 = vshra.s32 %v8049, 3
        %v9118 = vshra.s32 %v8050, 3
        %v9119 = vshra.s32 %v8051, 3
        %v9120 = vshra.s32 %v8052, 3
        %v9121 = vshra.s32 %v8053, 3
        %v9122 = vshra.s32 %v8054, 3
        %v9123 = vshra.s32 %v8055, 3
        %v9124 = vshra.s32 %v8056, 3
        %v9125 = vshra.s32 %v8057, 3
        %v9126 = vshra.s32 %v8058, 3
        %v9127 = vshra.s32 %v8059, 3
        %v9128 = vshra.s32 %v8060, 3
        %v9129 = vshra.s32 %v8061, 3
        %v9130 = vshra.s32 %v8062, 3
        %v9131 = vshra.s32 %v8063, 3
        %v9132 = vshra.s32 %v8064, 3
        %v9133 = vshra.s32 %v8065, 3
        %v9134 = vshra.s32 %v8066, 3
        %v9135 = vshra.s32 %v8067, 3
        %v9136 = vshra.s32 %v8068, 3
        %v9137 = vshra.s32 %v8069, 3
        %v9138 = vshra.s32 %v8070, 3
        %v9139 = vshra.s32 %v8071, 3
        %v9140 = vshra.s32 %v8072, 3
        %v9141 = vmul.u32 %v9077, 2
        %v9142 = vmul.u32 %v9078, 2
        %v9143 = vmul.u32 %v9079, 2
        %v9144 = vmul.u32 %v9080, 2
        %v9145 = vmul.u32 %v9081, 2
        %v9146 = vmul.u32 %v9082, 2
        %v9147 = vmul.u32 %v9083, 2
        %v9148 = vmul.u32 %v9084, 2
        %v9149 = vmul.u32 %v9085, 2
        %v9150 = vmul.u32 %v9086, 2
        %v9151 = vmul.u32 %v9087, 2
        %v9152 = vmul.u32 %v9088, 2
        %v9153 = vmul.u32 %v9089, 2
        %v9154 = vmul.u32 %v9090, 2
        %v9155 = vmul.u32 %v9091, 2
        %v9156 = vmul.u32 %v9092, 2
        %v9157 = vmul.u32 %v9093, 2
        %v9158 = vmul.u32 %v9094, 2
        %v9159 = vmul.u32 %v9095, 2
        %v9160 = vmul.u32 %v9096, 2
        %v9161 = vmul.u32 %v9097, 2
        %v9162 = vmul.u32 %v9098, 2
        %v9163 = vmul.u32 %v9099, 2
        %v9164 = vmul.u32 %v9100, 2
        %v9165 = vmul.u32 %v9101, 2
        %v9166 = vmul.u32 %v9102, 2
        %v9167 = vmul.u32 %v9103, 2
        %v9168 = vmul.u32 %v9104, 2
        %v9169 = vmul.u32 %v9105, 2
        %v9170 = vmul.u32 %v9106, 2
        %v9171 = vmul.u32 %v9107, 2
        %v9172 = vmul.u32 %v9108, 2
        %v9173 = vadd.s32 %v9141, %v9109
        %v9174 = vadd.s32 %v9142, %v9110
        %v9175 = vadd.s32 %v9143, %v9111
        %v9176 = vadd.s32 %v9144, %v9112
        %v9177 = vadd.s32 %v9145, %v9113
        %v9178 = vadd.s32 %v9146, %v9114
        %v9179 = vadd.s32 %v9147, %v9115
        %v9180 = vadd.s32 %v9148, %v9116
        %v9181 = vadd.s32 %v9149, %v9117
        %v9182 = vadd.s32 %v9150, %v9118
        %v9183 = vadd.s32 %v9151, %v9119
        %v9184 = vadd.s32 %v9152, %v9120
        %v9185 = vadd.s32 %v9153, %v9121
        %v9186 = vadd.s32 %v9154, %v9122
        %v9187 = vadd.s32 %v9155, %v9123
        %v9188 = vadd.s32 %v9156, %v9124
        %v9189 = vadd.s32 %v9157, %v9125
        %v9190 = vadd.s32 %v9158, %v9126
        %v9191 = vadd.s32 %v9159, %v9127
        %v9192 = vadd.s32 %v9160, %v9128
        %v9193 = vadd.s32 %v9161, %v9129
        %v9194 = vadd.s32 %v9162, %v9130
        %v9195 = vadd.s32 %v9163, %v9131
        %v9196 = vadd.s32 %v9164, %v9132
        %v9197 = vadd.s32 %v9165, %v9133
        %v9198 = vadd.s32 %v9166, %v9134
        %v9199 = vadd.s32 %v9167, %v9135
        %v9200 = vadd.s32 %v9168, %v9136
        %v9201 = vadd.s32 %v9169, %v9137
        %v9202 = vadd.s32 %v9170, %v9138
        %v9203 = vadd.s32 %v9171, %v9139
        %v9204 = vadd.s32 %v9172, %v9140
        %vm9205 = vcmp.eq.s32.totalorder %v8008, %v9173
        %vm9206 = vcmp.eq.s32.totalorder %v8008, %v9174
        %vm9207 = vcmp.eq.s32.totalorder %v8008, %v9175
        %vm9208 = vcmp.eq.s32.totalorder %v8008, %v9176
        %vm9209 = vcmp.eq.s32.totalorder %v8008, %v9177
        %vm9210 = vcmp.eq.s32.totalorder %v8008, %v9178
        %vm9211 = vcmp.eq.s32.totalorder %v8008, %v9179
        %vm9212 = vcmp.eq.s32.totalorder %v8008, %v9180
        %vm9213 = vcmp.eq.s32.totalorder %v8008, %v9181
        %vm9214 = vcmp.eq.s32.totalorder %v8008, %v9182
        %vm9215 = vcmp.eq.s32.totalorder %v8008, %v9183
        %vm9216 = vcmp.eq.s32.totalorder %v8008, %v9184
        %vm9217 = vcmp.eq.s32.totalorder %v8008, %v9185
        %vm9218 = vcmp.eq.s32.totalorder %v8008, %v9186
        %vm9219 = vcmp.eq.s32.totalorder %v8008, %v9187
        %vm9220 = vcmp.eq.s32.totalorder %v8008, %v9188
        %vm9221 = vcmp.eq.s32.totalorder %v8008, %v9189
        %vm9222 = vcmp.eq.s32.totalorder %v8008, %v9190
        %vm9223 = vcmp.eq.s32.totalorder %v8008, %v9191
        %vm9224 = vcmp.eq.s32.totalorder %v8008, %v9192
        %vm9225 = vcmp.eq.s32.totalorder %v8008, %v9193
        %vm9226 = vcmp.eq.s32.totalorder %v8008, %v9194
        %vm9227 = vcmp.eq.s32.totalorder %v8008, %v9195
        %vm9228 = vcmp.eq.s32.totalorder %v8008, %v9196
        %vm9229 = vcmp.eq.s32.totalorder %v8008, %v9197
        %vm9230 = vcmp.eq.s32.totalorder %v8008, %v9198
        %vm9231 = vcmp.eq.s32.totalorder %v8008, %v9199
        %vm9232 = vcmp.eq.s32.totalorder %v8008, %v9200
        %vm9233 = vcmp.eq.s32.totalorder %v8008, %v9201
        %vm9234 = vcmp.eq.s32.totalorder %v8008, %v9202
        %vm9235 = vcmp.eq.s32.totalorder %v8008, %v9203
        %vm9236 = vcmp.eq.s32.totalorder %v8008, %v9204
        %v9237 = vsel %vm9205, 1.0, 0.0
        %v9238 = vsel %vm9206, 1.0, 0.0
        %v9239 = vsel %vm9207, 1.0, 0.0
        %v9240 = vsel %vm9208, 1.0, 0.0
        %v9241 = vsel %vm9209, 1.0, 0.0
        %v9242 = vsel %vm9210, 1.0, 0.0
        %v9243 = vsel %vm9211, 1.0, 0.0
        %v9244 = vsel %vm9212, 1.0, 0.0
        %v9245 = vsel %vm9213, 1.0, 0.0
        %v9246 = vsel %vm9214, 1.0, 0.0
        %v9247 = vsel %vm9215, 1.0, 0.0
        %v9248 = vsel %vm9216, 1.0, 0.0
        %v9249 = vsel %vm9217, 1.0, 0.0
        %v9250 = vsel %vm9218, 1.0, 0.0
        %v9251 = vsel %vm9219, 1.0, 0.0
        %v9252 = vsel %vm9220, 1.0, 0.0
        %v9253 = vsel %vm9221, 1.0, 0.0
        %v9254 = vsel %vm9222, 1.0, 0.0
        %v9255 = vsel %vm9223, 1.0, 0.0
        %v9256 = vsel %vm9224, 1.0, 0.0
        %v9257 = vsel %vm9225, 1.0, 0.0
        %v9258 = vsel %vm9226, 1.0, 0.0
        %v9259 = vsel %vm9227, 1.0, 0.0
        %v9260 = vsel %vm9228, 1.0, 0.0
        %v9261 = vsel %vm9229, 1.0, 0.0
        %v9262 = vsel %vm9230, 1.0, 0.0
        %v9263 = vsel %vm9231, 1.0, 0.0
        %v9264 = vsel %vm9232, 1.0, 0.0
        %v9265 = vsel %vm9233, 1.0, 0.0
        %v9266 = vsel %vm9234, 1.0, 0.0
        %v9267 = vsel %vm9235, 1.0, 0.0
        %v9268 = vsel %vm9236, 1.0, 0.0
        %v9269 = vld [vmem:[#allocation12] sm:$0xf]
        %v9271 = vsel %vm370, %v9237, 0
        %v9274 = vsel %vm370, %v9238, 0
        %v9277 = vsel %vm370, %v9239, 0
        %v9280 = vsel %vm370, %v9240, 0
        %v9283 = vsel %vm370, %v9241, 0
        %v9286 = vsel %vm370, %v9242, 0
        %v9289 = vsel %vm370, %v9243, 0
        %v9292 = vsel %vm370, %v9244, 0
        %v9295 = vsel %vm370, %v9245, 0
        %v9298 = vsel %vm370, %v9246, 0
        %v9301 = vsel %vm370, %v9247, 0
        %v9304 = vsel %vm370, %v9248, 0
        %v9307 = vsel %vm370, %v9249, 0
        %v9310 = vsel %vm370, %v9250, 0
        %v9313 = vsel %vm370, %v9251, 0
        %v9316 = vsel %vm370, %v9252, 0
        %v9319 = vsel %vm370, %v9253, 0
        %v9322 = vsel %vm370, %v9254, 0
        %v9325 = vsel %vm370, %v9255, 0
        %v9328 = vsel %vm370, %v9256, 0
        %v9331 = vsel %vm370, %v9257, 0
        %v9334 = vsel %vm370, %v9258, 0
        %v9337 = vsel %vm370, %v9259, 0
        %v9340 = vsel %vm370, %v9260, 0
        %v9343 = vsel %vm370, %v9261, 0
        %v9346 = vsel %vm370, %v9262, 0
        %v9349 = vsel %vm370, %v9263, 0
        %v9352 = vsel %vm370, %v9264, 0
        %v9355 = vsel %vm370, %v9265, 0
        %v9358 = vsel %vm370, %v9266, 0
        %v9361 = vsel %vm370, %v9267, 0
        %v9364 = vsel %vm370, %v9268, 0
        %v9367 = vsel %vm690, %v9269, 0
        %9369 = vmatprep.subr.mxu0 0.0
        %9370 = vmatpush1.msra.mxu0 %v9367
        %9371 = vmatprep.subr.mxu0 0.0
        %9372 = vmatpush1.msra.mxu0 0.0
        %9373 = vmatprep.subr.mxu0 0.0
        %9374 = vmatpush1.msra.mxu0 0.0
        %9375 = vmatprep.subr.mxu0 0.0
        %9376 = vmatpush1.msra.mxu0 0.0
        %9377 = vmatprep.subr.mxu0 0.0
        %9378 = vmatpush1.msra.mxu0 0.0
        %9379 = vmatprep.subr.mxu0 0.0
        %9380 = vmatpush1.msra.mxu0 0.0
        %9381 = vmatprep.subr.mxu0 0.0
        %9382 = vmatpush1.msra.mxu0 0.0
        %9383 = vmatprep.subr.mxu0 0.0
        %9384 = vmatpush1.msra.mxu0 0.0
        %9385 = vmatprep.subr.mxu0 0.0
        %9386 = vmatpush1.msra.mxu0 0.0
        %9387 = vmatprep.subr.mxu0 0.0
        %9388 = vmatpush1.msra.mxu0 0.0
        %9389 = vmatprep.subr.mxu0 0.0
        %9390 = vmatpush1.msra.mxu0 0.0
        %9391 = vmatprep.subr.mxu0 0.0
        %9392 = vmatpush1.msra.mxu0 0.0
        %9393 = vmatprep.subr.mxu0 0.0
        %9394 = vmatpush1.msra.mxu0 0.0
        %9395 = vmatprep.subr.mxu0 0.0
        %9396 = vmatpush1.msra.mxu0 0.0
        %9397 = vmatprep.subr.mxu0 0.0
        %9398 = vmatpush1.msra.mxu0 0.0
        %9399 = vmatprep.subr.mxu0 0.0
        %9400 = vmatpush1.msra.mxu0 0.0
        %9401 = vmatprep.subr.mxu0 0.0
        %9402 = vmatpush1.msra.mxu0 0.0
        %9403 = vmatprep.subr.mxu0 0.0
        %9404 = vmatpush1.msra.mxu0 0.0
        %9405 = vmatprep.subr.mxu0 0.0
        %9406 = vmatpush1.msra.mxu0 0.0
        %9407 = vmatprep.subr.mxu0 0.0
        %9408 = vmatpush1.msra.mxu0 0.0
        %9409 = vmatprep.subr.mxu0 0.0
        %9410 = vmatpush1.msra.mxu0 0.0
        %9411 = vmatprep.subr.mxu0 0.0
        %9412 = vmatpush1.msra.mxu0 0.0
        %9413 = vmatprep.subr.mxu0 0.0
        %9414 = vmatpush1.msra.mxu0 0.0
        %9415 = vmatprep.subr.mxu0 0.0
        %9416 = vmatpush1.msra.mxu0 0.0
        %9417 = vmatprep.subr.mxu0 0.0
        %9418 = vmatpush1.msra.mxu0 0.0
        %9419 = vmatprep.subr.mxu0 0.0
        %9420 = vmatpush1.msra.mxu0 0.0
        %9421 = vmatprep.subr.mxu0 0.0
        %9422 = vmatpush1.msra.mxu0 0.0
        %9423 = vmatprep.subr.mxu0 0.0
        %9424 = vmatpush1.msra.mxu0 0.0
        %9425 = vmatprep.subr.mxu0 0.0
        %9426 = vmatpush1.msra.mxu0 0.0
        %9427 = vmatprep.subr.mxu0 0.0
        %9428 = vmatpush1.msra.mxu0 0.0
        %9429 = vmatprep.subr.mxu0 0.0
        %9430 = vmatpush1.msra.mxu0 0.0
        %9431 = vmatprep.subr.mxu0 0.0
        %9432 = vmatpush1.msra.mxu0 0.0
        %9433 = vmatprep.mubr.f32.mxu0 0.0
        %9434 = vmatmul.mubr.f32.gmra.mrb[0].mxu0 %v9271
        %v9435 = vpop.f32.mrb[0].mxu0
        %v9436 = vadd.f32 0.0, %v9435
        %v9437 = vpop.f32.mrb[0].mxu0
        %9438 = vmatprep.mubr.f32.mxu0 0.0
        %9439 = vmatmul.mubr.f32.gmra.mrb[0].mxu0 %v9274
        %v9440 = vpop.f32.mrb[0].mxu0
        %v9441 = vadd.f32 0.0, %v9440
        %v9442 = vpop.f32.mrb[0].mxu0
        %9443 = vmatprep.mubr.f32.mxu0 0.0
        %9444 = vmatmul.mubr.f32.gmra.mrb[0].mxu0 %v9277
        %v9445 = vpop.f32.mrb[0].mxu0
        %v9446 = vadd.f32 0.0, %v9445
        %v9447 = vpop.f32.mrb[0].mxu0
        %9448 = vmatprep.mubr.f32.mxu0 0.0
        %9449 = vmatmul.mubr.f32.gmra.mrb[0].mxu0 %v9280
        %v9450 = vpop.f32.mrb[0].mxu0
        %v9451 = vadd.f32 0.0, %v9450
        %v9452 = vpop.f32.mrb[0].mxu0
        %9453 = vmatprep.mubr.f32.mxu0 0.0
        %9454 = vmatmul.mubr.f32.gmra.mrb[0].mxu0 %v9283
        %v9455 = vpop.f32.mrb[0].mxu0
        %v9456 = vadd.f32 0.0, %v9455
        %v9457 = vpop.f32.mrb[0].mxu0
        %9458 = vmatprep.mubr.f32.mxu0 0.0
        %9459 = vmatmul.mubr.f32.gmra.mrb[0].mxu0 %v9286
        %v9460 = vpop.f32.mrb[0].mxu0
        %v9461 = vadd.f32 0.0, %v9460
        %v9462 = vpop.f32.mrb[0].mxu0
        %9463 = vmatprep.mubr.f32.mxu0 0.0
        %9464 = vmatmul.mubr.f32.gmra.mrb[0].mxu0 %v9289
        %v9465 = vpop.f32.mrb[0].mxu0
        %v9466 = vadd.f32 0.0, %v9465
        %v9467 = vpop.f32.mrb[0].mxu0
        %9468 = vmatprep.mubr.f32.mxu0 0.0
        %9469 = vmatmul.mubr.f32.gmra.mrb[0].mxu0 %v9292
        %v9470 = vpop.f32.mrb[0].mxu0
        %v9471 = vadd.f32 0.0, %v9470
        %v9472 = vpop.f32.mrb[0].mxu0
        %9473 = vmatprep.mubr.f32.mxu0 0.0
        %9474 = vmatmul.mubr.f32.gmra.mrb[0].mxu0 %v9295
        %v9475 = vpop.f32.mrb[0].mxu0
        %v9476 = vadd.f32 0.0, %v9475
        %v9477 = vpop.f32.mrb[0].mxu0
        %9478 = vmatprep.mubr.f32.mxu0 0.0
        %9479 = vmatmul.mubr.f32.gmra.mrb[0].mxu0 %v9298
        %v9480 = vpop.f32.mrb[0].mxu0
        %v9481 = vadd.f32 0.0, %v9480
        %v9482 = vpop.f32.mrb[0].mxu0
        %9483 = vmatprep.mubr.f32.mxu0 0.0
        %9484 = vmatmul.mubr.f32.gmra.mrb[0].mxu0 %v9301
        %v9485 = vpop.f32.mrb[0].mxu0
        %v9486 = vadd.f32 0.0, %v9485
        %v9487 = vpop.f32.mrb[0].mxu0
        %9488 = vmatprep.mubr.f32.mxu0 0.0
        %9489 = vmatmul.mubr.f32.gmra.mrb[0].mxu0 %v9304
        %v9490 = vpop.f32.mrb[0].mxu0
        %v9491 = vadd.f32 0.0, %v9490
        %v9492 = vpop.f32.mrb[0].mxu0
        %9493 = vmatprep.mubr.f32.mxu0 0.0
        %9494 = vmatmul.mubr.f32.gmra.mrb[0].mxu0 %v9307
        %v9495 = vpop.f32.mrb[0].mxu0
        %v9496 = vadd.f32 0.0, %v9495
        %v9497 = vpop.f32.mrb[0].mxu0
        %9498 = vmatprep.mubr.f32.mxu0 0.0
        %9499 = vmatmul.mubr.f32.gmra.mrb[0].mxu0 %v9310
        %v9500 = vpop.f32.mrb[0].mxu0
        %v9501 = vadd.f32 0.0, %v9500
        %v9502 = vpop.f32.mrb[0].mxu0
        %9503 = vmatprep.mubr.f32.mxu0 0.0
        %9504 = vmatmul.mubr.f32.gmra.mrb[0].mxu0 %v9313
        %v9505 = vpop.f32.mrb[0].mxu0
        %v9506 = vadd.f32 0.0, %v9505
        %v9507 = vpop.f32.mrb[0].mxu0
        %9508 = vmatprep.mubr.f32.mxu0 0.0
        %9509 = vmatmul.mubr.f32.gmra.mrb[0].mxu0 %v9316
        %v9510 = vpop.f32.mrb[0].mxu0
        %v9511 = vadd.f32 0.0, %v9510
        %v9512 = vpop.f32.mrb[0].mxu0
        %9513 = vmatprep.mubr.f32.mxu0 0.0
        %9514 = vmatmul.mubr.f32.gmra.mrb[0].mxu0 %v9319
        %v9515 = vpop.f32.mrb[0].mxu0
        %v9516 = vadd.f32 0.0, %v9515
        %v9517 = vpop.f32.mrb[0].mxu0
        %9518 = vmatprep.mubr.f32.mxu0 0.0
        %9519 = vmatmul.mubr.f32.gmra.mrb[0].mxu0 %v9322
        %v9520 = vpop.f32.mrb[0].mxu0
        %v9521 = vadd.f32 0.0, %v9520
        %v9522 = vpop.f32.mrb[0].mxu0
        %9523 = vmatprep.mubr.f32.mxu0 0.0
        %9524 = vmatmul.mubr.f32.gmra.mrb[0].mxu0 %v9325
        %v9525 = vpop.f32.mrb[0].mxu0
        %v9526 = vadd.f32 0.0, %v9525
        %v9527 = vpop.f32.mrb[0].mxu0
        %9528 = vmatprep.mubr.f32.mxu0 0.0
        %9529 = vmatmul.mubr.f32.gmra.mrb[0].mxu0 %v9328
        %v9530 = vpop.f32.mrb[0].mxu0
        %v9531 = vadd.f32 0.0, %v9530
        %v9532 = vpop.f32.mrb[0].mxu0
        %9533 = vmatprep.mubr.f32.mxu0 0.0
        %9534 = vmatmul.mubr.f32.gmra.mrb[0].mxu0 %v9331
        %v9535 = vpop.f32.mrb[0].mxu0
        %v9536 = vadd.f32 0.0, %v9535
        %v9537 = vpop.f32.mrb[0].mxu0
        %9538 = vmatprep.mubr.f32.mxu0 0.0
        %9539 = vmatmul.mubr.f32.gmra.mrb[0].mxu0 %v9334
        %v9540 = vpop.f32.mrb[0].mxu0
        %v9541 = vadd.f32 0.0, %v9540
        %v9542 = vpop.f32.mrb[0].mxu0
        %9543 = vmatprep.mubr.f32.mxu0 0.0
        %9544 = vmatmul.mubr.f32.gmra.mrb[0].mxu0 %v9337
        %v9545 = vpop.f32.mrb[0].mxu0
        %v9546 = vadd.f32 0.0, %v9545
        %v9547 = vpop.f32.mrb[0].mxu0
        %9548 = vmatprep.mubr.f32.mxu0 0.0
        %9549 = vmatmul.mubr.f32.gmra.mrb[0].mxu0 %v9340
        %v9550 = vpop.f32.mrb[0].mxu0
        %v9551 = vadd.f32 0.0, %v9550
        %v9552 = vpop.f32.mrb[0].mxu0
        %9553 = vmatprep.mubr.f32.mxu0 0.0
        %9554 = vmatmul.mubr.f32.gmra.mrb[0].mxu0 %v9343
        %v9555 = vpop.f32.mrb[0].mxu0
        %v9556 = vadd.f32 0.0, %v9555
        %v9557 = vpop.f32.mrb[0].mxu0
        %9558 = vmatprep.mubr.f32.mxu0 0.0
        %9559 = vmatmul.mubr.f32.gmra.mrb[0].mxu0 %v9346
        %v9560 = vpop.f32.mrb[0].mxu0
        %v9561 = vadd.f32 0.0, %v9560
        %v9562 = vpop.f32.mrb[0].mxu0
        %9563 = vmatprep.mubr.f32.mxu0 0.0
        %9564 = vmatmul.mubr.f32.gmra.mrb[0].mxu0 %v9349
        %v9565 = vpop.f32.mrb[0].mxu0
        %v9566 = vadd.f32 0.0, %v9565
        %v9567 = vpop.f32.mrb[0].mxu0
        %9568 = vmatprep.mubr.f32.mxu0 0.0
        %9569 = vmatmul.mubr.f32.gmra.mrb[0].mxu0 %v9352
        %v9570 = vpop.f32.mrb[0].mxu0
        %v9571 = vadd.f32 0.0, %v9570
        %v9572 = vpop.f32.mrb[0].mxu0
        %9573 = vmatprep.mubr.f32.mxu0 0.0
        %9574 = vmatmul.mubr.f32.gmra.mrb[0].mxu0 %v9355
        %v9575 = vpop.f32.mrb[0].mxu0
        %v9576 = vadd.f32 0.0, %v9575
        %v9577 = vpop.f32.mrb[0].mxu0
        %9578 = vmatprep.mubr.f32.mxu0 0.0
        %9579 = vmatmul.mubr.f32.gmra.mrb[0].mxu0 %v9358
        %v9580 = vpop.f32.mrb[0].mxu0
        %v9581 = vadd.f32 0.0, %v9580
        %v9582 = vpop.f32.mrb[0].mxu0
        %9583 = vmatprep.mubr.f32.mxu0 0.0
        %9584 = vmatmul.mubr.f32.gmra.mrb[0].mxu0 %v9361
        %v9585 = vpop.f32.mrb[0].mxu0
        %v9586 = vadd.f32 0.0, %v9585
        %v9587 = vpop.f32.mrb[0].mxu0
        %9588 = vmatprep.mubr.f32.mxu0 0.0
        %9589 = vmatmul.mubr.f32.gmra.mrb[0].mxu0 %v9364
        %v9590 = vpop.f32.mrb[0].mxu0
        %v9591 = vadd.f32 0.0, %v9590
        %v9592 = vpop.f32.mrb[0].mxu0
        %9593 = vdwg.mxu0
        %v9594 = vmul.f32 %v7942, %v8404
        %v9595 = vmul.f32 %v7943, %v8409
        %v9596 = vmul.f32 %v7944, %v8414
        %v9597 = vmul.f32 %v7945, %v8419
        %v9598 = vmul.f32 %v7946, %v8424
        %v9599 = vmul.f32 %v7947, %v8429
        %v9600 = vmul.f32 %v7948, %v8434
        %v9601 = vmul.f32 %v7949, %v8439
        %v9602 = vmul.f32 %v7950, %v8444
        %v9603 = vmul.f32 %v7951, %v8449
        %v9604 = vmul.f32 %v7952, %v8454
        %v9605 = vmul.f32 %v7953, %v8459
        %v9606 = vmul.f32 %v7954, %v8464
        %v9607 = vmul.f32 %v7955, %v8469
        %v9608 = vmul.f32 %v7956, %v8474
        %v9609 = vmul.f32 %v7957, %v8479
        %v9610 = vmul.f32 %v7958, %v8484
        %v9611 = vmul.f32 %v7959, %v8489
        %v9612 = vmul.f32 %v7960, %v8494
        %v9613 = vmul.f32 %v7961, %v8499
        %v9614 = vmul.f32 %v7962, %v8504
        %v9615 = vmul.f32 %v7963, %v8509
        %v9616 = vmul.f32 %v7964, %v8514
        %v9617 = vmul.f32 %v7965, %v8519
        %v9618 = vmul.f32 %v7966, %v8524
        %v9619 = vmul.f32 %v7967, %v8529
        %v9620 = vmul.f32 %v7968, %v8534
        %v9621 = vmul.f32 %v7969, %v8539
        %v9622 = vmul.f32 %v7970, %v8544
        %v9623 = vmul.f32 %v7971, %v8549
        %v9624 = vmul.f32 %v7972, %v8554
        %v9625 = vmul.f32 %v7973, %v8559
        %v9626 = vmul.f32 %v9594, %v8919
        %v9627 = vmul.f32 %v9595, %v8924
        %v9628 = vmul.f32 %v9596, %v8929
        %v9629 = vmul.f32 %v9597, %v8934
        %v9630 = vmul.f32 %v9598, %v8939
        %v9631 = vmul.f32 %v9599, %v8944
        %v9632 = vmul.f32 %v9600, %v8949
        %v9633 = vmul.f32 %v9601, %v8954
        %v9634 = vmul.f32 %v9602, %v8959
        %v9635 = vmul.f32 %v9603, %v8964
        %v9636 = vmul.f32 %v9604, %v8969
        %v9637 = vmul.f32 %v9605, %v8974
        %v9638 = vmul.f32 %v9606, %v8979
        %v9639 = vmul.f32 %v9607, %v8984
        %v9640 = vmul.f32 %v9608, %v8989
        %v9641 = vmul.f32 %v9609, %v8994
        %v9642 = vmul.f32 %v9610, %v8999
        %v9643 = vmul.f32 %v9611, %v9004
        %v9644 = vmul.f32 %v9612, %v9009
        %v9645 = vmul.f32 %v9613, %v9014
        %v9646 = vmul.f32 %v9614, %v9019
        %v9647 = vmul.f32 %v9615, %v9024
        %v9648 = vmul.f32 %v9616, %v9029
        %v9649 = vmul.f32 %v9617, %v9034
        %v9650 = vmul.f32 %v9618, %v9039
        %v9651 = vmul.f32 %v9619, %v9044
        %v9652 = vmul.f32 %v9620, %v9049
        %v9653 = vmul.f32 %v9621, %v9054
        %v9654 = vmul.f32 %v9622, %v9059
        %v9655 = vmul.f32 %v9623, %v9064
        %v9656 = vmul.f32 %v9624, %v9069
        %v9657 = vmul.f32 %v9625, %v9074
        %v9658 = vmul.f32 %v9626, %v9436
        %v9659 = vmul.f32 %v9627, %v9441
        %v9660 = vmul.f32 %v9628, %v9446
        %v9661 = vmul.f32 %v9629, %v9451
        %v9662 = vmul.f32 %v9630, %v9456
        %v9663 = vmul.f32 %v9631, %v9461
        %v9664 = vmul.f32 %v9632, %v9466
        %v9665 = vmul.f32 %v9633, %v9471
        %v9666 = vmul.f32 %v9634, %v9476
        %v9667 = vmul.f32 %v9635, %v9481
        %v9668 = vmul.f32 %v9636, %v9486
        %v9669 = vmul.f32 %v9637, %v9491
        %v9670 = vmul.f32 %v9638, %v9496
        %v9671 = vmul.f32 %v9639, %v9501
        %v9672 = vmul.f32 %v9640, %v9506
        %v9673 = vmul.f32 %v9641, %v9511
        %v9674 = vmul.f32 %v9642, %v9516
        %v9675 = vmul.f32 %v9643, %v9521
        %v9676 = vmul.f32 %v9644, %v9526
        %v9677 = vmul.f32 %v9645, %v9531
        %v9678 = vmul.f32 %v9646, %v9536
        %v9679 = vmul.f32 %v9647, %v9541
        %v9680 = vmul.f32 %v9648, %v9546
        %v9681 = vmul.f32 %v9649, %v9551
        %v9682 = vmul.f32 %v9650, %v9556
        %v9683 = vmul.f32 %v9651, %v9561
        %v9684 = vmul.f32 %v9652, %v9566
        %v9685 = vmul.f32 %v9653, %v9571
        %v9686 = vmul.f32 %v9654, %v9576
        %v9687 = vmul.f32 %v9655, %v9581
        %v9688 = vmul.f32 %v9656, %v9586
        %v9689 = vmul.f32 %v9657, %v9591
        %9690 = vst.msk [vmem:[%s369] sm:$0xff] %vm4437, %v9658
        %9691 = vst.msk [vmem:[%s369 + $0x8] sm:$0xff] %vm4437, %v9659
        %9692 = vst.msk [vmem:[%s369 + $0x10] sm:$0xff] %vm4437, %v9660
        %9693 = vst.msk [vmem:[%s369 + $0x18] sm:$0xff] %vm4437, %v9661
        %9694 = vst.msk [vmem:[%s369 + $0x20] sm:$0xff] %vm4437, %v9662
        %9695 = vst.msk [vmem:[%s369 + $0x28] sm:$0xff] %vm4437, %v9663
        %9696 = vst.msk [vmem:[%s369 + $0x30] sm:$0xff] %vm4437, %v9664
        %9697 = vst.msk [vmem:[%s369 + $0x38] sm:$0xff] %vm4437, %v9665
        %9698 = vst.msk [vmem:[%s369 + $0x40] sm:$0xff] %vm4437, %v9666
        %9699 = vst.msk [vmem:[%s369 + $0x48] sm:$0xff] %vm4437, %v9667
        %9700 = vst.msk [vmem:[%s369 + $0x50] sm:$0xff] %vm4437, %v9668
        %9701 = vst.msk [vmem:[%s369 + $0x58] sm:$0xff] %vm4437, %v9669
        %9702 = vst.msk [vmem:[%s369 + $0x60] sm:$0xff] %vm4437, %v9670
        %9703 = vst.msk [vmem:[%s369 + $0x68] sm:$0xff] %vm4437, %v9671
        %9704 = vst.msk [vmem:[%s369 + $0x70] sm:$0xff] %vm4437, %v9672
        %9705 = vst.msk [vmem:[%s369 + $0x78] sm:$0xff] %vm4437, %v9673
        %9706 = vst.msk [vmem:[%s369 + $0x80] sm:$0xff] %vm4437, %v9674
        %9707 = vst.msk [vmem:[%s369 + $0x88] sm:$0xff] %vm4437, %v9675
        %9708 = vst.msk [vmem:[%s369 + $0x90] sm:$0xff] %vm4437, %v9676
        %9709 = vst.msk [vmem:[%s369 + $0x98] sm:$0xff] %vm4437, %v9677
        %9710 = vst.msk [vmem:[%s369 + $0xa0] sm:$0xff] %vm4437, %v9678
        %9711 = vst.msk [vmem:[%s369 + $0xa8] sm:$0xff] %vm4437, %v9679
        %9712 = vst.msk [vmem:[%s369 + $0xb0] sm:$0xff] %vm4437, %v9680
        %9713 = vst.msk [vmem:[%s369 + $0xb8] sm:$0xff] %vm4437, %v9681
        %9714 = vst.msk [vmem:[%s369 + $0xc0] sm:$0xff] %vm4437, %v9682
        %9715 = vst.msk [vmem:[%s369 + $0xc8] sm:$0xff] %vm4437, %v9683
        %9716 = vst.msk [vmem:[%s369 + $0xd0] sm:$0xff] %vm4437, %v9684
        %9717 = vst.msk [vmem:[%s369 + $0xd8] sm:$0xff] %vm4437, %v9685
        %9718 = vst.msk [vmem:[%s369 + $0xe0] sm:$0xff] %vm4437, %v9686
        %9719 = vst.msk [vmem:[%s369 + $0xe8] sm:$0xff] %vm4437, %v9687
        %9720 = vst.msk [vmem:[%s369 + $0xf0] sm:$0xff] %vm4437, %v9688
        %9721 = vst.msk [vmem:[%s369 + $0xf8] sm:$0xff] %vm4437, %v9689
        %s9722 = sand.u32 %s227, 1
        %s9723 = scalar_lea.sflag [#allocation14], %s9722
        %s9724 = sand.u32 %s227, 1
        %s9725 = scalar_lea.vmem [#allocation13], %s9724
        %p9726 = scmp.lt.s32.totalorder %s25, 1
        %s9727 = scalar_select %p9726, %s25, 1
        %s9728 = smul.addr %s9727, 32
        %s9729 = smul.addr %s9728, 8
        %s9730 = scalar_lea.vmem %s10, %s9729
        // Predicated region
        $region57: #{tpu_custom_call.1} parent=55 // pred_check
          %p9731 = pneg %p237
        $region58: #{tpu_custom_call.1} parent=55 // pred_check_branch
          %9733 = sbr.rel (%p9731) target = $region60
        $region59: #{tpu_custom_call.1} parent=55 // pred_region
          %s9735 = ssub.s32 16, 16
          %9736 = vsyncadd %s9723, %s9735
          %s9737 = smul.addr %s25, 16
          %s9738 = scalar_lea.hbm %s9, %s9737
          %s9740 = sshll.u32 %s9725, 4
          %s9741 = int_to_ptr.vmem [resolvable:$true] %s9740
          %9743 = dma.vmem_to_hbm [thread:$0]  %s9741, 16, %s9738, %s9723
        $region60: #{tpu_custom_call.1} parent=55 // pred_fallthru
          _
        // Predicated region
        $region61: #{tpu_custom_call.1} parent=55 // pred_check
          %p9744 = pneg %p263
        $region62: #{tpu_custom_call.1} parent=55 // pred_check_branch
          %9746 = sbr.rel (%p9744) target = $region64
        $region63: #{tpu_custom_call.1} parent=55 // pred_region
          _
        $region64: #{tpu_custom_call.1} parent=55 // pred_fallthru
          _
      $region56: #{tpu_custom_call.1} parent=5 // pred_fallthru
        _
      %p9747 = scmp.le.s32.totalorder 2, %s20
      // Predicated region
      $region65: #{tpu_custom_call.1} parent=5 // pred_check
        %p9748 = pneg %p9747
      $region66: #{tpu_custom_call.1} parent=5 // pred_check_branch
        %9750 = sbr.rel (%p9748) target = $region68
      $region67: #{tpu_custom_call.1} parent=5 // pred_region
        %s9751 = ssub.s32 %s20, 2
        // Predicated region
        $region69: #{tpu_custom_call.1} parent=67 // pred_check
          %p9752 = pneg %p243
        $region70: #{tpu_custom_call.1} parent=67 // pred_check_branch
          %9754 = sbr.rel (%p9752) target = $region72
        $region71: #{tpu_custom_call.1} parent=67 // pred_region
          %s9755 = sand.u32 %s228, 1
          %s9756 = scalar_lea.sflag [#allocation14], %s9755
          %s9757 = sand.u32 %s228, 1
          %s9758 = scalar_lea.vmem [#allocation13], %s9757
          %9759 = dma.done %s9756, 16
        $region72: #{tpu_custom_call.1} parent=67 // pred_fallthru
          _
        // Predicated region
        $region73: #{tpu_custom_call.1} parent=67 // pred_check
          %p9760 = pneg %p269
        $region74: #{tpu_custom_call.1} parent=67 // pred_check_branch
          %9762 = sbr.rel (%p9760) target = $region76
        $region75: #{tpu_custom_call.1} parent=67 // pred_region
          %p9763 = scmp.lt.s32.totalorder %s26, 1
          %s9764 = scalar_select %p9763, %s26, 1
          %s9765 = smul.addr %s9764, 32
          %s9766 = smul.addr %s9765, 8
          %s9767 = scalar_lea.vmem %s10, %s9766
        $region76: #{tpu_custom_call.1} parent=67 // pred_fallthru
          _
      $region68: #{tpu_custom_call.1} parent=5 // pred_fallthru
        _
    $region6: #{tpu_custom_call.1} parent=1 // loop_footer
      %s24 = sadd.s32 1, %s20
    $region7: #{tpu_custom_call.1} parent=1 // loop_footer_branch
      %19 = sbr.rel target = $region3
    $region8: #{tpu_custom_call.1} parent=1 // loop_exit
      _
    %9768 = vsyncpa [#allocation14], 1
    %s9769 = scalar_lea.sflag [#allocation14], 1
    %9770 = vsyncpa %s9769, 1

</llo_original>
